<compile_context>
chip_gen: v5e
topology: v5e:2x2
jax: 0.10.0
libtpu: 0.0.40
codegen_flags: <defaults>
</compile_context>

<pallas_src>
import functools
import math

import jax
import jax.numpy as jnp
import numpy as np
from jax.experimental import pallas as pl
from jax.experimental.pallas import tpu as pltpu

_LANE = 128
_ROW_ALIGN = 16          # sublane tile of the bf16 staging scratch
_EPS = 1e-5


def _ceil_to(x, m):
    return ((x + m - 1) // m) * m


def _vmem_limit(nbytes):
    # Scoped-VMEM limit sized from the actual buffers (+50% head-room for
    # compiler temporaries), clamped to a safe range for v5e/v6e/v7x.
    return int(min(max(int(nbytes * 1.5) + (2 << 20), 16 << 20), 64 << 20))


# ---------------------------------------------------------------------------
# Kernel 1 (grid over batch, "parallel"):
#   BN1(precomputed scale/shift) + ReLU -> conv1 (3x3 implicit GEMM) ->
#   per-image BN2 partial sums; fused 1x1 convShortcut when in != out planes.
# One image slab = (rows, Cin_p), rows = (H+2)*(W+2) padded up to a sublane
# multiple; spatial pad-ring rows are kept at exactly 0.
# ---------------------------------------------------------------------------
def _front_kernel(*refs, taps, guard, rows, has_shortcut):
    if has_shortcut:
        (x_ref, s1_ref, t1_ref, w1_ref, wsc_ref, mint_ref, msel_ref,
         out1_ref, stat_ref, sc_ref, hbuf_ref, acc_ref) = refs
    else:
        (x_ref, s1_ref, t1_ref, w1_ref, mint_ref, msel_ref,
         out1_ref, stat_ref, hbuf_ref, acc_ref) = refs

    # BN1 (batch stats folded into scale/shift on the host) + ReLU, f32 VPU
    # math; the interior mask re-zeroes the spatial pad ring.
    h = jnp.maximum(x_ref[...] * s1_ref[...] + t1_ref[...], 0.0) * mint_ref[...]

    # Stage once as bf16 into the guard-padded scratch (single cast); zero only
    # the guard rows -- the interior is fully overwritten anyway.
    zeros_g = jnp.zeros((guard, hbuf_ref.shape[1]), jnp.bfloat16)
    hbuf_ref[pl.ds(0, guard), :] = zeros_g
    hbuf_ref[pl.ds(guard + rows, guard), :] = zeros_g
    hbuf_ref[pl.ds(guard, rows), :] = h.astype(jnp.bfloat16)

    # conv1 as 9 row-shifted tap GEMMs (implicit im2col); f32 accumulation into
    # a VMEM scratch ref (first tap overwrites, the rest accumulate in place).
    t0, off0 = taps[0]
    acc_ref[...] = jnp.dot(hbuf_ref[pl.ds(guard + off0, rows), :], w1_ref[t0],
                           preferred_element_type=jnp.float32)
    for t, off in taps[1:]:
        acc_ref[...] += jnp.dot(hbuf_ref[pl.ds(guard + off, rows), :],
                                w1_ref[t], preferred_element_type=jnp.float32)

    msel = msel_ref[...]
    y = acc_ref[...] * msel            # keep only stride-selected positions
    out1_ref[...] = y.astype(jnp.bfloat16)

    # Per-image partial sums for BN2 batch statistics (finalized on the host).
    stat_ref[0:1, :] = jnp.sum(y, axis=0, keepdims=True)
    stat_ref[1:2, :] = jnp.sum(y * y, axis=0, keepdims=True)

    if has_shortcut:
        # 1x1 stride-s shortcut conv; its LHS is read back from the bf16 scratch.
        sc_ref[...] = jnp.dot(hbuf_ref[pl.ds(guard, rows), :], wsc_ref[...],
                              preferred_element_type=jnp.float32) * msel


# ---------------------------------------------------------------------------
# Kernel 2 (grid over batch, "parallel"):
#   BN2 + ReLU -> conv2 (3x3 stride-1 implicit GEMM) -> fused residual add.
# ---------------------------------------------------------------------------
def _back_kernel(z_ref, s2_ref, t2_ref, w2_ref, res_ref, mint_ref, out_ref,
                 hbuf_ref, acc_ref, *, taps, guard, rows):
    h = jnp.maximum(z_ref[...].astype(jnp.float32) * s2_ref[...] + t2_ref[...],
                    0.0) * mint_ref[...]
    # TODO(synk): dropout (drop_rate > 0) would be applied to h here.

    zeros_g = jnp.zeros((guard, hbuf_ref.shape[1]), jnp.bfloat16)
    hbuf_ref[pl.ds(0, guard), :] = zeros_g
    hbuf_ref[pl.ds(guard + rows, guard), :] = zeros_g
    hbuf_ref[pl.ds(guard, rows), :] = h.astype(jnp.bfloat16)

    t0, off0 = taps[0]
    acc_ref[...] = jnp.dot(hbuf_ref[pl.ds(guard + off0, rows), :], w2_ref[t0],
                           preferred_element_type=jnp.float32)
    for t, off in taps[1:]:
        acc_ref[...] += jnp.dot(hbuf_ref[pl.ds(guard + off, rows), :],
                                w2_ref[t], preferred_element_type=jnp.float32)

    # Fused residual add; interior mask zeroes the (garbage) pad-ring rows.
    out_ref[...] = acc_ref[...] * mint_ref[...] + res_ref[...]


# ---------------------------------------------------------------------------
# Parameter packing / init (weights pre-packed once to bf16 MXU layout).
# ---------------------------------------------------------------------------
def _pack3x3(w_oihw, cin_p, cout_p):
    cout, cin, kh, kw = w_oihw.shape
    w = jnp.transpose(w_oihw, (2, 3, 1, 0)).reshape(kh * kw, cin, cout)
    w = jnp.pad(w, ((0, 0), (0, cin_p - cin), (0, cout_p - cout)))
    return w.astype(jnp.bfloat16)


def _pack1x1(w_oihw, cin_p, cout_p):
    cout, cin, _, _ = w_oihw.shape
    w = jnp.transpose(w_oihw, (1, 0, 2, 3)).reshape(cin, cout)
    w = jnp.pad(w, ((0, cin_p - cin), (0, cout_p - cout)))
    return w.astype(jnp.bfloat16)


def init_basic_block(key, in_planes, out_planes, stride, drop_rate=0.0):
    cin_p = _ceil_to(in_planes, _LANE)
    cout_p = _ceil_to(out_planes, _LANE)
    k1, k2, k3 = jax.random.split(key, 3)

    def conv_init(k, cout, cin, ksz):
        n = ksz * ksz * cout
        return jax.random.normal(k, (cout, cin, ksz, ksz),
                                 jnp.float32) * math.sqrt(2.0 / n)

    equal = in_planes == out_planes
    params = {
        "in_planes": in_planes,
        "out_planes": out_planes,
        "stride": stride,
        "equal": equal,
        "drop_rate": drop_rate,
        "cin_p": cin_p,
        "cout_p": cout_p,
        # BatchNorm2d defaults (weight=1, bias=0), stored unpadded.
        "g1": jnp.ones((in_planes,), jnp.float32),
        "b1": jnp.zeros((in_planes,), jnp.float32),
        "g2": jnp.ones((out_planes,), jnp.float32),
        "b2": jnp.zeros((out_planes,), jnp.float32),
        # Conv weights pre-packed once: (tap, Cin_p, Cout_p) bf16 for the MXU.
        "w1": _pack3x3(conv_init(k1, out_planes, in_planes, 3), cin_p, cout_p),
        "w2": _pack3x3(conv_init(k2, out_planes, out_planes, 3), cout_p, cout_p),
    }
    if not equal:
        params["wsc"] = _pack1x1(conv_init(k3, out_planes, in_planes, 1),
                                 cin_p, cout_p)
    return params


# ---------------------------------------------------------------------------
# Host-side glue.
# ---------------------------------------------------------------------------
def _row_masks(H, W, stride, Ho, Wo):
    """Interior / stride-selected row masks over one padded (H+2, W+2) image."""
    Hp, Wp = H + 2, W + 2
    h = np.arange(Hp)
    w = np.arange(Wp)
    int_h = (h >= 1) & (h <= H)
    int_w = (w >= 1) & (w <= W)
    sel_h = int_h & ((h - 1) % stride == 0) & ((h - 1) // stride < Ho)
    sel_w = int_w & ((w - 1) % stride == 0) & ((w - 1) // stride < Wo)
    m_int = (int_h[:, None] & int_w[None, :]).astype(np.float32).reshape(-1, 1)
    m_sel = (sel_h[:, None] & sel_w[None, :]).astype(np.float32).reshape(-1, 1)
    return m_int, m_sel


def basic_block_forward(params, x_nchw):
    """Forward pass of the pre-activation BasicBlock (training-mode BatchNorm)."""
    N, Cin, H, W = x_nchw.shape
    stride = params["stride"]
    equal = params["equal"]
    cin_p, cout_p = params["cin_p"], params["cout_p"]
    out_planes = params["out_planes"]
    assert Cin == params["in_planes"]
    if equal:
        assert stride == 1, "identity shortcut requires stride == 1"

    Ho = (H - 1) // stride + 1
    Wo = (W - 1) // stride + 1
    Hp, Wp = H + 2, W + 2
    Hop, Wop = Ho + 2, Wo + 2

    # ---- BN1 batch statistics: cheap XLA pre-pass, folded into scale/shift ----
    xf = x_nchw.astype(jnp.float32)
    mean1 = jnp.mean(xf, axis=(0, 2, 3))
    var1 = jnp.maximum(jnp.mean(xf * xf, axis=(0, 2, 3)) - mean1 * mean1, 0.0)
    inv1 = jax.lax.rsqrt(var1 + _EPS)
    s1v = params["g1"] * inv1
    scale1 = jnp.pad(s1v, (0, cin_p - Cin)).reshape(1, cin_p)
    shift1 = jnp.pad(params["b1"] - mean1 * s1v,
                     (0, cin_p - Cin)).reshape(1, cin_p)

    # ---- per-image padded slab layout (rows = padded spatial positions) ----
    # NOTE: in a stacked WRN the NCHW<->slab conversion below would be hoisted
    # out and the slab layout kept resident across blocks.
    R1_raw = Hp * Wp
    R1 = _ceil_to(R1_raw, _ROW_ALIGN)
    x = jnp.transpose(xf, (0, 2, 3, 1))                              # NHWC
    x = jnp.pad(x, ((0, 0), (1, 1), (1, 1), (0, cin_p - Cin)))
    x_slab = jnp.pad(x.reshape(N, R1_raw, cin_p),
                     ((0, 0), (0, R1 - R1_raw), (0, 0)))

    m_int1, m_sel1 = _row_masks(H, W, stride, Ho, Wo)
    m_int1 = jnp.asarray(np.pad(m_int1, ((0, R1 - R1_raw), (0, 0))))
    m_sel1 = jnp.asarray(np.pad(m_sel1, ((0, R1 - R1_raw), (0, 0))))

    guard1 = _ceil_to(Wp + 1, _ROW_ALIGN)
    taps1 = tuple((t, (t // 3 - 1) * Wp + (t % 3 - 1)) for t in range(9))

    kernel1 = functools.partial(_front_kernel, taps=taps1, guard=guard1,
                                rows=R1, has_shortcut=not equal)

    ins = [x_slab, scale1, shift1, params["w1"]]
    in_specs = [
        pl.BlockSpec((None, R1, cin_p), lambda n: (n, 0, 0)),
        pl.BlockSpec((1, cin_p), lambda n: (0, 0)),
        pl.BlockSpec((1, cin_p), lambda n: (0, 0)),
        pl.BlockSpec((9, cin_p, cout_p), lambda n: (0, 0, 0)),
    ]
    if not equal:
        ins.append(params["wsc"])
        in_specs.append(pl.BlockSpec((cin_p, cout_p), lambda n: (0, 0)))
    ins += [m_int1, m_sel1]
    in_specs += [pl.BlockSpec((R1, 1), lambda n: (0, 0)),
                 pl.BlockSpec((R1, 1), lambda n: (0, 0))]

    out_shape1 = [jax.ShapeDtypeStruct((N, R1, cout_p), jnp.bfloat16),
                  jax.ShapeDtypeStruct((N, 2, cout_p), jnp.float32)]
    out_specs1 = [pl.BlockSpec((None, R1, cout_p), lambda n: (n, 0, 0)),
                  pl.BlockSpec((None, 2, cout_p), lambda n: (n, 0, 0))]
    if not equal:
        out_shape1.append(jax.ShapeDtypeStruct((N, R1, cout_p), jnp.float32))
        out_specs1.append(pl.BlockSpec((None, R1, cout_p), lambda n: (n, 0, 0)))

    step1 = R1 * cin_p * 4 + R1 * cout_p * 2 + 2 * cout_p * 4
    fixed1 = (params["w1"].size * 2 + 2 * cin_p * 4 + 2 * R1 * 4
              + (R1 + 2 * guard1) * cin_p * 2 + R1 * cout_p * 4)
    if not equal:
        step1 += R1 * cout_p * 4
        fixed1 += params["wsc"].size * 2
    flops1 = 2 * N * R1 * cin_p * cout_p * (9 + (0 if equal else 1))
    bytes1 = int(x_slab.size * 4 + N * R1 * cout_p * (2 + (0 if equal else 4))
                 + params["w1"].size * 2)

    res1 = pl.pallas_call(
        kernel1,
        grid=(N,),
        in_specs=in_specs,
        out_specs=tuple(out_specs1),
        out_shape=tuple(out_shape1),
        scratch_shapes=[pltpu.VMEM((R1 + 2 * guard1, cin_p), jnp.bfloat16),
                        pltpu.VMEM((R1, cout_p), jnp.float32)],
        compiler_params=pltpu.CompilerParams(
            dimension_semantics=("parallel",),
            vmem_limit_bytes=_vmem_limit(2 * step1 + fixed1)),
        cost_estimate=pl.CostEstimate(flops=flops1, transcendentals=0,
                                      bytes_accessed=bytes1),
    )(*ins)

    if equal:
        out1, stat = res1
        sc = None
    else:
        out1, stat, sc = res1

    # ---- finalize BN2 batch statistics (tiny per-channel math) ----
    cnt2 = N * Ho * Wo
    mean2 = jnp.sum(stat[:, 0, :], axis=0) / cnt2
    var2 = jnp.maximum(jnp.sum(stat[:, 1, :], axis=0) / cnt2 - mean2 * mean2,
                       0.0)
    inv2 = jax.lax.rsqrt(var2 + _EPS)
    g2p = jnp.pad(params["g2"], (0, cout_p - out_planes))
    b2p = jnp.pad(params["b2"], (0, cout_p - out_planes))
    scale2 = (g2p * inv2).reshape(1, cout_p)
    shift2 = (b2p - mean2 * g2p * inv2).reshape(1, cout_p)

    # ---- move conv1 output / shortcut to the downsampled padded grid ----
    R2_raw = Hop * Wop
    R2 = _ceil_to(R2_raw, _ROW_ALIGN)

    def _to_out_coords(slab):
        if stride == 1:
            return slab                 # coordinate spaces coincide -> no-op
        a = slab[:, :R1_raw, :].reshape(N, Hp, Wp, cout_p)
        a = a[:, 1:1 + stride * Ho:stride, 1:1 + stride * Wo:stride, :]
        a = jnp.pad(a, ((0, 0), (1, 1), (1, 1), (0, 0)))
        return jnp.pad(a.reshape(N, R2_raw, cout_p),
                       ((0, 0), (0, R2 - R2_raw), (0, 0)))

    z2 = _to_out_coords(out1)                        # bf16 conv1 output
    res = x_slab if equal else _to_out_coords(sc)    # f32 residual

    m_int2, _ = _row_masks(Ho, Wo, 1, Ho, Wo)
    m_int2 = jnp.asarray(np.pad(m_int2, ((0, R2 - R2_raw), (0, 0))))
    guard2 = _ceil_to(Wop + 1, _ROW_ALIGN)
    taps2 = tuple((t, (t // 3 - 1) * Wop + (t % 3 - 1)) for t in range(9))

    kernel2 = functools.partial(_back_kernel, taps=taps2, guard=guard2, rows=R2)

    step2 = R2 * cout_p * (2 + 4 + 4)
    fixed2 = (params["w2"].size * 2 + 2 * cout_p * 4 + R2 * 4
              + (R2 + 2 * guard2) * cout_p * 2 + R2 * cout_p * 4)
    flops2 = 2 * N * R2 * cout_p * cout_p * 9
    bytes2 = int(N * R2 * cout_p * (2 + 4 + 4) + params["w2"].size * 2)

    out = pl.pallas_call(
        kernel2,
        grid=(N,),
        in_specs=[
            pl.BlockSpec((None, R2, cout_p), lambda n: (n, 0, 0)),
            pl.BlockSpec((1, cout_p), lambda n: (0, 0)),
            pl.BlockSpec((1, cout_p), lambda n: (0, 0)),
            pl.BlockSpec((9, cout_p, cout_p), lambda n: (0, 0, 0)),
            pl.BlockSpec((None, R2, cout_p), lambda n: (n, 0, 0)),
            pl.BlockSpec((R2, 1), lambda n: (0, 0)),
        ],
        out_specs=pl.BlockSpec((None, R2, cout_p), lambda n: (n, 0, 0)),
        out_shape=jax.ShapeDtypeStruct((N, R2, cout_p), jnp.float32),
        scratch_shapes=[pltpu.VMEM((R2 + 2 * guard2, cout_p), jnp.bfloat16),
                        pltpu.VMEM((R2, cout_p), jnp.float32)],
        compiler_params=pltpu.CompilerParams(
            dimension_semantics=("parallel",),
            vmem_limit_bytes=_vmem_limit(2 * step2 + fixed2)),
        cost_estimate=pl.CostEstimate(flops=flops2, transcendentals=0,
                                      bytes_accessed=bytes2),
    )(z2, scale2, shift2, params["w2"], res, m_int2)

    # Un-pad once at the very end: rows -> NHWC interior -> NCHW.
    y = out[:, :R2_raw, :].reshape(N, Hop, Wop, cout_p)
    y = y[:, 1:1 + Ho, 1:1 + Wo, :out_planes]
    return jnp.transpose(y, (0, 3, 1, 2))


# ---------------------------------------------------------------------------
# Pure-JAX reference (same bf16-packed weights, f32 activation math).
# ---------------------------------------------------------------------------
def _reference_forward(params, x_nchw):
    stride = params["stride"]
    Cin, Cout = params["in_planes"], params["out_planes"]
    x = x_nchw.astype(jnp.float32)

    def bn(v, g, b):
        m = jnp.mean(v, axis=(0, 2, 3), keepdims=True)
        var = jnp.mean((v - m) ** 2, axis=(0, 2, 3), keepdims=True)
        return ((v - m) * jax.lax.rsqrt(var + _EPS) * g.reshape(1, -1, 1, 1)
                + b.reshape(1, -1, 1, 1))

    def conv3(v, w_packed, cin, cout, s):
        w = w_packed.astype(jnp.float32)[:, :cin, :cout].reshape(3, 3, cin, cout)
        w = jnp.transpose(w, (3, 2, 0, 1))
        return jax.lax.conv_general_dilated(
            v, w, (s, s), [(1, 1), (1, 1)],
            dimension_numbers=("NCHW", "OIHW", "NCHW"))

    h = jax.nn.relu(bn(x, params["g1"], params["b1"]))
    out = conv3(h, params["w1"], Cin, Cout, stride)
    out = jax.nn.relu(bn(out, params["g2"], params["b2"]))
    out = conv3(out, params["w2"], Cout, Cout, 1)
    if params["equal"]:
        sc = x
    else:
        wsc = params["wsc"].astype(jnp.float32)[:Cin, :Cout]
        wsc = jnp.transpose(wsc, (1, 0)).reshape(Cout, Cin, 1, 1)
        sc = jax.lax.conv_general_dilated(
            h, wsc, (stride, stride), [(0, 0), (0, 0)],
            dimension_numbers=("NCHW", "OIHW", "NCHW"))
    return sc + out


if __name__ == "__main__":
    key = jax.random.PRNGKey(0)
    k_p1, k_p2, k_x = jax.random.split(key, 3)

    x = jax.random.normal(k_x, (2, 16, 16, 16), jnp.float32)   # NCHW

    # Downsampling block (in != out, stride 2): fused 1x1 convShortcut path.
    p_down = init_basic_block(k_p1, in_planes=16, out_planes=32, stride=2)
    y_down = jax.jit(lambda a: basic_block_forward(p_down, a))(x)
    jax.block_until_ready(y_down)
    assert y_down.shape == (2, 32, 8, 8) and y_down.dtype == jnp.float32
    np.testing.assert_allclose(np.asarray(y_down),
                               np.asarray(_reference_forward(p_down, x)),
                               rtol=5e-2, atol=1e-1)

    # Identity block (in == out, stride 1): equalInOut path (residual = raw x).
    p_id = init_basic_block(k_p2, in_planes=16, out_planes=16, stride=1)
    y_id = jax.jit(lambda a: basic_block_forward(p_id, a))(x)
    jax.block_until_ready(y_id)
    assert y_id.shape == (2, 16, 16, 16) and y_id.dtype == jnp.float32
    np.testing.assert_allclose(np.asarray(y_id),
                               np.asarray(_reference_forward(p_id, x)),
                               rtol=5e-2, atol=1e-1)

    print("KERNEL_OK")
</pallas_src>

<mosaic_0001>
module attributes {stable_mosaic.version = 11 : i64} {
  func.func @_front_kernel(%arg0: i32, %arg1: memref<1x336x128xf32, #tpu.memory_space<vmem>>, %arg2: memref<1x128xf32, #tpu.memory_space<vmem>>, %arg3: memref<1x128xf32, #tpu.memory_space<vmem>>, %arg4: memref<9x128x128xbf16, #tpu.memory_space<vmem>>, %arg5: memref<128x128xbf16, #tpu.memory_space<vmem>>, %arg6: memref<336x1xf32, #tpu.memory_space<vmem>>, %arg7: memref<336x1xf32, #tpu.memory_space<vmem>>, %arg8: memref<1x336x128xbf16, #tpu.memory_space<vmem>>, %arg9: memref<1x2x128xf32, #tpu.memory_space<vmem>>, %arg10: memref<1x336x128xf32, #tpu.memory_space<vmem>>, %arg11: memref<400x128xbf16, #tpu.memory_space<vmem>>, %arg12: memref<336x128xf32, #tpu.memory_space<vmem>>) attributes {dimension_semantics = [#tpu.dimension_semantics<parallel>], iteration_bounds = array<i64: 2>, scalar_prefetch = 0 : i64, scratch_operands = 2 : i64, tpu.core_type = #tpu.core_type<tc>, window_params = [{transform_indices = @transform_0, window_bounds = array<i64: 1, 336, 128>}, {pipeline_mode = #tpu.pipeline_mode<synchronous>, transform_indices = @transform_1, window_bounds = array<i64: 1, 128>}, {pipeline_mode = #tpu.pipeline_mode<synchronous>, transform_indices = @transform_2, window_bounds = array<i64: 1, 128>}, {pipeline_mode = #tpu.pipeline_mode<synchronous>, transform_indices = @transform_3, window_bounds = array<i64: 9, 128, 128>}, {pipeline_mode = #tpu.pipeline_mode<synchronous>, transform_indices = @transform_4, window_bounds = array<i64: 128, 128>}, {pipeline_mode = #tpu.pipeline_mode<synchronous>, transform_indices = @transform_5, window_bounds = array<i64: 336, 1>}, {pipeline_mode = #tpu.pipeline_mode<synchronous>, transform_indices = @transform_6, window_bounds = array<i64: 336, 1>}, {transform_indices = @transform_7, window_bounds = array<i64: 1, 336, 128>}, {transform_indices = @transform_8, window_bounds = array<i64: 1, 2, 128>}, {transform_indices = @transform_9, window_bounds = array<i64: 1, 336, 128>}]} {
    %c0 = arith.constant 0 : index
    %c0_0 = arith.constant 0 : index
    %c0_1 = arith.constant 0 : index
    %0 = vector.load %arg1[%c0, %c0_0, %c0_1] : memref<1x336x128xf32, #tpu.memory_space<vmem>>, vector<1x336x128xf32>
    %1 = vector.shape_cast %0 : vector<1x336x128xf32> to vector<336x128xf32>
    %c0_2 = arith.constant 0 : index
    %c0_3 = arith.constant 0 : index
    %2 = vector.load %arg2[%c0_2, %c0_3] : memref<1x128xf32, #tpu.memory_space<vmem>>, vector<1x128xf32>
    %3 = vector.broadcast %2 : vector<1x128xf32> to vector<336x128xf32>
    %4 = arith.mulf %1, %3 : vector<336x128xf32>
    %c0_4 = arith.constant 0 : index
    %c0_5 = arith.constant 0 : index
    %5 = vector.load %arg3[%c0_4, %c0_5] : memref<1x128xf32, #tpu.memory_space<vmem>>, vector<1x128xf32>
    %6 = vector.broadcast %5 : vector<1x128xf32> to vector<336x128xf32>
    %7 = arith.addf %4, %6 : vector<336x128xf32>
    %cst = arith.constant 0.000000e+00 : f32
    %8 = vector.broadcast %cst : f32 to vector<336x128xf32>
    %9 = arith.maximumf %7, %8 : vector<336x128xf32>
    %c0_6 = arith.constant 0 : index
    %c0_7 = arith.constant 0 : index
    %10 = vector.load %arg6[%c0_6, %c0_7] : memref<336x1xf32, #tpu.memory_space<vmem>>, vector<336x1xf32>
    %11 = vector.broadcast %10 : vector<336x1xf32> to vector<336x128xf32>
    %12 = arith.mulf %9, %11 : vector<336x128xf32>
    %cst_8 = arith.constant 0.000000e+00 : bf16
    %13 = vector.broadcast %cst_8 : bf16 to vector<32x128xbf16>
    %c0_9 = arith.constant 0 : index
    %c0_10 = arith.constant 0 : index
    %14 = vector.load %arg11[%c0_9, %c0_10] : memref<400x128xbf16, #tpu.memory_space<vmem>>, vector<32x128xbf16>
    tpu.vector_store %arg11[%c0_9, %c0_10], %13 {strides = array<i32>} : memref<400x128xbf16, #tpu.memory_space<vmem>>, vector<32x128xbf16>,
    %c368 = arith.constant 368 : index
    %c0_11 = arith.constant 0 : index
    %15 = vector.load %arg11[%c368, %c0_11] : memref<400x128xbf16, #tpu.memory_space<vmem>>, vector<32x128xbf16>
    tpu.vector_store %arg11[%c368, %c0_11], %13 {strides = array<i32>} : memref<400x128xbf16, #tpu.memory_space<vmem>>, vector<32x128xbf16>,
    %16 = arith.truncf %12 : vector<336x128xf32> to vector<336x128xbf16>
    %c32 = arith.constant 32 : index
    %c0_12 = arith.constant 0 : index
    %17 = vector.load %arg11[%c32, %c0_12] : memref<400x128xbf16, #tpu.memory_space<vmem>>, vector<336x128xbf16>
    tpu.vector_store %arg11[%c32, %c0_12], %16 {strides = array<i32>} : memref<400x128xbf16, #tpu.memory_space<vmem>>, vector<336x128xbf16>,
    %c13 = arith.constant 13 : index
    %c0_13 = arith.constant 0 : index
    %18 = vector.load %arg11[%c13, %c0_13] : memref<400x128xbf16, #tpu.memory_space<vmem>>, vector<336x128xbf16>
    %c0_14 = arith.constant 0 : index
    %c0_15 = arith.constant 0 : index
    %c0_16 = arith.constant 0 : index
    %19 = vector.load %arg4[%c0_14, %c0_15, %c0_16] : memref<9x128x128xbf16, #tpu.memory_space<vmem>>, vector<1x128x128xbf16>
    %20 = vector.shape_cast %19 : vector<1x128x128xbf16> to vector<128x128xbf16>
    %cst_17 = arith.constant dense<0.000000e+00> : vector<336x128xf32>
    %21 = tpu.matmul %18, %20, %cst_17 {dimension_numbers = #tpu.dot_dimension_numbers<[1], [0], [0], [1], [0, 0, 1, 1], [], []>} : vector<336x128xbf16>, vector<128x128xbf16>, vector<336x128xf32> -> vector<336x128xf32>
    %c0_18 = arith.constant 0 : index
    %c0_19 = arith.constant 0 : index
    %22 = vector.load %arg12[%c0_18, %c0_19] : memref<336x128xf32, #tpu.memory_space<vmem>>, vector<336x128xf32>
    tpu.vector_store %arg12[%c0_18, %c0_19], %21 {strides = array<i32>} : memref<336x128xf32, #tpu.memory_space<vmem>>, vector<336x128xf32>,
    %c0_20 = arith.constant 0 : index
    %c0_21 = arith.constant 0 : index
    %23 = vector.load %arg12[%c0_20, %c0_21] : memref<336x128xf32, #tpu.memory_space<vmem>>, vector<336x128xf32>
    %c14 = arith.constant 14 : index
    %c0_22 = arith.constant 0 : index
    %24 = vector.load %arg11[%c14, %c0_22] : memref<400x128xbf16, #tpu.memory_space<vmem>>, vector<336x128xbf16>
    %c1 = arith.constant 1 : index
    %c0_23 = arith.constant 0 : index
    %c0_24 = arith.constant 0 : index
    %25 = vector.load %arg4[%c1, %c0_23, %c0_24] : memref<9x128x128xbf16, #tpu.memory_space<vmem>>, vector<1x128x128xbf16>
    %26 = vector.shape_cast %25 : vector<1x128x128xbf16> to vector<128x128xbf16>
    %cst_25 = arith.constant dense<0.000000e+00> : vector<336x128xf32>
    %27 = tpu.matmul %24, %26, %cst_25 {dimension_numbers = #tpu.dot_dimension_numbers<[1], [0], [0], [1], [0, 0, 1, 1], [], []>} : vector<336x128xbf16>, vector<128x128xbf16>, vector<336x128xf32> -> vector<336x128xf32>
    %28 = arith.addf %23, %27 : vector<336x128xf32>
    %c0_26 = arith.constant 0 : index
    %c0_27 = arith.constant 0 : index
    %29 = vector.load %arg12[%c0_26, %c0_27] : memref<336x128xf32, #tpu.memory_space<vmem>>, vector<336x128xf32>
    tpu.vector_store %arg12[%c0_26, %c0_27], %28 {strides = array<i32>} : memref<336x128xf32, #tpu.memory_space<vmem>>, vector<336x128xf32>,
    %c0_28 = arith.constant 0 : index
    %c0_29 = arith.constant 0 : index
    %30 = vector.load %arg12[%c0_28, %c0_29] : memref<336x128xf32, #tpu.memory_space<vmem>>, vector<336x128xf32>
    %c15 = arith.constant 15 : index
    %c0_30 = arith.constant 0 : index
    %31 = vector.load %arg11[%c15, %c0_30] : memref<400x128xbf16, #tpu.memory_space<vmem>>, vector<336x128xbf16>
    %c2 = arith.constant 2 : index
    %c0_31 = arith.constant 0 : index
    %c0_32 = arith.constant 0 : index
    %32 = vector.load %arg4[%c2, %c0_31, %c0_32] : memref<9x128x128xbf16, #tpu.memory_space<vmem>>, vector<1x128x128xbf16>
    %33 = vector.shape_cast %32 : vector<1x128x128xbf16> to vector<128x128xbf16>
    %cst_33 = arith.constant dense<0.000000e+00> : vector<336x128xf32>
    %34 = tpu.matmul %31, %33, %cst_33 {dimension_numbers = #tpu.dot_dimension_numbers<[1], [0], [0], [1], [0, 0, 1, 1], [], []>} : vector<336x128xbf16>, vector<128x128xbf16>, vector<336x128xf32> -> vector<336x128xf32>
    %35 = arith.addf %30, %34 : vector<336x128xf32>
    %c0_34 = arith.constant 0 : index
    %c0_35 = arith.constant 0 : index
    %36 = vector.load %arg12[%c0_34, %c0_35] : memref<336x128xf32, #tpu.memory_space<vmem>>, vector<336x128xf32>
    tpu.vector_store %arg12[%c0_34, %c0_35], %35 {strides = array<i32>} : memref<336x128xf32, #tpu.memory_space<vmem>>, vector<336x128xf32>,
    %c0_36 = arith.constant 0 : index
    %c0_37 = arith.constant 0 : index
    %37 = vector.load %arg12[%c0_36, %c0_37] : memref<336x128xf32, #tpu.memory_space<vmem>>, vector<336x128xf32>
    %c31 = arith.constant 31 : index
    %c0_38 = arith.constant 0 : index
    %38 = vector.load %arg11[%c31, %c0_38] : memref<400x128xbf16, #tpu.memory_space<vmem>>, vector<336x128xbf16>
    %c3 = arith.constant 3 : index
    %c0_39 = arith.constant 0 : index
    %c0_40 = arith.constant 0 : index
    %39 = vector.load %arg4[%c3, %c0_39, %c0_40] : memref<9x128x128xbf16, #tpu.memory_space<vmem>>, vector<1x128x128xbf16>
    %40 = vector.shape_cast %39 : vector<1x128x128xbf16> to vector<128x128xbf16>
    %cst_41 = arith.constant dense<0.000000e+00> : vector<336x128xf32>
    %41 = tpu.matmul %38, %40, %cst_41 {dimension_numbers = #tpu.dot_dimension_numbers<[1], [0], [0], [1], [0, 0, 1, 1], [], []>} : vector<336x128xbf16>, vector<128x128xbf16>, vector<336x128xf32> -> vector<336x128xf32>
    %42 = arith.addf %37, %41 : vector<336x128xf32>
    %c0_42 = arith.constant 0 : index
    %c0_43 = arith.constant 0 : index
    %43 = vector.load %arg12[%c0_42, %c0_43] : memref<336x128xf32, #tpu.memory_space<vmem>>, vector<336x128xf32>
    tpu.vector_store %arg12[%c0_42, %c0_43], %42 {strides = array<i32>} : memref<336x128xf32, #tpu.memory_space<vmem>>, vector<336x128xf32>,
    %c0_44 = arith.constant 0 : index
    %c0_45 = arith.constant 0 : index
    %44 = vector.load %arg12[%c0_44, %c0_45] : memref<336x128xf32, #tpu.memory_space<vmem>>, vector<336x128xf32>
    %c32_46 = arith.constant 32 : index
    %c0_47 = arith.constant 0 : index
    %45 = vector.load %arg11[%c32_46, %c0_47] : memref<400x128xbf16, #tpu.memory_space<vmem>>, vector<336x128xbf16>
    %c4 = arith.constant 4 : index
    %c0_48 = arith.constant 0 : index
    %c0_49 = arith.constant 0 : index
    %46 = vector.load %arg4[%c4, %c0_48, %c0_49] : memref<9x128x128xbf16, #tpu.memory_space<vmem>>, vector<1x128x128xbf16>
    %47 = vector.shape_cast %46 : vector<1x128x128xbf16> to vector<128x128xbf16>
    %cst_50 = arith.constant dense<0.000000e+00> : vector<336x128xf32>
    %48 = tpu.matmul %45, %47, %cst_50 {dimension_numbers = #tpu.dot_dimension_numbers<[1], [0], [0], [1], [0, 0, 1, 1], [], []>} : vector<336x128xbf16>, vector<128x128xbf16>, vector<336x128xf32> -> vector<336x128xf32>
    %49 = arith.addf %44, %48 : vector<336x128xf32>
    %c0_51 = arith.constant 0 : index
    %c0_52 = arith.constant 0 : index
    %50 = vector.load %arg12[%c0_51, %c0_52] : memref<336x128xf32, #tpu.memory_space<vmem>>, vector<336x128xf32>
    tpu.vector_store %arg12[%c0_51, %c0_52], %49 {strides = array<i32>} : memref<336x128xf32, #tpu.memory_space<vmem>>, vector<336x128xf32>,
    %c0_53 = arith.constant 0 : index
    %c0_54 = arith.constant 0 : index
    %51 = vector.load %arg12[%c0_53, %c0_54] : memref<336x128xf32, #tpu.memory_space<vmem>>, vector<336x128xf32>
    %c33 = arith.constant 33 : index
    %c0_55 = arith.constant 0 : index
    %52 = vector.load %arg11[%c33, %c0_55] : memref<400x128xbf16, #tpu.memory_space<vmem>>, vector<336x128xbf16>
    %c5 = arith.constant 5 : index
    %c0_56 = arith.constant 0 : index
    %c0_57 = arith.constant 0 : index
    %53 = vector.load %arg4[%c5, %c0_56, %c0_57] : memref<9x128x128xbf16, #tpu.memory_space<vmem>>, vector<1x128x128xbf16>
    %54 = vector.shape_cast %53 : vector<1x128x128xbf16> to vector<128x128xbf16>
    %cst_58 = arith.constant dense<0.000000e+00> : vector<336x128xf32>
    %55 = tpu.matmul %52, %54, %cst_58 {dimension_numbers = #tpu.dot_dimension_numbers<[1], [0], [0], [1], [0, 0, 1, 1], [], []>} : vector<336x128xbf16>, vector<128x128xbf16>, vector<336x128xf32> -> vector<336x128xf32>
    %56 = arith.addf %51, %55 : vector<336x128xf32>
    %c0_59 = arith.constant 0 : index
    %c0_60 = arith.constant 0 : index
    %57 = vector.load %arg12[%c0_59, %c0_60] : memref<336x128xf32, #tpu.memory_space<vmem>>, vector<336x128xf32>
    tpu.vector_store %arg12[%c0_59, %c0_60], %56 {strides = array<i32>} : memref<336x128xf32, #tpu.memory_space<vmem>>, vector<336x128xf32>,
    %c0_61 = arith.constant 0 : index
    %c0_62 = arith.constant 0 : index
    %58 = vector.load %arg12[%c0_61, %c0_62] : memref<336x128xf32, #tpu.memory_space<vmem>>, vector<336x128xf32>
    %c49 = arith.constant 49 : index
    %c0_63 = arith.constant 0 : index
    %59 = vector.load %arg11[%c49, %c0_63] : memref<400x128xbf16, #tpu.memory_space<vmem>>, vector<336x128xbf16>
    %c6 = arith.constant 6 : index
    %c0_64 = arith.constant 0 : index
    %c0_65 = arith.constant 0 : index
    %60 = vector.load %arg4[%c6, %c0_64, %c0_65] : memref<9x128x128xbf16, #tpu.memory_space<vmem>>, vector<1x128x128xbf16>
    %61 = vector.shape_cast %60 : vector<1x128x128xbf16> to vector<128x128xbf16>
    %cst_66 = arith.constant dense<0.000000e+00> : vector<336x128xf32>
    %62 = tpu.matmul %59, %61, %cst_66 {dimension_numbers = #tpu.dot_dimension_numbers<[1], [0], [0], [1], [0, 0, 1, 1], [], []>} : vector<336x128xbf16>, vector<128x128xbf16>, vector<336x128xf32> -> vector<336x128xf32>
    %63 = arith.addf %58, %62 : vector<336x128xf32>
    %c0_67 = arith.constant 0 : index
    %c0_68 = arith.constant 0 : index
    %64 = vector.load %arg12[%c0_67, %c0_68] : memref<336x128xf32, #tpu.memory_space<vmem>>, vector<336x128xf32>
    tpu.vector_store %arg12[%c0_67, %c0_68], %63 {strides = array<i32>} : memref<336x128xf32, #tpu.memory_space<vmem>>, vector<336x128xf32>,
    %c0_69 = arith.constant 0 : index
    %c0_70 = arith.constant 0 : index
    %65 = vector.load %arg12[%c0_69, %c0_70] : memref<336x128xf32, #tpu.memory_space<vmem>>, vector<336x128xf32>
    %c50 = arith.constant 50 : index
    %c0_71 = arith.constant 0 : index
    %66 = vector.load %arg11[%c50, %c0_71] : memref<400x128xbf16, #tpu.memory_space<vmem>>, vector<336x128xbf16>
    %c7 = arith.constant 7 : index
    %c0_72 = arith.constant 0 : index
    %c0_73 = arith.constant 0 : index
    %67 = vector.load %arg4[%c7, %c0_72, %c0_73] : memref<9x128x128xbf16, #tpu.memory_space<vmem>>, vector<1x128x128xbf16>
    %68 = vector.shape_cast %67 : vector<1x128x128xbf16> to vector<128x128xbf16>
    %cst_74 = arith.constant dense<0.000000e+00> : vector<336x128xf32>
    %69 = tpu.matmul %66, %68, %cst_74 {dimension_numbers = #tpu.dot_dimension_numbers<[1], [0], [0], [1], [0, 0, 1, 1], [], []>} : vector<336x128xbf16>, vector<128x128xbf16>, vector<336x128xf32> -> vector<336x128xf32>
    %70 = arith.addf %65, %69 : vector<336x128xf32>
    %c0_75 = arith.constant 0 : index
    %c0_76 = arith.constant 0 : index
    %71 = vector.load %arg12[%c0_75, %c0_76] : memref<336x128xf32, #tpu.memory_space<vmem>>, vector<336x128xf32>
    tpu.vector_store %arg12[%c0_75, %c0_76], %70 {strides = array<i32>} : memref<336x128xf32, #tpu.memory_space<vmem>>, vector<336x128xf32>,
    %c0_77 = arith.constant 0 : index
    %c0_78 = arith.constant 0 : index
    %72 = vector.load %arg12[%c0_77, %c0_78] : memref<336x128xf32, #tpu.memory_space<vmem>>, vector<336x128xf32>
    %c51 = arith.constant 51 : index
    %c0_79 = arith.constant 0 : index
    %73 = vector.load %arg11[%c51, %c0_79] : memref<400x128xbf16, #tpu.memory_space<vmem>>, vector<336x128xbf16>
    %c8 = arith.constant 8 : index
    %c0_80 = arith.constant 0 : index
    %c0_81 = arith.constant 0 : index
    %74 = vector.load %arg4[%c8, %c0_80, %c0_81] : memref<9x128x128xbf16, #tpu.memory_space<vmem>>, vector<1x128x128xbf16>
    %75 = vector.shape_cast %74 : vector<1x128x128xbf16> to vector<128x128xbf16>
    %cst_82 = arith.constant dense<0.000000e+00> : vector<336x128xf32>
    %76 = tpu.matmul %73, %75, %cst_82 {dimension_numbers = #tpu.dot_dimension_numbers<[1], [0], [0], [1], [0, 0, 1, 1], [], []>} : vector<336x128xbf16>, vector<128x128xbf16>, vector<336x128xf32> -> vector<336x128xf32>
    %77 = arith.addf %72, %76 : vector<336x128xf32>
    %c0_83 = arith.constant 0 : index
    %c0_84 = arith.constant 0 : index
    %78 = vector.load %arg12[%c0_83, %c0_84] : memref<336x128xf32, #tpu.memory_space<vmem>>, vector<336x128xf32>
    tpu.vector_store %arg12[%c0_83, %c0_84], %77 {strides = array<i32>} : memref<336x128xf32, #tpu.memory_space<vmem>>, vector<336x128xf32>,
    %c0_85 = arith.constant 0 : index
    %c0_86 = arith.constant 0 : index
    %79 = vector.load %arg7[%c0_85, %c0_86] : memref<336x1xf32, #tpu.memory_space<vmem>>, vector<336x1xf32>
    %c0_87 = arith.constant 0 : index
    %c0_88 = arith.constant 0 : index
    %80 = vector.load %arg12[%c0_87, %c0_88] : memref<336x128xf32, #tpu.memory_space<vmem>>, vector<336x128xf32>
    %81 = vector.broadcast %79 : vector<336x1xf32> to vector<336x128xf32>
    %82 = arith.mulf %80, %81 : vector<336x128xf32>
    %83 = arith.truncf %82 : vector<336x128xf32> to vector<336x128xbf16>
    %c0_89 = arith.constant 0 : index
    %c0_90 = arith.constant 0 : index
    %c0_91 = arith.constant 0 : index
    %84 = vector.load %arg8[%c0_89, %c0_90, %c0_91] : memref<1x336x128xbf16, #tpu.memory_space<vmem>>, vector<1x336x128xbf16>
    %85 = vector.shape_cast %84 : vector<1x336x128xbf16> to vector<336x128xbf16>
    %86 = vector.shape_cast %83 : vector<336x128xbf16> to vector<1x336x128xbf16>
    tpu.vector_store %arg8[%c0_89, %c0_90, %c0_91], %86 {strides = array<i32>} : memref<1x336x128xbf16, #tpu.memory_space<vmem>>, vector<1x336x128xbf16>,
    %cst_92 = arith.constant dense<0.000000e+00> : vector<128xf32>
    %87 = vector.multi_reduction <add>, %82, %cst_92 [0] : vector<336x128xf32> to vector<128xf32>
    %88 = vector.shape_cast %87 : vector<128xf32> to vector<1x128xf32>
    %c0_93 = arith.constant 0 : index
    %c0_94 = arith.constant 0 : index
    %c0_95 = arith.constant 0 : index
    %89 = vector.load %arg9[%c0_93, %c0_94, %c0_95] : memref<1x2x128xf32, #tpu.memory_space<vmem>>, vector<1x1x128xf32>
    %90 = vector.shape_cast %89 : vector<1x1x128xf32> to vector<1x128xf32>
    %91 = vector.shape_cast %88 : vector<1x128xf32> to vector<1x1x128xf32>
    tpu.vector_store %arg9[%c0_93, %c0_94, %c0_95], %91 {strides = array<i32>} : memref<1x2x128xf32, #tpu.memory_space<vmem>>, vector<1x1x128xf32>,
    %92 = arith.mulf %82, %82 : vector<336x128xf32>
    %cst_96 = arith.constant dense<0.000000e+00> : vector<128xf32>
    %93 = vector.multi_reduction <add>, %92, %cst_96 [0] : vector<336x128xf32> to vector<128xf32>
    %94 = vector.shape_cast %93 : vector<128xf32> to vector<1x128xf32>
    %c0_97 = arith.constant 0 : index
    %c1_98 = arith.constant 1 : index
    %c0_99 = arith.constant 0 : index
    %95 = vector.load %arg9[%c0_97, %c1_98, %c0_99] : memref<1x2x128xf32, #tpu.memory_space<vmem>>, vector<1x1x128xf32>
    %96 = vector.shape_cast %95 : vector<1x1x128xf32> to vector<1x128xf32>
    %97 = vector.shape_cast %94 : vector<1x128xf32> to vector<1x1x128xf32>
    tpu.vector_store %arg9[%c0_97, %c1_98, %c0_99], %97 {strides = array<i32>} : memref<1x2x128xf32, #tpu.memory_space<vmem>>, vector<1x1x128xf32>,
    %c32_100 = arith.constant 32 : index
    %c0_101 = arith.constant 0 : index
    %98 = vector.load %arg11[%c32_100, %c0_101] : memref<400x128xbf16, #tpu.memory_space<vmem>>, vector<336x128xbf16>
    %c0_102 = arith.constant 0 : index
    %c0_103 = arith.constant 0 : index
    %99 = vector.load %arg5[%c0_102, %c0_103] : memref<128x128xbf16, #tpu.memory_space<vmem>>, vector<128x128xbf16>
    %cst_104 = arith.constant dense<0.000000e+00> : vector<336x128xf32>
    %100 = tpu.matmul %98, %99, %cst_104 {dimension_numbers = #tpu.dot_dimension_numbers<[1], [0], [0], [1], [0, 0, 1, 1], [], []>} : vector<336x128xbf16>, vector<128x128xbf16>, vector<336x128xf32> -> vector<336x128xf32>
    %101 = vector.broadcast %79 : vector<336x1xf32> to vector<336x128xf32>
    %102 = arith.mulf %100, %101 : vector<336x128xf32>
    %c0_105 = arith.constant 0 : index
    %c0_106 = arith.constant 0 : index
    %c0_107 = arith.constant 0 : index
    %103 = vector.load %arg10[%c0_105, %c0_106, %c0_107] : memref<1x336x128xf32, #tpu.memory_space<vmem>>, vector<1x336x128xf32>
    %104 = vector.shape_cast %103 : vector<1x336x128xf32> to vector<336x128xf32>
    %105 = vector.shape_cast %102 : vector<336x128xf32> to vector<1x336x128xf32>
    tpu.vector_store %arg10[%c0_105, %c0_106, %c0_107], %105 {strides = array<i32>} : memref<1x336x128xf32, #tpu.memory_space<vmem>>, vector<1x336x128xf32>,
    return
  }
  func.func @transform_0(%arg0: i32) -> (i32, i32, i32) {
    %c0_i32 = arith.constant 0 : i32
    %c0_i32_0 = arith.constant 0 : i32
    %c0_i32_1 = arith.constant 0 : i32
    return %arg0, %c0_i32, %c0_i32_0 : i32, i32, i32
  }
  func.func @transform_1(%arg0: i32) -> (i32, i32) {
    %c0_i32 = arith.constant 0 : i32
    %c0_i32_0 = arith.constant 0 : i32
    %c0_i32_1 = arith.constant 0 : i32
    return %c0_i32, %c0_i32_0 : i32, i32
  }
  func.func @transform_2(%arg0: i32) -> (i32, i32) {
    %c0_i32 = arith.constant 0 : i32
    %c0_i32_0 = arith.constant 0 : i32
    %c0_i32_1 = arith.constant 0 : i32
    return %c0_i32, %c0_i32_0 : i32, i32
  }
  func.func @transform_3(%arg0: i32) -> (i32, i32, i32) {
    %c0_i32 = arith.constant 0 : i32
    %c0_i32_0 = arith.constant 0 : i32
    %c0_i32_1 = arith.constant 0 : i32
    %c0_i32_2 = arith.constant 0 : i32
    return %c0_i32, %c0_i32_0, %c0_i32_1 : i32, i32, i32
  }
  func.func @transform_4(%arg0: i32) -> (i32, i32) {
    %c0_i32 = arith.constant 0 : i32
    %c0_i32_0 = arith.constant 0 : i32
    %c0_i32_1 = arith.constant 0 : i32
    return %c0_i32, %c0_i32_0 : i32, i32
  }
  func.func @transform_5(%arg0: i32) -> (i32, i32) {
    %c0_i32 = arith.constant 0 : i32
    %c0_i32_0 = arith.constant 0 : i32
    %c0_i32_1 = arith.constant 0 : i32
    return %c0_i32, %c0_i32_0 : i32, i32
  }
  func.func @transform_6(%arg0: i32) -> (i32, i32) {
    %c0_i32 = arith.constant 0 : i32
    %c0_i32_0 = arith.constant 0 : i32
    %c0_i32_1 = arith.constant 0 : i32
    return %c0_i32, %c0_i32_0 : i32, i32
  }
  func.func @transform_7(%arg0: i32) -> (i32, i32, i32) {
    %c0_i32 = arith.constant 0 : i32
    %c0_i32_0 = arith.constant 0 : i32
    %c0_i32_1 = arith.constant 0 : i32
    return %arg0, %c0_i32, %c0_i32_0 : i32, i32, i32
  }
  func.func @transform_8(%arg0: i32) -> (i32, i32, i32) {
    %c0_i32 = arith.constant 0 : i32
    %c0_i32_0 = arith.constant 0 : i32
    %c0_i32_1 = arith.constant 0 : i32
    return %arg0, %c0_i32, %c0_i32_0 : i32, i32, i32
  }
  func.func @transform_9(%arg0: i32) -> (i32, i32, i32) {
    %c0_i32 = arith.constant 0 : i32
    %c0_i32_0 = arith.constant 0 : i32
    %c0_i32_1 = arith.constant 0 : i32
    return %arg0, %c0_i32, %c0_i32_0 : i32, i32, i32
  }
}

module attributes {stable_mosaic.version = 11 : i64} {
  func.func @_back_kernel(%arg0: i32, %arg1: memref<1x112x128xbf16, #tpu.memory_space<vmem>>, %arg2: memref<1x128xf32, #tpu.memory_space<vmem>>, %arg3: memref<1x128xf32, #tpu.memory_space<vmem>>, %arg4: memref<9x128x128xbf16, #tpu.memory_space<vmem>>, %arg5: memref<1x112x128xf32, #tpu.memory_space<vmem>>, %arg6: memref<112x1xf32, #tpu.memory_space<vmem>>, %arg7: memref<1x112x128xf32, #tpu.memory_space<vmem>>, %arg8: memref<144x128xbf16, #tpu.memory_space<vmem>>, %arg9: memref<112x128xf32, #tpu.memory_space<vmem>>) attributes {dimension_semantics = [#tpu.dimension_semantics<parallel>], iteration_bounds = array<i64: 2>, scalar_prefetch = 0 : i64, scratch_operands = 2 : i64, tpu.core_type = #tpu.core_type<tc>, window_params = [{transform_indices = @transform_0, window_bounds = array<i64: 1, 112, 128>}, {pipeline_mode = #tpu.pipeline_mode<synchronous>, transform_indices = @transform_1, window_bounds = array<i64: 1, 128>}, {pipeline_mode = #tpu.pipeline_mode<synchronous>, transform_indices = @transform_2, window_bounds = array<i64: 1, 128>}, {pipeline_mode = #tpu.pipeline_mode<synchronous>, transform_indices = @transform_3, window_bounds = array<i64: 9, 128, 128>}, {transform_indices = @transform_4, window_bounds = array<i64: 1, 112, 128>}, {pipeline_mode = #tpu.pipeline_mode<synchronous>, transform_indices = @transform_5, window_bounds = array<i64: 112, 1>}, {transform_indices = @transform_6, window_bounds = array<i64: 1, 112, 128>}]} {
    %c0 = arith.constant 0 : index
    %c0_0 = arith.constant 0 : index
    %c0_1 = arith.constant 0 : index
    %0 = vector.load %arg1[%c0, %c0_0, %c0_1] : memref<1x112x128xbf16, #tpu.memory_space<vmem>>, vector<1x112x128xbf16>
    %1 = vector.shape_cast %0 : vector<1x112x128xbf16> to vector<112x128xbf16>
    %2 = arith.extf %1 : vector<112x128xbf16> to vector<112x128xf32>
    %c0_2 = arith.constant 0 : index
    %c0_3 = arith.constant 0 : index
    %3 = vector.load %arg2[%c0_2, %c0_3] : memref<1x128xf32, #tpu.memory_space<vmem>>, vector<1x128xf32>
    %4 = vector.broadcast %3 : vector<1x128xf32> to vector<112x128xf32>
    %5 = arith.mulf %2, %4 : vector<112x128xf32>
    %c0_4 = arith.constant 0 : index
    %c0_5 = arith.constant 0 : index
    %6 = vector.load %arg3[%c0_4, %c0_5] : memref<1x128xf32, #tpu.memory_space<vmem>>, vector<1x128xf32>
    %7 = vector.broadcast %6 : vector<1x128xf32> to vector<112x128xf32>
    %8 = arith.addf %5, %7 : vector<112x128xf32>
    %cst = arith.constant 0.000000e+00 : f32
    %9 = vector.broadcast %cst : f32 to vector<112x128xf32>
    %10 = arith.maximumf %8, %9 : vector<112x128xf32>
    %c0_6 = arith.constant 0 : index
    %c0_7 = arith.constant 0 : index
    %11 = vector.load %arg6[%c0_6, %c0_7] : memref<112x1xf32, #tpu.memory_space<vmem>>, vector<112x1xf32>
    %12 = vector.broadcast %11 : vector<112x1xf32> to vector<112x128xf32>
    %13 = arith.mulf %10, %12 : vector<112x128xf32>
    %cst_8 = arith.constant 0.000000e+00 : bf16
    %14 = vector.broadcast %cst_8 : bf16 to vector<16x128xbf16>
    %c0_9 = arith.constant 0 : index
    %c0_10 = arith.constant 0 : index
    %15 = vector.load %arg8[%c0_9, %c0_10] : memref<144x128xbf16, #tpu.memory_space<vmem>>, vector<16x128xbf16>
    tpu.vector_store %arg8[%c0_9, %c0_10], %14 {strides = array<i32>} : memref<144x128xbf16, #tpu.memory_space<vmem>>, vector<16x128xbf16>,
    %c128 = arith.constant 128 : index
    %c0_11 = arith.constant 0 : index
    %16 = vector.load %arg8[%c128, %c0_11] : memref<144x128xbf16, #tpu.memory_space<vmem>>, vector<16x128xbf16>
    tpu.vector_store %arg8[%c128, %c0_11], %14 {strides = array<i32>} : memref<144x128xbf16, #tpu.memory_space<vmem>>, vector<16x128xbf16>,
    %17 = arith.truncf %13 : vector<112x128xf32> to vector<112x128xbf16>
    %c16 = arith.constant 16 : index
    %c0_12 = arith.constant 0 : index
    %18 = vector.load %arg8[%c16, %c0_12] : memref<144x128xbf16, #tpu.memory_space<vmem>>, vector<112x128xbf16>
    tpu.vector_store %arg8[%c16, %c0_12], %17 {strides = array<i32>} : memref<144x128xbf16, #tpu.memory_space<vmem>>, vector<112x128xbf16>,
    %c5 = arith.constant 5 : index
    %c0_13 = arith.constant 0 : index
    %19 = vector.load %arg8[%c5, %c0_13] : memref<144x128xbf16, #tpu.memory_space<vmem>>, vector<112x128xbf16>
    %c0_14 = arith.constant 0 : index
    %c0_15 = arith.constant 0 : index
    %c0_16 = arith.constant 0 : index
    %20 = vector.load %arg4[%c0_14, %c0_15, %c0_16] : memref<9x128x128xbf16, #tpu.memory_space<vmem>>, vector<1x128x128xbf16>
    %21 = vector.shape_cast %20 : vector<1x128x128xbf16> to vector<128x128xbf16>
    %cst_17 = arith.constant dense<0.000000e+00> : vector<112x128xf32>
    %22 = tpu.matmul %19, %21, %cst_17 {dimension_numbers = #tpu.dot_dimension_numbers<[1], [0], [0], [1], [0, 0, 1, 1], [], []>} : vector<112x128xbf16>, vector<128x128xbf16>, vector<112x128xf32> -> vector<112x128xf32>
    %c0_18 = arith.constant 0 : index
    %c0_19 = arith.constant 0 : index
    %23 = vector.load %arg9[%c0_18, %c0_19] : memref<112x128xf32, #tpu.memory_space<vmem>>, vector<112x128xf32>
    tpu.vector_store %arg9[%c0_18, %c0_19], %22 {strides = array<i32>} : memref<112x128xf32, #tpu.memory_space<vmem>>, vector<112x128xf32>,
    %c0_20 = arith.constant 0 : index
    %c0_21 = arith.constant 0 : index
    %24 = vector.load %arg9[%c0_20, %c0_21] : memref<112x128xf32, #tpu.memory_space<vmem>>, vector<112x128xf32>
    %c6 = arith.constant 6 : index
    %c0_22 = arith.constant 0 : index
    %25 = vector.load %arg8[%c6, %c0_22] : memref<144x128xbf16, #tpu.memory_space<vmem>>, vector<112x128xbf16>
    %c1 = arith.constant 1 : index
    %c0_23 = arith.constant 0 : index
    %c0_24 = arith.constant 0 : index
    %26 = vector.load %arg4[%c1, %c0_23, %c0_24] : memref<9x128x128xbf16, #tpu.memory_space<vmem>>, vector<1x128x128xbf16>
    %27 = vector.shape_cast %26 : vector<1x128x128xbf16> to vector<128x128xbf16>
    %cst_25 = arith.constant dense<0.000000e+00> : vector<112x128xf32>
    %28 = tpu.matmul %25, %27, %cst_25 {dimension_numbers = #tpu.dot_dimension_numbers<[1], [0], [0], [1], [0, 0, 1, 1], [], []>} : vector<112x128xbf16>, vector<128x128xbf16>, vector<112x128xf32> -> vector<112x128xf32>
    %29 = arith.addf %24, %28 : vector<112x128xf32>
    %c0_26 = arith.constant 0 : index
    %c0_27 = arith.constant 0 : index
    %30 = vector.load %arg9[%c0_26, %c0_27] : memref<112x128xf32, #tpu.memory_space<vmem>>, vector<112x128xf32>
    tpu.vector_store %arg9[%c0_26, %c0_27], %29 {strides = array<i32>} : memref<112x128xf32, #tpu.memory_space<vmem>>, vector<112x128xf32>,
    %c0_28 = arith.constant 0 : index
    %c0_29 = arith.constant 0 : index
    %31 = vector.load %arg9[%c0_28, %c0_29] : memref<112x128xf32, #tpu.memory_space<vmem>>, vector<112x128xf32>
    %c7 = arith.constant 7 : index
    %c0_30 = arith.constant 0 : index
    %32 = vector.load %arg8[%c7, %c0_30] : memref<144x128xbf16, #tpu.memory_space<vmem>>, vector<112x128xbf16>
    %c2 = arith.constant 2 : index
    %c0_31 = arith.constant 0 : index
    %c0_32 = arith.constant 0 : index
    %33 = vector.load %arg4[%c2, %c0_31, %c0_32] : memref<9x128x128xbf16, #tpu.memory_space<vmem>>, vector<1x128x128xbf16>
    %34 = vector.shape_cast %33 : vector<1x128x128xbf16> to vector<128x128xbf16>
    %cst_33 = arith.constant dense<0.000000e+00> : vector<112x128xf32>
    %35 = tpu.matmul %32, %34, %cst_33 {dimension_numbers = #tpu.dot_dimension_numbers<[1], [0], [0], [1], [0, 0, 1, 1], [], []>} : vector<112x128xbf16>, vector<128x128xbf16>, vector<112x128xf32> -> vector<112x128xf32>
    %36 = arith.addf %31, %35 : vector<112x128xf32>
    %c0_34 = arith.constant 0 : index
    %c0_35 = arith.constant 0 : index
    %37 = vector.load %arg9[%c0_34, %c0_35] : memref<112x128xf32, #tpu.memory_space<vmem>>, vector<112x128xf32>
    tpu.vector_store %arg9[%c0_34, %c0_35], %36 {strides = array<i32>} : memref<112x128xf32, #tpu.memory_space<vmem>>, vector<112x128xf32>,
    %c0_36 = arith.constant 0 : index
    %c0_37 = arith.constant 0 : index
    %38 = vector.load %arg9[%c0_36, %c0_37] : memref<112x128xf32, #tpu.memory_space<vmem>>, vector<112x128xf32>
    %c15 = arith.constant 15 : index
    %c0_38 = arith.constant 0 : index
    %39 = vector.load %arg8[%c15, %c0_38] : memref<144x128xbf16, #tpu.memory_space<vmem>>, vector<112x128xbf16>
    %c3 = arith.constant 3 : index
    %c0_39 = arith.constant 0 : index
    %c0_40 = arith.constant 0 : index
    %40 = vector.load %arg4[%c3, %c0_39, %c0_40] : memref<9x128x128xbf16, #tpu.memory_space<vmem>>, vector<1x128x128xbf16>
    %41 = vector.shape_cast %40 : vector<1x128x128xbf16> to vector<128x128xbf16>
    %cst_41 = arith.constant dense<0.000000e+00> : vector<112x128xf32>
    %42 = tpu.matmul %39, %41, %cst_41 {dimension_numbers = #tpu.dot_dimension_numbers<[1], [0], [0], [1], [0, 0, 1, 1], [], []>} : vector<112x128xbf16>, vector<128x128xbf16>, vector<112x128xf32> -> vector<112x128xf32>
    %43 = arith.addf %38, %42 : vector<112x128xf32>
    %c0_42 = arith.constant 0 : index
    %c0_43 = arith.constant 0 : index
    %44 = vector.load %arg9[%c0_42, %c0_43] : memref<112x128xf32, #tpu.memory_space<vmem>>, vector<112x128xf32>
    tpu.vector_store %arg9[%c0_42, %c0_43], %43 {strides = array<i32>} : memref<112x128xf32, #tpu.memory_space<vmem>>, vector<112x128xf32>,
    %c0_44 = arith.constant 0 : index
    %c0_45 = arith.constant 0 : index
    %45 = vector.load %arg9[%c0_44, %c0_45] : memref<112x128xf32, #tpu.memory_space<vmem>>, vector<112x128xf32>
    %c16_46 = arith.constant 16 : index
    %c0_47 = arith.constant 0 : index
    %46 = vector.load %arg8[%c16_46, %c0_47] : memref<144x128xbf16, #tpu.memory_space<vmem>>, vector<112x128xbf16>
    %c4 = arith.constant 4 : index
    %c0_48 = arith.constant 0 : index
    %c0_49 = arith.constant 0 : index
    %47 = vector.load %arg4[%c4, %c0_48, %c0_49] : memref<9x128x128xbf16, #tpu.memory_space<vmem>>, vector<1x128x128xbf16>
    %48 = vector.shape_cast %47 : vector<1x128x128xbf16> to vector<128x128xbf16>
    %cst_50 = arith.constant dense<0.000000e+00> : vector<112x128xf32>
    %49 = tpu.matmul %46, %48, %cst_50 {dimension_numbers = #tpu.dot_dimension_numbers<[1], [0], [0], [1], [0, 0, 1, 1], [], []>} : vector<112x128xbf16>, vector<128x128xbf16>, vector<112x128xf32> -> vector<112x128xf32>
    %50 = arith.addf %45, %49 : vector<112x128xf32>
    %c0_51 = arith.constant 0 : index
    %c0_52 = arith.constant 0 : index
    %51 = vector.load %arg9[%c0_51, %c0_52] : memref<112x128xf32, #tpu.memory_space<vmem>>, vector<112x128xf32>
    tpu.vector_store %arg9[%c0_51, %c0_52], %50 {strides = array<i32>} : memref<112x128xf32, #tpu.memory_space<vmem>>, vector<112x128xf32>,
    %c0_53 = arith.constant 0 : index
    %c0_54 = arith.constant 0 : index
    %52 = vector.load %arg9[%c0_53, %c0_54] : memref<112x128xf32, #tpu.memory_space<vmem>>, vector<112x128xf32>
    %c17 = arith.constant 17 : index
    %c0_55 = arith.constant 0 : index
    %53 = vector.load %arg8[%c17, %c0_55] : memref<144x128xbf16, #tpu.memory_space<vmem>>, vector<112x128xbf16>
    %c5_56 = arith.constant 5 : index
    %c0_57 = arith.constant 0 : index
    %c0_58 = arith.constant 0 : index
    %54 = vector.load %arg4[%c5_56, %c0_57, %c0_58] : memref<9x128x128xbf16, #tpu.memory_space<vmem>>, vector<1x128x128xbf16>
    %55 = vector.shape_cast %54 : vector<1x128x128xbf16> to vector<128x128xbf16>
    %cst_59 = arith.constant dense<0.000000e+00> : vector<112x128xf32>
    %56 = tpu.matmul %53, %55, %cst_59 {dimension_numbers = #tpu.dot_dimension_numbers<[1], [0], [0], [1], [0, 0, 1, 1], [], []>} : vector<112x128xbf16>, vector<128x128xbf16>, vector<112x128xf32> -> vector<112x128xf32>
    %57 = arith.addf %52, %56 : vector<112x128xf32>
    %c0_60 = arith.constant 0 : index
    %c0_61 = arith.constant 0 : index
    %58 = vector.load %arg9[%c0_60, %c0_61] : memref<112x128xf32, #tpu.memory_space<vmem>>, vector<112x128xf32>
    tpu.vector_store %arg9[%c0_60, %c0_61], %57 {strides = array<i32>} : memref<112x128xf32, #tpu.memory_space<vmem>>, vector<112x128xf32>,
    %c0_62 = arith.constant 0 : index
    %c0_63 = arith.constant 0 : index
    %59 = vector.load %arg9[%c0_62, %c0_63] : memref<112x128xf32, #tpu.memory_space<vmem>>, vector<112x128xf32>
    %c25 = arith.constant 25 : index
    %c0_64 = arith.constant 0 : index
    %60 = vector.load %arg8[%c25, %c0_64] : memref<144x128xbf16, #tpu.memory_space<vmem>>, vector<112x128xbf16>
    %c6_65 = arith.constant 6 : index
    %c0_66 = arith.constant 0 : index
    %c0_67 = arith.constant 0 : index
    %61 = vector.load %arg4[%c6_65, %c0_66, %c0_67] : memref<9x128x128xbf16, #tpu.memory_space<vmem>>, vector<1x128x128xbf16>
    %62 = vector.shape_cast %61 : vector<1x128x128xbf16> to vector<128x128xbf16>
    %cst_68 = arith.constant dense<0.000000e+00> : vector<112x128xf32>
    %63 = tpu.matmul %60, %62, %cst_68 {dimension_numbers = #tpu.dot_dimension_numbers<[1], [0], [0], [1], [0, 0, 1, 1], [], []>} : vector<112x128xbf16>, vector<128x128xbf16>, vector<112x128xf32> -> vector<112x128xf32>
    %64 = arith.addf %59, %63 : vector<112x128xf32>
    %c0_69 = arith.constant 0 : index
    %c0_70 = arith.constant 0 : index
    %65 = vector.load %arg9[%c0_69, %c0_70] : memref<112x128xf32, #tpu.memory_space<vmem>>, vector<112x128xf32>
    tpu.vector_store %arg9[%c0_69, %c0_70], %64 {strides = array<i32>} : memref<112x128xf32, #tpu.memory_space<vmem>>, vector<112x128xf32>,
    %c0_71 = arith.constant 0 : index
    %c0_72 = arith.constant 0 : index
    %66 = vector.load %arg9[%c0_71, %c0_72] : memref<112x128xf32, #tpu.memory_space<vmem>>, vector<112x128xf32>
    %c26 = arith.constant 26 : index
    %c0_73 = arith.constant 0 : index
    %67 = vector.load %arg8[%c26, %c0_73] : memref<144x128xbf16, #tpu.memory_space<vmem>>, vector<112x128xbf16>
    %c7_74 = arith.constant 7 : index
    %c0_75 = arith.constant 0 : index
    %c0_76 = arith.constant 0 : index
    %68 = vector.load %arg4[%c7_74, %c0_75, %c0_76] : memref<9x128x128xbf16, #tpu.memory_space<vmem>>, vector<1x128x128xbf16>
    %69 = vector.shape_cast %68 : vector<1x128x128xbf16> to vector<128x128xbf16>
    %cst_77 = arith.constant dense<0.000000e+00> : vector<112x128xf32>
    %70 = tpu.matmul %67, %69, %cst_77 {dimension_numbers = #tpu.dot_dimension_numbers<[1], [0], [0], [1], [0, 0, 1, 1], [], []>} : vector<112x128xbf16>, vector<128x128xbf16>, vector<112x128xf32> -> vector<112x128xf32>
    %71 = arith.addf %66, %70 : vector<112x128xf32>
    %c0_78 = arith.constant 0 : index
    %c0_79 = arith.constant 0 : index
    %72 = vector.load %arg9[%c0_78, %c0_79] : memref<112x128xf32, #tpu.memory_space<vmem>>, vector<112x128xf32>
    tpu.vector_store %arg9[%c0_78, %c0_79], %71 {strides = array<i32>} : memref<112x128xf32, #tpu.memory_space<vmem>>, vector<112x128xf32>,
    %c0_80 = arith.constant 0 : index
    %c0_81 = arith.constant 0 : index
    %73 = vector.load %arg9[%c0_80, %c0_81] : memref<112x128xf32, #tpu.memory_space<vmem>>, vector<112x128xf32>
    %c27 = arith.constant 27 : index
    %c0_82 = arith.constant 0 : index
    %74 = vector.load %arg8[%c27, %c0_82] : memref<144x128xbf16, #tpu.memory_space<vmem>>, vector<112x128xbf16>
    %c8 = arith.constant 8 : index
    %c0_83 = arith.constant 0 : index
    %c0_84 = arith.constant 0 : index
    %75 = vector.load %arg4[%c8, %c0_83, %c0_84] : memref<9x128x128xbf16, #tpu.memory_space<vmem>>, vector<1x128x128xbf16>
    %76 = vector.shape_cast %75 : vector<1x128x128xbf16> to vector<128x128xbf16>
    %cst_85 = arith.constant dense<0.000000e+00> : vector<112x128xf32>
    %77 = tpu.matmul %74, %76, %cst_85 {dimension_numbers = #tpu.dot_dimension_numbers<[1], [0], [0], [1], [0, 0, 1, 1], [], []>} : vector<112x128xbf16>, vector<128x128xbf16>, vector<112x128xf32> -> vector<112x128xf32>
    %78 = arith.addf %73, %77 : vector<112x128xf32>
    %c0_86 = arith.constant 0 : index
    %c0_87 = arith.constant 0 : index
    %79 = vector.load %arg9[%c0_86, %c0_87] : memref<112x128xf32, #tpu.memory_space<vmem>>, vector<112x128xf32>
    tpu.vector_store %arg9[%c0_86, %c0_87], %78 {strides = array<i32>} : memref<112x128xf32, #tpu.memory_space<vmem>>, vector<112x128xf32>,
    %c0_88 = arith.constant 0 : index
    %c0_89 = arith.constant 0 : index
    %80 = vector.load %arg9[%c0_88, %c0_89] : memref<112x128xf32, #tpu.memory_space<vmem>>, vector<112x128xf32>
    %c0_90 = arith.constant 0 : index
    %c0_91 = arith.constant 0 : index
    %81 = vector.load %arg6[%c0_90, %c0_91] : memref<112x1xf32, #tpu.memory_space<vmem>>, vector<112x1xf32>
    %82 = vector.broadcast %81 : vector<112x1xf32> to vector<112x128xf32>
    %83 = arith.mulf %80, %82 : vector<112x128xf32>
    %c0_92 = arith.constant 0 : index
    %c0_93 = arith.constant 0 : index
    %c0_94 = arith.constant 0 : index
    %84 = vector.load %arg5[%c0_92, %c0_93, %c0_94] : memref<1x112x128xf32, #tpu.memory_space<vmem>>, vector<1x112x128xf32>
    %85 = vector.shape_cast %84 : vector<1x112x128xf32> to vector<112x128xf32>
    %86 = arith.addf %83, %85 : vector<112x128xf32>
    %c0_95 = arith.constant 0 : index
    %c0_96 = arith.constant 0 : index
    %c0_97 = arith.constant 0 : index
    %87 = vector.load %arg7[%c0_95, %c0_96, %c0_97] : memref<1x112x128xf32, #tpu.memory_space<vmem>>, vector<1x112x128xf32>
    %88 = vector.shape_cast %87 : vector<1x112x128xf32> to vector<112x128xf32>
    %89 = vector.shape_cast %86 : vector<112x128xf32> to vector<1x112x128xf32>
    tpu.vector_store %arg7[%c0_95, %c0_96, %c0_97], %89 {strides = array<i32>} : memref<1x112x128xf32, #tpu.memory_space<vmem>>, vector<1x112x128xf32>,
    return
  }
  func.func @transform_0(%arg0: i32) -> (i32, i32, i32) {
    %c0_i32 = arith.constant 0 : i32
    %c0_i32_0 = arith.constant 0 : i32
    %c0_i32_1 = arith.constant 0 : i32
    return %arg0, %c0_i32, %c0_i32_0 : i32, i32, i32
  }
  func.func @transform_1(%arg0: i32) -> (i32, i32) {
    %c0_i32 = arith.constant 0 : i32
    %c0_i32_0 = arith.constant 0 : i32
    %c0_i32_1 = arith.constant 0 : i32
    return %c0_i32, %c0_i32_0 : i32, i32
  }
  func.func @transform_2(%arg0: i32) -> (i32, i32) {
    %c0_i32 = arith.constant 0 : i32
    %c0_i32_0 = arith.constant 0 : i32
    %c0_i32_1 = arith.constant 0 : i32
    return %c0_i32, %c0_i32_0 : i32, i32
  }
  func.func @transform_3(%arg0: i32) -> (i32, i32, i32) {
    %c0_i32 = arith.constant 0 : i32
    %c0_i32_0 = arith.constant 0 : i32
    %c0_i32_1 = arith.constant 0 : i32
    %c0_i32_2 = arith.constant 0 : i32
    return %c0_i32, %c0_i32_0, %c0_i32_1 : i32, i32, i32
  }
  func.func @transform_4(%arg0: i32) -> (i32, i32, i32) {
    %c0_i32 = arith.constant 0 : i32
    %c0_i32_0 = arith.constant 0 : i32
    %c0_i32_1 = arith.constant 0 : i32
    return %arg0, %c0_i32, %c0_i32_0 : i32, i32, i32
  }
  func.func @transform_5(%arg0: i32) -> (i32, i32) {
    %c0_i32 = arith.constant 0 : i32
    %c0_i32_0 = arith.constant 0 : i32
    %c0_i32_1 = arith.constant 0 : i32
    return %c0_i32, %c0_i32_0 : i32, i32
  }
  func.func @transform_6(%arg0: i32) -> (i32, i32, i32) {
    %c0_i32 = arith.constant 0 : i32
    %c0_i32_0 = arith.constant 0 : i32
    %c0_i32_1 = arith.constant 0 : i32
    return %arg0, %c0_i32, %c0_i32_0 : i32, i32, i32
  }
}

</mosaic_0001>

<llo_original>
// kernel: _lambda_.3
$region0: #{_lambda_.3}
  #allocation0 [shape = 'u32[]', space=smem, size = 0x4, offset = 0x4, fixed_abs, tag = 'smem constant byte address 0x4 - core index']
  #allocation1 [shape = 'u32[72,128]{1,0:T(1,128)}', space=vmem, size = 0x9000, scoped, tag = 'internal scratch']
  #allocation2 [shape = 'bf16[144,128]{1,0:T(8,128)(2,1)}', space=vmem, size = 0x9000, scoped, tag = 'scratch operand']
  #allocation3 [shape = 'f32[112,128]{1,0:T(8,128)}', space=vmem, size = 0xe000, scoped, tag = 'scratch operand']
  %s0 = inlined_call_operand.vmem [shape: bf16[2,112,128], index: 0, kind: input, shape index: {}]
  %s1 = inlined_call_operand.vmem [shape: f32[1,128], index: 1, kind: input, shape index: {}]
  %s2 = inlined_call_operand.vmem [shape: f32[1,128], index: 2, kind: input, shape index: {}]
  %s3 = inlined_call_operand.vmem [shape: bf16[9,128,128], index: 3, kind: input, shape index: {}]
  %s4 = inlined_call_operand.vmem [shape: f32[2,112,128], index: 4, kind: input, shape index: {}]
  %s5 = inlined_call_operand.vmem [shape: f32[112,1], index: 5, kind: input, shape index: {}]
  %s6 = inlined_call_operand.vmem [shape: f32[2,112,128], index: 6, kind: output, shape index: {}]
  %s7 = sld [smem:[#allocation0]]
  $region57: #{_lambda_.3} parent=0
    _
  %s9 = ssub.s32 1, %s7
  %s10 = scalar_select 0, %s9, %s7
  loop: start=0, step=1, limit=4
  $region2: #{_lambda_.3} parent=0 // loop_pre_header
    _
  $region3: #{_lambda_.3} parent=0 // loop_header
    %s12 = sphi 0, %s16
    %p13 = scmp.ge.s32.totalorder %s12, 4
    %s22 = sphi 0, %s24
    %s25 = sphi 0, %s22
    %s26 = sphi 0, %s25
    %s42 = sphi 0, %s26
    %s46 = sphi 0, %s46
    %s48 = sphi 0, %s46
    %s49 = sphi 0, %s48
    %s63 = sphi 0, %s49
    %s67 = sphi 0, %s67
    %s69 = sphi 0, %s67
    %s70 = sphi 0, %s69
    %s84 = sphi 0, %s70
    %s88 = sphi 0, %s88
    %s90 = sphi 0, %s88
    %s91 = sphi 0, %s90
    %s105 = sphi 0, %s91
    %s111 = sphi 0, %s113
    %s114 = sphi 0, %s111
    %s115 = sphi 0, %s114
    %s131 = sphi 0, %s115
    %s135 = sphi 0, %s135
    %s137 = sphi 0, %s135
    %s138 = sphi 0, %s137
    %s152 = sphi 0, %s138
    %s158 = sphi 0, %s160
    %s161 = sphi 0, %s158
    %s162 = sphi 0, %s161
    %s178 = sphi 0, %s162
  $region4: #{_lambda_.3} parent=0 // loop_header_branch
    %15 = sbr.rel (%p13) target = $region8
  $region5: #{_lambda_.3} parent=0 // loop_body
    %s17 = ssub.s32 %s12, 1
    %s18 = ssub.s32 %s12, 2
    %s19 = sadd.s32 %s12, 1
    %s20 = ssub.s32 %s12, %s19
    %p21 = scmp.eq.s32.totalorder %s20, 0
    %s23 = sadd.s32 %s22, 1
    %s24 = scalar_select %p21, %s22, %s23
    %p27 = pneg %p21
    %p28 = scmp.eq.s32.totalorder %s12, 1
    %p29 = por %p27, %p28
    %p30 = scmp.ne.s32.totalorder %s22, %s25
    %p31 = scmp.eq.s32.totalorder %s12, 0
    %p32 = por %p30, %p31
    %p33 = scmp.ne.s32.totalorder %s22, %s25
    %p34 = scmp.eq.s32.totalorder %s17, 1
    %p35 = por %p33, %p34
    %p36 = scmp.ne.s32.totalorder %s25, %s26
    %p37 = scmp.eq.s32.totalorder %s17, 0
    %p38 = por %p36, %p37
    %p39 = scmp.ne.s32.totalorder %s25, %s26
    %p40 = scmp.eq.s32.totalorder %s18, 1
    %p41 = por %p39, %p40
    %p43 = scmp.ne.s32.totalorder %s26, %s42
    %p44 = scmp.eq.s32.totalorder %s18, 0
    %p45 = por %p43, %p44
    %s47 = sadd.s32 %s46, 1
    %p50 = scmp.eq.s32.totalorder %s12, 1
    %p51 = scmp.ne.s32.totalorder %s46, %s48
    %p52 = scmp.eq.s32.totalorder %s12, 0
    %p53 = por %p51, %p52
    %p54 = scmp.ne.s32.totalorder %s46, %s48
    %p55 = scmp.eq.s32.totalorder %s17, 1
    %p56 = por %p54, %p55
    %p57 = scmp.ne.s32.totalorder %s48, %s49
    %p58 = scmp.eq.s32.totalorder %s17, 0
    %p59 = por %p57, %p58
    %p60 = scmp.ne.s32.totalorder %s48, %s49
    %p61 = scmp.eq.s32.totalorder %s18, 1
    %p62 = por %p60, %p61
    %p64 = scmp.ne.s32.totalorder %s49, %s63
    %p65 = scmp.eq.s32.totalorder %s18, 0
    %p66 = por %p64, %p65
    %s68 = sadd.s32 %s67, 1
    %p71 = scmp.eq.s32.totalorder %s12, 1
    %p72 = scmp.ne.s32.totalorder %s67, %s69
    %p73 = scmp.eq.s32.totalorder %s12, 0
    %p74 = por %p72, %p73
    %p75 = scmp.ne.s32.totalorder %s67, %s69
    %p76 = scmp.eq.s32.totalorder %s17, 1
    %p77 = por %p75, %p76
    %p78 = scmp.ne.s32.totalorder %s69, %s70
    %p79 = scmp.eq.s32.totalorder %s17, 0
    %p80 = por %p78, %p79
    %p81 = scmp.ne.s32.totalorder %s69, %s70
    %p82 = scmp.eq.s32.totalorder %s18, 1
    %p83 = por %p81, %p82
    %p85 = scmp.ne.s32.totalorder %s70, %s84
    %p86 = scmp.eq.s32.totalorder %s18, 0
    %p87 = por %p85, %p86
    %s89 = sadd.s32 %s88, 1
    %p92 = scmp.eq.s32.totalorder %s12, 1
    %p93 = scmp.ne.s32.totalorder %s88, %s90
    %p94 = scmp.eq.s32.totalorder %s12, 0
    %p95 = por %p93, %p94
    %p96 = scmp.ne.s32.totalorder %s88, %s90
    %p97 = scmp.eq.s32.totalorder %s17, 1
    %p98 = por %p96, %p97
    %p99 = scmp.ne.s32.totalorder %s90, %s91
    %p100 = scmp.eq.s32.totalorder %s17, 0
    %p101 = por %p99, %p100
    %p102 = scmp.ne.s32.totalorder %s90, %s91
    %p103 = scmp.eq.s32.totalorder %s18, 1
    %p104 = por %p102, %p103
    %p106 = scmp.ne.s32.totalorder %s91, %s105
    %p107 = scmp.eq.s32.totalorder %s18, 0
    %p108 = por %p106, %p107
    %s109 = ssub.s32 %s12, %s19
    %p110 = scmp.eq.s32.totalorder %s109, 0
    %s112 = sadd.s32 %s111, 1
    %s113 = scalar_select %p110, %s111, %s112
    %p116 = pneg %p110
    %p117 = scmp.eq.s32.totalorder %s12, 1
    %p118 = por %p116, %p117
    %p119 = scmp.ne.s32.totalorder %s111, %s114
    %p120 = scmp.eq.s32.totalorder %s12, 0
    %p121 = por %p119, %p120
    %p122 = scmp.ne.s32.totalorder %s111, %s114
    %p123 = scmp.eq.s32.totalorder %s17, 1
    %p124 = por %p122, %p123
    %p125 = scmp.ne.s32.totalorder %s114, %s115
    %p126 = scmp.eq.s32.totalorder %s17, 0
    %p127 = por %p125, %p126
    %p128 = scmp.ne.s32.totalorder %s114, %s115
    %p129 = scmp.eq.s32.totalorder %s18, 1
    %p130 = por %p128, %p129
    %p132 = scmp.ne.s32.totalorder %s115, %s131
    %p133 = scmp.eq.s32.totalorder %s18, 0
    %p134 = por %p132, %p133
    %s136 = sadd.s32 %s135, 1
    %p139 = scmp.eq.s32.totalorder %s12, 1
    %p140 = scmp.ne.s32.totalorder %s135, %s137
    %p141 = scmp.eq.s32.totalorder %s12, 0
    %p142 = por %p140, %p141
    %p143 = scmp.ne.s32.totalorder %s135, %s137
    %p144 = scmp.eq.s32.totalorder %s17, 1
    %p145 = por %p143, %p144
    %p146 = scmp.ne.s32.totalorder %s137, %s138
    %p147 = scmp.eq.s32.totalorder %s17, 0
    %p148 = por %p146, %p147
    %p149 = scmp.ne.s32.totalorder %s137, %s138
    %p150 = scmp.eq.s32.totalorder %s18, 1
    %p151 = por %p149, %p150
    %p153 = scmp.ne.s32.totalorder %s138, %s152
    %p154 = scmp.eq.s32.totalorder %s18, 0
    %p155 = por %p153, %p154
    %s156 = ssub.s32 %s12, %s19
    %p157 = scmp.eq.s32.totalorder %s156, 0
    %s159 = sadd.s32 %s158, 1
    %s160 = scalar_select %p157, %s158, %s159
    %p163 = pneg %p157
    %p164 = scmp.eq.s32.totalorder %s12, 1
    %p165 = por %p163, %p164
    %p166 = scmp.ne.s32.totalorder %s158, %s161
    %p167 = scmp.eq.s32.totalorder %s12, 0
    %p168 = por %p166, %p167
    %p169 = scmp.ne.s32.totalorder %s158, %s161
    %p170 = scmp.eq.s32.totalorder %s17, 1
    %p171 = por %p169, %p170
    %p172 = scmp.ne.s32.totalorder %s161, %s162
    %p173 = scmp.eq.s32.totalorder %s17, 0
    %p174 = por %p172, %p173
    %p175 = scmp.ne.s32.totalorder %s161, %s162
    %p176 = scmp.eq.s32.totalorder %s18, 1
    %p177 = por %p175, %p176
    %p179 = scmp.ne.s32.totalorder %s162, %s178
    %p180 = scmp.eq.s32.totalorder %s18, 0
    %p181 = por %p179, %p180
    %p182 = scmp.le.s32.totalorder 1, %s12
    %p183 = scmp.lt.s32.totalorder %s12, 3
    %p184 = pnand %p182, %p183
    %p185 = pneg %p184
    // Predicated region
    $region9: #{_lambda_.3} parent=5 // pred_check
      _
    $region10: #{_lambda_.3} parent=5 // pred_check_branch
      %187 = sbr.rel (%p184) target = $region12
    $region11: #{_lambda_.3} parent=5 // pred_region
      %s188 = ssub.s32 %s12, 1
      // Predicated region
      $region13: #{_lambda_.3} parent=11 // pred_check
        %p189 = pneg %p59
      $region14: #{_lambda_.3} parent=11 // pred_check_branch
        %191 = sbr.rel (%p189) target = $region16
      $region15: #{_lambda_.3} parent=11 // pred_region
        _
      $region16: #{_lambda_.3} parent=11 // pred_fallthru
        _
      // Predicated region
      $region17: #{_lambda_.3} parent=11 // pred_check
        %p192 = pneg %p80
      $region18: #{_lambda_.3} parent=11 // pred_check_branch
        %194 = sbr.rel (%p192) target = $region20
      $region19: #{_lambda_.3} parent=11 // pred_region
        _
      $region20: #{_lambda_.3} parent=11 // pred_fallthru
        _
      // Predicated region
      $region21: #{_lambda_.3} parent=11 // pred_check
        %p195 = pneg %p101
      $region22: #{_lambda_.3} parent=11 // pred_check_branch
        %197 = sbr.rel (%p195) target = $region24
      $region23: #{_lambda_.3} parent=11 // pred_region
        _
      $region24: #{_lambda_.3} parent=11 // pred_fallthru
        _
      // Predicated region
      $region25: #{_lambda_.3} parent=11 // pred_check
        %p198 = pneg %p148
      $region26: #{_lambda_.3} parent=11 // pred_check_branch
        %200 = sbr.rel (%p198) target = $region28
      $region27: #{_lambda_.3} parent=11 // pred_region
        _
      $region28: #{_lambda_.3} parent=11 // pred_fallthru
        _
    $region12: #{_lambda_.3} parent=5 // pred_fallthru
      _
    %p201 = scmp.lt.s32.totalorder %s12, 2
    // Predicated region
    $region29: #{_lambda_.3} parent=5 // pred_check
      %p202 = pneg %p201
    $region30: #{_lambda_.3} parent=5 // pred_check_branch
      %204 = sbr.rel (%p202) target = $region32
    $region31: #{_lambda_.3} parent=5 // pred_region
      // Predicated region
      $region33: #{_lambda_.3} parent=31 // pred_check
        %p205 = pneg %p32
      $region34: #{_lambda_.3} parent=31 // pred_check_branch
        %207 = sbr.rel (%p205) target = $region36
      $region35: #{_lambda_.3} parent=31 // pred_region
        %p208 = scmp.lt.s32.totalorder %s12, 1
        %s209 = scalar_select %p208, %s12, 1
        %s210 = smul.addr %s209, 14
        %s211 = smul.addr %s210, 4
        %s212 = scalar_lea.vmem %s0, %s211
      $region36: #{_lambda_.3} parent=31 // pred_fallthru
        _
      // Predicated region
      $region37: #{_lambda_.3} parent=31 // pred_check
        %p213 = pneg %p121
      $region38: #{_lambda_.3} parent=31 // pred_check_branch
        %215 = sbr.rel (%p213) target = $region40
      $region39: #{_lambda_.3} parent=31 // pred_region
        %p216 = scmp.lt.s32.totalorder %s12, 1
        %s217 = scalar_select %p216, %s12, 1
        %s218 = smul.addr %s217, 14
        %s219 = smul.addr %s218, 8
        %s220 = scalar_lea.vmem %s4, %s219
      $region40: #{_lambda_.3} parent=31 // pred_fallthru
        _
    $region32: #{_lambda_.3} parent=5 // pred_fallthru
      _
    %p221 = scmp.le.s32.totalorder 1, %s12
    %p222 = scmp.lt.s32.totalorder %s12, 3
    %p223 = pnand %p221, %p222
    %p224 = pneg %p223
    // Predicated region
    $region41: #{_lambda_.3} parent=5 // pred_check
      _
    $region42: #{_lambda_.3} parent=5 // pred_check_branch
      %226 = sbr.rel (%p223) target = $region44
    $region43: #{_lambda_.3} parent=5 // pred_region
      %s227 = ssub.s32 %s12, 1
      %p228 = scmp.lt.s32.totalorder %s17, 1
      %s229 = scalar_select %p228, %s17, 1
      %s230 = smul.addr %s229, 14
      %s231 = smul.addr %s230, 4
      %s232 = scalar_lea.vmem %s0, %s231
      %p233 = pneg %p38
      %p234 = pneg %p35
      %p235 = pneg %p59
      %p236 = pneg %p56
      %p237 = pneg %p80
      %p238 = pneg %p77
      %p239 = pneg %p101
      %p240 = pneg %p98
      %p241 = scmp.lt.s32.totalorder %s17, 1
      %s242 = scalar_select %p241, %s17, 1
      %s243 = smul.addr %s242, 14
      %s244 = smul.addr %s243, 8
      %s245 = scalar_lea.vmem %s4, %s244
      %p246 = pneg %p127
      %p247 = pneg %p124
      %p248 = pneg %p148
      %p249 = pneg %p145
      %p250 = pneg %p174
      %p251 = pneg %p171
      %p252 = scmp.lt.s32.totalorder %s17, 1
      %s253 = scalar_select %p252, %s17, 1
      %s254 = smul.addr %s253, 14
      %s255 = smul.addr %s254, 8
      %s256 = scalar_lea.vmem %s6, %s255
      %p257 = scmp.lt.s32.totalorder %s17, 1
      %s258 = scalar_select %p257, %s17, 1
      %s259 = smul.addr %s258, 14
      %s260 = smul.addr %s259, 4
      %s261 = scalar_lea.vmem %s0, %s260
      %p262 = scmp.lt.s32.totalorder %s17, 1
      %s263 = scalar_select %p262, %s17, 1
      %s264 = smul.addr %s263, 14
      %s265 = smul.addr %s264, 8
      %s266 = scalar_lea.vmem %s4, %s265
      %p267 = scmp.lt.s32.totalorder %s17, 1
      %s268 = scalar_select %p267, %s17, 1
      %s269 = smul.addr %s268, 14
      %s270 = smul.addr %s269, 8
      %s271 = scalar_lea.vmem %s6, %s270
      %v273 = vld [vmem:[%s261] sm:$0xf]
      %v274 = vld [vmem:[%s261 + $0x4] sm:$0xf]
      %v275 = vld [vmem:[%s261 + $0x8] sm:$0xf]
      %v276 = vld [vmem:[%s261 + $0xc] sm:$0xf]
      %v277 = vld [vmem:[%s261 + $0x10] sm:$0xf]
      %v278 = vld [vmem:[%s261 + $0x14] sm:$0xf]
      %v279 = vld [vmem:[%s261 + $0x18] sm:$0xf]
      %v280 = vld [vmem:[%s261 + $0x1c] sm:$0xf]
      %v281 = vld [vmem:[%s261 + $0x20] sm:$0xf]
      %v282 = vld [vmem:[%s261 + $0x24] sm:$0xf]
      %v283 = vld [vmem:[%s261 + $0x28] sm:$0xf]
      %v284 = vld [vmem:[%s261 + $0x2c] sm:$0xf]
      %v285 = vld [vmem:[%s261 + $0x30] sm:$0xf]
      %v286 = vld [vmem:[%s261 + $0x34] sm:$0xf]
      %v287 = vunpack.c.l.bf16 %v273
      %v288 = vunpack.c.l.bf16 %v274
      %v289 = vunpack.c.l.bf16 %v275
      %v290 = vunpack.c.l.bf16 %v276
      %v291 = vunpack.c.l.bf16 %v277
      %v292 = vunpack.c.l.bf16 %v278
      %v293 = vunpack.c.l.bf16 %v279
      %v294 = vunpack.c.l.bf16 %v280
      %v295 = vunpack.c.l.bf16 %v281
      %v296 = vunpack.c.l.bf16 %v282
      %v297 = vunpack.c.l.bf16 %v283
      %v298 = vunpack.c.l.bf16 %v284
      %v299 = vunpack.c.l.bf16 %v285
      %v300 = vunpack.c.l.bf16 %v286
      %v301 = vld [vmem:[%s1] sm:$0x1]
      %v303 = vperm.slane %v301, 0
      %v305 = vmul.f32 %v287, %v303
      %v306 = vmul.f32 %v288, %v303
      %v307 = vmul.f32 %v289, %v303
      %v308 = vmul.f32 %v290, %v303
      %v309 = vmul.f32 %v291, %v303
      %v310 = vmul.f32 %v292, %v303
      %v311 = vmul.f32 %v293, %v303
      %v312 = vmul.f32 %v294, %v303
      %v313 = vmul.f32 %v295, %v303
      %v314 = vmul.f32 %v296, %v303
      %v315 = vmul.f32 %v297, %v303
      %v316 = vmul.f32 %v298, %v303
      %v317 = vmul.f32 %v299, %v303
      %v318 = vmul.f32 %v300, %v303
      %v319 = vld [vmem:[%s2] sm:$0x1]
      %v321 = vperm.slane %v319, 0
      %v323 = vadd.f32 %v305, %v321
      %v324 = vadd.f32 %v306, %v321
      %v325 = vadd.f32 %v307, %v321
      %v326 = vadd.f32 %v308, %v321
      %v327 = vadd.f32 %v309, %v321
      %v328 = vadd.f32 %v310, %v321
      %v329 = vadd.f32 %v311, %v321
      %v330 = vadd.f32 %v312, %v321
      %v331 = vadd.f32 %v313, %v321
      %v332 = vadd.f32 %v314, %v321
      %v333 = vadd.f32 %v315, %v321
      %v334 = vadd.f32 %v316, %v321
      %v335 = vadd.f32 %v317, %v321
      %v336 = vadd.f32 %v318, %v321
      %v337 = vmax.f32 %v323, 0.0
      %v338 = vmax.f32 %v324, 0.0
      %v339 = vmax.f32 %v325, 0.0
      %v340 = vmax.f32 %v326, 0.0
      %v341 = vmax.f32 %v327, 0.0
      %v342 = vmax.f32 %v328, 0.0
      %v343 = vmax.f32 %v329, 0.0
      %v344 = vmax.f32 %v330, 0.0
      %v345 = vmax.f32 %v331, 0.0
      %v346 = vmax.f32 %v332, 0.0
      %v347 = vmax.f32 %v333, 0.0
      %v348 = vmax.f32 %v334, 0.0
      %v349 = vmax.f32 %v335, 0.0
      %v350 = vmax.f32 %v336, 0.0
      %v351 = vld [vmem:[%s5] sm:$0xff]
      %v352 = vld [vmem:[%s5 + $0x8] sm:$0xff]
      %v353 = vld [vmem:[%s5 + $0x10] sm:$0xff]
      %v354 = vld [vmem:[%s5 + $0x18] sm:$0xff]
      %v355 = vld [vmem:[%s5 + $0x20] sm:$0xff]
      %v356 = vld [vmem:[%s5 + $0x28] sm:$0xff]
      %v357 = vld [vmem:[%s5 + $0x30] sm:$0xff]
      %v358 = vld [vmem:[%s5 + $0x38] sm:$0xff]
      %v359 = vld [vmem:[%s5 + $0x40] sm:$0xff]
      %v360 = vld [vmem:[%s5 + $0x48] sm:$0xff]
      %v361 = vld [vmem:[%s5 + $0x50] sm:$0xff]
      %v362 = vld [vmem:[%s5 + $0x58] sm:$0xff]
      %v363 = vld [vmem:[%s5 + $0x60] sm:$0xff]
      %v364 = vld [vmem:[%s5 + $0x68] sm:$0xff]
      %366 = vset.pattern.permute.xlu0 0
      %367 = vperm.xlu0 %366, %v351
      %v368 = vpop.permute.xlu0 %367
      %371 = vset.pattern.permute.xlu0 0
      %372 = vperm.xlu0 %371, %v352
      %v373 = vpop.permute.xlu0 %372
      %376 = vset.pattern.permute.xlu0 0
      %377 = vperm.xlu0 %376, %v353
      %v378 = vpop.permute.xlu0 %377
      %381 = vset.pattern.permute.xlu0 0
      %382 = vperm.xlu0 %381, %v354
      %v383 = vpop.permute.xlu0 %382
      %386 = vset.pattern.permute.xlu0 0
      %387 = vperm.xlu0 %386, %v355
      %v388 = vpop.permute.xlu0 %387
      %391 = vset.pattern.permute.xlu0 0
      %392 = vperm.xlu0 %391, %v356
      %v393 = vpop.permute.xlu0 %392
      %396 = vset.pattern.permute.xlu0 0
      %397 = vperm.xlu0 %396, %v357
      %v398 = vpop.permute.xlu0 %397
      %401 = vset.pattern.permute.xlu0 0
      %402 = vperm.xlu0 %401, %v358
      %v403 = vpop.permute.xlu0 %402
      %406 = vset.pattern.permute.xlu0 0
      %407 = vperm.xlu0 %406, %v359
      %v408 = vpop.permute.xlu0 %407
      %411 = vset.pattern.permute.xlu0 0
      %412 = vperm.xlu0 %411, %v360
      %v413 = vpop.permute.xlu0 %412
      %416 = vset.pattern.permute.xlu0 0
      %417 = vperm.xlu0 %416, %v361
      %v418 = vpop.permute.xlu0 %417
      %421 = vset.pattern.permute.xlu0 0
      %422 = vperm.xlu0 %421, %v362
      %v423 = vpop.permute.xlu0 %422
      %426 = vset.pattern.permute.xlu0 0
      %427 = vperm.xlu0 %426, %v363
      %v428 = vpop.permute.xlu0 %427
      %431 = vset.pattern.permute.xlu0 0
      %432 = vperm.xlu0 %431, %v364
      %v433 = vpop.permute.xlu0 %432
      %v435 = vmul.f32 %v337, %v368
      %v436 = vmul.f32 %v338, %v373
      %v437 = vmul.f32 %v339, %v378
      %v438 = vmul.f32 %v340, %v383
      %v439 = vmul.f32 %v341, %v388
      %v440 = vmul.f32 %v342, %v393
      %v441 = vmul.f32 %v343, %v398
      %v442 = vmul.f32 %v344, %v403
      %v443 = vmul.f32 %v345, %v408
      %v444 = vmul.f32 %v346, %v413
      %v445 = vmul.f32 %v347, %v418
      %v446 = vmul.f32 %v348, %v423
      %v447 = vmul.f32 %v349, %v428
      %v448 = vmul.f32 %v350, %v433
      %449 = vst [vmem:[#allocation2] sm:$0xf] 0
      %450 = vst [vmem:[#allocation2 + $0x4] sm:$0xf] 0
      %451 = vst [vmem:[#allocation2 + $0x40] sm:$0xf] 0
      %452 = vst [vmem:[#allocation2 + $0x44] sm:$0xf] 0
      %v453 = vpack.c.bf16 %v435, %v435
      %v454 = vpack.c.bf16 %v436, %v436
      %v455 = vpack.c.bf16 %v437, %v437
      %v456 = vpack.c.bf16 %v438, %v438
      %v457 = vpack.c.bf16 %v439, %v439
      %v458 = vpack.c.bf16 %v440, %v440
      %v459 = vpack.c.bf16 %v441, %v441
      %v460 = vpack.c.bf16 %v442, %v442
      %v461 = vpack.c.bf16 %v443, %v443
      %v462 = vpack.c.bf16 %v444, %v444
      %v463 = vpack.c.bf16 %v445, %v445
      %v464 = vpack.c.bf16 %v446, %v446
      %v465 = vpack.c.bf16 %v447, %v447
      %v466 = vpack.c.bf16 %v448, %v448
      %467 = vst [vmem:[#allocation2 + $0x8] sm:$0xf] %v453
      %468 = vst [vmem:[#allocation2 + $0xc] sm:$0xf] %v454
      %469 = vst [vmem:[#allocation2 + $0x10] sm:$0xf] %v455
      %470 = vst [vmem:[#allocation2 + $0x14] sm:$0xf] %v456
      %471 = vst [vmem:[#allocation2 + $0x18] sm:$0xf] %v457
      %472 = vst [vmem:[#allocation2 + $0x1c] sm:$0xf] %v458
      %473 = vst [vmem:[#allocation2 + $0x20] sm:$0xf] %v459
      %474 = vst [vmem:[#allocation2 + $0x24] sm:$0xf] %v460
      %475 = vst [vmem:[#allocation2 + $0x28] sm:$0xf] %v461
      %476 = vst [vmem:[#allocation2 + $0x2c] sm:$0xf] %v462
      %477 = vst [vmem:[#allocation2 + $0x30] sm:$0xf] %v463
      %478 = vst [vmem:[#allocation2 + $0x34] sm:$0xf] %v464
      %479 = vst [vmem:[#allocation2 + $0x38] sm:$0xf] %v465
      %480 = vst [vmem:[#allocation2 + $0x3c] sm:$0xf] %v466
      %v481 = vld [vmem:[#allocation2] sm:$0xc]
      %v482 = vld [vmem:[#allocation2 + $0x4] sm:$0xf]
      %v483 = vld [vmem:[#allocation2 + $0x8] sm:$0xf]
      %v484 = vld [vmem:[#allocation2 + $0xc] sm:$0xf]
      %v485 = vld [vmem:[#allocation2 + $0x10] sm:$0xf]
      %v486 = vld [vmem:[#allocation2 + $0x14] sm:$0xf]
      %v487 = vld [vmem:[#allocation2 + $0x18] sm:$0xf]
      %v488 = vld [vmem:[#allocation2 + $0x1c] sm:$0xf]
      %v489 = vld [vmem:[#allocation2 + $0x20] sm:$0xf]
      %v490 = vld [vmem:[#allocation2 + $0x24] sm:$0xf]
      %v491 = vld [vmem:[#allocation2 + $0x28] sm:$0xf]
      %v492 = vld [vmem:[#allocation2 + $0x2c] sm:$0xf]
      %v493 = vld [vmem:[#allocation2 + $0x30] sm:$0xf]
      %v494 = vld [vmem:[#allocation2 + $0x34] sm:$0xf]
      %v495 = vld [vmem:[#allocation2 + $0x38] sm:$0x7]
      %v496 = vld [vmem:[%s3] sm:$0xf]
      %v497 = vld [vmem:[%s3 + $0x4] sm:$0xf]
      %v498 = vld [vmem:[%s3 + $0x8] sm:$0xf]
      %v499 = vld [vmem:[%s3 + $0xc] sm:$0xf]
      %v500 = vld [vmem:[%s3 + $0x10] sm:$0xf]
      %v501 = vld [vmem:[%s3 + $0x14] sm:$0xf]
      %v502 = vld [vmem:[%s3 + $0x18] sm:$0xf]
      %v503 = vld [vmem:[%s3 + $0x1c] sm:$0xf]
      %v504 = vld [vmem:[%s3 + $0x20] sm:$0xf]
      %v505 = vld [vmem:[%s3 + $0x24] sm:$0xf]
      %v506 = vld [vmem:[%s3 + $0x28] sm:$0xf]
      %v507 = vld [vmem:[%s3 + $0x2c] sm:$0xf]
      %v508 = vld [vmem:[%s3 + $0x30] sm:$0xf]
      %v509 = vld [vmem:[%s3 + $0x34] sm:$0xf]
      %v510 = vld [vmem:[%s3 + $0x38] sm:$0xf]
      %v511 = vld [vmem:[%s3 + $0x3c] sm:$0xf]
      %v527 = vunpack.c.l.b16 %v481
      %v528 = vunpack.c.l.b16 %v482
      %v529 = vunpack.c.l.b16 %v483
      %v530 = vunpack.c.l.b16 %v484
      %v531 = vunpack.c.l.b16 %v485
      %v532 = vunpack.c.l.b16 %v486
      %v533 = vunpack.c.l.b16 %v487
      %v534 = vunpack.c.l.b16 %v488
      %v535 = vunpack.c.l.b16 %v489
      %v536 = vunpack.c.l.b16 %v490
      %v537 = vunpack.c.l.b16 %v491
      %v538 = vunpack.c.l.b16 %v492
      %v539 = vunpack.c.l.b16 %v493
      %v540 = vunpack.c.l.b16 %v494
      %v541 = vunpack.c.l.b16 %v495
      %v542 = vpack.c.b16 %v528, %v527
      %v543 = vpack.c.b16 %v530, %v529
      %v544 = vpack.c.b16 %v532, %v531
      %v545 = vpack.c.b16 %v534, %v533
      %v546 = vpack.c.b16 %v536, %v535
      %v547 = vpack.c.b16 %v538, %v537
      %v548 = vpack.c.b16 %v540, %v539
      %v549 = vpack.c.b16 %v541, %v541
      %vm550 = vsmask.f32 5376
      %v552 = vshrl.u32 %v542, 16
      %v554 = vrot.slane %v552, 2
      %v555 = vshll.u32 %v542, 16
      %v557 = vrot.slane %v555, 3
      %v558 = vor.u32 %v554, %v557
      %v560 = vshrl.u32 %v543, 16
      %v562 = vrot.slane %v560, 2
      %v563 = vshll.u32 %v543, 16
      %v565 = vrot.slane %v563, 3
      %v566 = vor.u32 %v562, %v565
      %v567 = vsel %vm550, %v558, %v566
      %v569 = vshrl.u32 %v544, 16
      %v571 = vrot.slane %v569, 2
      %v572 = vshll.u32 %v544, 16
      %v574 = vrot.slane %v572, 3
      %v575 = vor.u32 %v571, %v574
      %v576 = vsel %vm550, %v566, %v575
      %v578 = vshrl.u32 %v545, 16
      %v580 = vrot.slane %v578, 2
      %v581 = vshll.u32 %v545, 16
      %v583 = vrot.slane %v581, 3
      %v584 = vor.u32 %v580, %v583
      %v585 = vsel %vm550, %v575, %v584
      %v587 = vshrl.u32 %v546, 16
      %v589 = vrot.slane %v587, 2
      %v590 = vshll.u32 %v546, 16
      %v592 = vrot.slane %v590, 3
      %v593 = vor.u32 %v589, %v592
      %v594 = vsel %vm550, %v584, %v593
      %v596 = vshrl.u32 %v547, 16
      %v598 = vrot.slane %v596, 2
      %v599 = vshll.u32 %v547, 16
      %v601 = vrot.slane %v599, 3
      %v602 = vor.u32 %v598, %v601
      %v603 = vsel %vm550, %v593, %v602
      %v605 = vshrl.u32 %v548, 16
      %v607 = vrot.slane %v605, 2
      %v608 = vshll.u32 %v548, 16
      %v610 = vrot.slane %v608, 3
      %v611 = vor.u32 %v607, %v610
      %v612 = vsel %vm550, %v602, %v611
      %v614 = vshrl.u32 %v549, 16
      %v616 = vrot.slane %v614, 2
      %v617 = vshll.u32 %v549, 16
      %v619 = vrot.slane %v617, 3
      %v620 = vor.u32 %v616, %v619
      %v621 = vsel %vm550, %v611, %v620
      %v645 = vunpack.c.l.b16 %v496
      %v646 = vunpack.c.l.b16 %v497
      %v647 = vunpack.c.l.b16 %v498
      %v648 = vunpack.c.l.b16 %v499
      %v649 = vunpack.c.l.b16 %v500
      %v650 = vunpack.c.l.b16 %v501
      %v651 = vunpack.c.l.b16 %v502
      %v652 = vunpack.c.l.b16 %v503
      %v653 = vunpack.c.l.b16 %v504
      %v654 = vunpack.c.l.b16 %v505
      %v655 = vunpack.c.l.b16 %v506
      %v656 = vunpack.c.l.b16 %v507
      %v657 = vunpack.c.l.b16 %v508
      %v658 = vunpack.c.l.b16 %v509
      %v659 = vunpack.c.l.b16 %v510
      %v660 = vunpack.c.l.b16 %v511
      %v661 = vpack.c.b16 %v646, %v645
      %v662 = vpack.c.b16 %v648, %v647
      %v663 = vpack.c.b16 %v650, %v649
      %v664 = vpack.c.b16 %v652, %v651
      %v665 = vpack.c.b16 %v654, %v653
      %v666 = vpack.c.b16 %v656, %v655
      %v667 = vpack.c.b16 %v658, %v657
      %v668 = vpack.c.b16 %v660, %v659
      %677 = vmatpush.bf16.msra.mxu0 %v668
      %678 = vmatpush.bf16.msra.mxu0 %v667
      %679 = vmatpush.bf16.msra.mxu0 %v666
      %680 = vmatpush.bf16.msra.mxu0 %v665
      %681 = vmatpush.bf16.msra.mxu0 %v664
      %682 = vmatpush.bf16.msra.mxu0 %v663
      %683 = vmatpush.bf16.msra.mxu0 %v662
      %684 = vmatpush.bf16.msra.mxu0 %v661
      %685 = vmatmul.bf16.gmra.mxu0 %v567
      %v686 = vpop.f32.mrf.mxu0
      %v687 = vadd.f32 0.0, %v686
      %v688 = vpop.f32.mrf.mxu0
      %v689 = vadd.f32 0.0, %v688
      %690 = vmatmul.bf16.gmra.mxu0 %v576
      %v691 = vpop.f32.mrf.mxu0
      %v692 = vadd.f32 0.0, %v691
      %v693 = vpop.f32.mrf.mxu0
      %v694 = vadd.f32 0.0, %v693
      %695 = vmatmul.bf16.gmra.mxu0 %v585
      %v696 = vpop.f32.mrf.mxu0
      %v697 = vadd.f32 0.0, %v696
      %v698 = vpop.f32.mrf.mxu0
      %v699 = vadd.f32 0.0, %v698
      %700 = vmatmul.bf16.gmra.mxu0 %v594
      %v701 = vpop.f32.mrf.mxu0
      %v702 = vadd.f32 0.0, %v701
      %v703 = vpop.f32.mrf.mxu0
      %v704 = vadd.f32 0.0, %v703
      %705 = vmatmul.bf16.gmra.mxu0 %v603
      %v706 = vpop.f32.mrf.mxu0
      %v707 = vadd.f32 0.0, %v706
      %v708 = vpop.f32.mrf.mxu0
      %v709 = vadd.f32 0.0, %v708
      %710 = vmatmul.bf16.gmra.mxu0 %v612
      %v711 = vpop.f32.mrf.mxu0
      %v712 = vadd.f32 0.0, %v711
      %v713 = vpop.f32.mrf.mxu0
      %v714 = vadd.f32 0.0, %v713
      %715 = vmatmul.bf16.gmra.mxu0 %v621
      %v716 = vpop.f32.mrf.mxu0
      %v717 = vadd.f32 0.0, %v716
      %v718 = vpop.f32.mrf.mxu0
      %v719 = vadd.f32 0.0, %v718
      %720 = vdwg.mxu0
      %721 = vst [vmem:[#allocation3] sm:$0xff] %v687
      %722 = vst [vmem:[#allocation3 + $0x8] sm:$0xff] %v689
      %723 = vst [vmem:[#allocation3 + $0x10] sm:$0xff] %v692
      %724 = vst [vmem:[#allocation3 + $0x18] sm:$0xff] %v694
      %725 = vst [vmem:[#allocation3 + $0x20] sm:$0xff] %v697
      %726 = vst [vmem:[#allocation3 + $0x28] sm:$0xff] %v699
      %727 = vst [vmem:[#allocation3 + $0x30] sm:$0xff] %v702
      %728 = vst [vmem:[#allocation3 + $0x38] sm:$0xff] %v704
      %729 = vst [vmem:[#allocation3 + $0x40] sm:$0xff] %v707
      %730 = vst [vmem:[#allocation3 + $0x48] sm:$0xff] %v709
      %731 = vst [vmem:[#allocation3 + $0x50] sm:$0xff] %v712
      %732 = vst [vmem:[#allocation3 + $0x58] sm:$0xff] %v714
      %733 = vst [vmem:[#allocation3 + $0x60] sm:$0xff] %v717
      %734 = vst [vmem:[#allocation3 + $0x68] sm:$0xff] %v719
      %v735 = vld [vmem:[#allocation3] sm:$0xff]
      %v736 = vld [vmem:[#allocation3 + $0x8] sm:$0xff]
      %v737 = vld [vmem:[#allocation3 + $0x10] sm:$0xff]
      %v738 = vld [vmem:[#allocation3 + $0x18] sm:$0xff]
      %v739 = vld [vmem:[#allocation3 + $0x20] sm:$0xff]
      %v740 = vld [vmem:[#allocation3 + $0x28] sm:$0xff]
      %v741 = vld [vmem:[#allocation3 + $0x30] sm:$0xff]
      %v742 = vld [vmem:[#allocation3 + $0x38] sm:$0xff]
      %v743 = vld [vmem:[#allocation3 + $0x40] sm:$0xff]
      %v744 = vld [vmem:[#allocation3 + $0x48] sm:$0xff]
      %v745 = vld [vmem:[#allocation3 + $0x50] sm:$0xff]
      %v746 = vld [vmem:[#allocation3 + $0x58] sm:$0xff]
      %v747 = vld [vmem:[#allocation3 + $0x60] sm:$0xff]
      %v748 = vld [vmem:[#allocation3 + $0x68] sm:$0xff]
      %v749 = vld [vmem:[#allocation2] sm:$0x8]
      %v750 = vld [vmem:[#allocation2 + $0x4] sm:$0xf]
      %v751 = vld [vmem:[#allocation2 + $0x8] sm:$0xf]
      %v752 = vld [vmem:[#allocation2 + $0xc] sm:$0xf]
      %v753 = vld [vmem:[#allocation2 + $0x10] sm:$0xf]
      %v754 = vld [vmem:[#allocation2 + $0x14] sm:$0xf]
      %v755 = vld [vmem:[#allocation2 + $0x18] sm:$0xf]
      %v756 = vld [vmem:[#allocation2 + $0x1c] sm:$0xf]
      %v757 = vld [vmem:[#allocation2 + $0x20] sm:$0xf]
      %v758 = vld [vmem:[#allocation2 + $0x24] sm:$0xf]
      %v759 = vld [vmem:[#allocation2 + $0x28] sm:$0xf]
      %v760 = vld [vmem:[#allocation2 + $0x2c] sm:$0xf]
      %v761 = vld [vmem:[#allocation2 + $0x30] sm:$0xf]
      %v762 = vld [vmem:[#allocation2 + $0x34] sm:$0xf]
      %v763 = vld [vmem:[#allocation2 + $0x38] sm:$0x7]
      %s764 = scalar_lea.vmem %s3, 64
      %v765 = vld [vmem:[%s764] sm:$0xf]
      %v766 = vld [vmem:[%s764 + $0x4] sm:$0xf]
      %v767 = vld [vmem:[%s764 + $0x8] sm:$0xf]
      %v768 = vld [vmem:[%s764 + $0xc] sm:$0xf]
      %v769 = vld [vmem:[%s764 + $0x10] sm:$0xf]
      %v770 = vld [vmem:[%s764 + $0x14] sm:$0xf]
      %v771 = vld [vmem:[%s764 + $0x18] sm:$0xf]
      %v772 = vld [vmem:[%s764 + $0x1c] sm:$0xf]
      %v773 = vld [vmem:[%s764 + $0x20] sm:$0xf]
      %v774 = vld [vmem:[%s764 + $0x24] sm:$0xf]
      %v775 = vld [vmem:[%s764 + $0x28] sm:$0xf]
      %v776 = vld [vmem:[%s764 + $0x2c] sm:$0xf]
      %v777 = vld [vmem:[%s764 + $0x30] sm:$0xf]
      %v778 = vld [vmem:[%s764 + $0x34] sm:$0xf]
      %v779 = vld [vmem:[%s764 + $0x38] sm:$0xf]
      %v780 = vld [vmem:[%s764 + $0x3c] sm:$0xf]
      %v796 = vunpack.c.l.b16 %v749
      %v797 = vunpack.c.l.b16 %v750
      %v798 = vunpack.c.l.b16 %v751
      %v799 = vunpack.c.l.b16 %v752
      %v800 = vunpack.c.l.b16 %v753
      %v801 = vunpack.c.l.b16 %v754
      %v802 = vunpack.c.l.b16 %v755
      %v803 = vunpack.c.l.b16 %v756
      %v804 = vunpack.c.l.b16 %v757
      %v805 = vunpack.c.l.b16 %v758
      %v806 = vunpack.c.l.b16 %v759
      %v807 = vunpack.c.l.b16 %v760
      %v808 = vunpack.c.l.b16 %v761
      %v809 = vunpack.c.l.b16 %v762
      %v810 = vunpack.c.l.b16 %v763
      %v811 = vpack.c.b16 %v797, %v796
      %v812 = vpack.c.b16 %v799, %v798
      %v813 = vpack.c.b16 %v801, %v800
      %v814 = vpack.c.b16 %v803, %v802
      %v815 = vpack.c.b16 %v805, %v804
      %v816 = vpack.c.b16 %v807, %v806
      %v817 = vpack.c.b16 %v809, %v808
      %v818 = vpack.c.b16 %v810, %v810
      %vm819 = vcmask 1044480
      %v820 = vrot.slane %v811, 3
      %v821 = vrot.slane %v812, 3
      %v822 = vsel %vm819, %v820, %v821
      %v823 = vrot.slane %v813, 3
      %v824 = vsel %vm819, %v821, %v823
      %v825 = vrot.slane %v814, 3
      %v826 = vsel %vm819, %v823, %v825
      %v827 = vrot.slane %v815, 3
      %v828 = vsel %vm819, %v825, %v827
      %v829 = vrot.slane %v816, 3
      %v830 = vsel %vm819, %v827, %v829
      %v831 = vrot.slane %v817, 3
      %v832 = vsel %vm819, %v829, %v831
      %v833 = vrot.slane %v818, 3
      %v834 = vsel %vm819, %v831, %v833
      %v858 = vunpack.c.l.b16 %v765
      %v859 = vunpack.c.l.b16 %v766
      %v860 = vunpack.c.l.b16 %v767
      %v861 = vunpack.c.l.b16 %v768
      %v862 = vunpack.c.l.b16 %v769
      %v863 = vunpack.c.l.b16 %v770
      %v864 = vunpack.c.l.b16 %v771
      %v865 = vunpack.c.l.b16 %v772
      %v866 = vunpack.c.l.b16 %v773
      %v867 = vunpack.c.l.b16 %v774
      %v868 = vunpack.c.l.b16 %v775
      %v869 = vunpack.c.l.b16 %v776
      %v870 = vunpack.c.l.b16 %v777
      %v871 = vunpack.c.l.b16 %v778
      %v872 = vunpack.c.l.b16 %v779
      %v873 = vunpack.c.l.b16 %v780
      %v874 = vpack.c.b16 %v859, %v858
      %v875 = vpack.c.b16 %v861, %v860
      %v876 = vpack.c.b16 %v863, %v862
      %v877 = vpack.c.b16 %v865, %v864
      %v878 = vpack.c.b16 %v867, %v866
      %v879 = vpack.c.b16 %v869, %v868
      %v880 = vpack.c.b16 %v871, %v870
      %v881 = vpack.c.b16 %v873, %v872
      %890 = vmatpush.bf16.msra.mxu0 %v881
      %891 = vmatpush.bf16.msra.mxu0 %v880
      %892 = vmatpush.bf16.msra.mxu0 %v879
      %893 = vmatpush.bf16.msra.mxu0 %v878
      %894 = vmatpush.bf16.msra.mxu0 %v877
      %895 = vmatpush.bf16.msra.mxu0 %v876
      %896 = vmatpush.bf16.msra.mxu0 %v875
      %897 = vmatpush.bf16.msra.mxu0 %v874
      %898 = vmatmul.bf16.gmra.mxu0 %v822
      %v899 = vpop.f32.mrf.mxu0
      %v900 = vadd.f32 0.0, %v899
      %v901 = vpop.f32.mrf.mxu0
      %v902 = vadd.f32 0.0, %v901
      %903 = vmatmul.bf16.gmra.mxu0 %v824
      %v904 = vpop.f32.mrf.mxu0
      %v905 = vadd.f32 0.0, %v904
      %v906 = vpop.f32.mrf.mxu0
      %v907 = vadd.f32 0.0, %v906
      %908 = vmatmul.bf16.gmra.mxu0 %v826
      %v909 = vpop.f32.mrf.mxu0
      %v910 = vadd.f32 0.0, %v909
      %v911 = vpop.f32.mrf.mxu0
      %v912 = vadd.f32 0.0, %v911
      %913 = vmatmul.bf16.gmra.mxu0 %v828
      %v914 = vpop.f32.mrf.mxu0
      %v915 = vadd.f32 0.0, %v914
      %v916 = vpop.f32.mrf.mxu0
      %v917 = vadd.f32 0.0, %v916
      %918 = vmatmul.bf16.gmra.mxu0 %v830
      %v919 = vpop.f32.mrf.mxu0
      %v920 = vadd.f32 0.0, %v919
      %v921 = vpop.f32.mrf.mxu0
      %v922 = vadd.f32 0.0, %v921
      %923 = vmatmul.bf16.gmra.mxu0 %v832
      %v924 = vpop.f32.mrf.mxu0
      %v925 = vadd.f32 0.0, %v924
      %v926 = vpop.f32.mrf.mxu0
      %v927 = vadd.f32 0.0, %v926
      %928 = vmatmul.bf16.gmra.mxu0 %v834
      %v929 = vpop.f32.mrf.mxu0
      %v930 = vadd.f32 0.0, %v929
      %v931 = vpop.f32.mrf.mxu0
      %v932 = vadd.f32 0.0, %v931
      %933 = vdwg.mxu0
      %v934 = vadd.f32 %v735, %v900
      %v935 = vadd.f32 %v736, %v902
      %v936 = vadd.f32 %v737, %v905
      %v937 = vadd.f32 %v738, %v907
      %v938 = vadd.f32 %v739, %v910
      %v939 = vadd.f32 %v740, %v912
      %v940 = vadd.f32 %v741, %v915
      %v941 = vadd.f32 %v742, %v917
      %v942 = vadd.f32 %v743, %v920
      %v943 = vadd.f32 %v744, %v922
      %v944 = vadd.f32 %v745, %v925
      %v945 = vadd.f32 %v746, %v927
      %v946 = vadd.f32 %v747, %v930
      %v947 = vadd.f32 %v748, %v932
      %948 = vst [vmem:[#allocation3] sm:$0xff] %v934
      %949 = vst [vmem:[#allocation3 + $0x8] sm:$0xff] %v935
      %950 = vst [vmem:[#allocation3 + $0x10] sm:$0xff] %v936
      %951 = vst [vmem:[#allocation3 + $0x18] sm:$0xff] %v937
      %952 = vst [vmem:[#allocation3 + $0x20] sm:$0xff] %v938
      %953 = vst [vmem:[#allocation3 + $0x28] sm:$0xff] %v939
      %954 = vst [vmem:[#allocation3 + $0x30] sm:$0xff] %v940
      %955 = vst [vmem:[#allocation3 + $0x38] sm:$0xff] %v941
      %956 = vst [vmem:[#allocation3 + $0x40] sm:$0xff] %v942
      %957 = vst [vmem:[#allocation3 + $0x48] sm:$0xff] %v943
      %958 = vst [vmem:[#allocation3 + $0x50] sm:$0xff] %v944
      %959 = vst [vmem:[#allocation3 + $0x58] sm:$0xff] %v945
      %960 = vst [vmem:[#allocation3 + $0x60] sm:$0xff] %v946
      %961 = vst [vmem:[#allocation3 + $0x68] sm:$0xff] %v947
      %v962 = vld [vmem:[#allocation3] sm:$0xff]
      %v963 = vld [vmem:[#allocation3 + $0x8] sm:$0xff]
      %v964 = vld [vmem:[#allocation3 + $0x10] sm:$0xff]
      %v965 = vld [vmem:[#allocation3 + $0x18] sm:$0xff]
      %v966 = vld [vmem:[#allocation3 + $0x20] sm:$0xff]
      %v967 = vld [vmem:[#allocation3 + $0x28] sm:$0xff]
      %v968 = vld [vmem:[#allocation3 + $0x30] sm:$0xff]
      %v969 = vld [vmem:[#allocation3 + $0x38] sm:$0xff]
      %v970 = vld [vmem:[#allocation3 + $0x40] sm:$0xff]
      %v971 = vld [vmem:[#allocation3 + $0x48] sm:$0xff]
      %v972 = vld [vmem:[#allocation3 + $0x50] sm:$0xff]
      %v973 = vld [vmem:[#allocation3 + $0x58] sm:$0xff]
      %v974 = vld [vmem:[#allocation3 + $0x60] sm:$0xff]
      %v975 = vld [vmem:[#allocation3 + $0x68] sm:$0xff]
      %v976 = vld [vmem:[#allocation2] sm:$0x8]
      %v977 = vld [vmem:[#allocation2 + $0x4] sm:$0xf]
      %v978 = vld [vmem:[#allocation2 + $0x8] sm:$0xf]
      %v979 = vld [vmem:[#allocation2 + $0xc] sm:$0xf]
      %v980 = vld [vmem:[#allocation2 + $0x10] sm:$0xf]
      %v981 = vld [vmem:[#allocation2 + $0x14] sm:$0xf]
      %v982 = vld [vmem:[#allocation2 + $0x18] sm:$0xf]
      %v983 = vld [vmem:[#allocation2 + $0x1c] sm:$0xf]
      %v984 = vld [vmem:[#allocation2 + $0x20] sm:$0xf]
      %v985 = vld [vmem:[#allocation2 + $0x24] sm:$0xf]
      %v986 = vld [vmem:[#allocation2 + $0x28] sm:$0xf]
      %v987 = vld [vmem:[#allocation2 + $0x2c] sm:$0xf]
      %v988 = vld [vmem:[#allocation2 + $0x30] sm:$0xf]
      %v989 = vld [vmem:[#allocation2 + $0x34] sm:$0xf]
      %v990 = vld [vmem:[#allocation2 + $0x38] sm:$0xf]
      %s991 = scalar_lea.vmem %s3, 128
      %v992 = vld [vmem:[%s991] sm:$0xf]
      %v993 = vld [vmem:[%s991 + $0x4] sm:$0xf]
      %v994 = vld [vmem:[%s991 + $0x8] sm:$0xf]
      %v995 = vld [vmem:[%s991 + $0xc] sm:$0xf]
      %v996 = vld [vmem:[%s991 + $0x10] sm:$0xf]
      %v997 = vld [vmem:[%s991 + $0x14] sm:$0xf]
      %v998 = vld [vmem:[%s991 + $0x18] sm:$0xf]
      %v999 = vld [vmem:[%s991 + $0x1c] sm:$0xf]
      %v1000 = vld [vmem:[%s991 + $0x20] sm:$0xf]
      %v1001 = vld [vmem:[%s991 + $0x24] sm:$0xf]
      %v1002 = vld [vmem:[%s991 + $0x28] sm:$0xf]
      %v1003 = vld [vmem:[%s991 + $0x2c] sm:$0xf]
      %v1004 = vld [vmem:[%s991 + $0x30] sm:$0xf]
      %v1005 = vld [vmem:[%s991 + $0x34] sm:$0xf]
      %v1006 = vld [vmem:[%s991 + $0x38] sm:$0xf]
      %v1007 = vld [vmem:[%s991 + $0x3c] sm:$0xf]
      %v1023 = vunpack.c.l.b16 %v976
      %v1024 = vunpack.c.l.b16 %v977
      %v1025 = vunpack.c.l.b16 %v978
      %v1026 = vunpack.c.l.b16 %v979
      %v1027 = vunpack.c.l.b16 %v980
      %v1028 = vunpack.c.l.b16 %v981
      %v1029 = vunpack.c.l.b16 %v982
      %v1030 = vunpack.c.l.b16 %v983
      %v1031 = vunpack.c.l.b16 %v984
      %v1032 = vunpack.c.l.b16 %v985
      %v1033 = vunpack.c.l.b16 %v986
      %v1034 = vunpack.c.l.b16 %v987
      %v1035 = vunpack.c.l.b16 %v988
      %v1036 = vunpack.c.l.b16 %v989
      %v1037 = vunpack.c.l.b16 %v990
      %v1038 = vpack.c.b16 %v1024, %v1023
      %v1039 = vpack.c.b16 %v1026, %v1025
      %v1040 = vpack.c.b16 %v1028, %v1027
      %v1041 = vpack.c.b16 %v1030, %v1029
      %v1042 = vpack.c.b16 %v1032, %v1031
      %v1043 = vpack.c.b16 %v1034, %v1033
      %v1044 = vpack.c.b16 %v1036, %v1035
      %v1045 = vpack.c.b16 %v1037, %v1037
      %vm1046 = vsmask.f32 4352
      %v1048 = vshrl.u32 %v1038, 16
      %v1050 = vrot.slane %v1048, 3
      %v1051 = vshll.u32 %v1038, 16
      %v1053 = vrot.slane %v1051, 4
      %v1054 = vor.u32 %v1050, %v1053
      %v1056 = vshrl.u32 %v1039, 16
      %v1058 = vrot.slane %v1056, 3
      %v1059 = vshll.u32 %v1039, 16
      %v1061 = vrot.slane %v1059, 4
      %v1062 = vor.u32 %v1058, %v1061
      %v1063 = vsel %vm1046, %v1054, %v1062
      %v1065 = vshrl.u32 %v1040, 16
      %v1067 = vrot.slane %v1065, 3
      %v1068 = vshll.u32 %v1040, 16
      %v1070 = vrot.slane %v1068, 4
      %v1071 = vor.u32 %v1067, %v1070
      %v1072 = vsel %vm1046, %v1062, %v1071
      %v1074 = vshrl.u32 %v1041, 16
      %v1076 = vrot.slane %v1074, 3
      %v1077 = vshll.u32 %v1041, 16
      %v1079 = vrot.slane %v1077, 4
      %v1080 = vor.u32 %v1076, %v1079
      %v1081 = vsel %vm1046, %v1071, %v1080
      %v1083 = vshrl.u32 %v1042, 16
      %v1085 = vrot.slane %v1083, 3
      %v1086 = vshll.u32 %v1042, 16
      %v1088 = vrot.slane %v1086, 4
      %v1089 = vor.u32 %v1085, %v1088
      %v1090 = vsel %vm1046, %v1080, %v1089
      %v1092 = vshrl.u32 %v1043, 16
      %v1094 = vrot.slane %v1092, 3
      %v1095 = vshll.u32 %v1043, 16
      %v1097 = vrot.slane %v1095, 4
      %v1098 = vor.u32 %v1094, %v1097
      %v1099 = vsel %vm1046, %v1089, %v1098
      %v1101 = vshrl.u32 %v1044, 16
      %v1103 = vrot.slane %v1101, 3
      %v1104 = vshll.u32 %v1044, 16
      %v1106 = vrot.slane %v1104, 4
      %v1107 = vor.u32 %v1103, %v1106
      %v1108 = vsel %vm1046, %v1098, %v1107
      %v1110 = vshrl.u32 %v1045, 16
      %v1112 = vrot.slane %v1110, 3
      %v1113 = vshll.u32 %v1045, 16
      %v1115 = vrot.slane %v1113, 4
      %v1116 = vor.u32 %v1112, %v1115
      %v1117 = vsel %vm1046, %v1107, %v1116
      %v1141 = vunpack.c.l.b16 %v992
      %v1142 = vunpack.c.l.b16 %v993
      %v1143 = vunpack.c.l.b16 %v994
      %v1144 = vunpack.c.l.b16 %v995
      %v1145 = vunpack.c.l.b16 %v996
      %v1146 = vunpack.c.l.b16 %v997
      %v1147 = vunpack.c.l.b16 %v998
      %v1148 = vunpack.c.l.b16 %v999
      %v1149 = vunpack.c.l.b16 %v1000
      %v1150 = vunpack.c.l.b16 %v1001
      %v1151 = vunpack.c.l.b16 %v1002
      %v1152 = vunpack.c.l.b16 %v1003
      %v1153 = vunpack.c.l.b16 %v1004
      %v1154 = vunpack.c.l.b16 %v1005
      %v1155 = vunpack.c.l.b16 %v1006
      %v1156 = vunpack.c.l.b16 %v1007
      %v1157 = vpack.c.b16 %v1142, %v1141
      %v1158 = vpack.c.b16 %v1144, %v1143
      %v1159 = vpack.c.b16 %v1146, %v1145
      %v1160 = vpack.c.b16 %v1148, %v1147
      %v1161 = vpack.c.b16 %v1150, %v1149
      %v1162 = vpack.c.b16 %v1152, %v1151
      %v1163 = vpack.c.b16 %v1154, %v1153
      %v1164 = vpack.c.b16 %v1156, %v1155
      %1173 = vmatpush.bf16.msra.mxu0 %v1164
      %1174 = vmatpush.bf16.msra.mxu0 %v1163
      %1175 = vmatpush.bf16.msra.mxu0 %v1162
      %1176 = vmatpush.bf16.msra.mxu0 %v1161
      %1177 = vmatpush.bf16.msra.mxu0 %v1160
      %1178 = vmatpush.bf16.msra.mxu0 %v1159
      %1179 = vmatpush.bf16.msra.mxu0 %v1158
      %1180 = vmatpush.bf16.msra.mxu0 %v1157
      %1181 = vmatmul.bf16.gmra.mxu0 %v1063
      %v1182 = vpop.f32.mrf.mxu0
      %v1183 = vadd.f32 0.0, %v1182
      %v1184 = vpop.f32.mrf.mxu0
      %v1185 = vadd.f32 0.0, %v1184
      %1186 = vmatmul.bf16.gmra.mxu0 %v1072
      %v1187 = vpop.f32.mrf.mxu0
      %v1188 = vadd.f32 0.0, %v1187
      %v1189 = vpop.f32.mrf.mxu0
      %v1190 = vadd.f32 0.0, %v1189
      %1191 = vmatmul.bf16.gmra.mxu0 %v1081
      %v1192 = vpop.f32.mrf.mxu0
      %v1193 = vadd.f32 0.0, %v1192
      %v1194 = vpop.f32.mrf.mxu0
      %v1195 = vadd.f32 0.0, %v1194
      %1196 = vmatmul.bf16.gmra.mxu0 %v1090
      %v1197 = vpop.f32.mrf.mxu0
      %v1198 = vadd.f32 0.0, %v1197
      %v1199 = vpop.f32.mrf.mxu0
      %v1200 = vadd.f32 0.0, %v1199
      %1201 = vmatmul.bf16.gmra.mxu0 %v1099
      %v1202 = vpop.f32.mrf.mxu0
      %v1203 = vadd.f32 0.0, %v1202
      %v1204 = vpop.f32.mrf.mxu0
      %v1205 = vadd.f32 0.0, %v1204
      %1206 = vmatmul.bf16.gmra.mxu0 %v1108
      %v1207 = vpop.f32.mrf.mxu0
      %v1208 = vadd.f32 0.0, %v1207
      %v1209 = vpop.f32.mrf.mxu0
      %v1210 = vadd.f32 0.0, %v1209
      %1211 = vmatmul.bf16.gmra.mxu0 %v1117
      %v1212 = vpop.f32.mrf.mxu0
      %v1213 = vadd.f32 0.0, %v1212
      %v1214 = vpop.f32.mrf.mxu0
      %v1215 = vadd.f32 0.0, %v1214
      %1216 = vdwg.mxu0
      %v1217 = vadd.f32 %v962, %v1183
      %v1218 = vadd.f32 %v963, %v1185
      %v1219 = vadd.f32 %v964, %v1188
      %v1220 = vadd.f32 %v965, %v1190
      %v1221 = vadd.f32 %v966, %v1193
      %v1222 = vadd.f32 %v967, %v1195
      %v1223 = vadd.f32 %v968, %v1198
      %v1224 = vadd.f32 %v969, %v1200
      %v1225 = vadd.f32 %v970, %v1203
      %v1226 = vadd.f32 %v971, %v1205
      %v1227 = vadd.f32 %v972, %v1208
      %v1228 = vadd.f32 %v973, %v1210
      %v1229 = vadd.f32 %v974, %v1213
      %v1230 = vadd.f32 %v975, %v1215
      %1231 = vst [vmem:[#allocation3] sm:$0xff] %v1217
      %1232 = vst [vmem:[#allocation3 + $0x8] sm:$0xff] %v1218
      %1233 = vst [vmem:[#allocation3 + $0x10] sm:$0xff] %v1219
      %1234 = vst [vmem:[#allocation3 + $0x18] sm:$0xff] %v1220
      %1235 = vst [vmem:[#allocation3 + $0x20] sm:$0xff] %v1221
      %1236 = vst [vmem:[#allocation3 + $0x28] sm:$0xff] %v1222
      %1237 = vst [vmem:[#allocation3 + $0x30] sm:$0xff] %v1223
      %1238 = vst [vmem:[#allocation3 + $0x38] sm:$0xff] %v1224
      %1239 = vst [vmem:[#allocation3 + $0x40] sm:$0xff] %v1225
      %1240 = vst [vmem:[#allocation3 + $0x48] sm:$0xff] %v1226
      %1241 = vst [vmem:[#allocation3 + $0x50] sm:$0xff] %v1227
      %1242 = vst [vmem:[#allocation3 + $0x58] sm:$0xff] %v1228
      %1243 = vst [vmem:[#allocation3 + $0x60] sm:$0xff] %v1229
      %1244 = vst [vmem:[#allocation3 + $0x68] sm:$0xff] %v1230
      %v1245 = vld [vmem:[#allocation3] sm:$0xff]
      %v1246 = vld [vmem:[#allocation3 + $0x8] sm:$0xff]
      %v1247 = vld [vmem:[#allocation3 + $0x10] sm:$0xff]
      %v1248 = vld [vmem:[#allocation3 + $0x18] sm:$0xff]
      %v1249 = vld [vmem:[#allocation3 + $0x20] sm:$0xff]
      %v1250 = vld [vmem:[#allocation3 + $0x28] sm:$0xff]
      %v1251 = vld [vmem:[#allocation3 + $0x30] sm:$0xff]
      %v1252 = vld [vmem:[#allocation3 + $0x38] sm:$0xff]
      %v1253 = vld [vmem:[#allocation3 + $0x40] sm:$0xff]
      %v1254 = vld [vmem:[#allocation3 + $0x48] sm:$0xff]
      %v1255 = vld [vmem:[#allocation3 + $0x50] sm:$0xff]
      %v1256 = vld [vmem:[#allocation3 + $0x58] sm:$0xff]
      %v1257 = vld [vmem:[#allocation3 + $0x60] sm:$0xff]
      %v1258 = vld [vmem:[#allocation3 + $0x68] sm:$0xff]
      %v1259 = vld [vmem:[#allocation2 + $0x4] sm:$0x8]
      %v1260 = vld [vmem:[#allocation2 + $0x8] sm:$0xf]
      %v1261 = vld [vmem:[#allocation2 + $0xc] sm:$0xf]
      %v1262 = vld [vmem:[#allocation2 + $0x10] sm:$0xf]
      %v1263 = vld [vmem:[#allocation2 + $0x14] sm:$0xf]
      %v1264 = vld [vmem:[#allocation2 + $0x18] sm:$0xf]
      %v1265 = vld [vmem:[#allocation2 + $0x1c] sm:$0xf]
      %v1266 = vld [vmem:[#allocation2 + $0x20] sm:$0xf]
      %v1267 = vld [vmem:[#allocation2 + $0x24] sm:$0xf]
      %v1268 = vld [vmem:[#allocation2 + $0x28] sm:$0xf]
      %v1269 = vld [vmem:[#allocation2 + $0x2c] sm:$0xf]
      %v1270 = vld [vmem:[#allocation2 + $0x30] sm:$0xf]
      %v1271 = vld [vmem:[#allocation2 + $0x34] sm:$0xf]
      %v1272 = vld [vmem:[#allocation2 + $0x38] sm:$0xf]
      %v1273 = vld [vmem:[#allocation2 + $0x3c] sm:$0xf]
      %s1274 = scalar_lea.vmem %s3, 192
      %v1275 = vld [vmem:[%s1274] sm:$0xf]
      %v1276 = vld [vmem:[%s1274 + $0x4] sm:$0xf]
      %v1277 = vld [vmem:[%s1274 + $0x8] sm:$0xf]
      %v1278 = vld [vmem:[%s1274 + $0xc] sm:$0xf]
      %v1279 = vld [vmem:[%s1274 + $0x10] sm:$0xf]
      %v1280 = vld [vmem:[%s1274 + $0x14] sm:$0xf]
      %v1281 = vld [vmem:[%s1274 + $0x18] sm:$0xf]
      %v1282 = vld [vmem:[%s1274 + $0x1c] sm:$0xf]
      %v1283 = vld [vmem:[%s1274 + $0x20] sm:$0xf]
      %v1284 = vld [vmem:[%s1274 + $0x24] sm:$0xf]
      %v1285 = vld [vmem:[%s1274 + $0x28] sm:$0xf]
      %v1286 = vld [vmem:[%s1274 + $0x2c] sm:$0xf]
      %v1287 = vld [vmem:[%s1274 + $0x30] sm:$0xf]
      %v1288 = vld [vmem:[%s1274 + $0x34] sm:$0xf]
      %v1289 = vld [vmem:[%s1274 + $0x38] sm:$0xf]
      %v1290 = vld [vmem:[%s1274 + $0x3c] sm:$0xf]
      %v1306 = vunpack.c.l.b16 %v1259
      %v1307 = vunpack.c.l.b16 %v1260
      %v1308 = vunpack.c.l.b16 %v1261
      %v1309 = vunpack.c.l.b16 %v1262
      %v1310 = vunpack.c.l.b16 %v1263
      %v1311 = vunpack.c.l.b16 %v1264
      %v1312 = vunpack.c.l.b16 %v1265
      %v1313 = vunpack.c.l.b16 %v1266
      %v1314 = vunpack.c.l.b16 %v1267
      %v1315 = vunpack.c.l.b16 %v1268
      %v1316 = vunpack.c.l.b16 %v1269
      %v1317 = vunpack.c.l.b16 %v1270
      %v1318 = vunpack.c.l.b16 %v1271
      %v1319 = vunpack.c.l.b16 %v1272
      %v1320 = vunpack.c.l.b16 %v1273
      %v1321 = vpack.c.b16 %v1307, %v1306
      %v1322 = vpack.c.b16 %v1309, %v1308
      %v1323 = vpack.c.b16 %v1311, %v1310
      %v1324 = vpack.c.b16 %v1313, %v1312
      %v1325 = vpack.c.b16 %v1315, %v1314
      %v1326 = vpack.c.b16 %v1317, %v1316
      %v1327 = vpack.c.b16 %v1319, %v1318
      %v1328 = vpack.c.b16 %v1320, %v1320
      %v1330 = vshrl.u32 %v1321, 16
      %v1332 = vrot.slane %v1330, 3
      %v1333 = vshll.u32 %v1321, 16
      %v1335 = vrot.slane %v1333, 4
      %v1336 = vor.u32 %v1332, %v1335
      %v1338 = vshrl.u32 %v1322, 16
      %v1340 = vrot.slane %v1338, 3
      %v1341 = vshll.u32 %v1322, 16
      %v1343 = vrot.slane %v1341, 4
      %v1344 = vor.u32 %v1340, %v1343
      %v1345 = vsel %vm1046, %v1336, %v1344
      %v1347 = vshrl.u32 %v1323, 16
      %v1349 = vrot.slane %v1347, 3
      %v1350 = vshll.u32 %v1323, 16
      %v1352 = vrot.slane %v1350, 4
      %v1353 = vor.u32 %v1349, %v1352
      %v1354 = vsel %vm1046, %v1344, %v1353
      %v1356 = vshrl.u32 %v1324, 16
      %v1358 = vrot.slane %v1356, 3
      %v1359 = vshll.u32 %v1324, 16
      %v1361 = vrot.slane %v1359, 4
      %v1362 = vor.u32 %v1358, %v1361
      %v1363 = vsel %vm1046, %v1353, %v1362
      %v1365 = vshrl.u32 %v1325, 16
      %v1367 = vrot.slane %v1365, 3
      %v1368 = vshll.u32 %v1325, 16
      %v1370 = vrot.slane %v1368, 4
      %v1371 = vor.u32 %v1367, %v1370
      %v1372 = vsel %vm1046, %v1362, %v1371
      %v1374 = vshrl.u32 %v1326, 16
      %v1376 = vrot.slane %v1374, 3
      %v1377 = vshll.u32 %v1326, 16
      %v1379 = vrot.slane %v1377, 4
      %v1380 = vor.u32 %v1376, %v1379
      %v1381 = vsel %vm1046, %v1371, %v1380
      %v1383 = vshrl.u32 %v1327, 16
      %v1385 = vrot.slane %v1383, 3
      %v1386 = vshll.u32 %v1327, 16
      %v1388 = vrot.slane %v1386, 4
      %v1389 = vor.u32 %v1385, %v1388
      %v1390 = vsel %vm1046, %v1380, %v1389
      %v1392 = vshrl.u32 %v1328, 16
      %v1394 = vrot.slane %v1392, 3
      %v1395 = vshll.u32 %v1328, 16
      %v1397 = vrot.slane %v1395, 4
      %v1398 = vor.u32 %v1394, %v1397
      %v1399 = vsel %vm1046, %v1389, %v1398
      %v1423 = vunpack.c.l.b16 %v1275
      %v1424 = vunpack.c.l.b16 %v1276
      %v1425 = vunpack.c.l.b16 %v1277
      %v1426 = vunpack.c.l.b16 %v1278
      %v1427 = vunpack.c.l.b16 %v1279
      %v1428 = vunpack.c.l.b16 %v1280
      %v1429 = vunpack.c.l.b16 %v1281
      %v1430 = vunpack.c.l.b16 %v1282
      %v1431 = vunpack.c.l.b16 %v1283
      %v1432 = vunpack.c.l.b16 %v1284
      %v1433 = vunpack.c.l.b16 %v1285
      %v1434 = vunpack.c.l.b16 %v1286
      %v1435 = vunpack.c.l.b16 %v1287
      %v1436 = vunpack.c.l.b16 %v1288
      %v1437 = vunpack.c.l.b16 %v1289
      %v1438 = vunpack.c.l.b16 %v1290
      %v1439 = vpack.c.b16 %v1424, %v1423
      %v1440 = vpack.c.b16 %v1426, %v1425
      %v1441 = vpack.c.b16 %v1428, %v1427
      %v1442 = vpack.c.b16 %v1430, %v1429
      %v1443 = vpack.c.b16 %v1432, %v1431
      %v1444 = vpack.c.b16 %v1434, %v1433
      %v1445 = vpack.c.b16 %v1436, %v1435
      %v1446 = vpack.c.b16 %v1438, %v1437
      %1455 = vmatpush.bf16.msra.mxu0 %v1446
      %1456 = vmatpush.bf16.msra.mxu0 %v1445
      %1457 = vmatpush.bf16.msra.mxu0 %v1444
      %1458 = vmatpush.bf16.msra.mxu0 %v1443
      %1459 = vmatpush.bf16.msra.mxu0 %v1442
      %1460 = vmatpush.bf16.msra.mxu0 %v1441
      %1461 = vmatpush.bf16.msra.mxu0 %v1440
      %1462 = vmatpush.bf16.msra.mxu0 %v1439
      %1463 = vmatmul.bf16.gmra.mxu0 %v1345
      %v1464 = vpop.f32.mrf.mxu0
      %v1465 = vadd.f32 0.0, %v1464
      %v1466 = vpop.f32.mrf.mxu0
      %v1467 = vadd.f32 0.0, %v1466
      %1468 = vmatmul.bf16.gmra.mxu0 %v1354
      %v1469 = vpop.f32.mrf.mxu0
      %v1470 = vadd.f32 0.0, %v1469
      %v1471 = vpop.f32.mrf.mxu0
      %v1472 = vadd.f32 0.0, %v1471
      %1473 = vmatmul.bf16.gmra.mxu0 %v1363
      %v1474 = vpop.f32.mrf.mxu0
      %v1475 = vadd.f32 0.0, %v1474
      %v1476 = vpop.f32.mrf.mxu0
      %v1477 = vadd.f32 0.0, %v1476
      %1478 = vmatmul.bf16.gmra.mxu0 %v1372
      %v1479 = vpop.f32.mrf.mxu0
      %v1480 = vadd.f32 0.0, %v1479
      %v1481 = vpop.f32.mrf.mxu0
      %v1482 = vadd.f32 0.0, %v1481
      %1483 = vmatmul.bf16.gmra.mxu0 %v1381
      %v1484 = vpop.f32.mrf.mxu0
      %v1485 = vadd.f32 0.0, %v1484
      %v1486 = vpop.f32.mrf.mxu0
      %v1487 = vadd.f32 0.0, %v1486
      %1488 = vmatmul.bf16.gmra.mxu0 %v1390
      %v1489 = vpop.f32.mrf.mxu0
      %v1490 = vadd.f32 0.0, %v1489
      %v1491 = vpop.f32.mrf.mxu0
      %v1492 = vadd.f32 0.0, %v1491
      %1493 = vmatmul.bf16.gmra.mxu0 %v1399
      %v1494 = vpop.f32.mrf.mxu0
      %v1495 = vadd.f32 0.0, %v1494
      %v1496 = vpop.f32.mrf.mxu0
      %v1497 = vadd.f32 0.0, %v1496
      %1498 = vdwg.mxu0
      %v1499 = vadd.f32 %v1245, %v1465
      %v1500 = vadd.f32 %v1246, %v1467
      %v1501 = vadd.f32 %v1247, %v1470
      %v1502 = vadd.f32 %v1248, %v1472
      %v1503 = vadd.f32 %v1249, %v1475
      %v1504 = vadd.f32 %v1250, %v1477
      %v1505 = vadd.f32 %v1251, %v1480
      %v1506 = vadd.f32 %v1252, %v1482
      %v1507 = vadd.f32 %v1253, %v1485
      %v1508 = vadd.f32 %v1254, %v1487
      %v1509 = vadd.f32 %v1255, %v1490
      %v1510 = vadd.f32 %v1256, %v1492
      %v1511 = vadd.f32 %v1257, %v1495
      %v1512 = vadd.f32 %v1258, %v1497
      %1513 = vst [vmem:[#allocation3] sm:$0xff] %v1499
      %1514 = vst [vmem:[#allocation3 + $0x8] sm:$0xff] %v1500
      %1515 = vst [vmem:[#allocation3 + $0x10] sm:$0xff] %v1501
      %1516 = vst [vmem:[#allocation3 + $0x18] sm:$0xff] %v1502
      %1517 = vst [vmem:[#allocation3 + $0x20] sm:$0xff] %v1503
      %1518 = vst [vmem:[#allocation3 + $0x28] sm:$0xff] %v1504
      %1519 = vst [vmem:[#allocation3 + $0x30] sm:$0xff] %v1505
      %1520 = vst [vmem:[#allocation3 + $0x38] sm:$0xff] %v1506
      %1521 = vst [vmem:[#allocation3 + $0x40] sm:$0xff] %v1507
      %1522 = vst [vmem:[#allocation3 + $0x48] sm:$0xff] %v1508
      %1523 = vst [vmem:[#allocation3 + $0x50] sm:$0xff] %v1509
      %1524 = vst [vmem:[#allocation3 + $0x58] sm:$0xff] %v1510
      %1525 = vst [vmem:[#allocation3 + $0x60] sm:$0xff] %v1511
      %1526 = vst [vmem:[#allocation3 + $0x68] sm:$0xff] %v1512
      %v1527 = vld [vmem:[#allocation3] sm:$0xff]
      %v1528 = vld [vmem:[#allocation3 + $0x8] sm:$0xff]
      %v1529 = vld [vmem:[#allocation3 + $0x10] sm:$0xff]
      %v1530 = vld [vmem:[#allocation3 + $0x18] sm:$0xff]
      %v1531 = vld [vmem:[#allocation3 + $0x20] sm:$0xff]
      %v1532 = vld [vmem:[#allocation3 + $0x28] sm:$0xff]
      %v1533 = vld [vmem:[#allocation3 + $0x30] sm:$0xff]
      %v1534 = vld [vmem:[#allocation3 + $0x38] sm:$0xff]
      %v1535 = vld [vmem:[#allocation3 + $0x40] sm:$0xff]
      %v1536 = vld [vmem:[#allocation3 + $0x48] sm:$0xff]
      %v1537 = vld [vmem:[#allocation3 + $0x50] sm:$0xff]
      %v1538 = vld [vmem:[#allocation3 + $0x58] sm:$0xff]
      %v1539 = vld [vmem:[#allocation3 + $0x60] sm:$0xff]
      %v1540 = vld [vmem:[#allocation3 + $0x68] sm:$0xff]
      %v1541 = vld [vmem:[#allocation2 + $0x8] sm:$0xf]
      %v1542 = vld [vmem:[#allocation2 + $0xc] sm:$0xf]
      %v1543 = vld [vmem:[#allocation2 + $0x10] sm:$0xf]
      %v1544 = vld [vmem:[#allocation2 + $0x14] sm:$0xf]
      %v1545 = vld [vmem:[#allocation2 + $0x18] sm:$0xf]
      %v1546 = vld [vmem:[#allocation2 + $0x1c] sm:$0xf]
      %v1547 = vld [vmem:[#allocation2 + $0x20] sm:$0xf]
      %v1548 = vld [vmem:[#allocation2 + $0x24] sm:$0xf]
      %v1549 = vld [vmem:[#allocation2 + $0x28] sm:$0xf]
      %v1550 = vld [vmem:[#allocation2 + $0x2c] sm:$0xf]
      %v1551 = vld [vmem:[#allocation2 + $0x30] sm:$0xf]
      %v1552 = vld [vmem:[#allocation2 + $0x34] sm:$0xf]
      %v1553 = vld [vmem:[#allocation2 + $0x38] sm:$0xf]
      %v1554 = vld [vmem:[#allocation2 + $0x3c] sm:$0xf]
      %s1555 = scalar_lea.vmem %s3, 256
      %v1556 = vld [vmem:[%s1555] sm:$0xf]
      %v1557 = vld [vmem:[%s1555 + $0x4] sm:$0xf]
      %v1558 = vld [vmem:[%s1555 + $0x8] sm:$0xf]
      %v1559 = vld [vmem:[%s1555 + $0xc] sm:$0xf]
      %v1560 = vld [vmem:[%s1555 + $0x10] sm:$0xf]
      %v1561 = vld [vmem:[%s1555 + $0x14] sm:$0xf]
      %v1562 = vld [vmem:[%s1555 + $0x18] sm:$0xf]
      %v1563 = vld [vmem:[%s1555 + $0x1c] sm:$0xf]
      %v1564 = vld [vmem:[%s1555 + $0x20] sm:$0xf]
      %v1565 = vld [vmem:[%s1555 + $0x24] sm:$0xf]
      %v1566 = vld [vmem:[%s1555 + $0x28] sm:$0xf]
      %v1567 = vld [vmem:[%s1555 + $0x2c] sm:$0xf]
      %v1568 = vld [vmem:[%s1555 + $0x30] sm:$0xf]
      %v1569 = vld [vmem:[%s1555 + $0x34] sm:$0xf]
      %v1570 = vld [vmem:[%s1555 + $0x38] sm:$0xf]
      %v1571 = vld [vmem:[%s1555 + $0x3c] sm:$0xf]
      %v1586 = vunpack.c.l.b16 %v1541
      %v1587 = vunpack.c.l.b16 %v1542
      %v1588 = vunpack.c.l.b16 %v1543
      %v1589 = vunpack.c.l.b16 %v1544
      %v1590 = vunpack.c.l.b16 %v1545
      %v1591 = vunpack.c.l.b16 %v1546
      %v1592 = vunpack.c.l.b16 %v1547
      %v1593 = vunpack.c.l.b16 %v1548
      %v1594 = vunpack.c.l.b16 %v1549
      %v1595 = vunpack.c.l.b16 %v1550
      %v1596 = vunpack.c.l.b16 %v1551
      %v1597 = vunpack.c.l.b16 %v1552
      %v1598 = vunpack.c.l.b16 %v1553
      %v1599 = vunpack.c.l.b16 %v1554
      %v1600 = vpack.c.b16 %v1587, %v1586
      %v1601 = vpack.c.b16 %v1589, %v1588
      %v1602 = vpack.c.b16 %v1591, %v1590
      %v1603 = vpack.c.b16 %v1593, %v1592
      %v1604 = vpack.c.b16 %v1595, %v1594
      %v1605 = vpack.c.b16 %v1597, %v1596
      %v1606 = vpack.c.b16 %v1599, %v1598
      %v1630 = vunpack.c.l.b16 %v1556
      %v1631 = vunpack.c.l.b16 %v1557
      %v1632 = vunpack.c.l.b16 %v1558
      %v1633 = vunpack.c.l.b16 %v1559
      %v1634 = vunpack.c.l.b16 %v1560
      %v1635 = vunpack.c.l.b16 %v1561
      %v1636 = vunpack.c.l.b16 %v1562
      %v1637 = vunpack.c.l.b16 %v1563
      %v1638 = vunpack.c.l.b16 %v1564
      %v1639 = vunpack.c.l.b16 %v1565
      %v1640 = vunpack.c.l.b16 %v1566
      %v1641 = vunpack.c.l.b16 %v1567
      %v1642 = vunpack.c.l.b16 %v1568
      %v1643 = vunpack.c.l.b16 %v1569
      %v1644 = vunpack.c.l.b16 %v1570
      %v1645 = vunpack.c.l.b16 %v1571
      %v1646 = vpack.c.b16 %v1631, %v1630
      %v1647 = vpack.c.b16 %v1633, %v1632
      %v1648 = vpack.c.b16 %v1635, %v1634
      %v1649 = vpack.c.b16 %v1637, %v1636
      %v1650 = vpack.c.b16 %v1639, %v1638
      %v1651 = vpack.c.b16 %v1641, %v1640
      %v1652 = vpack.c.b16 %v1643, %v1642
      %v1653 = vpack.c.b16 %v1645, %v1644
      %1662 = vmatpush.bf16.msra.mxu0 %v1653
      %1663 = vmatpush.bf16.msra.mxu0 %v1652
      %1664 = vmatpush.bf16.msra.mxu0 %v1651
      %1665 = vmatpush.bf16.msra.mxu0 %v1650
      %1666 = vmatpush.bf16.msra.mxu0 %v1649
      %1667 = vmatpush.bf16.msra.mxu0 %v1648
      %1668 = vmatpush.bf16.msra.mxu0 %v1647
      %1669 = vmatpush.bf16.msra.mxu0 %v1646
      %1670 = vmatmul.bf16.gmra.mxu0 %v1600
      %v1671 = vpop.f32.mrf.mxu0
      %v1672 = vadd.f32 0.0, %v1671
      %v1673 = vpop.f32.mrf.mxu0
      %v1674 = vadd.f32 0.0, %v1673
      %1675 = vmatmul.bf16.gmra.mxu0 %v1601
      %v1676 = vpop.f32.mrf.mxu0
      %v1677 = vadd.f32 0.0, %v1676
      %v1678 = vpop.f32.mrf.mxu0
      %v1679 = vadd.f32 0.0, %v1678
      %1680 = vmatmul.bf16.gmra.mxu0 %v1602
      %v1681 = vpop.f32.mrf.mxu0
      %v1682 = vadd.f32 0.0, %v1681
      %v1683 = vpop.f32.mrf.mxu0
      %v1684 = vadd.f32 0.0, %v1683
      %1685 = vmatmul.bf16.gmra.mxu0 %v1603
      %v1686 = vpop.f32.mrf.mxu0
      %v1687 = vadd.f32 0.0, %v1686
      %v1688 = vpop.f32.mrf.mxu0
      %v1689 = vadd.f32 0.0, %v1688
      %1690 = vmatmul.bf16.gmra.mxu0 %v1604
      %v1691 = vpop.f32.mrf.mxu0
      %v1692 = vadd.f32 0.0, %v1691
      %v1693 = vpop.f32.mrf.mxu0
      %v1694 = vadd.f32 0.0, %v1693
      %1695 = vmatmul.bf16.gmra.mxu0 %v1605
      %v1696 = vpop.f32.mrf.mxu0
      %v1697 = vadd.f32 0.0, %v1696
      %v1698 = vpop.f32.mrf.mxu0
      %v1699 = vadd.f32 0.0, %v1698
      %1700 = vmatmul.bf16.gmra.mxu0 %v1606
      %v1701 = vpop.f32.mrf.mxu0
      %v1702 = vadd.f32 0.0, %v1701
      %v1703 = vpop.f32.mrf.mxu0
      %v1704 = vadd.f32 0.0, %v1703
      %1705 = vdwg.mxu0
      %v1706 = vadd.f32 %v1527, %v1672
      %v1707 = vadd.f32 %v1528, %v1674
      %v1708 = vadd.f32 %v1529, %v1677
      %v1709 = vadd.f32 %v1530, %v1679
      %v1710 = vadd.f32 %v1531, %v1682
      %v1711 = vadd.f32 %v1532, %v1684
      %v1712 = vadd.f32 %v1533, %v1687
      %v1713 = vadd.f32 %v1534, %v1689
      %v1714 = vadd.f32 %v1535, %v1692
      %v1715 = vadd.f32 %v1536, %v1694
      %v1716 = vadd.f32 %v1537, %v1697
      %v1717 = vadd.f32 %v1538, %v1699
      %v1718 = vadd.f32 %v1539, %v1702
      %v1719 = vadd.f32 %v1540, %v1704
      %1720 = vst [vmem:[#allocation3] sm:$0xff] %v1706
      %1721 = vst [vmem:[#allocation3 + $0x8] sm:$0xff] %v1707
      %1722 = vst [vmem:[#allocation3 + $0x10] sm:$0xff] %v1708
      %1723 = vst [vmem:[#allocation3 + $0x18] sm:$0xff] %v1709
      %1724 = vst [vmem:[#allocation3 + $0x20] sm:$0xff] %v1710
      %1725 = vst [vmem:[#allocation3 + $0x28] sm:$0xff] %v1711
      %1726 = vst [vmem:[#allocation3 + $0x30] sm:$0xff] %v1712
      %1727 = vst [vmem:[#allocation3 + $0x38] sm:$0xff] %v1713
      %1728 = vst [vmem:[#allocation3 + $0x40] sm:$0xff] %v1714
      %1729 = vst [vmem:[#allocation3 + $0x48] sm:$0xff] %v1715
      %1730 = vst [vmem:[#allocation3 + $0x50] sm:$0xff] %v1716
      %1731 = vst [vmem:[#allocation3 + $0x58] sm:$0xff] %v1717
      %1732 = vst [vmem:[#allocation3 + $0x60] sm:$0xff] %v1718
      %1733 = vst [vmem:[#allocation3 + $0x68] sm:$0xff] %v1719
      %v1734 = vld [vmem:[#allocation3] sm:$0xff]
      %v1735 = vld [vmem:[#allocation3 + $0x8] sm:$0xff]
      %v1736 = vld [vmem:[#allocation3 + $0x10] sm:$0xff]
      %v1737 = vld [vmem:[#allocation3 + $0x18] sm:$0xff]
      %v1738 = vld [vmem:[#allocation3 + $0x20] sm:$0xff]
      %v1739 = vld [vmem:[#allocation3 + $0x28] sm:$0xff]
      %v1740 = vld [vmem:[#allocation3 + $0x30] sm:$0xff]
      %v1741 = vld [vmem:[#allocation3 + $0x38] sm:$0xff]
      %v1742 = vld [vmem:[#allocation3 + $0x40] sm:$0xff]
      %v1743 = vld [vmem:[#allocation3 + $0x48] sm:$0xff]
      %v1744 = vld [vmem:[#allocation3 + $0x50] sm:$0xff]
      %v1745 = vld [vmem:[#allocation3 + $0x58] sm:$0xff]
      %v1746 = vld [vmem:[#allocation3 + $0x60] sm:$0xff]
      %v1747 = vld [vmem:[#allocation3 + $0x68] sm:$0xff]
      %v1748 = vld [vmem:[#allocation2 + $0x8] sm:$0xf]
      %v1749 = vld [vmem:[#allocation2 + $0xc] sm:$0xf]
      %v1750 = vld [vmem:[#allocation2 + $0x10] sm:$0xf]
      %v1751 = vld [vmem:[#allocation2 + $0x14] sm:$0xf]
      %v1752 = vld [vmem:[#allocation2 + $0x18] sm:$0xf]
      %v1753 = vld [vmem:[#allocation2 + $0x1c] sm:$0xf]
      %v1754 = vld [vmem:[#allocation2 + $0x20] sm:$0xf]
      %v1755 = vld [vmem:[#allocation2 + $0x24] sm:$0xf]
      %v1756 = vld [vmem:[#allocation2 + $0x28] sm:$0xf]
      %v1757 = vld [vmem:[#allocation2 + $0x2c] sm:$0xf]
      %v1758 = vld [vmem:[#allocation2 + $0x30] sm:$0xf]
      %v1759 = vld [vmem:[#allocation2 + $0x34] sm:$0xf]
      %v1760 = vld [vmem:[#allocation2 + $0x38] sm:$0xf]
      %v1761 = vld [vmem:[#allocation2 + $0x3c] sm:$0xf]
      %v1762 = vld [vmem:[#allocation2 + $0x40] sm:$0x1]
      %s1763 = scalar_lea.vmem %s3, 320
      %v1764 = vld [vmem:[%s1763] sm:$0xf]
      %v1765 = vld [vmem:[%s1763 + $0x4] sm:$0xf]
      %v1766 = vld [vmem:[%s1763 + $0x8] sm:$0xf]
      %v1767 = vld [vmem:[%s1763 + $0xc] sm:$0xf]
      %v1768 = vld [vmem:[%s1763 + $0x10] sm:$0xf]
      %v1769 = vld [vmem:[%s1763 + $0x14] sm:$0xf]
      %v1770 = vld [vmem:[%s1763 + $0x18] sm:$0xf]
      %v1771 = vld [vmem:[%s1763 + $0x1c] sm:$0xf]
      %v1772 = vld [vmem:[%s1763 + $0x20] sm:$0xf]
      %v1773 = vld [vmem:[%s1763 + $0x24] sm:$0xf]
      %v1774 = vld [vmem:[%s1763 + $0x28] sm:$0xf]
      %v1775 = vld [vmem:[%s1763 + $0x2c] sm:$0xf]
      %v1776 = vld [vmem:[%s1763 + $0x30] sm:$0xf]
      %v1777 = vld [vmem:[%s1763 + $0x34] sm:$0xf]
      %v1778 = vld [vmem:[%s1763 + $0x38] sm:$0xf]
      %v1779 = vld [vmem:[%s1763 + $0x3c] sm:$0xf]
      %v1795 = vunpack.c.l.b16 %v1748
      %v1796 = vunpack.c.l.b16 %v1749
      %v1797 = vunpack.c.l.b16 %v1750
      %v1798 = vunpack.c.l.b16 %v1751
      %v1799 = vunpack.c.l.b16 %v1752
      %v1800 = vunpack.c.l.b16 %v1753
      %v1801 = vunpack.c.l.b16 %v1754
      %v1802 = vunpack.c.l.b16 %v1755
      %v1803 = vunpack.c.l.b16 %v1756
      %v1804 = vunpack.c.l.b16 %v1757
      %v1805 = vunpack.c.l.b16 %v1758
      %v1806 = vunpack.c.l.b16 %v1759
      %v1807 = vunpack.c.l.b16 %v1760
      %v1808 = vunpack.c.l.b16 %v1761
      %v1809 = vunpack.c.l.b16 %v1762
      %v1810 = vpack.c.b16 %v1796, %v1795
      %v1811 = vpack.c.b16 %v1798, %v1797
      %v1812 = vpack.c.b16 %v1800, %v1799
      %v1813 = vpack.c.b16 %v1802, %v1801
      %v1814 = vpack.c.b16 %v1804, %v1803
      %v1815 = vpack.c.b16 %v1806, %v1805
      %v1816 = vpack.c.b16 %v1808, %v1807
      %v1817 = vpack.c.b16 %v1809, %v1809
      %vm1818 = vsmask.f32 7424
      %v1820 = vshrl.u32 %v1810, 16
      %v1822 = vshll.u32 %v1810, 16
      %v1824 = vrot.slane %v1822, 1
      %v1825 = vor.u32 %v1820, %v1824
      %v1827 = vshll.u32 %v1811, 16
      %v1829 = vrot.slane %v1827, 1
      %v1830 = vsel %vm1818, %v1825, %v1829
      %v1831 = vshrl.u32 %v1811, 16
      %v1833 = vor.u32 %v1831, %v1829
      %v1835 = vshll.u32 %v1812, 16
      %v1837 = vrot.slane %v1835, 1
      %v1838 = vsel %vm1818, %v1833, %v1837
      %v1839 = vshrl.u32 %v1812, 16
      %v1841 = vor.u32 %v1839, %v1837
      %v1843 = vshll.u32 %v1813, 16
      %v1845 = vrot.slane %v1843, 1
      %v1846 = vsel %vm1818, %v1841, %v1845
      %v1847 = vshrl.u32 %v1813, 16
      %v1849 = vor.u32 %v1847, %v1845
      %v1851 = vshll.u32 %v1814, 16
      %v1853 = vrot.slane %v1851, 1
      %v1854 = vsel %vm1818, %v1849, %v1853
      %v1855 = vshrl.u32 %v1814, 16
      %v1857 = vor.u32 %v1855, %v1853
      %v1859 = vshll.u32 %v1815, 16
      %v1861 = vrot.slane %v1859, 1
      %v1862 = vsel %vm1818, %v1857, %v1861
      %v1863 = vshrl.u32 %v1815, 16
      %v1865 = vor.u32 %v1863, %v1861
      %v1867 = vshll.u32 %v1816, 16
      %v1869 = vrot.slane %v1867, 1
      %v1870 = vsel %vm1818, %v1865, %v1869
      %v1871 = vshrl.u32 %v1816, 16
      %v1873 = vor.u32 %v1871, %v1869
      %v1875 = vshll.u32 %v1817, 16
      %v1877 = vrot.slane %v1875, 1
      %v1878 = vsel %vm1818, %v1873, %v1877
      %v1902 = vunpack.c.l.b16 %v1764
      %v1903 = vunpack.c.l.b16 %v1765
      %v1904 = vunpack.c.l.b16 %v1766
      %v1905 = vunpack.c.l.b16 %v1767
      %v1906 = vunpack.c.l.b16 %v1768
      %v1907 = vunpack.c.l.b16 %v1769
      %v1908 = vunpack.c.l.b16 %v1770
      %v1909 = vunpack.c.l.b16 %v1771
      %v1910 = vunpack.c.l.b16 %v1772
      %v1911 = vunpack.c.l.b16 %v1773
      %v1912 = vunpack.c.l.b16 %v1774
      %v1913 = vunpack.c.l.b16 %v1775
      %v1914 = vunpack.c.l.b16 %v1776
      %v1915 = vunpack.c.l.b16 %v1777
      %v1916 = vunpack.c.l.b16 %v1778
      %v1917 = vunpack.c.l.b16 %v1779
      %v1918 = vpack.c.b16 %v1903, %v1902
      %v1919 = vpack.c.b16 %v1905, %v1904
      %v1920 = vpack.c.b16 %v1907, %v1906
      %v1921 = vpack.c.b16 %v1909, %v1908
      %v1922 = vpack.c.b16 %v1911, %v1910
      %v1923 = vpack.c.b16 %v1913, %v1912
      %v1924 = vpack.c.b16 %v1915, %v1914
      %v1925 = vpack.c.b16 %v1917, %v1916
      %1934 = vmatpush.bf16.msra.mxu0 %v1925
      %1935 = vmatpush.bf16.msra.mxu0 %v1924
      %1936 = vmatpush.bf16.msra.mxu0 %v1923
      %1937 = vmatpush.bf16.msra.mxu0 %v1922
      %1938 = vmatpush.bf16.msra.mxu0 %v1921
      %1939 = vmatpush.bf16.msra.mxu0 %v1920
      %1940 = vmatpush.bf16.msra.mxu0 %v1919
      %1941 = vmatpush.bf16.msra.mxu0 %v1918
      %1942 = vmatmul.bf16.gmra.mxu0 %v1830
      %v1943 = vpop.f32.mrf.mxu0
      %v1944 = vadd.f32 0.0, %v1943
      %v1945 = vpop.f32.mrf.mxu0
      %v1946 = vadd.f32 0.0, %v1945
      %1947 = vmatmul.bf16.gmra.mxu0 %v1838
      %v1948 = vpop.f32.mrf.mxu0
      %v1949 = vadd.f32 0.0, %v1948
      %v1950 = vpop.f32.mrf.mxu0
      %v1951 = vadd.f32 0.0, %v1950
      %1952 = vmatmul.bf16.gmra.mxu0 %v1846
      %v1953 = vpop.f32.mrf.mxu0
      %v1954 = vadd.f32 0.0, %v1953
      %v1955 = vpop.f32.mrf.mxu0
      %v1956 = vadd.f32 0.0, %v1955
      %1957 = vmatmul.bf16.gmra.mxu0 %v1854
      %v1958 = vpop.f32.mrf.mxu0
      %v1959 = vadd.f32 0.0, %v1958
      %v1960 = vpop.f32.mrf.mxu0
      %v1961 = vadd.f32 0.0, %v1960
      %1962 = vmatmul.bf16.gmra.mxu0 %v1862
      %v1963 = vpop.f32.mrf.mxu0
      %v1964 = vadd.f32 0.0, %v1963
      %v1965 = vpop.f32.mrf.mxu0
      %v1966 = vadd.f32 0.0, %v1965
      %1967 = vmatmul.bf16.gmra.mxu0 %v1870
      %v1968 = vpop.f32.mrf.mxu0
      %v1969 = vadd.f32 0.0, %v1968
      %v1970 = vpop.f32.mrf.mxu0
      %v1971 = vadd.f32 0.0, %v1970
      %1972 = vmatmul.bf16.gmra.mxu0 %v1878
      %v1973 = vpop.f32.mrf.mxu0
      %v1974 = vadd.f32 0.0, %v1973
      %v1975 = vpop.f32.mrf.mxu0
      %v1976 = vadd.f32 0.0, %v1975
      %1977 = vdwg.mxu0
      %v1978 = vadd.f32 %v1734, %v1944
      %v1979 = vadd.f32 %v1735, %v1946
      %v1980 = vadd.f32 %v1736, %v1949
      %v1981 = vadd.f32 %v1737, %v1951
      %v1982 = vadd.f32 %v1738, %v1954
      %v1983 = vadd.f32 %v1739, %v1956
      %v1984 = vadd.f32 %v1740, %v1959
      %v1985 = vadd.f32 %v1741, %v1961
      %v1986 = vadd.f32 %v1742, %v1964
      %v1987 = vadd.f32 %v1743, %v1966
      %v1988 = vadd.f32 %v1744, %v1969
      %v1989 = vadd.f32 %v1745, %v1971
      %v1990 = vadd.f32 %v1746, %v1974
      %v1991 = vadd.f32 %v1747, %v1976
      %1992 = vst [vmem:[#allocation3] sm:$0xff] %v1978
      %1993 = vst [vmem:[#allocation3 + $0x8] sm:$0xff] %v1979
      %1994 = vst [vmem:[#allocation3 + $0x10] sm:$0xff] %v1980
      %1995 = vst [vmem:[#allocation3 + $0x18] sm:$0xff] %v1981
      %1996 = vst [vmem:[#allocation3 + $0x20] sm:$0xff] %v1982
      %1997 = vst [vmem:[#allocation3 + $0x28] sm:$0xff] %v1983
      %1998 = vst [vmem:[#allocation3 + $0x30] sm:$0xff] %v1984
      %1999 = vst [vmem:[#allocation3 + $0x38] sm:$0xff] %v1985
      %2000 = vst [vmem:[#allocation3 + $0x40] sm:$0xff] %v1986
      %2001 = vst [vmem:[#allocation3 + $0x48] sm:$0xff] %v1987
      %2002 = vst [vmem:[#allocation3 + $0x50] sm:$0xff] %v1988
      %2003 = vst [vmem:[#allocation3 + $0x58] sm:$0xff] %v1989
      %2004 = vst [vmem:[#allocation3 + $0x60] sm:$0xff] %v1990
      %2005 = vst [vmem:[#allocation3 + $0x68] sm:$0xff] %v1991
      %v2006 = vld [vmem:[#allocation3] sm:$0xff]
      %v2007 = vld [vmem:[#allocation3 + $0x8] sm:$0xff]
      %v2008 = vld [vmem:[#allocation3 + $0x10] sm:$0xff]
      %v2009 = vld [vmem:[#allocation3 + $0x18] sm:$0xff]
      %v2010 = vld [vmem:[#allocation3 + $0x20] sm:$0xff]
      %v2011 = vld [vmem:[#allocation3 + $0x28] sm:$0xff]
      %v2012 = vld [vmem:[#allocation3 + $0x30] sm:$0xff]
      %v2013 = vld [vmem:[#allocation3 + $0x38] sm:$0xff]
      %v2014 = vld [vmem:[#allocation3 + $0x40] sm:$0xff]
      %v2015 = vld [vmem:[#allocation3 + $0x48] sm:$0xff]
      %v2016 = vld [vmem:[#allocation3 + $0x50] sm:$0xff]
      %v2017 = vld [vmem:[#allocation3 + $0x58] sm:$0xff]
      %v2018 = vld [vmem:[#allocation3 + $0x60] sm:$0xff]
      %v2019 = vld [vmem:[#allocation3 + $0x68] sm:$0xff]
      %v2020 = vld [vmem:[#allocation2 + $0xc] sm:$0xf]
      %v2021 = vld [vmem:[#allocation2 + $0x10] sm:$0xf]
      %v2022 = vld [vmem:[#allocation2 + $0x14] sm:$0xf]
      %v2023 = vld [vmem:[#allocation2 + $0x18] sm:$0xf]
      %v2024 = vld [vmem:[#allocation2 + $0x1c] sm:$0xf]
      %v2025 = vld [vmem:[#allocation2 + $0x20] sm:$0xf]
      %v2026 = vld [vmem:[#allocation2 + $0x24] sm:$0xf]
      %v2027 = vld [vmem:[#allocation2 + $0x28] sm:$0xf]
      %v2028 = vld [vmem:[#allocation2 + $0x2c] sm:$0xf]
      %v2029 = vld [vmem:[#allocation2 + $0x30] sm:$0xf]
      %v2030 = vld [vmem:[#allocation2 + $0x34] sm:$0xf]
      %v2031 = vld [vmem:[#allocation2 + $0x38] sm:$0xf]
      %v2032 = vld [vmem:[#allocation2 + $0x3c] sm:$0xf]
      %v2033 = vld [vmem:[#allocation2 + $0x40] sm:$0xf]
      %v2034 = vld [vmem:[#allocation2 + $0x44] sm:$0x1]
      %s2035 = scalar_lea.vmem %s3, 384
      %v2036 = vld [vmem:[%s2035] sm:$0xf]
      %v2037 = vld [vmem:[%s2035 + $0x4] sm:$0xf]
      %v2038 = vld [vmem:[%s2035 + $0x8] sm:$0xf]
      %v2039 = vld [vmem:[%s2035 + $0xc] sm:$0xf]
      %v2040 = vld [vmem:[%s2035 + $0x10] sm:$0xf]
      %v2041 = vld [vmem:[%s2035 + $0x14] sm:$0xf]
      %v2042 = vld [vmem:[%s2035 + $0x18] sm:$0xf]
      %v2043 = vld [vmem:[%s2035 + $0x1c] sm:$0xf]
      %v2044 = vld [vmem:[%s2035 + $0x20] sm:$0xf]
      %v2045 = vld [vmem:[%s2035 + $0x24] sm:$0xf]
      %v2046 = vld [vmem:[%s2035 + $0x28] sm:$0xf]
      %v2047 = vld [vmem:[%s2035 + $0x2c] sm:$0xf]
      %v2048 = vld [vmem:[%s2035 + $0x30] sm:$0xf]
      %v2049 = vld [vmem:[%s2035 + $0x34] sm:$0xf]
      %v2050 = vld [vmem:[%s2035 + $0x38] sm:$0xf]
      %v2051 = vld [vmem:[%s2035 + $0x3c] sm:$0xf]
      %v2067 = vunpack.c.l.b16 %v2020
      %v2068 = vunpack.c.l.b16 %v2021
      %v2069 = vunpack.c.l.b16 %v2022
      %v2070 = vunpack.c.l.b16 %v2023
      %v2071 = vunpack.c.l.b16 %v2024
      %v2072 = vunpack.c.l.b16 %v2025
      %v2073 = vunpack.c.l.b16 %v2026
      %v2074 = vunpack.c.l.b16 %v2027
      %v2075 = vunpack.c.l.b16 %v2028
      %v2076 = vunpack.c.l.b16 %v2029
      %v2077 = vunpack.c.l.b16 %v2030
      %v2078 = vunpack.c.l.b16 %v2031
      %v2079 = vunpack.c.l.b16 %v2032
      %v2080 = vunpack.c.l.b16 %v2033
      %v2081 = vunpack.c.l.b16 %v2034
      %v2082 = vpack.c.b16 %v2068, %v2067
      %v2083 = vpack.c.b16 %v2070, %v2069
      %v2084 = vpack.c.b16 %v2072, %v2071
      %v2085 = vpack.c.b16 %v2074, %v2073
      %v2086 = vpack.c.b16 %v2076, %v2075
      %v2087 = vpack.c.b16 %v2078, %v2077
      %v2088 = vpack.c.b16 %v2080, %v2079
      %v2089 = vpack.c.b16 %v2081, %v2081
      %v2091 = vshrl.u32 %v2082, 16
      %v2093 = vshll.u32 %v2082, 16
      %v2095 = vrot.slane %v2093, 1
      %v2096 = vor.u32 %v2091, %v2095
      %v2098 = vshll.u32 %v2083, 16
      %v2100 = vrot.slane %v2098, 1
      %v2101 = vsel %vm1818, %v2096, %v2100
      %v2102 = vshrl.u32 %v2083, 16
      %v2104 = vor.u32 %v2102, %v2100
      %v2106 = vshll.u32 %v2084, 16
      %v2108 = vrot.slane %v2106, 1
      %v2109 = vsel %vm1818, %v2104, %v2108
      %v2110 = vshrl.u32 %v2084, 16
      %v2112 = vor.u32 %v2110, %v2108
      %v2114 = vshll.u32 %v2085, 16
      %v2116 = vrot.slane %v2114, 1
      %v2117 = vsel %vm1818, %v2112, %v2116
      %v2118 = vshrl.u32 %v2085, 16
      %v2120 = vor.u32 %v2118, %v2116
      %v2122 = vshll.u32 %v2086, 16
      %v2124 = vrot.slane %v2122, 1
      %v2125 = vsel %vm1818, %v2120, %v2124
      %v2126 = vshrl.u32 %v2086, 16
      %v2128 = vor.u32 %v2126, %v2124
      %v2130 = vshll.u32 %v2087, 16
      %v2132 = vrot.slane %v2130, 1
      %v2133 = vsel %vm1818, %v2128, %v2132
      %v2134 = vshrl.u32 %v2087, 16
      %v2136 = vor.u32 %v2134, %v2132
      %v2138 = vshll.u32 %v2088, 16
      %v2140 = vrot.slane %v2138, 1
      %v2141 = vsel %vm1818, %v2136, %v2140
      %v2142 = vshrl.u32 %v2088, 16
      %v2144 = vor.u32 %v2142, %v2140
      %v2146 = vshll.u32 %v2089, 16
      %v2148 = vrot.slane %v2146, 1
      %v2149 = vsel %vm1818, %v2144, %v2148
      %v2173 = vunpack.c.l.b16 %v2036
      %v2174 = vunpack.c.l.b16 %v2037
      %v2175 = vunpack.c.l.b16 %v2038
      %v2176 = vunpack.c.l.b16 %v2039
      %v2177 = vunpack.c.l.b16 %v2040
      %v2178 = vunpack.c.l.b16 %v2041
      %v2179 = vunpack.c.l.b16 %v2042
      %v2180 = vunpack.c.l.b16 %v2043
      %v2181 = vunpack.c.l.b16 %v2044
      %v2182 = vunpack.c.l.b16 %v2045
      %v2183 = vunpack.c.l.b16 %v2046
      %v2184 = vunpack.c.l.b16 %v2047
      %v2185 = vunpack.c.l.b16 %v2048
      %v2186 = vunpack.c.l.b16 %v2049
      %v2187 = vunpack.c.l.b16 %v2050
      %v2188 = vunpack.c.l.b16 %v2051
      %v2189 = vpack.c.b16 %v2174, %v2173
      %v2190 = vpack.c.b16 %v2176, %v2175
      %v2191 = vpack.c.b16 %v2178, %v2177
      %v2192 = vpack.c.b16 %v2180, %v2179
      %v2193 = vpack.c.b16 %v2182, %v2181
      %v2194 = vpack.c.b16 %v2184, %v2183
      %v2195 = vpack.c.b16 %v2186, %v2185
      %v2196 = vpack.c.b16 %v2188, %v2187
      %2205 = vmatpush.bf16.msra.mxu0 %v2196
      %2206 = vmatpush.bf16.msra.mxu0 %v2195
      %2207 = vmatpush.bf16.msra.mxu0 %v2194
      %2208 = vmatpush.bf16.msra.mxu0 %v2193
      %2209 = vmatpush.bf16.msra.mxu0 %v2192
      %2210 = vmatpush.bf16.msra.mxu0 %v2191
      %2211 = vmatpush.bf16.msra.mxu0 %v2190
      %2212 = vmatpush.bf16.msra.mxu0 %v2189
      %2213 = vmatmul.bf16.gmra.mxu0 %v2101
      %v2214 = vpop.f32.mrf.mxu0
      %v2215 = vadd.f32 0.0, %v2214
      %v2216 = vpop.f32.mrf.mxu0
      %v2217 = vadd.f32 0.0, %v2216
      %2218 = vmatmul.bf16.gmra.mxu0 %v2109
      %v2219 = vpop.f32.mrf.mxu0
      %v2220 = vadd.f32 0.0, %v2219
      %v2221 = vpop.f32.mrf.mxu0
      %v2222 = vadd.f32 0.0, %v2221
      %2223 = vmatmul.bf16.gmra.mxu0 %v2117
      %v2224 = vpop.f32.mrf.mxu0
      %v2225 = vadd.f32 0.0, %v2224
      %v2226 = vpop.f32.mrf.mxu0
      %v2227 = vadd.f32 0.0, %v2226
      %2228 = vmatmul.bf16.gmra.mxu0 %v2125
      %v2229 = vpop.f32.mrf.mxu0
      %v2230 = vadd.f32 0.0, %v2229
      %v2231 = vpop.f32.mrf.mxu0
      %v2232 = vadd.f32 0.0, %v2231
      %2233 = vmatmul.bf16.gmra.mxu0 %v2133
      %v2234 = vpop.f32.mrf.mxu0
      %v2235 = vadd.f32 0.0, %v2234
      %v2236 = vpop.f32.mrf.mxu0
      %v2237 = vadd.f32 0.0, %v2236
      %2238 = vmatmul.bf16.gmra.mxu0 %v2141
      %v2239 = vpop.f32.mrf.mxu0
      %v2240 = vadd.f32 0.0, %v2239
      %v2241 = vpop.f32.mrf.mxu0
      %v2242 = vadd.f32 0.0, %v2241
      %2243 = vmatmul.bf16.gmra.mxu0 %v2149
      %v2244 = vpop.f32.mrf.mxu0
      %v2245 = vadd.f32 0.0, %v2244
      %v2246 = vpop.f32.mrf.mxu0
      %v2247 = vadd.f32 0.0, %v2246
      %2248 = vdwg.mxu0
      %v2249 = vadd.f32 %v2006, %v2215
      %v2250 = vadd.f32 %v2007, %v2217
      %v2251 = vadd.f32 %v2008, %v2220
      %v2252 = vadd.f32 %v2009, %v2222
      %v2253 = vadd.f32 %v2010, %v2225
      %v2254 = vadd.f32 %v2011, %v2227
      %v2255 = vadd.f32 %v2012, %v2230
      %v2256 = vadd.f32 %v2013, %v2232
      %v2257 = vadd.f32 %v2014, %v2235
      %v2258 = vadd.f32 %v2015, %v2237
      %v2259 = vadd.f32 %v2016, %v2240
      %v2260 = vadd.f32 %v2017, %v2242
      %v2261 = vadd.f32 %v2018, %v2245
      %v2262 = vadd.f32 %v2019, %v2247
      %2263 = vst [vmem:[#allocation3] sm:$0xff] %v2249
      %2264 = vst [vmem:[#allocation3 + $0x8] sm:$0xff] %v2250
      %2265 = vst [vmem:[#allocation3 + $0x10] sm:$0xff] %v2251
      %2266 = vst [vmem:[#allocation3 + $0x18] sm:$0xff] %v2252
      %2267 = vst [vmem:[#allocation3 + $0x20] sm:$0xff] %v2253
      %2268 = vst [vmem:[#allocation3 + $0x28] sm:$0xff] %v2254
      %2269 = vst [vmem:[#allocation3 + $0x30] sm:$0xff] %v2255
      %2270 = vst [vmem:[#allocation3 + $0x38] sm:$0xff] %v2256
      %2271 = vst [vmem:[#allocation3 + $0x40] sm:$0xff] %v2257
      %2272 = vst [vmem:[#allocation3 + $0x48] sm:$0xff] %v2258
      %2273 = vst [vmem:[#allocation3 + $0x50] sm:$0xff] %v2259
      %2274 = vst [vmem:[#allocation3 + $0x58] sm:$0xff] %v2260
      %2275 = vst [vmem:[#allocation3 + $0x60] sm:$0xff] %v2261
      %2276 = vst [vmem:[#allocation3 + $0x68] sm:$0xff] %v2262
      %v2277 = vld [vmem:[#allocation3] sm:$0xff]
      %v2278 = vld [vmem:[#allocation3 + $0x8] sm:$0xff]
      %v2279 = vld [vmem:[#allocation3 + $0x10] sm:$0xff]
      %v2280 = vld [vmem:[#allocation3 + $0x18] sm:$0xff]
      %v2281 = vld [vmem:[#allocation3 + $0x20] sm:$0xff]
      %v2282 = vld [vmem:[#allocation3 + $0x28] sm:$0xff]
      %v2283 = vld [vmem:[#allocation3 + $0x30] sm:$0xff]
      %v2284 = vld [vmem:[#allocation3 + $0x38] sm:$0xff]
      %v2285 = vld [vmem:[#allocation3 + $0x40] sm:$0xff]
      %v2286 = vld [vmem:[#allocation3 + $0x48] sm:$0xff]
      %v2287 = vld [vmem:[#allocation3 + $0x50] sm:$0xff]
      %v2288 = vld [vmem:[#allocation3 + $0x58] sm:$0xff]
      %v2289 = vld [vmem:[#allocation3 + $0x60] sm:$0xff]
      %v2290 = vld [vmem:[#allocation3 + $0x68] sm:$0xff]
      %v2291 = vld [vmem:[#allocation2 + $0xc] sm:$0xe]
      %v2292 = vld [vmem:[#allocation2 + $0x10] sm:$0xf]
      %v2293 = vld [vmem:[#allocation2 + $0x14] sm:$0xf]
      %v2294 = vld [vmem:[#allocation2 + $0x18] sm:$0xf]
      %v2295 = vld [vmem:[#allocation2 + $0x1c] sm:$0xf]
      %v2296 = vld [vmem:[#allocation2 + $0x20] sm:$0xf]
      %v2297 = vld [vmem:[#allocation2 + $0x24] sm:$0xf]
      %v2298 = vld [vmem:[#allocation2 + $0x28] sm:$0xf]
      %v2299 = vld [vmem:[#allocation2 + $0x2c] sm:$0xf]
      %v2300 = vld [vmem:[#allocation2 + $0x30] sm:$0xf]
      %v2301 = vld [vmem:[#allocation2 + $0x34] sm:$0xf]
      %v2302 = vld [vmem:[#allocation2 + $0x38] sm:$0xf]
      %v2303 = vld [vmem:[#allocation2 + $0x3c] sm:$0xf]
      %v2304 = vld [vmem:[#allocation2 + $0x40] sm:$0xf]
      %v2305 = vld [vmem:[#allocation2 + $0x44] sm:$0x1]
      %s2306 = scalar_lea.vmem %s3, 448
      %v2307 = vld [vmem:[%s2306] sm:$0xf]
      %v2308 = vld [vmem:[%s2306 + $0x4] sm:$0xf]
      %v2309 = vld [vmem:[%s2306 + $0x8] sm:$0xf]
      %v2310 = vld [vmem:[%s2306 + $0xc] sm:$0xf]
      %v2311 = vld [vmem:[%s2306 + $0x10] sm:$0xf]
      %v2312 = vld [vmem:[%s2306 + $0x14] sm:$0xf]
      %v2313 = vld [vmem:[%s2306 + $0x18] sm:$0xf]
      %v2314 = vld [vmem:[%s2306 + $0x1c] sm:$0xf]
      %v2315 = vld [vmem:[%s2306 + $0x20] sm:$0xf]
      %v2316 = vld [vmem:[%s2306 + $0x24] sm:$0xf]
      %v2317 = vld [vmem:[%s2306 + $0x28] sm:$0xf]
      %v2318 = vld [vmem:[%s2306 + $0x2c] sm:$0xf]
      %v2319 = vld [vmem:[%s2306 + $0x30] sm:$0xf]
      %v2320 = vld [vmem:[%s2306 + $0x34] sm:$0xf]
      %v2321 = vld [vmem:[%s2306 + $0x38] sm:$0xf]
      %v2322 = vld [vmem:[%s2306 + $0x3c] sm:$0xf]
      %v2338 = vunpack.c.l.b16 %v2291
      %v2339 = vunpack.c.l.b16 %v2292
      %v2340 = vunpack.c.l.b16 %v2293
      %v2341 = vunpack.c.l.b16 %v2294
      %v2342 = vunpack.c.l.b16 %v2295
      %v2343 = vunpack.c.l.b16 %v2296
      %v2344 = vunpack.c.l.b16 %v2297
      %v2345 = vunpack.c.l.b16 %v2298
      %v2346 = vunpack.c.l.b16 %v2299
      %v2347 = vunpack.c.l.b16 %v2300
      %v2348 = vunpack.c.l.b16 %v2301
      %v2349 = vunpack.c.l.b16 %v2302
      %v2350 = vunpack.c.l.b16 %v2303
      %v2351 = vunpack.c.l.b16 %v2304
      %v2352 = vunpack.c.l.b16 %v2305
      %v2353 = vpack.c.b16 %v2339, %v2338
      %v2354 = vpack.c.b16 %v2341, %v2340
      %v2355 = vpack.c.b16 %v2343, %v2342
      %v2356 = vpack.c.b16 %v2345, %v2344
      %v2357 = vpack.c.b16 %v2347, %v2346
      %v2358 = vpack.c.b16 %v2349, %v2348
      %v2359 = vpack.c.b16 %v2351, %v2350
      %v2360 = vpack.c.b16 %v2352, %v2352
      %vm2361 = vcmask 1046528
      %v2362 = vrot.slane %v2353, 1
      %v2363 = vrot.slane %v2354, 1
      %v2364 = vsel %vm2361, %v2362, %v2363
      %v2365 = vrot.slane %v2355, 1
      %v2366 = vsel %vm2361, %v2363, %v2365
      %v2367 = vrot.slane %v2356, 1
      %v2368 = vsel %vm2361, %v2365, %v2367
      %v2369 = vrot.slane %v2357, 1
      %v2370 = vsel %vm2361, %v2367, %v2369
      %v2371 = vrot.slane %v2358, 1
      %v2372 = vsel %vm2361, %v2369, %v2371
      %v2373 = vrot.slane %v2359, 1
      %v2374 = vsel %vm2361, %v2371, %v2373
      %v2375 = vrot.slane %v2360, 1
      %v2376 = vsel %vm2361, %v2373, %v2375
      %v2400 = vunpack.c.l.b16 %v2307
      %v2401 = vunpack.c.l.b16 %v2308
      %v2402 = vunpack.c.l.b16 %v2309
      %v2403 = vunpack.c.l.b16 %v2310
      %v2404 = vunpack.c.l.b16 %v2311
      %v2405 = vunpack.c.l.b16 %v2312
      %v2406 = vunpack.c.l.b16 %v2313
      %v2407 = vunpack.c.l.b16 %v2314
      %v2408 = vunpack.c.l.b16 %v2315
      %v2409 = vunpack.c.l.b16 %v2316
      %v2410 = vunpack.c.l.b16 %v2317
      %v2411 = vunpack.c.l.b16 %v2318
      %v2412 = vunpack.c.l.b16 %v2319
      %v2413 = vunpack.c.l.b16 %v2320
      %v2414 = vunpack.c.l.b16 %v2321
      %v2415 = vunpack.c.l.b16 %v2322
      %v2416 = vpack.c.b16 %v2401, %v2400
      %v2417 = vpack.c.b16 %v2403, %v2402
      %v2418 = vpack.c.b16 %v2405, %v2404
      %v2419 = vpack.c.b16 %v2407, %v2406
      %v2420 = vpack.c.b16 %v2409, %v2408
      %v2421 = vpack.c.b16 %v2411, %v2410
      %v2422 = vpack.c.b16 %v2413, %v2412
      %v2423 = vpack.c.b16 %v2415, %v2414
      %2432 = vmatpush.bf16.msra.mxu0 %v2423
      %2433 = vmatpush.bf16.msra.mxu0 %v2422
      %2434 = vmatpush.bf16.msra.mxu0 %v2421
      %2435 = vmatpush.bf16.msra.mxu0 %v2420
      %2436 = vmatpush.bf16.msra.mxu0 %v2419
      %2437 = vmatpush.bf16.msra.mxu0 %v2418
      %2438 = vmatpush.bf16.msra.mxu0 %v2417
      %2439 = vmatpush.bf16.msra.mxu0 %v2416
      %2440 = vmatmul.bf16.gmra.mxu0 %v2364
      %v2441 = vpop.f32.mrf.mxu0
      %v2442 = vadd.f32 0.0, %v2441
      %v2443 = vpop.f32.mrf.mxu0
      %v2444 = vadd.f32 0.0, %v2443
      %2445 = vmatmul.bf16.gmra.mxu0 %v2366
      %v2446 = vpop.f32.mrf.mxu0
      %v2447 = vadd.f32 0.0, %v2446
      %v2448 = vpop.f32.mrf.mxu0
      %v2449 = vadd.f32 0.0, %v2448
      %2450 = vmatmul.bf16.gmra.mxu0 %v2368
      %v2451 = vpop.f32.mrf.mxu0
      %v2452 = vadd.f32 0.0, %v2451
      %v2453 = vpop.f32.mrf.mxu0
      %v2454 = vadd.f32 0.0, %v2453
      %2455 = vmatmul.bf16.gmra.mxu0 %v2370
      %v2456 = vpop.f32.mrf.mxu0
      %v2457 = vadd.f32 0.0, %v2456
      %v2458 = vpop.f32.mrf.mxu0
      %v2459 = vadd.f32 0.0, %v2458
      %2460 = vmatmul.bf16.gmra.mxu0 %v2372
      %v2461 = vpop.f32.mrf.mxu0
      %v2462 = vadd.f32 0.0, %v2461
      %v2463 = vpop.f32.mrf.mxu0
      %v2464 = vadd.f32 0.0, %v2463
      %2465 = vmatmul.bf16.gmra.mxu0 %v2374
      %v2466 = vpop.f32.mrf.mxu0
      %v2467 = vadd.f32 0.0, %v2466
      %v2468 = vpop.f32.mrf.mxu0
      %v2469 = vadd.f32 0.0, %v2468
      %2470 = vmatmul.bf16.gmra.mxu0 %v2376
      %v2471 = vpop.f32.mrf.mxu0
      %v2472 = vadd.f32 0.0, %v2471
      %v2473 = vpop.f32.mrf.mxu0
      %v2474 = vadd.f32 0.0, %v2473
      %2475 = vdwg.mxu0
      %v2476 = vadd.f32 %v2277, %v2442
      %v2477 = vadd.f32 %v2278, %v2444
      %v2478 = vadd.f32 %v2279, %v2447
      %v2479 = vadd.f32 %v2280, %v2449
      %v2480 = vadd.f32 %v2281, %v2452
      %v2481 = vadd.f32 %v2282, %v2454
      %v2482 = vadd.f32 %v2283, %v2457
      %v2483 = vadd.f32 %v2284, %v2459
      %v2484 = vadd.f32 %v2285, %v2462
      %v2485 = vadd.f32 %v2286, %v2464
      %v2486 = vadd.f32 %v2287, %v2467
      %v2487 = vadd.f32 %v2288, %v2469
      %v2488 = vadd.f32 %v2289, %v2472
      %v2489 = vadd.f32 %v2290, %v2474
      %2490 = vst [vmem:[#allocation3] sm:$0xff] %v2476
      %2491 = vst [vmem:[#allocation3 + $0x8] sm:$0xff] %v2477
      %2492 = vst [vmem:[#allocation3 + $0x10] sm:$0xff] %v2478
      %2493 = vst [vmem:[#allocation3 + $0x18] sm:$0xff] %v2479
      %2494 = vst [vmem:[#allocation3 + $0x20] sm:$0xff] %v2480
      %2495 = vst [vmem:[#allocation3 + $0x28] sm:$0xff] %v2481
      %2496 = vst [vmem:[#allocation3 + $0x30] sm:$0xff] %v2482
      %2497 = vst [vmem:[#allocation3 + $0x38] sm:$0xff] %v2483
      %2498 = vst [vmem:[#allocation3 + $0x40] sm:$0xff] %v2484
      %2499 = vst [vmem:[#allocation3 + $0x48] sm:$0xff] %v2485
      %2500 = vst [vmem:[#allocation3 + $0x50] sm:$0xff] %v2486
      %2501 = vst [vmem:[#allocation3 + $0x58] sm:$0xff] %v2487
      %2502 = vst [vmem:[#allocation3 + $0x60] sm:$0xff] %v2488
      %2503 = vst [vmem:[#allocation3 + $0x68] sm:$0xff] %v2489
      %v2504 = vld [vmem:[#allocation3] sm:$0xff]
      %v2505 = vld [vmem:[#allocation3 + $0x8] sm:$0xff]
      %v2506 = vld [vmem:[#allocation3 + $0x10] sm:$0xff]
      %v2507 = vld [vmem:[#allocation3 + $0x18] sm:$0xff]
      %v2508 = vld [vmem:[#allocation3 + $0x20] sm:$0xff]
      %v2509 = vld [vmem:[#allocation3 + $0x28] sm:$0xff]
      %v2510 = vld [vmem:[#allocation3 + $0x30] sm:$0xff]
      %v2511 = vld [vmem:[#allocation3 + $0x38] sm:$0xff]
      %v2512 = vld [vmem:[#allocation3 + $0x40] sm:$0xff]
      %v2513 = vld [vmem:[#allocation3 + $0x48] sm:$0xff]
      %v2514 = vld [vmem:[#allocation3 + $0x50] sm:$0xff]
      %v2515 = vld [vmem:[#allocation3 + $0x58] sm:$0xff]
      %v2516 = vld [vmem:[#allocation3 + $0x60] sm:$0xff]
      %v2517 = vld [vmem:[#allocation3 + $0x68] sm:$0xff]
      %v2518 = vld [vmem:[#allocation2 + $0xc] sm:$0xe]
      %v2519 = vld [vmem:[#allocation2 + $0x10] sm:$0xf]
      %v2520 = vld [vmem:[#allocation2 + $0x14] sm:$0xf]
      %v2521 = vld [vmem:[#allocation2 + $0x18] sm:$0xf]
      %v2522 = vld [vmem:[#allocation2 + $0x1c] sm:$0xf]
      %v2523 = vld [vmem:[#allocation2 + $0x20] sm:$0xf]
      %v2524 = vld [vmem:[#allocation2 + $0x24] sm:$0xf]
      %v2525 = vld [vmem:[#allocation2 + $0x28] sm:$0xf]
      %v2526 = vld [vmem:[#allocation2 + $0x2c] sm:$0xf]
      %v2527 = vld [vmem:[#allocation2 + $0x30] sm:$0xf]
      %v2528 = vld [vmem:[#allocation2 + $0x34] sm:$0xf]
      %v2529 = vld [vmem:[#allocation2 + $0x38] sm:$0xf]
      %v2530 = vld [vmem:[#allocation2 + $0x3c] sm:$0xf]
      %v2531 = vld [vmem:[#allocation2 + $0x40] sm:$0xf]
      %v2532 = vld [vmem:[#allocation2 + $0x44] sm:$0x3]
      %s2533 = scalar_lea.vmem %s3, 512
      %v2534 = vld [vmem:[%s2533] sm:$0xf]
      %v2535 = vld [vmem:[%s2533 + $0x4] sm:$0xf]
      %v2536 = vld [vmem:[%s2533 + $0x8] sm:$0xf]
      %v2537 = vld [vmem:[%s2533 + $0xc] sm:$0xf]
      %v2538 = vld [vmem:[%s2533 + $0x10] sm:$0xf]
      %v2539 = vld [vmem:[%s2533 + $0x14] sm:$0xf]
      %v2540 = vld [vmem:[%s2533 + $0x18] sm:$0xf]
      %v2541 = vld [vmem:[%s2533 + $0x1c] sm:$0xf]
      %v2542 = vld [vmem:[%s2533 + $0x20] sm:$0xf]
      %v2543 = vld [vmem:[%s2533 + $0x24] sm:$0xf]
      %v2544 = vld [vmem:[%s2533 + $0x28] sm:$0xf]
      %v2545 = vld [vmem:[%s2533 + $0x2c] sm:$0xf]
      %v2546 = vld [vmem:[%s2533 + $0x30] sm:$0xf]
      %v2547 = vld [vmem:[%s2533 + $0x34] sm:$0xf]
      %v2548 = vld [vmem:[%s2533 + $0x38] sm:$0xf]
      %v2549 = vld [vmem:[%s2533 + $0x3c] sm:$0xf]
      %v2565 = vunpack.c.l.b16 %v2518
      %v2566 = vunpack.c.l.b16 %v2519
      %v2567 = vunpack.c.l.b16 %v2520
      %v2568 = vunpack.c.l.b16 %v2521
      %v2569 = vunpack.c.l.b16 %v2522
      %v2570 = vunpack.c.l.b16 %v2523
      %v2571 = vunpack.c.l.b16 %v2524
      %v2572 = vunpack.c.l.b16 %v2525
      %v2573 = vunpack.c.l.b16 %v2526
      %v2574 = vunpack.c.l.b16 %v2527
      %v2575 = vunpack.c.l.b16 %v2528
      %v2576 = vunpack.c.l.b16 %v2529
      %v2577 = vunpack.c.l.b16 %v2530
      %v2578 = vunpack.c.l.b16 %v2531
      %v2579 = vunpack.c.l.b16 %v2532
      %v2580 = vpack.c.b16 %v2566, %v2565
      %v2581 = vpack.c.b16 %v2568, %v2567
      %v2582 = vpack.c.b16 %v2570, %v2569
      %v2583 = vpack.c.b16 %v2572, %v2571
      %v2584 = vpack.c.b16 %v2574, %v2573
      %v2585 = vpack.c.b16 %v2576, %v2575
      %v2586 = vpack.c.b16 %v2578, %v2577
      %v2587 = vpack.c.b16 %v2579, %v2579
      %vm2588 = vsmask.f32 6400
      %v2590 = vshrl.u32 %v2580, 16
      %v2592 = vrot.slane %v2590, 1
      %v2593 = vshll.u32 %v2580, 16
      %v2595 = vrot.slane %v2593, 2
      %v2596 = vor.u32 %v2592, %v2595
      %v2598 = vshrl.u32 %v2581, 16
      %v2600 = vrot.slane %v2598, 1
      %v2601 = vshll.u32 %v2581, 16
      %v2603 = vrot.slane %v2601, 2
      %v2604 = vor.u32 %v2600, %v2603
      %v2605 = vsel %vm2588, %v2596, %v2604
      %v2607 = vshrl.u32 %v2582, 16
      %v2609 = vrot.slane %v2607, 1
      %v2610 = vshll.u32 %v2582, 16
      %v2612 = vrot.slane %v2610, 2
      %v2613 = vor.u32 %v2609, %v2612
      %v2614 = vsel %vm2588, %v2604, %v2613
      %v2616 = vshrl.u32 %v2583, 16
      %v2618 = vrot.slane %v2616, 1
      %v2619 = vshll.u32 %v2583, 16
      %v2621 = vrot.slane %v2619, 2
      %v2622 = vor.u32 %v2618, %v2621
      %v2623 = vsel %vm2588, %v2613, %v2622
      %v2625 = vshrl.u32 %v2584, 16
      %v2627 = vrot.slane %v2625, 1
      %v2628 = vshll.u32 %v2584, 16
      %v2630 = vrot.slane %v2628, 2
      %v2631 = vor.u32 %v2627, %v2630
      %v2632 = vsel %vm2588, %v2622, %v2631
      %v2634 = vshrl.u32 %v2585, 16
      %v2636 = vrot.slane %v2634, 1
      %v2637 = vshll.u32 %v2585, 16
      %v2639 = vrot.slane %v2637, 2
      %v2640 = vor.u32 %v2636, %v2639
      %v2641 = vsel %vm2588, %v2631, %v2640
      %v2643 = vshrl.u32 %v2586, 16
      %v2645 = vrot.slane %v2643, 1
      %v2646 = vshll.u32 %v2586, 16
      %v2648 = vrot.slane %v2646, 2
      %v2649 = vor.u32 %v2645, %v2648
      %v2650 = vsel %vm2588, %v2640, %v2649
      %v2652 = vshrl.u32 %v2587, 16
      %v2654 = vrot.slane %v2652, 1
      %v2655 = vshll.u32 %v2587, 16
      %v2657 = vrot.slane %v2655, 2
      %v2658 = vor.u32 %v2654, %v2657
      %v2659 = vsel %vm2588, %v2649, %v2658
      %v2683 = vunpack.c.l.b16 %v2534
      %v2684 = vunpack.c.l.b16 %v2535
      %v2685 = vunpack.c.l.b16 %v2536
      %v2686 = vunpack.c.l.b16 %v2537
      %v2687 = vunpack.c.l.b16 %v2538
      %v2688 = vunpack.c.l.b16 %v2539
      %v2689 = vunpack.c.l.b16 %v2540
      %v2690 = vunpack.c.l.b16 %v2541
      %v2691 = vunpack.c.l.b16 %v2542
      %v2692 = vunpack.c.l.b16 %v2543
      %v2693 = vunpack.c.l.b16 %v2544
      %v2694 = vunpack.c.l.b16 %v2545
      %v2695 = vunpack.c.l.b16 %v2546
      %v2696 = vunpack.c.l.b16 %v2547
      %v2697 = vunpack.c.l.b16 %v2548
      %v2698 = vunpack.c.l.b16 %v2549
      %v2699 = vpack.c.b16 %v2684, %v2683
      %v2700 = vpack.c.b16 %v2686, %v2685
      %v2701 = vpack.c.b16 %v2688, %v2687
      %v2702 = vpack.c.b16 %v2690, %v2689
      %v2703 = vpack.c.b16 %v2692, %v2691
      %v2704 = vpack.c.b16 %v2694, %v2693
      %v2705 = vpack.c.b16 %v2696, %v2695
      %v2706 = vpack.c.b16 %v2698, %v2697
      %2715 = vmatpush.bf16.msra.mxu0 %v2706
      %2716 = vmatpush.bf16.msra.mxu0 %v2705
      %2717 = vmatpush.bf16.msra.mxu0 %v2704
      %2718 = vmatpush.bf16.msra.mxu0 %v2703
      %2719 = vmatpush.bf16.msra.mxu0 %v2702
      %2720 = vmatpush.bf16.msra.mxu0 %v2701
      %2721 = vmatpush.bf16.msra.mxu0 %v2700
      %2722 = vmatpush.bf16.msra.mxu0 %v2699
      %2723 = vmatmul.bf16.gmra.mxu0 %v2605
      %v2724 = vpop.f32.mrf.mxu0
      %v2725 = vadd.f32 0.0, %v2724
      %v2726 = vpop.f32.mrf.mxu0
      %v2727 = vadd.f32 0.0, %v2726
      %2728 = vmatmul.bf16.gmra.mxu0 %v2614
      %v2729 = vpop.f32.mrf.mxu0
      %v2730 = vadd.f32 0.0, %v2729
      %v2731 = vpop.f32.mrf.mxu0
      %v2732 = vadd.f32 0.0, %v2731
      %2733 = vmatmul.bf16.gmra.mxu0 %v2623
      %v2734 = vpop.f32.mrf.mxu0
      %v2735 = vadd.f32 0.0, %v2734
      %v2736 = vpop.f32.mrf.mxu0
      %v2737 = vadd.f32 0.0, %v2736
      %2738 = vmatmul.bf16.gmra.mxu0 %v2632
      %v2739 = vpop.f32.mrf.mxu0
      %v2740 = vadd.f32 0.0, %v2739
      %v2741 = vpop.f32.mrf.mxu0
      %v2742 = vadd.f32 0.0, %v2741
      %2743 = vmatmul.bf16.gmra.mxu0 %v2641
      %v2744 = vpop.f32.mrf.mxu0
      %v2745 = vadd.f32 0.0, %v2744
      %v2746 = vpop.f32.mrf.mxu0
      %v2747 = vadd.f32 0.0, %v2746
      %2748 = vmatmul.bf16.gmra.mxu0 %v2650
      %v2749 = vpop.f32.mrf.mxu0
      %v2750 = vadd.f32 0.0, %v2749
      %v2751 = vpop.f32.mrf.mxu0
      %v2752 = vadd.f32 0.0, %v2751
      %2753 = vmatmul.bf16.gmra.mxu0 %v2659
      %v2754 = vpop.f32.mrf.mxu0
      %v2755 = vadd.f32 0.0, %v2754
      %v2756 = vpop.f32.mrf.mxu0
      %v2757 = vadd.f32 0.0, %v2756
      %2758 = vdwg.mxu0
      %v2759 = vadd.f32 %v2504, %v2725
      %v2760 = vadd.f32 %v2505, %v2727
      %v2761 = vadd.f32 %v2506, %v2730
      %v2762 = vadd.f32 %v2507, %v2732
      %v2763 = vadd.f32 %v2508, %v2735
      %v2764 = vadd.f32 %v2509, %v2737
      %v2765 = vadd.f32 %v2510, %v2740
      %v2766 = vadd.f32 %v2511, %v2742
      %v2767 = vadd.f32 %v2512, %v2745
      %v2768 = vadd.f32 %v2513, %v2747
      %v2769 = vadd.f32 %v2514, %v2750
      %v2770 = vadd.f32 %v2515, %v2752
      %v2771 = vadd.f32 %v2516, %v2755
      %v2772 = vadd.f32 %v2517, %v2757
      %2773 = vst [vmem:[#allocation3] sm:$0xff] %v2759
      %2774 = vst [vmem:[#allocation3 + $0x8] sm:$0xff] %v2760
      %2775 = vst [vmem:[#allocation3 + $0x10] sm:$0xff] %v2761
      %2776 = vst [vmem:[#allocation3 + $0x18] sm:$0xff] %v2762
      %2777 = vst [vmem:[#allocation3 + $0x20] sm:$0xff] %v2763
      %2778 = vst [vmem:[#allocation3 + $0x28] sm:$0xff] %v2764
      %2779 = vst [vmem:[#allocation3 + $0x30] sm:$0xff] %v2765
      %2780 = vst [vmem:[#allocation3 + $0x38] sm:$0xff] %v2766
      %2781 = vst [vmem:[#allocation3 + $0x40] sm:$0xff] %v2767
      %2782 = vst [vmem:[#allocation3 + $0x48] sm:$0xff] %v2768
      %2783 = vst [vmem:[#allocation3 + $0x50] sm:$0xff] %v2769
      %2784 = vst [vmem:[#allocation3 + $0x58] sm:$0xff] %v2770
      %2785 = vst [vmem:[#allocation3 + $0x60] sm:$0xff] %v2771
      %2786 = vst [vmem:[#allocation3 + $0x68] sm:$0xff] %v2772
      %v2787 = vld [vmem:[#allocation3] sm:$0xff]
      %v2788 = vld [vmem:[#allocation3 + $0x8] sm:$0xff]
      %v2789 = vld [vmem:[#allocation3 + $0x10] sm:$0xff]
      %v2790 = vld [vmem:[#allocation3 + $0x18] sm:$0xff]
      %v2791 = vld [vmem:[#allocation3 + $0x20] sm:$0xff]
      %v2792 = vld [vmem:[#allocation3 + $0x28] sm:$0xff]
      %v2793 = vld [vmem:[#allocation3 + $0x30] sm:$0xff]
      %v2794 = vld [vmem:[#allocation3 + $0x38] sm:$0xff]
      %v2795 = vld [vmem:[#allocation3 + $0x40] sm:$0xff]
      %v2796 = vld [vmem:[#allocation3 + $0x48] sm:$0xff]
      %v2797 = vld [vmem:[#allocation3 + $0x50] sm:$0xff]
      %v2798 = vld [vmem:[#allocation3 + $0x58] sm:$0xff]
      %v2799 = vld [vmem:[#allocation3 + $0x60] sm:$0xff]
      %v2800 = vld [vmem:[#allocation3 + $0x68] sm:$0xff]
      %v2801 = vld [vmem:[%s5] sm:$0xff]
      %v2802 = vld [vmem:[%s5 + $0x8] sm:$0xff]
      %v2803 = vld [vmem:[%s5 + $0x10] sm:$0xff]
      %v2804 = vld [vmem:[%s5 + $0x18] sm:$0xff]
      %v2805 = vld [vmem:[%s5 + $0x20] sm:$0xff]
      %v2806 = vld [vmem:[%s5 + $0x28] sm:$0xff]
      %v2807 = vld [vmem:[%s5 + $0x30] sm:$0xff]
      %v2808 = vld [vmem:[%s5 + $0x38] sm:$0xff]
      %v2809 = vld [vmem:[%s5 + $0x40] sm:$0xff]
      %v2810 = vld [vmem:[%s5 + $0x48] sm:$0xff]
      %v2811 = vld [vmem:[%s5 + $0x50] sm:$0xff]
      %v2812 = vld [vmem:[%s5 + $0x58] sm:$0xff]
      %v2813 = vld [vmem:[%s5 + $0x60] sm:$0xff]
      %v2814 = vld [vmem:[%s5 + $0x68] sm:$0xff]
      %2816 = vset.pattern.permute.xlu0 0
      %2817 = vperm.xlu0 %2816, %v2801
      %v2818 = vpop.permute.xlu0 %2817
      %2821 = vset.pattern.permute.xlu0 0
      %2822 = vperm.xlu0 %2821, %v2802
      %v2823 = vpop.permute.xlu0 %2822
      %2826 = vset.pattern.permute.xlu0 0
      %2827 = vperm.xlu0 %2826, %v2803
      %v2828 = vpop.permute.xlu0 %2827
      %2831 = vset.pattern.permute.xlu0 0
      %2832 = vperm.xlu0 %2831, %v2804
      %v2833 = vpop.permute.xlu0 %2832
      %2836 = vset.pattern.permute.xlu0 0
      %2837 = vperm.xlu0 %2836, %v2805
      %v2838 = vpop.permute.xlu0 %2837
      %2841 = vset.pattern.permute.xlu0 0
      %2842 = vperm.xlu0 %2841, %v2806
      %v2843 = vpop.permute.xlu0 %2842
      %2846 = vset.pattern.permute.xlu0 0
      %2847 = vperm.xlu0 %2846, %v2807
      %v2848 = vpop.permute.xlu0 %2847
      %2851 = vset.pattern.permute.xlu0 0
      %2852 = vperm.xlu0 %2851, %v2808
      %v2853 = vpop.permute.xlu0 %2852
      %2856 = vset.pattern.permute.xlu0 0
      %2857 = vperm.xlu0 %2856, %v2809
      %v2858 = vpop.permute.xlu0 %2857
      %2861 = vset.pattern.permute.xlu0 0
      %2862 = vperm.xlu0 %2861, %v2810
      %v2863 = vpop.permute.xlu0 %2862
      %2866 = vset.pattern.permute.xlu0 0
      %2867 = vperm.xlu0 %2866, %v2811
      %v2868 = vpop.permute.xlu0 %2867
      %2871 = vset.pattern.permute.xlu0 0
      %2872 = vperm.xlu0 %2871, %v2812
      %v2873 = vpop.permute.xlu0 %2872
      %2876 = vset.pattern.permute.xlu0 0
      %2877 = vperm.xlu0 %2876, %v2813
      %v2878 = vpop.permute.xlu0 %2877
      %2881 = vset.pattern.permute.xlu0 0
      %2882 = vperm.xlu0 %2881, %v2814
      %v2883 = vpop.permute.xlu0 %2882
      %v2885 = vmul.f32 %v2787, %v2818
      %v2886 = vmul.f32 %v2788, %v2823
      %v2887 = vmul.f32 %v2789, %v2828
      %v2888 = vmul.f32 %v2790, %v2833
      %v2889 = vmul.f32 %v2791, %v2838
      %v2890 = vmul.f32 %v2792, %v2843
      %v2891 = vmul.f32 %v2793, %v2848
      %v2892 = vmul.f32 %v2794, %v2853
      %v2893 = vmul.f32 %v2795, %v2858
      %v2894 = vmul.f32 %v2796, %v2863
      %v2895 = vmul.f32 %v2797, %v2868
      %v2896 = vmul.f32 %v2798, %v2873
      %v2897 = vmul.f32 %v2799, %v2878
      %v2898 = vmul.f32 %v2800, %v2883
      %v2899 = vld [vmem:[%s266] sm:$0xff]
      %v2900 = vld [vmem:[%s266 + $0x8] sm:$0xff]
      %v2901 = vld [vmem:[%s266 + $0x10] sm:$0xff]
      %v2902 = vld [vmem:[%s266 + $0x18] sm:$0xff]
      %v2903 = vld [vmem:[%s266 + $0x20] sm:$0xff]
      %v2904 = vld [vmem:[%s266 + $0x28] sm:$0xff]
      %v2905 = vld [vmem:[%s266 + $0x30] sm:$0xff]
      %v2906 = vld [vmem:[%s266 + $0x38] sm:$0xff]
      %v2907 = vld [vmem:[%s266 + $0x40] sm:$0xff]
      %v2908 = vld [vmem:[%s266 + $0x48] sm:$0xff]
      %v2909 = vld [vmem:[%s266 + $0x50] sm:$0xff]
      %v2910 = vld [vmem:[%s266 + $0x58] sm:$0xff]
      %v2911 = vld [vmem:[%s266 + $0x60] sm:$0xff]
      %v2912 = vld [vmem:[%s266 + $0x68] sm:$0xff]
      %v2913 = vadd.f32 %v2885, %v2899
      %v2914 = vadd.f32 %v2886, %v2900
      %v2915 = vadd.f32 %v2887, %v2901
      %v2916 = vadd.f32 %v2888, %v2902
      %v2917 = vadd.f32 %v2889, %v2903
      %v2918 = vadd.f32 %v2890, %v2904
      %v2919 = vadd.f32 %v2891, %v2905
      %v2920 = vadd.f32 %v2892, %v2906
      %v2921 = vadd.f32 %v2893, %v2907
      %v2922 = vadd.f32 %v2894, %v2908
      %v2923 = vadd.f32 %v2895, %v2909
      %v2924 = vadd.f32 %v2896, %v2910
      %v2925 = vadd.f32 %v2897, %v2911
      %v2926 = vadd.f32 %v2898, %v2912
      %2927 = vst [vmem:[%s271] sm:$0xff] %v2913
      %2928 = vst [vmem:[%s271 + $0x8] sm:$0xff] %v2914
      %2929 = vst [vmem:[%s271 + $0x10] sm:$0xff] %v2915
      %2930 = vst [vmem:[%s271 + $0x18] sm:$0xff] %v2916
      %2931 = vst [vmem:[%s271 + $0x20] sm:$0xff] %v2917
      %2932 = vst [vmem:[%s271 + $0x28] sm:$0xff] %v2918
      %2933 = vst [vmem:[%s271 + $0x30] sm:$0xff] %v2919
      %2934 = vst [vmem:[%s271 + $0x38] sm:$0xff] %v2920
      %2935 = vst [vmem:[%s271 + $0x40] sm:$0xff] %v2921
      %2936 = vst [vmem:[%s271 + $0x48] sm:$0xff] %v2922
      %2937 = vst [vmem:[%s271 + $0x50] sm:$0xff] %v2923
      %2938 = vst [vmem:[%s271 + $0x58] sm:$0xff] %v2924
      %2939 = vst [vmem:[%s271 + $0x60] sm:$0xff] %v2925
      %2940 = vst [vmem:[%s271 + $0x68] sm:$0xff] %v2926
      %p2941 = scmp.lt.s32.totalorder %s17, 1
      %s2942 = scalar_select %p2941, %s17, 1
      %s2943 = smul.addr %s2942, 14
      %s2944 = smul.addr %s2943, 8
      %s2945 = scalar_lea.vmem %s6, %s2944
      // Predicated region
      $region45: #{_lambda_.3} parent=43 // pred_check
        %p2946 = pneg %p171
      $region46: #{_lambda_.3} parent=43 // pred_check_branch
        %2948 = sbr.rel (%p2946) target = $region48
      $region47: #{_lambda_.3} parent=43 // pred_region
        _
      $region48: #{_lambda_.3} parent=43 // pred_fallthru
        _
    $region44: #{_lambda_.3} parent=5 // pred_fallthru
      _
    %p2949 = scmp.le.s32.totalorder 2, %s12
    // Predicated region
    $region49: #{_lambda_.3} parent=5 // pred_check
      %p2950 = pneg %p2949
    $region50: #{_lambda_.3} parent=5 // pred_check_branch
      %2952 = sbr.rel (%p2950) target = $region52
    $region51: #{_lambda_.3} parent=5 // pred_region
      %s2953 = ssub.s32 %s12, 2
      // Predicated region
      $region53: #{_lambda_.3} parent=51 // pred_check
        %p2954 = pneg %p177
      $region54: #{_lambda_.3} parent=51 // pred_check_branch
        %2956 = sbr.rel (%p2954) target = $region56
      $region55: #{_lambda_.3} parent=51 // pred_region
        %p2957 = scmp.lt.s32.totalorder %s18, 1
        %s2958 = scalar_select %p2957, %s18, 1
        %s2959 = smul.addr %s2958, 14
        %s2960 = smul.addr %s2959, 8
        %s2961 = scalar_lea.vmem %s6, %s2960
      $region56: #{_lambda_.3} parent=51 // pred_fallthru
        _
    $region52: #{_lambda_.3} parent=5 // pred_fallthru
      _
  $region6: #{_lambda_.3} parent=0 // loop_footer
    %s16 = sadd.s32 1, %s12
  $region7: #{_lambda_.3} parent=0 // loop_footer_branch
    %11 = sbr.rel target = $region3
  $region8: #{_lambda_.3} parent=0 // loop_exit
    _

// kernel: _lambda_.2
$region0: #{_lambda_.2}
  #allocation0 [shape = 'u32[]', space=smem, size = 0x4, offset = 0x4, fixed_abs, tag = 'smem constant byte address 0x4 - core index']
  #allocation1 [shape = 'u32[72,128]{1,0:T(1,128)}', space=vmem, size = 0x9000, scoped, tag = 'internal scratch']
  #allocation2 [shape = 'bf16[400,128]{1,0:T(8,128)(2,1)}', space=vmem, size = 0x19000, scoped, tag = 'scratch operand']
  #allocation3 [shape = 'f32[336,128]{1,0:T(8,128)}', space=vmem, size = 0x2a000, scoped, tag = 'scratch operand']
  %s0 = inlined_call_operand.vmem [shape: f32[2,336,128], index: 0, kind: input, shape index: {}]
  %s1 = inlined_call_operand.vmem [shape: f32[1,128], index: 1, kind: input, shape index: {}]
  %s2 = inlined_call_operand.vmem [shape: f32[1,128], index: 2, kind: input, shape index: {}]
  %s3 = inlined_call_operand.vmem [shape: bf16[9,128,128], index: 3, kind: input, shape index: {}]
  %s4 = inlined_call_operand.vmem [shape: bf16[128,128], index: 4, kind: input, shape index: {}]
  %s5 = inlined_call_operand.vmem [shape: f32[336,1], index: 5, kind: input, shape index: {}]
  %s6 = inlined_call_operand.vmem [shape: f32[336,1], index: 6, kind: input, shape index: {}]
  %s7 = inlined_call_operand.vmem [shape: bf16[2,336,128], index: 7, kind: output, shape index: {0}]
  %s8 = inlined_call_operand.vmem [shape: f32[2,2,128], index: 8, kind: output, shape index: {1}]
  %s9 = inlined_call_operand.vmem [shape: f32[2,336,128], index: 9, kind: output, shape index: {2}]
  %10 = xla_tuple %s7, %s8, %s9
  %s11 = sld [smem:[#allocation0]]
  $region77: #{_lambda_.2} parent=0
    _
  %s13 = ssub.s32 1, %s11
  %s14 = scalar_select 0, %s13, %s11
  loop: start=0, step=1, limit=4
  $region2: #{_lambda_.2} parent=0 // loop_pre_header
    _
  $region3: #{_lambda_.2} parent=0 // loop_header
    %s16 = sphi 0, %s20
    %p17 = scmp.ge.s32.totalorder %s16, 4
    %s26 = sphi 0, %s28
    %s29 = sphi 0, %s26
    %s30 = sphi 0, %s29
    %s46 = sphi 0, %s30
    %s50 = sphi 0, %s50
    %s52 = sphi 0, %s50
    %s53 = sphi 0, %s52
    %s67 = sphi 0, %s53
    %s71 = sphi 0, %s71
    %s73 = sphi 0, %s71
    %s74 = sphi 0, %s73
    %s88 = sphi 0, %s74
    %s92 = sphi 0, %s92
    %s94 = sphi 0, %s92
    %s95 = sphi 0, %s94
    %s109 = sphi 0, %s95
    %s113 = sphi 0, %s113
    %s115 = sphi 0, %s113
    %s116 = sphi 0, %s115
    %s130 = sphi 0, %s116
    %s134 = sphi 0, %s134
    %s136 = sphi 0, %s134
    %s137 = sphi 0, %s136
    %s151 = sphi 0, %s137
    %s155 = sphi 0, %s155
    %s157 = sphi 0, %s155
    %s158 = sphi 0, %s157
    %s172 = sphi 0, %s158
    %s178 = sphi 0, %s180
    %s181 = sphi 0, %s178
    %s182 = sphi 0, %s181
    %s198 = sphi 0, %s182
    %s204 = sphi 0, %s206
    %s207 = sphi 0, %s204
    %s208 = sphi 0, %s207
    %s224 = sphi 0, %s208
    %s230 = sphi 0, %s232
    %s233 = sphi 0, %s230
    %s234 = sphi 0, %s233
    %s250 = sphi 0, %s234
  $region4: #{_lambda_.2} parent=0 // loop_header_branch
    %19 = sbr.rel (%p17) target = $region8
  $region5: #{_lambda_.2} parent=0 // loop_body
    %s21 = ssub.s32 %s16, 1
    %s22 = ssub.s32 %s16, 2
    %s23 = sadd.s32 %s16, 1
    %s24 = ssub.s32 %s16, %s23
    %p25 = scmp.eq.s32.totalorder %s24, 0
    %s27 = sadd.s32 %s26, 1
    %s28 = scalar_select %p25, %s26, %s27
    %p31 = pneg %p25
    %p32 = scmp.eq.s32.totalorder %s16, 1
    %p33 = por %p31, %p32
    %p34 = scmp.ne.s32.totalorder %s26, %s29
    %p35 = scmp.eq.s32.totalorder %s16, 0
    %p36 = por %p34, %p35
    %p37 = scmp.ne.s32.totalorder %s26, %s29
    %p38 = scmp.eq.s32.totalorder %s21, 1
    %p39 = por %p37, %p38
    %p40 = scmp.ne.s32.totalorder %s29, %s30
    %p41 = scmp.eq.s32.totalorder %s21, 0
    %p42 = por %p40, %p41
    %p43 = scmp.ne.s32.totalorder %s29, %s30
    %p44 = scmp.eq.s32.totalorder %s22, 1
    %p45 = por %p43, %p44
    %p47 = scmp.ne.s32.totalorder %s30, %s46
    %p48 = scmp.eq.s32.totalorder %s22, 0
    %p49 = por %p47, %p48
    %s51 = sadd.s32 %s50, 1
    %p54 = scmp.eq.s32.totalorder %s16, 1
    %p55 = scmp.ne.s32.totalorder %s50, %s52
    %p56 = scmp.eq.s32.totalorder %s16, 0
    %p57 = por %p55, %p56
    %p58 = scmp.ne.s32.totalorder %s50, %s52
    %p59 = scmp.eq.s32.totalorder %s21, 1
    %p60 = por %p58, %p59
    %p61 = scmp.ne.s32.totalorder %s52, %s53
    %p62 = scmp.eq.s32.totalorder %s21, 0
    %p63 = por %p61, %p62
    %p64 = scmp.ne.s32.totalorder %s52, %s53
    %p65 = scmp.eq.s32.totalorder %s22, 1
    %p66 = por %p64, %p65
    %p68 = scmp.ne.s32.totalorder %s53, %s67
    %p69 = scmp.eq.s32.totalorder %s22, 0
    %p70 = por %p68, %p69
    %s72 = sadd.s32 %s71, 1
    %p75 = scmp.eq.s32.totalorder %s16, 1
    %p76 = scmp.ne.s32.totalorder %s71, %s73
    %p77 = scmp.eq.s32.totalorder %s16, 0
    %p78 = por %p76, %p77
    %p79 = scmp.ne.s32.totalorder %s71, %s73
    %p80 = scmp.eq.s32.totalorder %s21, 1
    %p81 = por %p79, %p80
    %p82 = scmp.ne.s32.totalorder %s73, %s74
    %p83 = scmp.eq.s32.totalorder %s21, 0
    %p84 = por %p82, %p83
    %p85 = scmp.ne.s32.totalorder %s73, %s74
    %p86 = scmp.eq.s32.totalorder %s22, 1
    %p87 = por %p85, %p86
    %p89 = scmp.ne.s32.totalorder %s74, %s88
    %p90 = scmp.eq.s32.totalorder %s22, 0
    %p91 = por %p89, %p90
    %s93 = sadd.s32 %s92, 1
    %p96 = scmp.eq.s32.totalorder %s16, 1
    %p97 = scmp.ne.s32.totalorder %s92, %s94
    %p98 = scmp.eq.s32.totalorder %s16, 0
    %p99 = por %p97, %p98
    %p100 = scmp.ne.s32.totalorder %s92, %s94
    %p101 = scmp.eq.s32.totalorder %s21, 1
    %p102 = por %p100, %p101
    %p103 = scmp.ne.s32.totalorder %s94, %s95
    %p104 = scmp.eq.s32.totalorder %s21, 0
    %p105 = por %p103, %p104
    %p106 = scmp.ne.s32.totalorder %s94, %s95
    %p107 = scmp.eq.s32.totalorder %s22, 1
    %p108 = por %p106, %p107
    %p110 = scmp.ne.s32.totalorder %s95, %s109
    %p111 = scmp.eq.s32.totalorder %s22, 0
    %p112 = por %p110, %p111
    %s114 = sadd.s32 %s113, 1
    %p117 = scmp.eq.s32.totalorder %s16, 1
    %p118 = scmp.ne.s32.totalorder %s113, %s115
    %p119 = scmp.eq.s32.totalorder %s16, 0
    %p120 = por %p118, %p119
    %p121 = scmp.ne.s32.totalorder %s113, %s115
    %p122 = scmp.eq.s32.totalorder %s21, 1
    %p123 = por %p121, %p122
    %p124 = scmp.ne.s32.totalorder %s115, %s116
    %p125 = scmp.eq.s32.totalorder %s21, 0
    %p126 = por %p124, %p125
    %p127 = scmp.ne.s32.totalorder %s115, %s116
    %p128 = scmp.eq.s32.totalorder %s22, 1
    %p129 = por %p127, %p128
    %p131 = scmp.ne.s32.totalorder %s116, %s130
    %p132 = scmp.eq.s32.totalorder %s22, 0
    %p133 = por %p131, %p132
    %s135 = sadd.s32 %s134, 1
    %p138 = scmp.eq.s32.totalorder %s16, 1
    %p139 = scmp.ne.s32.totalorder %s134, %s136
    %p140 = scmp.eq.s32.totalorder %s16, 0
    %p141 = por %p139, %p140
    %p142 = scmp.ne.s32.totalorder %s134, %s136
    %p143 = scmp.eq.s32.totalorder %s21, 1
    %p144 = por %p142, %p143
    %p145 = scmp.ne.s32.totalorder %s136, %s137
    %p146 = scmp.eq.s32.totalorder %s21, 0
    %p147 = por %p145, %p146
    %p148 = scmp.ne.s32.totalorder %s136, %s137
    %p149 = scmp.eq.s32.totalorder %s22, 1
    %p150 = por %p148, %p149
    %p152 = scmp.ne.s32.totalorder %s137, %s151
    %p153 = scmp.eq.s32.totalorder %s22, 0
    %p154 = por %p152, %p153
    %s156 = sadd.s32 %s155, 1
    %p159 = scmp.eq.s32.totalorder %s16, 1
    %p160 = scmp.ne.s32.totalorder %s155, %s157
    %p161 = scmp.eq.s32.totalorder %s16, 0
    %p162 = por %p160, %p161
    %p163 = scmp.ne.s32.totalorder %s155, %s157
    %p164 = scmp.eq.s32.totalorder %s21, 1
    %p165 = por %p163, %p164
    %p166 = scmp.ne.s32.totalorder %s157, %s158
    %p167 = scmp.eq.s32.totalorder %s21, 0
    %p168 = por %p166, %p167
    %p169 = scmp.ne.s32.totalorder %s157, %s158
    %p170 = scmp.eq.s32.totalorder %s22, 1
    %p171 = por %p169, %p170
    %p173 = scmp.ne.s32.totalorder %s158, %s172
    %p174 = scmp.eq.s32.totalorder %s22, 0
    %p175 = por %p173, %p174
    %s176 = ssub.s32 %s16, %s23
    %p177 = scmp.eq.s32.totalorder %s176, 0
    %s179 = sadd.s32 %s178, 1
    %s180 = scalar_select %p177, %s178, %s179
    %p183 = pneg %p177
    %p184 = scmp.eq.s32.totalorder %s16, 1
    %p185 = por %p183, %p184
    %p186 = scmp.ne.s32.totalorder %s178, %s181
    %p187 = scmp.eq.s32.totalorder %s16, 0
    %p188 = por %p186, %p187
    %p189 = scmp.ne.s32.totalorder %s178, %s181
    %p190 = scmp.eq.s32.totalorder %s21, 1
    %p191 = por %p189, %p190
    %p192 = scmp.ne.s32.totalorder %s181, %s182
    %p193 = scmp.eq.s32.totalorder %s21, 0
    %p194 = por %p192, %p193
    %p195 = scmp.ne.s32.totalorder %s181, %s182
    %p196 = scmp.eq.s32.totalorder %s22, 1
    %p197 = por %p195, %p196
    %p199 = scmp.ne.s32.totalorder %s182, %s198
    %p200 = scmp.eq.s32.totalorder %s22, 0
    %p201 = por %p199, %p200
    %s202 = ssub.s32 %s16, %s23
    %p203 = scmp.eq.s32.totalorder %s202, 0
    %s205 = sadd.s32 %s204, 1
    %s206 = scalar_select %p203, %s204, %s205
    %p209 = pneg %p203
    %p210 = scmp.eq.s32.totalorder %s16, 1
    %p211 = por %p209, %p210
    %p212 = scmp.ne.s32.totalorder %s204, %s207
    %p213 = scmp.eq.s32.totalorder %s16, 0
    %p214 = por %p212, %p213
    %p215 = scmp.ne.s32.totalorder %s204, %s207
    %p216 = scmp.eq.s32.totalorder %s21, 1
    %p217 = por %p215, %p216
    %p218 = scmp.ne.s32.totalorder %s207, %s208
    %p219 = scmp.eq.s32.totalorder %s21, 0
    %p220 = por %p218, %p219
    %p221 = scmp.ne.s32.totalorder %s207, %s208
    %p222 = scmp.eq.s32.totalorder %s22, 1
    %p223 = por %p221, %p222
    %p225 = scmp.ne.s32.totalorder %s208, %s224
    %p226 = scmp.eq.s32.totalorder %s22, 0
    %p227 = por %p225, %p226
    %s228 = ssub.s32 %s16, %s23
    %p229 = scmp.eq.s32.totalorder %s228, 0
    %s231 = sadd.s32 %s230, 1
    %s232 = scalar_select %p229, %s230, %s231
    %p235 = pneg %p229
    %p236 = scmp.eq.s32.totalorder %s16, 1
    %p237 = por %p235, %p236
    %p238 = scmp.ne.s32.totalorder %s230, %s233
    %p239 = scmp.eq.s32.totalorder %s16, 0
    %p240 = por %p238, %p239
    %p241 = scmp.ne.s32.totalorder %s230, %s233
    %p242 = scmp.eq.s32.totalorder %s21, 1
    %p243 = por %p241, %p242
    %p244 = scmp.ne.s32.totalorder %s233, %s234
    %p245 = scmp.eq.s32.totalorder %s21, 0
    %p246 = por %p244, %p245
    %p247 = scmp.ne.s32.totalorder %s233, %s234
    %p248 = scmp.eq.s32.totalorder %s22, 1
    %p249 = por %p247, %p248
    %p251 = scmp.ne.s32.totalorder %s234, %s250
    %p252 = scmp.eq.s32.totalorder %s22, 0
    %p253 = por %p251, %p252
    %p254 = scmp.le.s32.totalorder 1, %s16
    %p255 = scmp.lt.s32.totalorder %s16, 3
    %p256 = pnand %p254, %p255
    %p257 = pneg %p256
    // Predicated region
    $region9: #{_lambda_.2} parent=5 // pred_check
      _
    $region10: #{_lambda_.2} parent=5 // pred_check_branch
      %259 = sbr.rel (%p256) target = $region12
    $region11: #{_lambda_.2} parent=5 // pred_region
      %s260 = ssub.s32 %s16, 1
      // Predicated region
      $region13: #{_lambda_.2} parent=11 // pred_check
        %p261 = pneg %p63
      $region14: #{_lambda_.2} parent=11 // pred_check_branch
        %263 = sbr.rel (%p261) target = $region16
      $region15: #{_lambda_.2} parent=11 // pred_region
        _
      $region16: #{_lambda_.2} parent=11 // pred_fallthru
        _
      // Predicated region
      $region17: #{_lambda_.2} parent=11 // pred_check
        %p264 = pneg %p84
      $region18: #{_lambda_.2} parent=11 // pred_check_branch
        %266 = sbr.rel (%p264) target = $region20
      $region19: #{_lambda_.2} parent=11 // pred_region
        _
      $region20: #{_lambda_.2} parent=11 // pred_fallthru
        _
      // Predicated region
      $region21: #{_lambda_.2} parent=11 // pred_check
        %p267 = pneg %p105
      $region22: #{_lambda_.2} parent=11 // pred_check_branch
        %269 = sbr.rel (%p267) target = $region24
      $region23: #{_lambda_.2} parent=11 // pred_region
        _
      $region24: #{_lambda_.2} parent=11 // pred_fallthru
        _
      // Predicated region
      $region25: #{_lambda_.2} parent=11 // pred_check
        %p270 = pneg %p126
      $region26: #{_lambda_.2} parent=11 // pred_check_branch
        %272 = sbr.rel (%p270) target = $region28
      $region27: #{_lambda_.2} parent=11 // pred_region
        _
      $region28: #{_lambda_.2} parent=11 // pred_fallthru
        _
      // Predicated region
      $region29: #{_lambda_.2} parent=11 // pred_check
        %p273 = pneg %p147
      $region30: #{_lambda_.2} parent=11 // pred_check_branch
        %275 = sbr.rel (%p273) target = $region32
      $region31: #{_lambda_.2} parent=11 // pred_region
        _
      $region32: #{_lambda_.2} parent=11 // pred_fallthru
        _
      // Predicated region
      $region33: #{_lambda_.2} parent=11 // pred_check
        %p276 = pneg %p168
      $region34: #{_lambda_.2} parent=11 // pred_check_branch
        %278 = sbr.rel (%p276) target = $region36
      $region35: #{_lambda_.2} parent=11 // pred_region
        _
      $region36: #{_lambda_.2} parent=11 // pred_fallthru
        _
    $region12: #{_lambda_.2} parent=5 // pred_fallthru
      _
    %p279 = scmp.lt.s32.totalorder %s16, 2
    // Predicated region
    $region37: #{_lambda_.2} parent=5 // pred_check
      %p280 = pneg %p279
    $region38: #{_lambda_.2} parent=5 // pred_check_branch
      %282 = sbr.rel (%p280) target = $region40
    $region39: #{_lambda_.2} parent=5 // pred_region
      // Predicated region
      $region41: #{_lambda_.2} parent=39 // pred_check
        %p283 = pneg %p36
      $region42: #{_lambda_.2} parent=39 // pred_check_branch
        %285 = sbr.rel (%p283) target = $region44
      $region43: #{_lambda_.2} parent=39 // pred_region
        %p286 = scmp.lt.s32.totalorder %s16, 1
        %s287 = scalar_select %p286, %s16, 1
        %s288 = smul.addr %s287, 42
        %s289 = smul.addr %s288, 8
        %s290 = scalar_lea.vmem %s0, %s289
      $region44: #{_lambda_.2} parent=39 // pred_fallthru
        _
    $region40: #{_lambda_.2} parent=5 // pred_fallthru
      _
    %p291 = scmp.le.s32.totalorder 1, %s16
    %p292 = scmp.lt.s32.totalorder %s16, 3
    %p293 = pnand %p291, %p292
    %p294 = pneg %p293
    // Predicated region
    $region45: #{_lambda_.2} parent=5 // pred_check
      _
    $region46: #{_lambda_.2} parent=5 // pred_check_branch
      %296 = sbr.rel (%p293) target = $region48
    $region47: #{_lambda_.2} parent=5 // pred_region
      %s297 = ssub.s32 %s16, 1
      %p298 = scmp.lt.s32.totalorder %s21, 1
      %s299 = scalar_select %p298, %s21, 1
      %s300 = smul.addr %s299, 42
      %s301 = smul.addr %s300, 8
      %s302 = scalar_lea.vmem %s0, %s301
      %p303 = pneg %p42
      %p304 = pneg %p39
      %p305 = pneg %p63
      %p306 = pneg %p60
      %p307 = pneg %p84
      %p308 = pneg %p81
      %p309 = pneg %p105
      %p310 = pneg %p102
      %p311 = pneg %p126
      %p312 = pneg %p123
      %p313 = pneg %p147
      %p314 = pneg %p144
      %p315 = pneg %p168
      %p316 = pneg %p165
      %p317 = pneg %p194
      %p318 = pneg %p191
      %p319 = scmp.lt.s32.totalorder %s21, 1
      %s320 = scalar_select %p319, %s21, 1
      %s321 = smul.addr %s320, 42
      %s322 = smul.addr %s321, 4
      %s323 = scalar_lea.vmem %s7, %s322
      %p324 = pneg %p220
      %p325 = pneg %p217
      %p326 = scmp.lt.s32.totalorder %s21, 1
      %s327 = scalar_select %p326, %s21, 1
      %s328 = smul.addr %s327, 2
      %s329 = scalar_lea.vmem %s8, %s328
      %p330 = pneg %p246
      %p331 = pneg %p243
      %p332 = scmp.lt.s32.totalorder %s21, 1
      %s333 = scalar_select %p332, %s21, 1
      %s334 = smul.addr %s333, 42
      %s335 = smul.addr %s334, 8
      %s336 = scalar_lea.vmem %s9, %s335
      %p337 = scmp.lt.s32.totalorder %s21, 1
      %s338 = scalar_select %p337, %s21, 1
      %s339 = smul.addr %s338, 42
      %s340 = smul.addr %s339, 8
      %s341 = scalar_lea.vmem %s0, %s340
      %p342 = scmp.lt.s32.totalorder %s21, 1
      %s343 = scalar_select %p342, %s21, 1
      %s344 = smul.addr %s343, 42
      %s345 = smul.addr %s344, 4
      %s346 = scalar_lea.vmem %s7, %s345
      %p347 = scmp.lt.s32.totalorder %s21, 1
      %s348 = scalar_select %p347, %s21, 1
      %s349 = smul.addr %s348, 2
      %s350 = scalar_lea.vmem %s8, %s349
      %p351 = scmp.lt.s32.totalorder %s21, 1
      %s352 = scalar_select %p351, %s21, 1
      %s353 = smul.addr %s352, 42
      %s354 = smul.addr %s353, 8
      %s355 = scalar_lea.vmem %s9, %s354
      %v357 = vld [vmem:[%s341] sm:$0xff]
      %v358 = vld [vmem:[%s341 + $0x8] sm:$0xff]
      %v359 = vld [vmem:[%s341 + $0x10] sm:$0xff]
      %v360 = vld [vmem:[%s341 + $0x18] sm:$0xff]
      %v361 = vld [vmem:[%s341 + $0x20] sm:$0xff]
      %v362 = vld [vmem:[%s341 + $0x28] sm:$0xff]
      %v363 = vld [vmem:[%s341 + $0x30] sm:$0xff]
      %v364 = vld [vmem:[%s341 + $0x38] sm:$0xff]
      %v365 = vld [vmem:[%s341 + $0x40] sm:$0xff]
      %v366 = vld [vmem:[%s341 + $0x48] sm:$0xff]
      %v367 = vld [vmem:[%s341 + $0x50] sm:$0xff]
      %v368 = vld [vmem:[%s341 + $0x58] sm:$0xff]
      %v369 = vld [vmem:[%s341 + $0x60] sm:$0xff]
      %v370 = vld [vmem:[%s341 + $0x68] sm:$0xff]
      %v371 = vld [vmem:[%s341 + $0x70] sm:$0xff]
      %v372 = vld [vmem:[%s341 + $0x78] sm:$0xff]
      %v373 = vld [vmem:[%s341 + $0x80] sm:$0xff]
      %v374 = vld [vmem:[%s341 + $0x88] sm:$0xff]
      %v375 = vld [vmem:[%s341 + $0x90] sm:$0xff]
      %v376 = vld [vmem:[%s341 + $0x98] sm:$0xff]
      %v377 = vld [vmem:[%s341 + $0xa0] sm:$0xff]
      %v378 = vld [vmem:[%s341 + $0xa8] sm:$0xff]
      %v379 = vld [vmem:[%s341 + $0xb0] sm:$0xff]
      %v380 = vld [vmem:[%s341 + $0xb8] sm:$0xff]
      %v381 = vld [vmem:[%s341 + $0xc0] sm:$0xff]
      %v382 = vld [vmem:[%s341 + $0xc8] sm:$0xff]
      %v383 = vld [vmem:[%s341 + $0xd0] sm:$0xff]
      %v384 = vld [vmem:[%s341 + $0xd8] sm:$0xff]
      %v385 = vld [vmem:[%s341 + $0xe0] sm:$0xff]
      %v386 = vld [vmem:[%s341 + $0xe8] sm:$0xff]
      %v387 = vld [vmem:[%s341 + $0xf0] sm:$0xff]
      %v388 = vld [vmem:[%s341 + $0xf8] sm:$0xff]
      %v389 = vld [vmem:[%s341 + $0x100] sm:$0xff]
      %v390 = vld [vmem:[%s341 + $0x108] sm:$0xff]
      %v391 = vld [vmem:[%s341 + $0x110] sm:$0xff]
      %v392 = vld [vmem:[%s341 + $0x118] sm:$0xff]
      %v393 = vld [vmem:[%s341 + $0x120] sm:$0xff]
      %v394 = vld [vmem:[%s341 + $0x128] sm:$0xff]
      %v395 = vld [vmem:[%s341 + $0x130] sm:$0xff]
      %v396 = vld [vmem:[%s341 + $0x138] sm:$0xff]
      %v397 = vld [vmem:[%s341 + $0x140] sm:$0xff]
      %v398 = vld [vmem:[%s341 + $0x148] sm:$0xff]
      %v399 = vld [vmem:[%s1] sm:$0x1]
      %v401 = vperm.slane %v399, 0
      %v403 = vmul.f32 %v357, %v401
      %v404 = vmul.f32 %v358, %v401
      %v405 = vmul.f32 %v359, %v401
      %v406 = vmul.f32 %v360, %v401
      %v407 = vmul.f32 %v361, %v401
      %v408 = vmul.f32 %v362, %v401
      %v409 = vmul.f32 %v363, %v401
      %v410 = vmul.f32 %v364, %v401
      %v411 = vmul.f32 %v365, %v401
      %v412 = vmul.f32 %v366, %v401
      %v413 = vmul.f32 %v367, %v401
      %v414 = vmul.f32 %v368, %v401
      %v415 = vmul.f32 %v369, %v401
      %v416 = vmul.f32 %v370, %v401
      %v417 = vmul.f32 %v371, %v401
      %v418 = vmul.f32 %v372, %v401
      %v419 = vmul.f32 %v373, %v401
      %v420 = vmul.f32 %v374, %v401
      %v421 = vmul.f32 %v375, %v401
      %v422 = vmul.f32 %v376, %v401
      %v423 = vmul.f32 %v377, %v401
      %v424 = vmul.f32 %v378, %v401
      %v425 = vmul.f32 %v379, %v401
      %v426 = vmul.f32 %v380, %v401
      %v427 = vmul.f32 %v381, %v401
      %v428 = vmul.f32 %v382, %v401
      %v429 = vmul.f32 %v383, %v401
      %v430 = vmul.f32 %v384, %v401
      %v431 = vmul.f32 %v385, %v401
      %v432 = vmul.f32 %v386, %v401
      %v433 = vmul.f32 %v387, %v401
      %v434 = vmul.f32 %v388, %v401
      %v435 = vmul.f32 %v389, %v401
      %v436 = vmul.f32 %v390, %v401
      %v437 = vmul.f32 %v391, %v401
      %v438 = vmul.f32 %v392, %v401
      %v439 = vmul.f32 %v393, %v401
      %v440 = vmul.f32 %v394, %v401
      %v441 = vmul.f32 %v395, %v401
      %v442 = vmul.f32 %v396, %v401
      %v443 = vmul.f32 %v397, %v401
      %v444 = vmul.f32 %v398, %v401
      %v445 = vld [vmem:[%s2] sm:$0x1]
      %v447 = vperm.slane %v445, 0
      %v449 = vadd.f32 %v403, %v447
      %v450 = vadd.f32 %v404, %v447
      %v451 = vadd.f32 %v405, %v447
      %v452 = vadd.f32 %v406, %v447
      %v453 = vadd.f32 %v407, %v447
      %v454 = vadd.f32 %v408, %v447
      %v455 = vadd.f32 %v409, %v447
      %v456 = vadd.f32 %v410, %v447
      %v457 = vadd.f32 %v411, %v447
      %v458 = vadd.f32 %v412, %v447
      %v459 = vadd.f32 %v413, %v447
      %v460 = vadd.f32 %v414, %v447
      %v461 = vadd.f32 %v415, %v447
      %v462 = vadd.f32 %v416, %v447
      %v463 = vadd.f32 %v417, %v447
      %v464 = vadd.f32 %v418, %v447
      %v465 = vadd.f32 %v419, %v447
      %v466 = vadd.f32 %v420, %v447
      %v467 = vadd.f32 %v421, %v447
      %v468 = vadd.f32 %v422, %v447
      %v469 = vadd.f32 %v423, %v447
      %v470 = vadd.f32 %v424, %v447
      %v471 = vadd.f32 %v425, %v447
      %v472 = vadd.f32 %v426, %v447
      %v473 = vadd.f32 %v427, %v447
      %v474 = vadd.f32 %v428, %v447
      %v475 = vadd.f32 %v429, %v447
      %v476 = vadd.f32 %v430, %v447
      %v477 = vadd.f32 %v431, %v447
      %v478 = vadd.f32 %v432, %v447
      %v479 = vadd.f32 %v433, %v447
      %v480 = vadd.f32 %v434, %v447
      %v481 = vadd.f32 %v435, %v447
      %v482 = vadd.f32 %v436, %v447
      %v483 = vadd.f32 %v437, %v447
      %v484 = vadd.f32 %v438, %v447
      %v485 = vadd.f32 %v439, %v447
      %v486 = vadd.f32 %v440, %v447
      %v487 = vadd.f32 %v441, %v447
      %v488 = vadd.f32 %v442, %v447
      %v489 = vadd.f32 %v443, %v447
      %v490 = vadd.f32 %v444, %v447
      %v491 = vmax.f32 %v449, 0.0
      %v492 = vmax.f32 %v450, 0.0
      %v493 = vmax.f32 %v451, 0.0
      %v494 = vmax.f32 %v452, 0.0
      %v495 = vmax.f32 %v453, 0.0
      %v496 = vmax.f32 %v454, 0.0
      %v497 = vmax.f32 %v455, 0.0
      %v498 = vmax.f32 %v456, 0.0
      %v499 = vmax.f32 %v457, 0.0
      %v500 = vmax.f32 %v458, 0.0
      %v501 = vmax.f32 %v459, 0.0
      %v502 = vmax.f32 %v460, 0.0
      %v503 = vmax.f32 %v461, 0.0
      %v504 = vmax.f32 %v462, 0.0
      %v505 = vmax.f32 %v463, 0.0
      %v506 = vmax.f32 %v464, 0.0
      %v507 = vmax.f32 %v465, 0.0
      %v508 = vmax.f32 %v466, 0.0
      %v509 = vmax.f32 %v467, 0.0
      %v510 = vmax.f32 %v468, 0.0
      %v511 = vmax.f32 %v469, 0.0
      %v512 = vmax.f32 %v470, 0.0
      %v513 = vmax.f32 %v471, 0.0
      %v514 = vmax.f32 %v472, 0.0
      %v515 = vmax.f32 %v473, 0.0
      %v516 = vmax.f32 %v474, 0.0
      %v517 = vmax.f32 %v475, 0.0
      %v518 = vmax.f32 %v476, 0.0
      %v519 = vmax.f32 %v477, 0.0
      %v520 = vmax.f32 %v478, 0.0
      %v521 = vmax.f32 %v479, 0.0
      %v522 = vmax.f32 %v480, 0.0
      %v523 = vmax.f32 %v481, 0.0
      %v524 = vmax.f32 %v482, 0.0
      %v525 = vmax.f32 %v483, 0.0
      %v526 = vmax.f32 %v484, 0.0
      %v527 = vmax.f32 %v485, 0.0
      %v528 = vmax.f32 %v486, 0.0
      %v529 = vmax.f32 %v487, 0.0
      %v530 = vmax.f32 %v488, 0.0
      %v531 = vmax.f32 %v489, 0.0
      %v532 = vmax.f32 %v490, 0.0
      %v533 = vld [vmem:[%s5] sm:$0xff]
      %v534 = vld [vmem:[%s5 + $0x8] sm:$0xff]
      %v535 = vld [vmem:[%s5 + $0x10] sm:$0xff]
      %v536 = vld [vmem:[%s5 + $0x18] sm:$0xff]
      %v537 = vld [vmem:[%s5 + $0x20] sm:$0xff]
      %v538 = vld [vmem:[%s5 + $0x28] sm:$0xff]
      %v539 = vld [vmem:[%s5 + $0x30] sm:$0xff]
      %v540 = vld [vmem:[%s5 + $0x38] sm:$0xff]
      %v541 = vld [vmem:[%s5 + $0x40] sm:$0xff]
      %v542 = vld [vmem:[%s5 + $0x48] sm:$0xff]
      %v543 = vld [vmem:[%s5 + $0x50] sm:$0xff]
      %v544 = vld [vmem:[%s5 + $0x58] sm:$0xff]
      %v545 = vld [vmem:[%s5 + $0x60] sm:$0xff]
      %v546 = vld [vmem:[%s5 + $0x68] sm:$0xff]
      %v547 = vld [vmem:[%s5 + $0x70] sm:$0xff]
      %v548 = vld [vmem:[%s5 + $0x78] sm:$0xff]
      %v549 = vld [vmem:[%s5 + $0x80] sm:$0xff]
      %v550 = vld [vmem:[%s5 + $0x88] sm:$0xff]
      %v551 = vld [vmem:[%s5 + $0x90] sm:$0xff]
      %v552 = vld [vmem:[%s5 + $0x98] sm:$0xff]
      %v553 = vld [vmem:[%s5 + $0xa0] sm:$0xff]
      %v554 = vld [vmem:[%s5 + $0xa8] sm:$0xff]
      %v555 = vld [vmem:[%s5 + $0xb0] sm:$0xff]
      %v556 = vld [vmem:[%s5 + $0xb8] sm:$0xff]
      %v557 = vld [vmem:[%s5 + $0xc0] sm:$0xff]
      %v558 = vld [vmem:[%s5 + $0xc8] sm:$0xff]
      %v559 = vld [vmem:[%s5 + $0xd0] sm:$0xff]
      %v560 = vld [vmem:[%s5 + $0xd8] sm:$0xff]
      %v561 = vld [vmem:[%s5 + $0xe0] sm:$0xff]
      %v562 = vld [vmem:[%s5 + $0xe8] sm:$0xff]
      %v563 = vld [vmem:[%s5 + $0xf0] sm:$0xff]
      %v564 = vld [vmem:[%s5 + $0xf8] sm:$0xff]
      %v565 = vld [vmem:[%s5 + $0x100] sm:$0xff]
      %v566 = vld [vmem:[%s5 + $0x108] sm:$0xff]
      %v567 = vld [vmem:[%s5 + $0x110] sm:$0xff]
      %v568 = vld [vmem:[%s5 + $0x118] sm:$0xff]
      %v569 = vld [vmem:[%s5 + $0x120] sm:$0xff]
      %v570 = vld [vmem:[%s5 + $0x128] sm:$0xff]
      %v571 = vld [vmem:[%s5 + $0x130] sm:$0xff]
      %v572 = vld [vmem:[%s5 + $0x138] sm:$0xff]
      %v573 = vld [vmem:[%s5 + $0x140] sm:$0xff]
      %v574 = vld [vmem:[%s5 + $0x148] sm:$0xff]
      %576 = vset.pattern.permute.xlu0 0
      %577 = vperm.xlu0 %576, %v533
      %v578 = vpop.permute.xlu0 %577
      %581 = vset.pattern.permute.xlu0 0
      %582 = vperm.xlu0 %581, %v534
      %v583 = vpop.permute.xlu0 %582
      %586 = vset.pattern.permute.xlu0 0
      %587 = vperm.xlu0 %586, %v535
      %v588 = vpop.permute.xlu0 %587
      %591 = vset.pattern.permute.xlu0 0
      %592 = vperm.xlu0 %591, %v536
      %v593 = vpop.permute.xlu0 %592
      %596 = vset.pattern.permute.xlu0 0
      %597 = vperm.xlu0 %596, %v537
      %v598 = vpop.permute.xlu0 %597
      %601 = vset.pattern.permute.xlu0 0
      %602 = vperm.xlu0 %601, %v538
      %v603 = vpop.permute.xlu0 %602
      %606 = vset.pattern.permute.xlu0 0
      %607 = vperm.xlu0 %606, %v539
      %v608 = vpop.permute.xlu0 %607
      %611 = vset.pattern.permute.xlu0 0
      %612 = vperm.xlu0 %611, %v540
      %v613 = vpop.permute.xlu0 %612
      %616 = vset.pattern.permute.xlu0 0
      %617 = vperm.xlu0 %616, %v541
      %v618 = vpop.permute.xlu0 %617
      %621 = vset.pattern.permute.xlu0 0
      %622 = vperm.xlu0 %621, %v542
      %v623 = vpop.permute.xlu0 %622
      %626 = vset.pattern.permute.xlu0 0
      %627 = vperm.xlu0 %626, %v543
      %v628 = vpop.permute.xlu0 %627
      %631 = vset.pattern.permute.xlu0 0
      %632 = vperm.xlu0 %631, %v544
      %v633 = vpop.permute.xlu0 %632
      %636 = vset.pattern.permute.xlu0 0
      %637 = vperm.xlu0 %636, %v545
      %v638 = vpop.permute.xlu0 %637
      %641 = vset.pattern.permute.xlu0 0
      %642 = vperm.xlu0 %641, %v546
      %v643 = vpop.permute.xlu0 %642
      %646 = vset.pattern.permute.xlu0 0
      %647 = vperm.xlu0 %646, %v547
      %v648 = vpop.permute.xlu0 %647
      %651 = vset.pattern.permute.xlu0 0
      %652 = vperm.xlu0 %651, %v548
      %v653 = vpop.permute.xlu0 %652
      %656 = vset.pattern.permute.xlu0 0
      %657 = vperm.xlu0 %656, %v549
      %v658 = vpop.permute.xlu0 %657
      %661 = vset.pattern.permute.xlu0 0
      %662 = vperm.xlu0 %661, %v550
      %v663 = vpop.permute.xlu0 %662
      %666 = vset.pattern.permute.xlu0 0
      %667 = vperm.xlu0 %666, %v551
      %v668 = vpop.permute.xlu0 %667
      %671 = vset.pattern.permute.xlu0 0
      %672 = vperm.xlu0 %671, %v552
      %v673 = vpop.permute.xlu0 %672
      %676 = vset.pattern.permute.xlu0 0
      %677 = vperm.xlu0 %676, %v553
      %v678 = vpop.permute.xlu0 %677
      %681 = vset.pattern.permute.xlu0 0
      %682 = vperm.xlu0 %681, %v554
      %v683 = vpop.permute.xlu0 %682
      %686 = vset.pattern.permute.xlu0 0
      %687 = vperm.xlu0 %686, %v555
      %v688 = vpop.permute.xlu0 %687
      %691 = vset.pattern.permute.xlu0 0
      %692 = vperm.xlu0 %691, %v556
      %v693 = vpop.permute.xlu0 %692
      %696 = vset.pattern.permute.xlu0 0
      %697 = vperm.xlu0 %696, %v557
      %v698 = vpop.permute.xlu0 %697
      %701 = vset.pattern.permute.xlu0 0
      %702 = vperm.xlu0 %701, %v558
      %v703 = vpop.permute.xlu0 %702
      %706 = vset.pattern.permute.xlu0 0
      %707 = vperm.xlu0 %706, %v559
      %v708 = vpop.permute.xlu0 %707
      %711 = vset.pattern.permute.xlu0 0
      %712 = vperm.xlu0 %711, %v560
      %v713 = vpop.permute.xlu0 %712
      %716 = vset.pattern.permute.xlu0 0
      %717 = vperm.xlu0 %716, %v561
      %v718 = vpop.permute.xlu0 %717
      %721 = vset.pattern.permute.xlu0 0
      %722 = vperm.xlu0 %721, %v562
      %v723 = vpop.permute.xlu0 %722
      %726 = vset.pattern.permute.xlu0 0
      %727 = vperm.xlu0 %726, %v563
      %v728 = vpop.permute.xlu0 %727
      %731 = vset.pattern.permute.xlu0 0
      %732 = vperm.xlu0 %731, %v564
      %v733 = vpop.permute.xlu0 %732
      %736 = vset.pattern.permute.xlu0 0
      %737 = vperm.xlu0 %736, %v565
      %v738 = vpop.permute.xlu0 %737
      %741 = vset.pattern.permute.xlu0 0
      %742 = vperm.xlu0 %741, %v566
      %v743 = vpop.permute.xlu0 %742
      %746 = vset.pattern.permute.xlu0 0
      %747 = vperm.xlu0 %746, %v567
      %v748 = vpop.permute.xlu0 %747
      %751 = vset.pattern.permute.xlu0 0
      %752 = vperm.xlu0 %751, %v568
      %v753 = vpop.permute.xlu0 %752
      %756 = vset.pattern.permute.xlu0 0
      %757 = vperm.xlu0 %756, %v569
      %v758 = vpop.permute.xlu0 %757
      %761 = vset.pattern.permute.xlu0 0
      %762 = vperm.xlu0 %761, %v570
      %v763 = vpop.permute.xlu0 %762
      %766 = vset.pattern.permute.xlu0 0
      %767 = vperm.xlu0 %766, %v571
      %v768 = vpop.permute.xlu0 %767
      %771 = vset.pattern.permute.xlu0 0
      %772 = vperm.xlu0 %771, %v572
      %v773 = vpop.permute.xlu0 %772
      %776 = vset.pattern.permute.xlu0 0
      %777 = vperm.xlu0 %776, %v573
      %v778 = vpop.permute.xlu0 %777
      %781 = vset.pattern.permute.xlu0 0
      %782 = vperm.xlu0 %781, %v574
      %v783 = vpop.permute.xlu0 %782
      %v785 = vmul.f32 %v491, %v578
      %v786 = vmul.f32 %v492, %v583
      %v787 = vmul.f32 %v493, %v588
      %v788 = vmul.f32 %v494, %v593
      %v789 = vmul.f32 %v495, %v598
      %v790 = vmul.f32 %v496, %v603
      %v791 = vmul.f32 %v497, %v608
      %v792 = vmul.f32 %v498, %v613
      %v793 = vmul.f32 %v499, %v618
      %v794 = vmul.f32 %v500, %v623
      %v795 = vmul.f32 %v501, %v628
      %v796 = vmul.f32 %v502, %v633
      %v797 = vmul.f32 %v503, %v638
      %v798 = vmul.f32 %v504, %v643
      %v799 = vmul.f32 %v505, %v648
      %v800 = vmul.f32 %v506, %v653
      %v801 = vmul.f32 %v507, %v658
      %v802 = vmul.f32 %v508, %v663
      %v803 = vmul.f32 %v509, %v668
      %v804 = vmul.f32 %v510, %v673
      %v805 = vmul.f32 %v511, %v678
      %v806 = vmul.f32 %v512, %v683
      %v807 = vmul.f32 %v513, %v688
      %v808 = vmul.f32 %v514, %v693
      %v809 = vmul.f32 %v515, %v698
      %v810 = vmul.f32 %v516, %v703
      %v811 = vmul.f32 %v517, %v708
      %v812 = vmul.f32 %v518, %v713
      %v813 = vmul.f32 %v519, %v718
      %v814 = vmul.f32 %v520, %v723
      %v815 = vmul.f32 %v521, %v728
      %v816 = vmul.f32 %v522, %v733
      %v817 = vmul.f32 %v523, %v738
      %v818 = vmul.f32 %v524, %v743
      %v819 = vmul.f32 %v525, %v748
      %v820 = vmul.f32 %v526, %v753
      %v821 = vmul.f32 %v527, %v758
      %v822 = vmul.f32 %v528, %v763
      %v823 = vmul.f32 %v529, %v768
      %v824 = vmul.f32 %v530, %v773
      %v825 = vmul.f32 %v531, %v778
      %v826 = vmul.f32 %v532, %v783
      %827 = vst [vmem:[#allocation2] sm:$0xf] 0
      %828 = vst [vmem:[#allocation2 + $0x4] sm:$0xf] 0
      %829 = vst [vmem:[#allocation2 + $0x8] sm:$0xf] 0
      %830 = vst [vmem:[#allocation2 + $0xc] sm:$0xf] 0
      %831 = vst [vmem:[#allocation2 + $0xb8] sm:$0xf] 0
      %832 = vst [vmem:[#allocation2 + $0xbc] sm:$0xf] 0
      %833 = vst [vmem:[#allocation2 + $0xc0] sm:$0xf] 0
      %834 = vst [vmem:[#allocation2 + $0xc4] sm:$0xf] 0
      %v835 = vpack.c.bf16 %v785, %v785
      %v836 = vpack.c.bf16 %v786, %v786
      %v837 = vpack.c.bf16 %v787, %v787
      %v838 = vpack.c.bf16 %v788, %v788
      %v839 = vpack.c.bf16 %v789, %v789
      %v840 = vpack.c.bf16 %v790, %v790
      %v841 = vpack.c.bf16 %v791, %v791
      %v842 = vpack.c.bf16 %v792, %v792
      %v843 = vpack.c.bf16 %v793, %v793
      %v844 = vpack.c.bf16 %v794, %v794
      %v845 = vpack.c.bf16 %v795, %v795
      %v846 = vpack.c.bf16 %v796, %v796
      %v847 = vpack.c.bf16 %v797, %v797
      %v848 = vpack.c.bf16 %v798, %v798
      %v849 = vpack.c.bf16 %v799, %v799
      %v850 = vpack.c.bf16 %v800, %v800
      %v851 = vpack.c.bf16 %v801, %v801
      %v852 = vpack.c.bf16 %v802, %v802
      %v853 = vpack.c.bf16 %v803, %v803
      %v854 = vpack.c.bf16 %v804, %v804
      %v855 = vpack.c.bf16 %v805, %v805
      %v856 = vpack.c.bf16 %v806, %v806
      %v857 = vpack.c.bf16 %v807, %v807
      %v858 = vpack.c.bf16 %v808, %v808
      %v859 = vpack.c.bf16 %v809, %v809
      %v860 = vpack.c.bf16 %v810, %v810
      %v861 = vpack.c.bf16 %v811, %v811
      %v862 = vpack.c.bf16 %v812, %v812
      %v863 = vpack.c.bf16 %v813, %v813
      %v864 = vpack.c.bf16 %v814, %v814
      %v865 = vpack.c.bf16 %v815, %v815
      %v866 = vpack.c.bf16 %v816, %v816
      %v867 = vpack.c.bf16 %v817, %v817
      %v868 = vpack.c.bf16 %v818, %v818
      %v869 = vpack.c.bf16 %v819, %v819
      %v870 = vpack.c.bf16 %v820, %v820
      %v871 = vpack.c.bf16 %v821, %v821
      %v872 = vpack.c.bf16 %v822, %v822
      %v873 = vpack.c.bf16 %v823, %v823
      %v874 = vpack.c.bf16 %v824, %v824
      %v875 = vpack.c.bf16 %v825, %v825
      %v876 = vpack.c.bf16 %v826, %v826
      %877 = vst [vmem:[#allocation2 + $0x10] sm:$0xf] %v835
      %878 = vst [vmem:[#allocation2 + $0x14] sm:$0xf] %v836
      %879 = vst [vmem:[#allocation2 + $0x18] sm:$0xf] %v837
      %880 = vst [vmem:[#allocation2 + $0x1c] sm:$0xf] %v838
      %881 = vst [vmem:[#allocation2 + $0x20] sm:$0xf] %v839
      %882 = vst [vmem:[#allocation2 + $0x24] sm:$0xf] %v840
      %883 = vst [vmem:[#allocation2 + $0x28] sm:$0xf] %v841
      %884 = vst [vmem:[#allocation2 + $0x2c] sm:$0xf] %v842
      %885 = vst [vmem:[#allocation2 + $0x30] sm:$0xf] %v843
      %886 = vst [vmem:[#allocation2 + $0x34] sm:$0xf] %v844
      %887 = vst [vmem:[#allocation2 + $0x38] sm:$0xf] %v845
      %888 = vst [vmem:[#allocation2 + $0x3c] sm:$0xf] %v846
      %889 = vst [vmem:[#allocation2 + $0x40] sm:$0xf] %v847
      %890 = vst [vmem:[#allocation2 + $0x44] sm:$0xf] %v848
      %891 = vst [vmem:[#allocation2 + $0x48] sm:$0xf] %v849
      %892 = vst [vmem:[#allocation2 + $0x4c] sm:$0xf] %v850
      %893 = vst [vmem:[#allocation2 + $0x50] sm:$0xf] %v851
      %894 = vst [vmem:[#allocation2 + $0x54] sm:$0xf] %v852
      %895 = vst [vmem:[#allocation2 + $0x58] sm:$0xf] %v853
      %896 = vst [vmem:[#allocation2 + $0x5c] sm:$0xf] %v854
      %897 = vst [vmem:[#allocation2 + $0x60] sm:$0xf] %v855
      %898 = vst [vmem:[#allocation2 + $0x64] sm:$0xf] %v856
      %899 = vst [vmem:[#allocation2 + $0x68] sm:$0xf] %v857
      %900 = vst [vmem:[#allocation2 + $0x6c] sm:$0xf] %v858
      %901 = vst [vmem:[#allocation2 + $0x70] sm:$0xf] %v859
      %902 = vst [vmem:[#allocation2 + $0x74] sm:$0xf] %v860
      %903 = vst [vmem:[#allocation2 + $0x78] sm:$0xf] %v861
      %904 = vst [vmem:[#allocation2 + $0x7c] sm:$0xf] %v862
      %905 = vst [vmem:[#allocation2 + $0x80] sm:$0xf] %v863
      %906 = vst [vmem:[#allocation2 + $0x84] sm:$0xf] %v864
      %907 = vst [vmem:[#allocation2 + $0x88] sm:$0xf] %v865
      %908 = vst [vmem:[#allocation2 + $0x8c] sm:$0xf] %v866
      %909 = vst [vmem:[#allocation2 + $0x90] sm:$0xf] %v867
      %910 = vst [vmem:[#allocation2 + $0x94] sm:$0xf] %v868
      %911 = vst [vmem:[#allocation2 + $0x98] sm:$0xf] %v869
      %912 = vst [vmem:[#allocation2 + $0x9c] sm:$0xf] %v870
      %913 = vst [vmem:[#allocation2 + $0xa0] sm:$0xf] %v871
      %914 = vst [vmem:[#allocation2 + $0xa4] sm:$0xf] %v872
      %915 = vst [vmem:[#allocation2 + $0xa8] sm:$0xf] %v873
      %916 = vst [vmem:[#allocation2 + $0xac] sm:$0xf] %v874
      %917 = vst [vmem:[#allocation2 + $0xb0] sm:$0xf] %v875
      %918 = vst [vmem:[#allocation2 + $0xb4] sm:$0xf] %v876
      %v919 = vld [vmem:[#allocation2 + $0x4] sm:$0xc]
      %v920 = vld [vmem:[#allocation2 + $0x8] sm:$0xf]
      %v921 = vld [vmem:[#allocation2 + $0xc] sm:$0xf]
      %v922 = vld [vmem:[#allocation2 + $0x10] sm:$0xf]
      %v923 = vld [vmem:[#allocation2 + $0x14] sm:$0xf]
      %v924 = vld [vmem:[#allocation2 + $0x18] sm:$0xf]
      %v925 = vld [vmem:[#allocation2 + $0x1c] sm:$0xf]
      %v926 = vld [vmem:[#allocation2 + $0x20] sm:$0xf]
      %v927 = vld [vmem:[#allocation2 + $0x24] sm:$0xf]
      %v928 = vld [vmem:[#allocation2 + $0x28] sm:$0xf]
      %v929 = vld [vmem:[#allocation2 + $0x2c] sm:$0xf]
      %v930 = vld [vmem:[#allocation2 + $0x30] sm:$0xf]
      %v931 = vld [vmem:[#allocation2 + $0x34] sm:$0xf]
      %v932 = vld [vmem:[#allocation2 + $0x38] sm:$0xf]
      %v933 = vld [vmem:[#allocation2 + $0x3c] sm:$0xf]
      %v934 = vld [vmem:[#allocation2 + $0x40] sm:$0xf]
      %v935 = vld [vmem:[#allocation2 + $0x44] sm:$0xf]
      %v936 = vld [vmem:[#allocation2 + $0x48] sm:$0xf]
      %v937 = vld [vmem:[#allocation2 + $0x4c] sm:$0xf]
      %v938 = vld [vmem:[#allocation2 + $0x50] sm:$0xf]
      %v939 = vld [vmem:[#allocation2 + $0x54] sm:$0xf]
      %v940 = vld [vmem:[#allocation2 + $0x58] sm:$0xf]
      %v941 = vld [vmem:[#allocation2 + $0x5c] sm:$0xf]
      %v942 = vld [vmem:[#allocation2 + $0x60] sm:$0xf]
      %v943 = vld [vmem:[#allocation2 + $0x64] sm:$0xf]
      %v944 = vld [vmem:[#allocation2 + $0x68] sm:$0xf]
      %v945 = vld [vmem:[#allocation2 + $0x6c] sm:$0xf]
      %v946 = vld [vmem:[#allocation2 + $0x70] sm:$0xf]
      %v947 = vld [vmem:[#allocation2 + $0x74] sm:$0xf]
      %v948 = vld [vmem:[#allocation2 + $0x78] sm:$0xf]
      %v949 = vld [vmem:[#allocation2 + $0x7c] sm:$0xf]
      %v950 = vld [vmem:[#allocation2 + $0x80] sm:$0xf]
      %v951 = vld [vmem:[#allocation2 + $0x84] sm:$0xf]
      %v952 = vld [vmem:[#allocation2 + $0x88] sm:$0xf]
      %v953 = vld [vmem:[#allocation2 + $0x8c] sm:$0xf]
      %v954 = vld [vmem:[#allocation2 + $0x90] sm:$0xf]
      %v955 = vld [vmem:[#allocation2 + $0x94] sm:$0xf]
      %v956 = vld [vmem:[#allocation2 + $0x98] sm:$0xf]
      %v957 = vld [vmem:[#allocation2 + $0x9c] sm:$0xf]
      %v958 = vld [vmem:[#allocation2 + $0xa0] sm:$0xf]
      %v959 = vld [vmem:[#allocation2 + $0xa4] sm:$0xf]
      %v960 = vld [vmem:[#allocation2 + $0xa8] sm:$0xf]
      %v961 = vld [vmem:[#allocation2 + $0xac] sm:$0x7]
      %v962 = vld [vmem:[%s3] sm:$0xf]
      %v963 = vld [vmem:[%s3 + $0x4] sm:$0xf]
      %v964 = vld [vmem:[%s3 + $0x8] sm:$0xf]
      %v965 = vld [vmem:[%s3 + $0xc] sm:$0xf]
      %v966 = vld [vmem:[%s3 + $0x10] sm:$0xf]
      %v967 = vld [vmem:[%s3 + $0x14] sm:$0xf]
      %v968 = vld [vmem:[%s3 + $0x18] sm:$0xf]
      %v969 = vld [vmem:[%s3 + $0x1c] sm:$0xf]
      %v970 = vld [vmem:[%s3 + $0x20] sm:$0xf]
      %v971 = vld [vmem:[%s3 + $0x24] sm:$0xf]
      %v972 = vld [vmem:[%s3 + $0x28] sm:$0xf]
      %v973 = vld [vmem:[%s3 + $0x2c] sm:$0xf]
      %v974 = vld [vmem:[%s3 + $0x30] sm:$0xf]
      %v975 = vld [vmem:[%s3 + $0x34] sm:$0xf]
      %v976 = vld [vmem:[%s3 + $0x38] sm:$0xf]
      %v977 = vld [vmem:[%s3 + $0x3c] sm:$0xf]
      %v1021 = vunpack.c.l.b16 %v919
      %v1022 = vunpack.c.l.b16 %v920
      %v1023 = vunpack.c.l.b16 %v921
      %v1024 = vunpack.c.l.b16 %v922
      %v1025 = vunpack.c.l.b16 %v923
      %v1026 = vunpack.c.l.b16 %v924
      %v1027 = vunpack.c.l.b16 %v925
      %v1028 = vunpack.c.l.b16 %v926
      %v1029 = vunpack.c.l.b16 %v927
      %v1030 = vunpack.c.l.b16 %v928
      %v1031 = vunpack.c.l.b16 %v929
      %v1032 = vunpack.c.l.b16 %v930
      %v1033 = vunpack.c.l.b16 %v931
      %v1034 = vunpack.c.l.b16 %v932
      %v1035 = vunpack.c.l.b16 %v933
      %v1036 = vunpack.c.l.b16 %v934
      %v1037 = vunpack.c.l.b16 %v935
      %v1038 = vunpack.c.l.b16 %v936
      %v1039 = vunpack.c.l.b16 %v937
      %v1040 = vunpack.c.l.b16 %v938
      %v1041 = vunpack.c.l.b16 %v939
      %v1042 = vunpack.c.l.b16 %v940
      %v1043 = vunpack.c.l.b16 %v941
      %v1044 = vunpack.c.l.b16 %v942
      %v1045 = vunpack.c.l.b16 %v943
      %v1046 = vunpack.c.l.b16 %v944
      %v1047 = vunpack.c.l.b16 %v945
      %v1048 = vunpack.c.l.b16 %v946
      %v1049 = vunpack.c.l.b16 %v947
      %v1050 = vunpack.c.l.b16 %v948
      %v1051 = vunpack.c.l.b16 %v949
      %v1052 = vunpack.c.l.b16 %v950
      %v1053 = vunpack.c.l.b16 %v951
      %v1054 = vunpack.c.l.b16 %v952
      %v1055 = vunpack.c.l.b16 %v953
      %v1056 = vunpack.c.l.b16 %v954
      %v1057 = vunpack.c.l.b16 %v955
      %v1058 = vunpack.c.l.b16 %v956
      %v1059 = vunpack.c.l.b16 %v957
      %v1060 = vunpack.c.l.b16 %v958
      %v1061 = vunpack.c.l.b16 %v959
      %v1062 = vunpack.c.l.b16 %v960
      %v1063 = vunpack.c.l.b16 %v961
      %v1064 = vpack.c.b16 %v1022, %v1021
      %v1065 = vpack.c.b16 %v1024, %v1023
      %v1066 = vpack.c.b16 %v1026, %v1025
      %v1067 = vpack.c.b16 %v1028, %v1027
      %v1068 = vpack.c.b16 %v1030, %v1029
      %v1069 = vpack.c.b16 %v1032, %v1031
      %v1070 = vpack.c.b16 %v1034, %v1033
      %v1071 = vpack.c.b16 %v1036, %v1035
      %v1072 = vpack.c.b16 %v1038, %v1037
      %v1073 = vpack.c.b16 %v1040, %v1039
      %v1074 = vpack.c.b16 %v1042, %v1041
      %v1075 = vpack.c.b16 %v1044, %v1043
      %v1076 = vpack.c.b16 %v1046, %v1045
      %v1077 = vpack.c.b16 %v1048, %v1047
      %v1078 = vpack.c.b16 %v1050, %v1049
      %v1079 = vpack.c.b16 %v1052, %v1051
      %v1080 = vpack.c.b16 %v1054, %v1053
      %v1081 = vpack.c.b16 %v1056, %v1055
      %v1082 = vpack.c.b16 %v1058, %v1057
      %v1083 = vpack.c.b16 %v1060, %v1059
      %v1084 = vpack.c.b16 %v1062, %v1061
      %v1085 = vpack.c.b16 %v1063, %v1063
      %vm1086 = vsmask.f32 5376
      %v1088 = vshrl.u32 %v1064, 16
      %v1090 = vrot.slane %v1088, 2
      %v1091 = vshll.u32 %v1064, 16
      %v1093 = vrot.slane %v1091, 3
      %v1094 = vor.u32 %v1090, %v1093
      %v1096 = vshrl.u32 %v1065, 16
      %v1098 = vrot.slane %v1096, 2
      %v1099 = vshll.u32 %v1065, 16
      %v1101 = vrot.slane %v1099, 3
      %v1102 = vor.u32 %v1098, %v1101
      %v1103 = vsel %vm1086, %v1094, %v1102
      %v1105 = vshrl.u32 %v1066, 16
      %v1107 = vrot.slane %v1105, 2
      %v1108 = vshll.u32 %v1066, 16
      %v1110 = vrot.slane %v1108, 3
      %v1111 = vor.u32 %v1107, %v1110
      %v1112 = vsel %vm1086, %v1102, %v1111
      %v1114 = vshrl.u32 %v1067, 16
      %v1116 = vrot.slane %v1114, 2
      %v1117 = vshll.u32 %v1067, 16
      %v1119 = vrot.slane %v1117, 3
      %v1120 = vor.u32 %v1116, %v1119
      %v1121 = vsel %vm1086, %v1111, %v1120
      %v1123 = vshrl.u32 %v1068, 16
      %v1125 = vrot.slane %v1123, 2
      %v1126 = vshll.u32 %v1068, 16
      %v1128 = vrot.slane %v1126, 3
      %v1129 = vor.u32 %v1125, %v1128
      %v1130 = vsel %vm1086, %v1120, %v1129
      %v1132 = vshrl.u32 %v1069, 16
      %v1134 = vrot.slane %v1132, 2
      %v1135 = vshll.u32 %v1069, 16
      %v1137 = vrot.slane %v1135, 3
      %v1138 = vor.u32 %v1134, %v1137
      %v1139 = vsel %vm1086, %v1129, %v1138
      %v1141 = vshrl.u32 %v1070, 16
      %v1143 = vrot.slane %v1141, 2
      %v1144 = vshll.u32 %v1070, 16
      %v1146 = vrot.slane %v1144, 3
      %v1147 = vor.u32 %v1143, %v1146
      %v1148 = vsel %vm1086, %v1138, %v1147
      %v1150 = vshrl.u32 %v1071, 16
      %v1152 = vrot.slane %v1150, 2
      %v1153 = vshll.u32 %v1071, 16
      %v1155 = vrot.slane %v1153, 3
      %v1156 = vor.u32 %v1152, %v1155
      %v1157 = vsel %vm1086, %v1147, %v1156
      %v1159 = vshrl.u32 %v1072, 16
      %v1161 = vrot.slane %v1159, 2
      %v1162 = vshll.u32 %v1072, 16
      %v1164 = vrot.slane %v1162, 3
      %v1165 = vor.u32 %v1161, %v1164
      %v1166 = vsel %vm1086, %v1156, %v1165
      %v1168 = vshrl.u32 %v1073, 16
      %v1170 = vrot.slane %v1168, 2
      %v1171 = vshll.u32 %v1073, 16
      %v1173 = vrot.slane %v1171, 3
      %v1174 = vor.u32 %v1170, %v1173
      %v1175 = vsel %vm1086, %v1165, %v1174
      %v1177 = vshrl.u32 %v1074, 16
      %v1179 = vrot.slane %v1177, 2
      %v1180 = vshll.u32 %v1074, 16
      %v1182 = vrot.slane %v1180, 3
      %v1183 = vor.u32 %v1179, %v1182
      %v1184 = vsel %vm1086, %v1174, %v1183
      %v1186 = vshrl.u32 %v1075, 16
      %v1188 = vrot.slane %v1186, 2
      %v1189 = vshll.u32 %v1075, 16
      %v1191 = vrot.slane %v1189, 3
      %v1192 = vor.u32 %v1188, %v1191
      %v1193 = vsel %vm1086, %v1183, %v1192
      %v1195 = vshrl.u32 %v1076, 16
      %v1197 = vrot.slane %v1195, 2
      %v1198 = vshll.u32 %v1076, 16
      %v1200 = vrot.slane %v1198, 3
      %v1201 = vor.u32 %v1197, %v1200
      %v1202 = vsel %vm1086, %v1192, %v1201
      %v1204 = vshrl.u32 %v1077, 16
      %v1206 = vrot.slane %v1204, 2
      %v1207 = vshll.u32 %v1077, 16
      %v1209 = vrot.slane %v1207, 3
      %v1210 = vor.u32 %v1206, %v1209
      %v1211 = vsel %vm1086, %v1201, %v1210
      %v1213 = vshrl.u32 %v1078, 16
      %v1215 = vrot.slane %v1213, 2
      %v1216 = vshll.u32 %v1078, 16
      %v1218 = vrot.slane %v1216, 3
      %v1219 = vor.u32 %v1215, %v1218
      %v1220 = vsel %vm1086, %v1210, %v1219
      %v1222 = vshrl.u32 %v1079, 16
      %v1224 = vrot.slane %v1222, 2
      %v1225 = vshll.u32 %v1079, 16
      %v1227 = vrot.slane %v1225, 3
      %v1228 = vor.u32 %v1224, %v1227
      %v1229 = vsel %vm1086, %v1219, %v1228
      %v1231 = vshrl.u32 %v1080, 16
      %v1233 = vrot.slane %v1231, 2
      %v1234 = vshll.u32 %v1080, 16
      %v1236 = vrot.slane %v1234, 3
      %v1237 = vor.u32 %v1233, %v1236
      %v1238 = vsel %vm1086, %v1228, %v1237
      %v1240 = vshrl.u32 %v1081, 16
      %v1242 = vrot.slane %v1240, 2
      %v1243 = vshll.u32 %v1081, 16
      %v1245 = vrot.slane %v1243, 3
      %v1246 = vor.u32 %v1242, %v1245
      %v1247 = vsel %vm1086, %v1237, %v1246
      %v1249 = vshrl.u32 %v1082, 16
      %v1251 = vrot.slane %v1249, 2
      %v1252 = vshll.u32 %v1082, 16
      %v1254 = vrot.slane %v1252, 3
      %v1255 = vor.u32 %v1251, %v1254
      %v1256 = vsel %vm1086, %v1246, %v1255
      %v1258 = vshrl.u32 %v1083, 16
      %v1260 = vrot.slane %v1258, 2
      %v1261 = vshll.u32 %v1083, 16
      %v1263 = vrot.slane %v1261, 3
      %v1264 = vor.u32 %v1260, %v1263
      %v1265 = vsel %vm1086, %v1255, %v1264
      %v1267 = vshrl.u32 %v1084, 16
      %v1269 = vrot.slane %v1267, 2
      %v1270 = vshll.u32 %v1084, 16
      %v1272 = vrot.slane %v1270, 3
      %v1273 = vor.u32 %v1269, %v1272
      %v1274 = vsel %vm1086, %v1264, %v1273
      %v1276 = vshrl.u32 %v1085, 16
      %v1278 = vrot.slane %v1276, 2
      %v1279 = vshll.u32 %v1085, 16
      %v1281 = vrot.slane %v1279, 3
      %v1282 = vor.u32 %v1278, %v1281
      %v1283 = vsel %vm1086, %v1273, %v1282
      %v1321 = vunpack.c.l.b16 %v962
      %v1322 = vunpack.c.l.b16 %v963
      %v1323 = vunpack.c.l.b16 %v964
      %v1324 = vunpack.c.l.b16 %v965
      %v1325 = vunpack.c.l.b16 %v966
      %v1326 = vunpack.c.l.b16 %v967
      %v1327 = vunpack.c.l.b16 %v968
      %v1328 = vunpack.c.l.b16 %v969
      %v1329 = vunpack.c.l.b16 %v970
      %v1330 = vunpack.c.l.b16 %v971
      %v1331 = vunpack.c.l.b16 %v972
      %v1332 = vunpack.c.l.b16 %v973
      %v1333 = vunpack.c.l.b16 %v974
      %v1334 = vunpack.c.l.b16 %v975
      %v1335 = vunpack.c.l.b16 %v976
      %v1336 = vunpack.c.l.b16 %v977
      %v1337 = vpack.c.b16 %v1322, %v1321
      %v1338 = vpack.c.b16 %v1324, %v1323
      %v1339 = vpack.c.b16 %v1326, %v1325
      %v1340 = vpack.c.b16 %v1328, %v1327
      %v1341 = vpack.c.b16 %v1330, %v1329
      %v1342 = vpack.c.b16 %v1332, %v1331
      %v1343 = vpack.c.b16 %v1334, %v1333
      %v1344 = vpack.c.b16 %v1336, %v1335
      %1353 = vmatpush.bf16.msra.mxu0 %v1344
      %1354 = vmatpush.bf16.msra.mxu0 %v1343
      %1355 = vmatpush.bf16.msra.mxu0 %v1342
      %1356 = vmatpush.bf16.msra.mxu0 %v1341
      %1357 = vmatpush.bf16.msra.mxu0 %v1340
      %1358 = vmatpush.bf16.msra.mxu0 %v1339
      %1359 = vmatpush.bf16.msra.mxu0 %v1338
      %1360 = vmatpush.bf16.msra.mxu0 %v1337
      %1361 = vmatmul.bf16.gmra.mxu0 %v1103
      %v1362 = vpop.f32.mrf.mxu0
      %v1363 = vadd.f32 0.0, %v1362
      %v1364 = vpop.f32.mrf.mxu0
      %v1365 = vadd.f32 0.0, %v1364
      %1366 = vmatmul.bf16.gmra.mxu0 %v1112
      %v1367 = vpop.f32.mrf.mxu0
      %v1368 = vadd.f32 0.0, %v1367
      %v1369 = vpop.f32.mrf.mxu0
      %v1370 = vadd.f32 0.0, %v1369
      %1371 = vmatmul.bf16.gmra.mxu0 %v1121
      %v1372 = vpop.f32.mrf.mxu0
      %v1373 = vadd.f32 0.0, %v1372
      %v1374 = vpop.f32.mrf.mxu0
      %v1375 = vadd.f32 0.0, %v1374
      %1376 = vmatmul.bf16.gmra.mxu0 %v1130
      %v1377 = vpop.f32.mrf.mxu0
      %v1378 = vadd.f32 0.0, %v1377
      %v1379 = vpop.f32.mrf.mxu0
      %v1380 = vadd.f32 0.0, %v1379
      %1381 = vmatmul.bf16.gmra.mxu0 %v1139
      %v1382 = vpop.f32.mrf.mxu0
      %v1383 = vadd.f32 0.0, %v1382
      %v1384 = vpop.f32.mrf.mxu0
      %v1385 = vadd.f32 0.0, %v1384
      %1386 = vmatmul.bf16.gmra.mxu0 %v1148
      %v1387 = vpop.f32.mrf.mxu0
      %v1388 = vadd.f32 0.0, %v1387
      %v1389 = vpop.f32.mrf.mxu0
      %v1390 = vadd.f32 0.0, %v1389
      %1391 = vmatmul.bf16.gmra.mxu0 %v1157
      %v1392 = vpop.f32.mrf.mxu0
      %v1393 = vadd.f32 0.0, %v1392
      %v1394 = vpop.f32.mrf.mxu0
      %v1395 = vadd.f32 0.0, %v1394
      %1396 = vmatmul.bf16.gmra.mxu0 %v1166
      %v1397 = vpop.f32.mrf.mxu0
      %v1398 = vadd.f32 0.0, %v1397
      %v1399 = vpop.f32.mrf.mxu0
      %v1400 = vadd.f32 0.0, %v1399
      %1401 = vmatmul.bf16.gmra.mxu0 %v1175
      %v1402 = vpop.f32.mrf.mxu0
      %v1403 = vadd.f32 0.0, %v1402
      %v1404 = vpop.f32.mrf.mxu0
      %v1405 = vadd.f32 0.0, %v1404
      %1406 = vmatmul.bf16.gmra.mxu0 %v1184
      %v1407 = vpop.f32.mrf.mxu0
      %v1408 = vadd.f32 0.0, %v1407
      %v1409 = vpop.f32.mrf.mxu0
      %v1410 = vadd.f32 0.0, %v1409
      %1411 = vmatmul.bf16.gmra.mxu0 %v1193
      %v1412 = vpop.f32.mrf.mxu0
      %v1413 = vadd.f32 0.0, %v1412
      %v1414 = vpop.f32.mrf.mxu0
      %v1415 = vadd.f32 0.0, %v1414
      %1416 = vmatmul.bf16.gmra.mxu0 %v1202
      %v1417 = vpop.f32.mrf.mxu0
      %v1418 = vadd.f32 0.0, %v1417
      %v1419 = vpop.f32.mrf.mxu0
      %v1420 = vadd.f32 0.0, %v1419
      %1421 = vmatmul.bf16.gmra.mxu0 %v1211
      %v1422 = vpop.f32.mrf.mxu0
      %v1423 = vadd.f32 0.0, %v1422
      %v1424 = vpop.f32.mrf.mxu0
      %v1425 = vadd.f32 0.0, %v1424
      %1426 = vmatmul.bf16.gmra.mxu0 %v1220
      %v1427 = vpop.f32.mrf.mxu0
      %v1428 = vadd.f32 0.0, %v1427
      %v1429 = vpop.f32.mrf.mxu0
      %v1430 = vadd.f32 0.0, %v1429
      %1431 = vmatmul.bf16.gmra.mxu0 %v1229
      %v1432 = vpop.f32.mrf.mxu0
      %v1433 = vadd.f32 0.0, %v1432
      %v1434 = vpop.f32.mrf.mxu0
      %v1435 = vadd.f32 0.0, %v1434
      %1436 = vmatmul.bf16.gmra.mxu0 %v1238
      %v1437 = vpop.f32.mrf.mxu0
      %v1438 = vadd.f32 0.0, %v1437
      %v1439 = vpop.f32.mrf.mxu0
      %v1440 = vadd.f32 0.0, %v1439
      %1441 = vmatmul.bf16.gmra.mxu0 %v1247
      %v1442 = vpop.f32.mrf.mxu0
      %v1443 = vadd.f32 0.0, %v1442
      %v1444 = vpop.f32.mrf.mxu0
      %v1445 = vadd.f32 0.0, %v1444
      %1446 = vmatmul.bf16.gmra.mxu0 %v1256
      %v1447 = vpop.f32.mrf.mxu0
      %v1448 = vadd.f32 0.0, %v1447
      %v1449 = vpop.f32.mrf.mxu0
      %v1450 = vadd.f32 0.0, %v1449
      %1451 = vmatmul.bf16.gmra.mxu0 %v1265
      %v1452 = vpop.f32.mrf.mxu0
      %v1453 = vadd.f32 0.0, %v1452
      %v1454 = vpop.f32.mrf.mxu0
      %v1455 = vadd.f32 0.0, %v1454
      %1456 = vmatmul.bf16.gmra.mxu0 %v1274
      %v1457 = vpop.f32.mrf.mxu0
      %v1458 = vadd.f32 0.0, %v1457
      %v1459 = vpop.f32.mrf.mxu0
      %v1460 = vadd.f32 0.0, %v1459
      %1461 = vmatmul.bf16.gmra.mxu0 %v1283
      %v1462 = vpop.f32.mrf.mxu0
      %v1463 = vadd.f32 0.0, %v1462
      %v1464 = vpop.f32.mrf.mxu0
      %v1465 = vadd.f32 0.0, %v1464
      %1466 = vdwg.mxu0
      %1467 = vst [vmem:[#allocation3] sm:$0xff] %v1363
      %1468 = vst [vmem:[#allocation3 + $0x8] sm:$0xff] %v1365
      %1469 = vst [vmem:[#allocation3 + $0x10] sm:$0xff] %v1368
      %1470 = vst [vmem:[#allocation3 + $0x18] sm:$0xff] %v1370
      %1471 = vst [vmem:[#allocation3 + $0x20] sm:$0xff] %v1373
      %1472 = vst [vmem:[#allocation3 + $0x28] sm:$0xff] %v1375
      %1473 = vst [vmem:[#allocation3 + $0x30] sm:$0xff] %v1378
      %1474 = vst [vmem:[#allocation3 + $0x38] sm:$0xff] %v1380
      %1475 = vst [vmem:[#allocation3 + $0x40] sm:$0xff] %v1383
      %1476 = vst [vmem:[#allocation3 + $0x48] sm:$0xff] %v1385
      %1477 = vst [vmem:[#allocation3 + $0x50] sm:$0xff] %v1388
      %1478 = vst [vmem:[#allocation3 + $0x58] sm:$0xff] %v1390
      %1479 = vst [vmem:[#allocation3 + $0x60] sm:$0xff] %v1393
      %1480 = vst [vmem:[#allocation3 + $0x68] sm:$0xff] %v1395
      %1481 = vst [vmem:[#allocation3 + $0x70] sm:$0xff] %v1398
      %1482 = vst [vmem:[#allocation3 + $0x78] sm:$0xff] %v1400
      %1483 = vst [vmem:[#allocation3 + $0x80] sm:$0xff] %v1403
      %1484 = vst [vmem:[#allocation3 + $0x88] sm:$0xff] %v1405
      %1485 = vst [vmem:[#allocation3 + $0x90] sm:$0xff] %v1408
      %1486 = vst [vmem:[#allocation3 + $0x98] sm:$0xff] %v1410
      %1487 = vst [vmem:[#allocation3 + $0xa0] sm:$0xff] %v1413
      %1488 = vst [vmem:[#allocation3 + $0xa8] sm:$0xff] %v1415
      %1489 = vst [vmem:[#allocation3 + $0xb0] sm:$0xff] %v1418
      %1490 = vst [vmem:[#allocation3 + $0xb8] sm:$0xff] %v1420
      %1491 = vst [vmem:[#allocation3 + $0xc0] sm:$0xff] %v1423
      %1492 = vst [vmem:[#allocation3 + $0xc8] sm:$0xff] %v1425
      %1493 = vst [vmem:[#allocation3 + $0xd0] sm:$0xff] %v1428
      %1494 = vst [vmem:[#allocation3 + $0xd8] sm:$0xff] %v1430
      %1495 = vst [vmem:[#allocation3 + $0xe0] sm:$0xff] %v1433
      %1496 = vst [vmem:[#allocation3 + $0xe8] sm:$0xff] %v1435
      %1497 = vst [vmem:[#allocation3 + $0xf0] sm:$0xff] %v1438
      %1498 = vst [vmem:[#allocation3 + $0xf8] sm:$0xff] %v1440
      %1499 = vst [vmem:[#allocation3 + $0x100] sm:$0xff] %v1443
      %1500 = vst [vmem:[#allocation3 + $0x108] sm:$0xff] %v1445
      %1501 = vst [vmem:[#allocation3 + $0x110] sm:$0xff] %v1448
      %1502 = vst [vmem:[#allocation3 + $0x118] sm:$0xff] %v1450
      %1503 = vst [vmem:[#allocation3 + $0x120] sm:$0xff] %v1453
      %1504 = vst [vmem:[#allocation3 + $0x128] sm:$0xff] %v1455
      %1505 = vst [vmem:[#allocation3 + $0x130] sm:$0xff] %v1458
      %1506 = vst [vmem:[#allocation3 + $0x138] sm:$0xff] %v1460
      %1507 = vst [vmem:[#allocation3 + $0x140] sm:$0xff] %v1463
      %1508 = vst [vmem:[#allocation3 + $0x148] sm:$0xff] %v1465
      %v1509 = vld [vmem:[#allocation3] sm:$0xff]
      %v1510 = vld [vmem:[#allocation3 + $0x8] sm:$0xff]
      %v1511 = vld [vmem:[#allocation3 + $0x10] sm:$0xff]
      %v1512 = vld [vmem:[#allocation3 + $0x18] sm:$0xff]
      %v1513 = vld [vmem:[#allocation3 + $0x20] sm:$0xff]
      %v1514 = vld [vmem:[#allocation3 + $0x28] sm:$0xff]
      %v1515 = vld [vmem:[#allocation3 + $0x30] sm:$0xff]
      %v1516 = vld [vmem:[#allocation3 + $0x38] sm:$0xff]
      %v1517 = vld [vmem:[#allocation3 + $0x40] sm:$0xff]
      %v1518 = vld [vmem:[#allocation3 + $0x48] sm:$0xff]
      %v1519 = vld [vmem:[#allocation3 + $0x50] sm:$0xff]
      %v1520 = vld [vmem:[#allocation3 + $0x58] sm:$0xff]
      %v1521 = vld [vmem:[#allocation3 + $0x60] sm:$0xff]
      %v1522 = vld [vmem:[#allocation3 + $0x68] sm:$0xff]
      %v1523 = vld [vmem:[#allocation3 + $0x70] sm:$0xff]
      %v1524 = vld [vmem:[#allocation3 + $0x78] sm:$0xff]
      %v1525 = vld [vmem:[#allocation3 + $0x80] sm:$0xff]
      %v1526 = vld [vmem:[#allocation3 + $0x88] sm:$0xff]
      %v1527 = vld [vmem:[#allocation3 + $0x90] sm:$0xff]
      %v1528 = vld [vmem:[#allocation3 + $0x98] sm:$0xff]
      %v1529 = vld [vmem:[#allocation3 + $0xa0] sm:$0xff]
      %v1530 = vld [vmem:[#allocation3 + $0xa8] sm:$0xff]
      %v1531 = vld [vmem:[#allocation3 + $0xb0] sm:$0xff]
      %v1532 = vld [vmem:[#allocation3 + $0xb8] sm:$0xff]
      %v1533 = vld [vmem:[#allocation3 + $0xc0] sm:$0xff]
      %v1534 = vld [vmem:[#allocation3 + $0xc8] sm:$0xff]
      %v1535 = vld [vmem:[#allocation3 + $0xd0] sm:$0xff]
      %v1536 = vld [vmem:[#allocation3 + $0xd8] sm:$0xff]
      %v1537 = vld [vmem:[#allocation3 + $0xe0] sm:$0xff]
      %v1538 = vld [vmem:[#allocation3 + $0xe8] sm:$0xff]
      %v1539 = vld [vmem:[#allocation3 + $0xf0] sm:$0xff]
      %v1540 = vld [vmem:[#allocation3 + $0xf8] sm:$0xff]
      %v1541 = vld [vmem:[#allocation3 + $0x100] sm:$0xff]
      %v1542 = vld [vmem:[#allocation3 + $0x108] sm:$0xff]
      %v1543 = vld [vmem:[#allocation3 + $0x110] sm:$0xff]
      %v1544 = vld [vmem:[#allocation3 + $0x118] sm:$0xff]
      %v1545 = vld [vmem:[#allocation3 + $0x120] sm:$0xff]
      %v1546 = vld [vmem:[#allocation3 + $0x128] sm:$0xff]
      %v1547 = vld [vmem:[#allocation3 + $0x130] sm:$0xff]
      %v1548 = vld [vmem:[#allocation3 + $0x138] sm:$0xff]
      %v1549 = vld [vmem:[#allocation3 + $0x140] sm:$0xff]
      %v1550 = vld [vmem:[#allocation3 + $0x148] sm:$0xff]
      %v1551 = vld [vmem:[#allocation2 + $0x4] sm:$0x8]
      %v1552 = vld [vmem:[#allocation2 + $0x8] sm:$0xf]
      %v1553 = vld [vmem:[#allocation2 + $0xc] sm:$0xf]
      %v1554 = vld [vmem:[#allocation2 + $0x10] sm:$0xf]
      %v1555 = vld [vmem:[#allocation2 + $0x14] sm:$0xf]
      %v1556 = vld [vmem:[#allocation2 + $0x18] sm:$0xf]
      %v1557 = vld [vmem:[#allocation2 + $0x1c] sm:$0xf]
      %v1558 = vld [vmem:[#allocation2 + $0x20] sm:$0xf]
      %v1559 = vld [vmem:[#allocation2 + $0x24] sm:$0xf]
      %v1560 = vld [vmem:[#allocation2 + $0x28] sm:$0xf]
      %v1561 = vld [vmem:[#allocation2 + $0x2c] sm:$0xf]
      %v1562 = vld [vmem:[#allocation2 + $0x30] sm:$0xf]
      %v1563 = vld [vmem:[#allocation2 + $0x34] sm:$0xf]
      %v1564 = vld [vmem:[#allocation2 + $0x38] sm:$0xf]
      %v1565 = vld [vmem:[#allocation2 + $0x3c] sm:$0xf]
      %v1566 = vld [vmem:[#allocation2 + $0x40] sm:$0xf]
      %v1567 = vld [vmem:[#allocation2 + $0x44] sm:$0xf]
      %v1568 = vld [vmem:[#allocation2 + $0x48] sm:$0xf]
      %v1569 = vld [vmem:[#allocation2 + $0x4c] sm:$0xf]
      %v1570 = vld [vmem:[#allocation2 + $0x50] sm:$0xf]
      %v1571 = vld [vmem:[#allocation2 + $0x54] sm:$0xf]
      %v1572 = vld [vmem:[#allocation2 + $0x58] sm:$0xf]
      %v1573 = vld [vmem:[#allocation2 + $0x5c] sm:$0xf]
      %v1574 = vld [vmem:[#allocation2 + $0x60] sm:$0xf]
      %v1575 = vld [vmem:[#allocation2 + $0x64] sm:$0xf]
      %v1576 = vld [vmem:[#allocation2 + $0x68] sm:$0xf]
      %v1577 = vld [vmem:[#allocation2 + $0x6c] sm:$0xf]
      %v1578 = vld [vmem:[#allocation2 + $0x70] sm:$0xf]
      %v1579 = vld [vmem:[#allocation2 + $0x74] sm:$0xf]
      %v1580 = vld [vmem:[#allocation2 + $0x78] sm:$0xf]
      %v1581 = vld [vmem:[#allocation2 + $0x7c] sm:$0xf]
      %v1582 = vld [vmem:[#allocation2 + $0x80] sm:$0xf]
      %v1583 = vld [vmem:[#allocation2 + $0x84] sm:$0xf]
      %v1584 = vld [vmem:[#allocation2 + $0x88] sm:$0xf]
      %v1585 = vld [vmem:[#allocation2 + $0x8c] sm:$0xf]
      %v1586 = vld [vmem:[#allocation2 + $0x90] sm:$0xf]
      %v1587 = vld [vmem:[#allocation2 + $0x94] sm:$0xf]
      %v1588 = vld [vmem:[#allocation2 + $0x98] sm:$0xf]
      %v1589 = vld [vmem:[#allocation2 + $0x9c] sm:$0xf]
      %v1590 = vld [vmem:[#allocation2 + $0xa0] sm:$0xf]
      %v1591 = vld [vmem:[#allocation2 + $0xa4] sm:$0xf]
      %v1592 = vld [vmem:[#allocation2 + $0xa8] sm:$0xf]
      %v1593 = vld [vmem:[#allocation2 + $0xac] sm:$0x7]
      %s1594 = scalar_lea.vmem %s3, 64
      %v1595 = vld [vmem:[%s1594] sm:$0xf]
      %v1596 = vld [vmem:[%s1594 + $0x4] sm:$0xf]
      %v1597 = vld [vmem:[%s1594 + $0x8] sm:$0xf]
      %v1598 = vld [vmem:[%s1594 + $0xc] sm:$0xf]
      %v1599 = vld [vmem:[%s1594 + $0x10] sm:$0xf]
      %v1600 = vld [vmem:[%s1594 + $0x14] sm:$0xf]
      %v1601 = vld [vmem:[%s1594 + $0x18] sm:$0xf]
      %v1602 = vld [vmem:[%s1594 + $0x1c] sm:$0xf]
      %v1603 = vld [vmem:[%s1594 + $0x20] sm:$0xf]
      %v1604 = vld [vmem:[%s1594 + $0x24] sm:$0xf]
      %v1605 = vld [vmem:[%s1594 + $0x28] sm:$0xf]
      %v1606 = vld [vmem:[%s1594 + $0x2c] sm:$0xf]
      %v1607 = vld [vmem:[%s1594 + $0x30] sm:$0xf]
      %v1608 = vld [vmem:[%s1594 + $0x34] sm:$0xf]
      %v1609 = vld [vmem:[%s1594 + $0x38] sm:$0xf]
      %v1610 = vld [vmem:[%s1594 + $0x3c] sm:$0xf]
      %v1654 = vunpack.c.l.b16 %v1551
      %v1655 = vunpack.c.l.b16 %v1552
      %v1656 = vunpack.c.l.b16 %v1553
      %v1657 = vunpack.c.l.b16 %v1554
      %v1658 = vunpack.c.l.b16 %v1555
      %v1659 = vunpack.c.l.b16 %v1556
      %v1660 = vunpack.c.l.b16 %v1557
      %v1661 = vunpack.c.l.b16 %v1558
      %v1662 = vunpack.c.l.b16 %v1559
      %v1663 = vunpack.c.l.b16 %v1560
      %v1664 = vunpack.c.l.b16 %v1561
      %v1665 = vunpack.c.l.b16 %v1562
      %v1666 = vunpack.c.l.b16 %v1563
      %v1667 = vunpack.c.l.b16 %v1564
      %v1668 = vunpack.c.l.b16 %v1565
      %v1669 = vunpack.c.l.b16 %v1566
      %v1670 = vunpack.c.l.b16 %v1567
      %v1671 = vunpack.c.l.b16 %v1568
      %v1672 = vunpack.c.l.b16 %v1569
      %v1673 = vunpack.c.l.b16 %v1570
      %v1674 = vunpack.c.l.b16 %v1571
      %v1675 = vunpack.c.l.b16 %v1572
      %v1676 = vunpack.c.l.b16 %v1573
      %v1677 = vunpack.c.l.b16 %v1574
      %v1678 = vunpack.c.l.b16 %v1575
      %v1679 = vunpack.c.l.b16 %v1576
      %v1680 = vunpack.c.l.b16 %v1577
      %v1681 = vunpack.c.l.b16 %v1578
      %v1682 = vunpack.c.l.b16 %v1579
      %v1683 = vunpack.c.l.b16 %v1580
      %v1684 = vunpack.c.l.b16 %v1581
      %v1685 = vunpack.c.l.b16 %v1582
      %v1686 = vunpack.c.l.b16 %v1583
      %v1687 = vunpack.c.l.b16 %v1584
      %v1688 = vunpack.c.l.b16 %v1585
      %v1689 = vunpack.c.l.b16 %v1586
      %v1690 = vunpack.c.l.b16 %v1587
      %v1691 = vunpack.c.l.b16 %v1588
      %v1692 = vunpack.c.l.b16 %v1589
      %v1693 = vunpack.c.l.b16 %v1590
      %v1694 = vunpack.c.l.b16 %v1591
      %v1695 = vunpack.c.l.b16 %v1592
      %v1696 = vunpack.c.l.b16 %v1593
      %v1697 = vpack.c.b16 %v1655, %v1654
      %v1698 = vpack.c.b16 %v1657, %v1656
      %v1699 = vpack.c.b16 %v1659, %v1658
      %v1700 = vpack.c.b16 %v1661, %v1660
      %v1701 = vpack.c.b16 %v1663, %v1662
      %v1702 = vpack.c.b16 %v1665, %v1664
      %v1703 = vpack.c.b16 %v1667, %v1666
      %v1704 = vpack.c.b16 %v1669, %v1668
      %v1705 = vpack.c.b16 %v1671, %v1670
      %v1706 = vpack.c.b16 %v1673, %v1672
      %v1707 = vpack.c.b16 %v1675, %v1674
      %v1708 = vpack.c.b16 %v1677, %v1676
      %v1709 = vpack.c.b16 %v1679, %v1678
      %v1710 = vpack.c.b16 %v1681, %v1680
      %v1711 = vpack.c.b16 %v1683, %v1682
      %v1712 = vpack.c.b16 %v1685, %v1684
      %v1713 = vpack.c.b16 %v1687, %v1686
      %v1714 = vpack.c.b16 %v1689, %v1688
      %v1715 = vpack.c.b16 %v1691, %v1690
      %v1716 = vpack.c.b16 %v1693, %v1692
      %v1717 = vpack.c.b16 %v1695, %v1694
      %v1718 = vpack.c.b16 %v1696, %v1696
      %vm1719 = vcmask 1044480
      %v1720 = vrot.slane %v1697, 3
      %v1721 = vrot.slane %v1698, 3
      %v1722 = vsel %vm1719, %v1720, %v1721
      %v1723 = vrot.slane %v1699, 3
      %v1724 = vsel %vm1719, %v1721, %v1723
      %v1725 = vrot.slane %v1700, 3
      %v1726 = vsel %vm1719, %v1723, %v1725
      %v1727 = vrot.slane %v1701, 3
      %v1728 = vsel %vm1719, %v1725, %v1727
      %v1729 = vrot.slane %v1702, 3
      %v1730 = vsel %vm1719, %v1727, %v1729
      %v1731 = vrot.slane %v1703, 3
      %v1732 = vsel %vm1719, %v1729, %v1731
      %v1733 = vrot.slane %v1704, 3
      %v1734 = vsel %vm1719, %v1731, %v1733
      %v1735 = vrot.slane %v1705, 3
      %v1736 = vsel %vm1719, %v1733, %v1735
      %v1737 = vrot.slane %v1706, 3
      %v1738 = vsel %vm1719, %v1735, %v1737
      %v1739 = vrot.slane %v1707, 3
      %v1740 = vsel %vm1719, %v1737, %v1739
      %v1741 = vrot.slane %v1708, 3
      %v1742 = vsel %vm1719, %v1739, %v1741
      %v1743 = vrot.slane %v1709, 3
      %v1744 = vsel %vm1719, %v1741, %v1743
      %v1745 = vrot.slane %v1710, 3
      %v1746 = vsel %vm1719, %v1743, %v1745
      %v1747 = vrot.slane %v1711, 3
      %v1748 = vsel %vm1719, %v1745, %v1747
      %v1749 = vrot.slane %v1712, 3
      %v1750 = vsel %vm1719, %v1747, %v1749
      %v1751 = vrot.slane %v1713, 3
      %v1752 = vsel %vm1719, %v1749, %v1751
      %v1753 = vrot.slane %v1714, 3
      %v1754 = vsel %vm1719, %v1751, %v1753
      %v1755 = vrot.slane %v1715, 3
      %v1756 = vsel %vm1719, %v1753, %v1755
      %v1757 = vrot.slane %v1716, 3
      %v1758 = vsel %vm1719, %v1755, %v1757
      %v1759 = vrot.slane %v1717, 3
      %v1760 = vsel %vm1719, %v1757, %v1759
      %v1761 = vrot.slane %v1718, 3
      %v1762 = vsel %vm1719, %v1759, %v1761
      %v1800 = vunpack.c.l.b16 %v1595
      %v1801 = vunpack.c.l.b16 %v1596
      %v1802 = vunpack.c.l.b16 %v1597
      %v1803 = vunpack.c.l.b16 %v1598
      %v1804 = vunpack.c.l.b16 %v1599
      %v1805 = vunpack.c.l.b16 %v1600
      %v1806 = vunpack.c.l.b16 %v1601
      %v1807 = vunpack.c.l.b16 %v1602
      %v1808 = vunpack.c.l.b16 %v1603
      %v1809 = vunpack.c.l.b16 %v1604
      %v1810 = vunpack.c.l.b16 %v1605
      %v1811 = vunpack.c.l.b16 %v1606
      %v1812 = vunpack.c.l.b16 %v1607
      %v1813 = vunpack.c.l.b16 %v1608
      %v1814 = vunpack.c.l.b16 %v1609
      %v1815 = vunpack.c.l.b16 %v1610
      %v1816 = vpack.c.b16 %v1801, %v1800
      %v1817 = vpack.c.b16 %v1803, %v1802
      %v1818 = vpack.c.b16 %v1805, %v1804
      %v1819 = vpack.c.b16 %v1807, %v1806
      %v1820 = vpack.c.b16 %v1809, %v1808
      %v1821 = vpack.c.b16 %v1811, %v1810
      %v1822 = vpack.c.b16 %v1813, %v1812
      %v1823 = vpack.c.b16 %v1815, %v1814
      %1832 = vmatpush.bf16.msra.mxu0 %v1823
      %1833 = vmatpush.bf16.msra.mxu0 %v1822
      %1834 = vmatpush.bf16.msra.mxu0 %v1821
      %1835 = vmatpush.bf16.msra.mxu0 %v1820
      %1836 = vmatpush.bf16.msra.mxu0 %v1819
      %1837 = vmatpush.bf16.msra.mxu0 %v1818
      %1838 = vmatpush.bf16.msra.mxu0 %v1817
      %1839 = vmatpush.bf16.msra.mxu0 %v1816
      %1840 = vmatmul.bf16.gmra.mxu0 %v1722
      %v1841 = vpop.f32.mrf.mxu0
      %v1842 = vadd.f32 0.0, %v1841
      %v1843 = vpop.f32.mrf.mxu0
      %v1844 = vadd.f32 0.0, %v1843
      %1845 = vmatmul.bf16.gmra.mxu0 %v1724
      %v1846 = vpop.f32.mrf.mxu0
      %v1847 = vadd.f32 0.0, %v1846
      %v1848 = vpop.f32.mrf.mxu0
      %v1849 = vadd.f32 0.0, %v1848
      %1850 = vmatmul.bf16.gmra.mxu0 %v1726
      %v1851 = vpop.f32.mrf.mxu0
      %v1852 = vadd.f32 0.0, %v1851
      %v1853 = vpop.f32.mrf.mxu0
      %v1854 = vadd.f32 0.0, %v1853
      %1855 = vmatmul.bf16.gmra.mxu0 %v1728
      %v1856 = vpop.f32.mrf.mxu0
      %v1857 = vadd.f32 0.0, %v1856
      %v1858 = vpop.f32.mrf.mxu0
      %v1859 = vadd.f32 0.0, %v1858
      %1860 = vmatmul.bf16.gmra.mxu0 %v1730
      %v1861 = vpop.f32.mrf.mxu0
      %v1862 = vadd.f32 0.0, %v1861
      %v1863 = vpop.f32.mrf.mxu0
      %v1864 = vadd.f32 0.0, %v1863
      %1865 = vmatmul.bf16.gmra.mxu0 %v1732
      %v1866 = vpop.f32.mrf.mxu0
      %v1867 = vadd.f32 0.0, %v1866
      %v1868 = vpop.f32.mrf.mxu0
      %v1869 = vadd.f32 0.0, %v1868
      %1870 = vmatmul.bf16.gmra.mxu0 %v1734
      %v1871 = vpop.f32.mrf.mxu0
      %v1872 = vadd.f32 0.0, %v1871
      %v1873 = vpop.f32.mrf.mxu0
      %v1874 = vadd.f32 0.0, %v1873
      %1875 = vmatmul.bf16.gmra.mxu0 %v1736
      %v1876 = vpop.f32.mrf.mxu0
      %v1877 = vadd.f32 0.0, %v1876
      %v1878 = vpop.f32.mrf.mxu0
      %v1879 = vadd.f32 0.0, %v1878
      %1880 = vmatmul.bf16.gmra.mxu0 %v1738
      %v1881 = vpop.f32.mrf.mxu0
      %v1882 = vadd.f32 0.0, %v1881
      %v1883 = vpop.f32.mrf.mxu0
      %v1884 = vadd.f32 0.0, %v1883
      %1885 = vmatmul.bf16.gmra.mxu0 %v1740
      %v1886 = vpop.f32.mrf.mxu0
      %v1887 = vadd.f32 0.0, %v1886
      %v1888 = vpop.f32.mrf.mxu0
      %v1889 = vadd.f32 0.0, %v1888
      %1890 = vmatmul.bf16.gmra.mxu0 %v1742
      %v1891 = vpop.f32.mrf.mxu0
      %v1892 = vadd.f32 0.0, %v1891
      %v1893 = vpop.f32.mrf.mxu0
      %v1894 = vadd.f32 0.0, %v1893
      %1895 = vmatmul.bf16.gmra.mxu0 %v1744
      %v1896 = vpop.f32.mrf.mxu0
      %v1897 = vadd.f32 0.0, %v1896
      %v1898 = vpop.f32.mrf.mxu0
      %v1899 = vadd.f32 0.0, %v1898
      %1900 = vmatmul.bf16.gmra.mxu0 %v1746
      %v1901 = vpop.f32.mrf.mxu0
      %v1902 = vadd.f32 0.0, %v1901
      %v1903 = vpop.f32.mrf.mxu0
      %v1904 = vadd.f32 0.0, %v1903
      %1905 = vmatmul.bf16.gmra.mxu0 %v1748
      %v1906 = vpop.f32.mrf.mxu0
      %v1907 = vadd.f32 0.0, %v1906
      %v1908 = vpop.f32.mrf.mxu0
      %v1909 = vadd.f32 0.0, %v1908
      %1910 = vmatmul.bf16.gmra.mxu0 %v1750
      %v1911 = vpop.f32.mrf.mxu0
      %v1912 = vadd.f32 0.0, %v1911
      %v1913 = vpop.f32.mrf.mxu0
      %v1914 = vadd.f32 0.0, %v1913
      %1915 = vmatmul.bf16.gmra.mxu0 %v1752
      %v1916 = vpop.f32.mrf.mxu0
      %v1917 = vadd.f32 0.0, %v1916
      %v1918 = vpop.f32.mrf.mxu0
      %v1919 = vadd.f32 0.0, %v1918
      %1920 = vmatmul.bf16.gmra.mxu0 %v1754
      %v1921 = vpop.f32.mrf.mxu0
      %v1922 = vadd.f32 0.0, %v1921
      %v1923 = vpop.f32.mrf.mxu0
      %v1924 = vadd.f32 0.0, %v1923
      %1925 = vmatmul.bf16.gmra.mxu0 %v1756
      %v1926 = vpop.f32.mrf.mxu0
      %v1927 = vadd.f32 0.0, %v1926
      %v1928 = vpop.f32.mrf.mxu0
      %v1929 = vadd.f32 0.0, %v1928
      %1930 = vmatmul.bf16.gmra.mxu0 %v1758
      %v1931 = vpop.f32.mrf.mxu0
      %v1932 = vadd.f32 0.0, %v1931
      %v1933 = vpop.f32.mrf.mxu0
      %v1934 = vadd.f32 0.0, %v1933
      %1935 = vmatmul.bf16.gmra.mxu0 %v1760
      %v1936 = vpop.f32.mrf.mxu0
      %v1937 = vadd.f32 0.0, %v1936
      %v1938 = vpop.f32.mrf.mxu0
      %v1939 = vadd.f32 0.0, %v1938
      %1940 = vmatmul.bf16.gmra.mxu0 %v1762
      %v1941 = vpop.f32.mrf.mxu0
      %v1942 = vadd.f32 0.0, %v1941
      %v1943 = vpop.f32.mrf.mxu0
      %v1944 = vadd.f32 0.0, %v1943
      %1945 = vdwg.mxu0
      %v1946 = vadd.f32 %v1509, %v1842
      %v1947 = vadd.f32 %v1510, %v1844
      %v1948 = vadd.f32 %v1511, %v1847
      %v1949 = vadd.f32 %v1512, %v1849
      %v1950 = vadd.f32 %v1513, %v1852
      %v1951 = vadd.f32 %v1514, %v1854
      %v1952 = vadd.f32 %v1515, %v1857
      %v1953 = vadd.f32 %v1516, %v1859
      %v1954 = vadd.f32 %v1517, %v1862
      %v1955 = vadd.f32 %v1518, %v1864
      %v1956 = vadd.f32 %v1519, %v1867
      %v1957 = vadd.f32 %v1520, %v1869
      %v1958 = vadd.f32 %v1521, %v1872
      %v1959 = vadd.f32 %v1522, %v1874
      %v1960 = vadd.f32 %v1523, %v1877
      %v1961 = vadd.f32 %v1524, %v1879
      %v1962 = vadd.f32 %v1525, %v1882
      %v1963 = vadd.f32 %v1526, %v1884
      %v1964 = vadd.f32 %v1527, %v1887
      %v1965 = vadd.f32 %v1528, %v1889
      %v1966 = vadd.f32 %v1529, %v1892
      %v1967 = vadd.f32 %v1530, %v1894
      %v1968 = vadd.f32 %v1531, %v1897
      %v1969 = vadd.f32 %v1532, %v1899
      %v1970 = vadd.f32 %v1533, %v1902
      %v1971 = vadd.f32 %v1534, %v1904
      %v1972 = vadd.f32 %v1535, %v1907
      %v1973 = vadd.f32 %v1536, %v1909
      %v1974 = vadd.f32 %v1537, %v1912
      %v1975 = vadd.f32 %v1538, %v1914
      %v1976 = vadd.f32 %v1539, %v1917
      %v1977 = vadd.f32 %v1540, %v1919
      %v1978 = vadd.f32 %v1541, %v1922
      %v1979 = vadd.f32 %v1542, %v1924
      %v1980 = vadd.f32 %v1543, %v1927
      %v1981 = vadd.f32 %v1544, %v1929
      %v1982 = vadd.f32 %v1545, %v1932
      %v1983 = vadd.f32 %v1546, %v1934
      %v1984 = vadd.f32 %v1547, %v1937
      %v1985 = vadd.f32 %v1548, %v1939
      %v1986 = vadd.f32 %v1549, %v1942
      %v1987 = vadd.f32 %v1550, %v1944
      %1988 = vst [vmem:[#allocation3] sm:$0xff] %v1946
      %1989 = vst [vmem:[#allocation3 + $0x8] sm:$0xff] %v1947
      %1990 = vst [vmem:[#allocation3 + $0x10] sm:$0xff] %v1948
      %1991 = vst [vmem:[#allocation3 + $0x18] sm:$0xff] %v1949
      %1992 = vst [vmem:[#allocation3 + $0x20] sm:$0xff] %v1950
      %1993 = vst [vmem:[#allocation3 + $0x28] sm:$0xff] %v1951
      %1994 = vst [vmem:[#allocation3 + $0x30] sm:$0xff] %v1952
      %1995 = vst [vmem:[#allocation3 + $0x38] sm:$0xff] %v1953
      %1996 = vst [vmem:[#allocation3 + $0x40] sm:$0xff] %v1954
      %1997 = vst [vmem:[#allocation3 + $0x48] sm:$0xff] %v1955
      %1998 = vst [vmem:[#allocation3 + $0x50] sm:$0xff] %v1956
      %1999 = vst [vmem:[#allocation3 + $0x58] sm:$0xff] %v1957
      %2000 = vst [vmem:[#allocation3 + $0x60] sm:$0xff] %v1958
      %2001 = vst [vmem:[#allocation3 + $0x68] sm:$0xff] %v1959
      %2002 = vst [vmem:[#allocation3 + $0x70] sm:$0xff] %v1960
      %2003 = vst [vmem:[#allocation3 + $0x78] sm:$0xff] %v1961
      %2004 = vst [vmem:[#allocation3 + $0x80] sm:$0xff] %v1962
      %2005 = vst [vmem:[#allocation3 + $0x88] sm:$0xff] %v1963
      %2006 = vst [vmem:[#allocation3 + $0x90] sm:$0xff] %v1964
      %2007 = vst [vmem:[#allocation3 + $0x98] sm:$0xff] %v1965
      %2008 = vst [vmem:[#allocation3 + $0xa0] sm:$0xff] %v1966
      %2009 = vst [vmem:[#allocation3 + $0xa8] sm:$0xff] %v1967
      %2010 = vst [vmem:[#allocation3 + $0xb0] sm:$0xff] %v1968
      %2011 = vst [vmem:[#allocation3 + $0xb8] sm:$0xff] %v1969
      %2012 = vst [vmem:[#allocation3 + $0xc0] sm:$0xff] %v1970
      %2013 = vst [vmem:[#allocation3 + $0xc8] sm:$0xff] %v1971
      %2014 = vst [vmem:[#allocation3 + $0xd0] sm:$0xff] %v1972
      %2015 = vst [vmem:[#allocation3 + $0xd8] sm:$0xff] %v1973
      %2016 = vst [vmem:[#allocation3 + $0xe0] sm:$0xff] %v1974
      %2017 = vst [vmem:[#allocation3 + $0xe8] sm:$0xff] %v1975
      %2018 = vst [vmem:[#allocation3 + $0xf0] sm:$0xff] %v1976
      %2019 = vst [vmem:[#allocation3 + $0xf8] sm:$0xff] %v1977
      %2020 = vst [vmem:[#allocation3 + $0x100] sm:$0xff] %v1978
      %2021 = vst [vmem:[#allocation3 + $0x108] sm:$0xff] %v1979
      %2022 = vst [vmem:[#allocation3 + $0x110] sm:$0xff] %v1980
      %2023 = vst [vmem:[#allocation3 + $0x118] sm:$0xff] %v1981
      %2024 = vst [vmem:[#allocation3 + $0x120] sm:$0xff] %v1982
      %2025 = vst [vmem:[#allocation3 + $0x128] sm:$0xff] %v1983
      %2026 = vst [vmem:[#allocation3 + $0x130] sm:$0xff] %v1984
      %2027 = vst [vmem:[#allocation3 + $0x138] sm:$0xff] %v1985
      %2028 = vst [vmem:[#allocation3 + $0x140] sm:$0xff] %v1986
      %2029 = vst [vmem:[#allocation3 + $0x148] sm:$0xff] %v1987
      %v2030 = vld [vmem:[#allocation3] sm:$0xff]
      %v2031 = vld [vmem:[#allocation3 + $0x8] sm:$0xff]
      %v2032 = vld [vmem:[#allocation3 + $0x10] sm:$0xff]
      %v2033 = vld [vmem:[#allocation3 + $0x18] sm:$0xff]
      %v2034 = vld [vmem:[#allocation3 + $0x20] sm:$0xff]
      %v2035 = vld [vmem:[#allocation3 + $0x28] sm:$0xff]
      %v2036 = vld [vmem:[#allocation3 + $0x30] sm:$0xff]
      %v2037 = vld [vmem:[#allocation3 + $0x38] sm:$0xff]
      %v2038 = vld [vmem:[#allocation3 + $0x40] sm:$0xff]
      %v2039 = vld [vmem:[#allocation3 + $0x48] sm:$0xff]
      %v2040 = vld [vmem:[#allocation3 + $0x50] sm:$0xff]
      %v2041 = vld [vmem:[#allocation3 + $0x58] sm:$0xff]
      %v2042 = vld [vmem:[#allocation3 + $0x60] sm:$0xff]
      %v2043 = vld [vmem:[#allocation3 + $0x68] sm:$0xff]
      %v2044 = vld [vmem:[#allocation3 + $0x70] sm:$0xff]
      %v2045 = vld [vmem:[#allocation3 + $0x78] sm:$0xff]
      %v2046 = vld [vmem:[#allocation3 + $0x80] sm:$0xff]
      %v2047 = vld [vmem:[#allocation3 + $0x88] sm:$0xff]
      %v2048 = vld [vmem:[#allocation3 + $0x90] sm:$0xff]
      %v2049 = vld [vmem:[#allocation3 + $0x98] sm:$0xff]
      %v2050 = vld [vmem:[#allocation3 + $0xa0] sm:$0xff]
      %v2051 = vld [vmem:[#allocation3 + $0xa8] sm:$0xff]
      %v2052 = vld [vmem:[#allocation3 + $0xb0] sm:$0xff]
      %v2053 = vld [vmem:[#allocation3 + $0xb8] sm:$0xff]
      %v2054 = vld [vmem:[#allocation3 + $0xc0] sm:$0xff]
      %v2055 = vld [vmem:[#allocation3 + $0xc8] sm:$0xff]
      %v2056 = vld [vmem:[#allocation3 + $0xd0] sm:$0xff]
      %v2057 = vld [vmem:[#allocation3 + $0xd8] sm:$0xff]
      %v2058 = vld [vmem:[#allocation3 + $0xe0] sm:$0xff]
      %v2059 = vld [vmem:[#allocation3 + $0xe8] sm:$0xff]
      %v2060 = vld [vmem:[#allocation3 + $0xf0] sm:$0xff]
      %v2061 = vld [vmem:[#allocation3 + $0xf8] sm:$0xff]
      %v2062 = vld [vmem:[#allocation3 + $0x100] sm:$0xff]
      %v2063 = vld [vmem:[#allocation3 + $0x108] sm:$0xff]
      %v2064 = vld [vmem:[#allocation3 + $0x110] sm:$0xff]
      %v2065 = vld [vmem:[#allocation3 + $0x118] sm:$0xff]
      %v2066 = vld [vmem:[#allocation3 + $0x120] sm:$0xff]
      %v2067 = vld [vmem:[#allocation3 + $0x128] sm:$0xff]
      %v2068 = vld [vmem:[#allocation3 + $0x130] sm:$0xff]
      %v2069 = vld [vmem:[#allocation3 + $0x138] sm:$0xff]
      %v2070 = vld [vmem:[#allocation3 + $0x140] sm:$0xff]
      %v2071 = vld [vmem:[#allocation3 + $0x148] sm:$0xff]
      %v2072 = vld [vmem:[#allocation2 + $0x4] sm:$0x8]
      %v2073 = vld [vmem:[#allocation2 + $0x8] sm:$0xf]
      %v2074 = vld [vmem:[#allocation2 + $0xc] sm:$0xf]
      %v2075 = vld [vmem:[#allocation2 + $0x10] sm:$0xf]
      %v2076 = vld [vmem:[#allocation2 + $0x14] sm:$0xf]
      %v2077 = vld [vmem:[#allocation2 + $0x18] sm:$0xf]
      %v2078 = vld [vmem:[#allocation2 + $0x1c] sm:$0xf]
      %v2079 = vld [vmem:[#allocation2 + $0x20] sm:$0xf]
      %v2080 = vld [vmem:[#allocation2 + $0x24] sm:$0xf]
      %v2081 = vld [vmem:[#allocation2 + $0x28] sm:$0xf]
      %v2082 = vld [vmem:[#allocation2 + $0x2c] sm:$0xf]
      %v2083 = vld [vmem:[#allocation2 + $0x30] sm:$0xf]
      %v2084 = vld [vmem:[#allocation2 + $0x34] sm:$0xf]
      %v2085 = vld [vmem:[#allocation2 + $0x38] sm:$0xf]
      %v2086 = vld [vmem:[#allocation2 + $0x3c] sm:$0xf]
      %v2087 = vld [vmem:[#allocation2 + $0x40] sm:$0xf]
      %v2088 = vld [vmem:[#allocation2 + $0x44] sm:$0xf]
      %v2089 = vld [vmem:[#allocation2 + $0x48] sm:$0xf]
      %v2090 = vld [vmem:[#allocation2 + $0x4c] sm:$0xf]
      %v2091 = vld [vmem:[#allocation2 + $0x50] sm:$0xf]
      %v2092 = vld [vmem:[#allocation2 + $0x54] sm:$0xf]
      %v2093 = vld [vmem:[#allocation2 + $0x58] sm:$0xf]
      %v2094 = vld [vmem:[#allocation2 + $0x5c] sm:$0xf]
      %v2095 = vld [vmem:[#allocation2 + $0x60] sm:$0xf]
      %v2096 = vld [vmem:[#allocation2 + $0x64] sm:$0xf]
      %v2097 = vld [vmem:[#allocation2 + $0x68] sm:$0xf]
      %v2098 = vld [vmem:[#allocation2 + $0x6c] sm:$0xf]
      %v2099 = vld [vmem:[#allocation2 + $0x70] sm:$0xf]
      %v2100 = vld [vmem:[#allocation2 + $0x74] sm:$0xf]
      %v2101 = vld [vmem:[#allocation2 + $0x78] sm:$0xf]
      %v2102 = vld [vmem:[#allocation2 + $0x7c] sm:$0xf]
      %v2103 = vld [vmem:[#allocation2 + $0x80] sm:$0xf]
      %v2104 = vld [vmem:[#allocation2 + $0x84] sm:$0xf]
      %v2105 = vld [vmem:[#allocation2 + $0x88] sm:$0xf]
      %v2106 = vld [vmem:[#allocation2 + $0x8c] sm:$0xf]
      %v2107 = vld [vmem:[#allocation2 + $0x90] sm:$0xf]
      %v2108 = vld [vmem:[#allocation2 + $0x94] sm:$0xf]
      %v2109 = vld [vmem:[#allocation2 + $0x98] sm:$0xf]
      %v2110 = vld [vmem:[#allocation2 + $0x9c] sm:$0xf]
      %v2111 = vld [vmem:[#allocation2 + $0xa0] sm:$0xf]
      %v2112 = vld [vmem:[#allocation2 + $0xa4] sm:$0xf]
      %v2113 = vld [vmem:[#allocation2 + $0xa8] sm:$0xf]
      %v2114 = vld [vmem:[#allocation2 + $0xac] sm:$0xf]
      %s2115 = scalar_lea.vmem %s3, 128
      %v2116 = vld [vmem:[%s2115] sm:$0xf]
      %v2117 = vld [vmem:[%s2115 + $0x4] sm:$0xf]
      %v2118 = vld [vmem:[%s2115 + $0x8] sm:$0xf]
      %v2119 = vld [vmem:[%s2115 + $0xc] sm:$0xf]
      %v2120 = vld [vmem:[%s2115 + $0x10] sm:$0xf]
      %v2121 = vld [vmem:[%s2115 + $0x14] sm:$0xf]
      %v2122 = vld [vmem:[%s2115 + $0x18] sm:$0xf]
      %v2123 = vld [vmem:[%s2115 + $0x1c] sm:$0xf]
      %v2124 = vld [vmem:[%s2115 + $0x20] sm:$0xf]
      %v2125 = vld [vmem:[%s2115 + $0x24] sm:$0xf]
      %v2126 = vld [vmem:[%s2115 + $0x28] sm:$0xf]
      %v2127 = vld [vmem:[%s2115 + $0x2c] sm:$0xf]
      %v2128 = vld [vmem:[%s2115 + $0x30] sm:$0xf]
      %v2129 = vld [vmem:[%s2115 + $0x34] sm:$0xf]
      %v2130 = vld [vmem:[%s2115 + $0x38] sm:$0xf]
      %v2131 = vld [vmem:[%s2115 + $0x3c] sm:$0xf]
      %v2175 = vunpack.c.l.b16 %v2072
      %v2176 = vunpack.c.l.b16 %v2073
      %v2177 = vunpack.c.l.b16 %v2074
      %v2178 = vunpack.c.l.b16 %v2075
      %v2179 = vunpack.c.l.b16 %v2076
      %v2180 = vunpack.c.l.b16 %v2077
      %v2181 = vunpack.c.l.b16 %v2078
      %v2182 = vunpack.c.l.b16 %v2079
      %v2183 = vunpack.c.l.b16 %v2080
      %v2184 = vunpack.c.l.b16 %v2081
      %v2185 = vunpack.c.l.b16 %v2082
      %v2186 = vunpack.c.l.b16 %v2083
      %v2187 = vunpack.c.l.b16 %v2084
      %v2188 = vunpack.c.l.b16 %v2085
      %v2189 = vunpack.c.l.b16 %v2086
      %v2190 = vunpack.c.l.b16 %v2087
      %v2191 = vunpack.c.l.b16 %v2088
      %v2192 = vunpack.c.l.b16 %v2089
      %v2193 = vunpack.c.l.b16 %v2090
      %v2194 = vunpack.c.l.b16 %v2091
      %v2195 = vunpack.c.l.b16 %v2092
      %v2196 = vunpack.c.l.b16 %v2093
      %v2197 = vunpack.c.l.b16 %v2094
      %v2198 = vunpack.c.l.b16 %v2095
      %v2199 = vunpack.c.l.b16 %v2096
      %v2200 = vunpack.c.l.b16 %v2097
      %v2201 = vunpack.c.l.b16 %v2098
      %v2202 = vunpack.c.l.b16 %v2099
      %v2203 = vunpack.c.l.b16 %v2100
      %v2204 = vunpack.c.l.b16 %v2101
      %v2205 = vunpack.c.l.b16 %v2102
      %v2206 = vunpack.c.l.b16 %v2103
      %v2207 = vunpack.c.l.b16 %v2104
      %v2208 = vunpack.c.l.b16 %v2105
      %v2209 = vunpack.c.l.b16 %v2106
      %v2210 = vunpack.c.l.b16 %v2107
      %v2211 = vunpack.c.l.b16 %v2108
      %v2212 = vunpack.c.l.b16 %v2109
      %v2213 = vunpack.c.l.b16 %v2110
      %v2214 = vunpack.c.l.b16 %v2111
      %v2215 = vunpack.c.l.b16 %v2112
      %v2216 = vunpack.c.l.b16 %v2113
      %v2217 = vunpack.c.l.b16 %v2114
      %v2218 = vpack.c.b16 %v2176, %v2175
      %v2219 = vpack.c.b16 %v2178, %v2177
      %v2220 = vpack.c.b16 %v2180, %v2179
      %v2221 = vpack.c.b16 %v2182, %v2181
      %v2222 = vpack.c.b16 %v2184, %v2183
      %v2223 = vpack.c.b16 %v2186, %v2185
      %v2224 = vpack.c.b16 %v2188, %v2187
      %v2225 = vpack.c.b16 %v2190, %v2189
      %v2226 = vpack.c.b16 %v2192, %v2191
      %v2227 = vpack.c.b16 %v2194, %v2193
      %v2228 = vpack.c.b16 %v2196, %v2195
      %v2229 = vpack.c.b16 %v2198, %v2197
      %v2230 = vpack.c.b16 %v2200, %v2199
      %v2231 = vpack.c.b16 %v2202, %v2201
      %v2232 = vpack.c.b16 %v2204, %v2203
      %v2233 = vpack.c.b16 %v2206, %v2205
      %v2234 = vpack.c.b16 %v2208, %v2207
      %v2235 = vpack.c.b16 %v2210, %v2209
      %v2236 = vpack.c.b16 %v2212, %v2211
      %v2237 = vpack.c.b16 %v2214, %v2213
      %v2238 = vpack.c.b16 %v2216, %v2215
      %v2239 = vpack.c.b16 %v2217, %v2217
      %vm2240 = vsmask.f32 4352
      %v2242 = vshrl.u32 %v2218, 16
      %v2244 = vrot.slane %v2242, 3
      %v2245 = vshll.u32 %v2218, 16
      %v2247 = vrot.slane %v2245, 4
      %v2248 = vor.u32 %v2244, %v2247
      %v2250 = vshrl.u32 %v2219, 16
      %v2252 = vrot.slane %v2250, 3
      %v2253 = vshll.u32 %v2219, 16
      %v2255 = vrot.slane %v2253, 4
      %v2256 = vor.u32 %v2252, %v2255
      %v2257 = vsel %vm2240, %v2248, %v2256
      %v2259 = vshrl.u32 %v2220, 16
      %v2261 = vrot.slane %v2259, 3
      %v2262 = vshll.u32 %v2220, 16
      %v2264 = vrot.slane %v2262, 4
      %v2265 = vor.u32 %v2261, %v2264
      %v2266 = vsel %vm2240, %v2256, %v2265
      %v2268 = vshrl.u32 %v2221, 16
      %v2270 = vrot.slane %v2268, 3
      %v2271 = vshll.u32 %v2221, 16
      %v2273 = vrot.slane %v2271, 4
      %v2274 = vor.u32 %v2270, %v2273
      %v2275 = vsel %vm2240, %v2265, %v2274
      %v2277 = vshrl.u32 %v2222, 16
      %v2279 = vrot.slane %v2277, 3
      %v2280 = vshll.u32 %v2222, 16
      %v2282 = vrot.slane %v2280, 4
      %v2283 = vor.u32 %v2279, %v2282
      %v2284 = vsel %vm2240, %v2274, %v2283
      %v2286 = vshrl.u32 %v2223, 16
      %v2288 = vrot.slane %v2286, 3
      %v2289 = vshll.u32 %v2223, 16
      %v2291 = vrot.slane %v2289, 4
      %v2292 = vor.u32 %v2288, %v2291
      %v2293 = vsel %vm2240, %v2283, %v2292
      %v2295 = vshrl.u32 %v2224, 16
      %v2297 = vrot.slane %v2295, 3
      %v2298 = vshll.u32 %v2224, 16
      %v2300 = vrot.slane %v2298, 4
      %v2301 = vor.u32 %v2297, %v2300
      %v2302 = vsel %vm2240, %v2292, %v2301
      %v2304 = vshrl.u32 %v2225, 16
      %v2306 = vrot.slane %v2304, 3
      %v2307 = vshll.u32 %v2225, 16
      %v2309 = vrot.slane %v2307, 4
      %v2310 = vor.u32 %v2306, %v2309
      %v2311 = vsel %vm2240, %v2301, %v2310
      %v2313 = vshrl.u32 %v2226, 16
      %v2315 = vrot.slane %v2313, 3
      %v2316 = vshll.u32 %v2226, 16
      %v2318 = vrot.slane %v2316, 4
      %v2319 = vor.u32 %v2315, %v2318
      %v2320 = vsel %vm2240, %v2310, %v2319
      %v2322 = vshrl.u32 %v2227, 16
      %v2324 = vrot.slane %v2322, 3
      %v2325 = vshll.u32 %v2227, 16
      %v2327 = vrot.slane %v2325, 4
      %v2328 = vor.u32 %v2324, %v2327
      %v2329 = vsel %vm2240, %v2319, %v2328
      %v2331 = vshrl.u32 %v2228, 16
      %v2333 = vrot.slane %v2331, 3
      %v2334 = vshll.u32 %v2228, 16
      %v2336 = vrot.slane %v2334, 4
      %v2337 = vor.u32 %v2333, %v2336
      %v2338 = vsel %vm2240, %v2328, %v2337
      %v2340 = vshrl.u32 %v2229, 16
      %v2342 = vrot.slane %v2340, 3
      %v2343 = vshll.u32 %v2229, 16
      %v2345 = vrot.slane %v2343, 4
      %v2346 = vor.u32 %v2342, %v2345
      %v2347 = vsel %vm2240, %v2337, %v2346
      %v2349 = vshrl.u32 %v2230, 16
      %v2351 = vrot.slane %v2349, 3
      %v2352 = vshll.u32 %v2230, 16
      %v2354 = vrot.slane %v2352, 4
      %v2355 = vor.u32 %v2351, %v2354
      %v2356 = vsel %vm2240, %v2346, %v2355
      %v2358 = vshrl.u32 %v2231, 16
      %v2360 = vrot.slane %v2358, 3
      %v2361 = vshll.u32 %v2231, 16
      %v2363 = vrot.slane %v2361, 4
      %v2364 = vor.u32 %v2360, %v2363
      %v2365 = vsel %vm2240, %v2355, %v2364
      %v2367 = vshrl.u32 %v2232, 16
      %v2369 = vrot.slane %v2367, 3
      %v2370 = vshll.u32 %v2232, 16
      %v2372 = vrot.slane %v2370, 4
      %v2373 = vor.u32 %v2369, %v2372
      %v2374 = vsel %vm2240, %v2364, %v2373
      %v2376 = vshrl.u32 %v2233, 16
      %v2378 = vrot.slane %v2376, 3
      %v2379 = vshll.u32 %v2233, 16
      %v2381 = vrot.slane %v2379, 4
      %v2382 = vor.u32 %v2378, %v2381
      %v2383 = vsel %vm2240, %v2373, %v2382
      %v2385 = vshrl.u32 %v2234, 16
      %v2387 = vrot.slane %v2385, 3
      %v2388 = vshll.u32 %v2234, 16
      %v2390 = vrot.slane %v2388, 4
      %v2391 = vor.u32 %v2387, %v2390
      %v2392 = vsel %vm2240, %v2382, %v2391
      %v2394 = vshrl.u32 %v2235, 16
      %v2396 = vrot.slane %v2394, 3
      %v2397 = vshll.u32 %v2235, 16
      %v2399 = vrot.slane %v2397, 4
      %v2400 = vor.u32 %v2396, %v2399
      %v2401 = vsel %vm2240, %v2391, %v2400
      %v2403 = vshrl.u32 %v2236, 16
      %v2405 = vrot.slane %v2403, 3
      %v2406 = vshll.u32 %v2236, 16
      %v2408 = vrot.slane %v2406, 4
      %v2409 = vor.u32 %v2405, %v2408
      %v2410 = vsel %vm2240, %v2400, %v2409
      %v2412 = vshrl.u32 %v2237, 16
      %v2414 = vrot.slane %v2412, 3
      %v2415 = vshll.u32 %v2237, 16
      %v2417 = vrot.slane %v2415, 4
      %v2418 = vor.u32 %v2414, %v2417
      %v2419 = vsel %vm2240, %v2409, %v2418
      %v2421 = vshrl.u32 %v2238, 16
      %v2423 = vrot.slane %v2421, 3
      %v2424 = vshll.u32 %v2238, 16
      %v2426 = vrot.slane %v2424, 4
      %v2427 = vor.u32 %v2423, %v2426
      %v2428 = vsel %vm2240, %v2418, %v2427
      %v2430 = vshrl.u32 %v2239, 16
      %v2432 = vrot.slane %v2430, 3
      %v2433 = vshll.u32 %v2239, 16
      %v2435 = vrot.slane %v2433, 4
      %v2436 = vor.u32 %v2432, %v2435
      %v2437 = vsel %vm2240, %v2427, %v2436
      %v2475 = vunpack.c.l.b16 %v2116
      %v2476 = vunpack.c.l.b16 %v2117
      %v2477 = vunpack.c.l.b16 %v2118
      %v2478 = vunpack.c.l.b16 %v2119
      %v2479 = vunpack.c.l.b16 %v2120
      %v2480 = vunpack.c.l.b16 %v2121
      %v2481 = vunpack.c.l.b16 %v2122
      %v2482 = vunpack.c.l.b16 %v2123
      %v2483 = vunpack.c.l.b16 %v2124
      %v2484 = vunpack.c.l.b16 %v2125
      %v2485 = vunpack.c.l.b16 %v2126
      %v2486 = vunpack.c.l.b16 %v2127
      %v2487 = vunpack.c.l.b16 %v2128
      %v2488 = vunpack.c.l.b16 %v2129
      %v2489 = vunpack.c.l.b16 %v2130
      %v2490 = vunpack.c.l.b16 %v2131
      %v2491 = vpack.c.b16 %v2476, %v2475
      %v2492 = vpack.c.b16 %v2478, %v2477
      %v2493 = vpack.c.b16 %v2480, %v2479
      %v2494 = vpack.c.b16 %v2482, %v2481
      %v2495 = vpack.c.b16 %v2484, %v2483
      %v2496 = vpack.c.b16 %v2486, %v2485
      %v2497 = vpack.c.b16 %v2488, %v2487
      %v2498 = vpack.c.b16 %v2490, %v2489
      %2507 = vmatpush.bf16.msra.mxu0 %v2498
      %2508 = vmatpush.bf16.msra.mxu0 %v2497
      %2509 = vmatpush.bf16.msra.mxu0 %v2496
      %2510 = vmatpush.bf16.msra.mxu0 %v2495
      %2511 = vmatpush.bf16.msra.mxu0 %v2494
      %2512 = vmatpush.bf16.msra.mxu0 %v2493
      %2513 = vmatpush.bf16.msra.mxu0 %v2492
      %2514 = vmatpush.bf16.msra.mxu0 %v2491
      %2515 = vmatmul.bf16.gmra.mxu0 %v2257
      %v2516 = vpop.f32.mrf.mxu0
      %v2517 = vadd.f32 0.0, %v2516
      %v2518 = vpop.f32.mrf.mxu0
      %v2519 = vadd.f32 0.0, %v2518
      %2520 = vmatmul.bf16.gmra.mxu0 %v2266
      %v2521 = vpop.f32.mrf.mxu0
      %v2522 = vadd.f32 0.0, %v2521
      %v2523 = vpop.f32.mrf.mxu0
      %v2524 = vadd.f32 0.0, %v2523
      %2525 = vmatmul.bf16.gmra.mxu0 %v2275
      %v2526 = vpop.f32.mrf.mxu0
      %v2527 = vadd.f32 0.0, %v2526
      %v2528 = vpop.f32.mrf.mxu0
      %v2529 = vadd.f32 0.0, %v2528
      %2530 = vmatmul.bf16.gmra.mxu0 %v2284
      %v2531 = vpop.f32.mrf.mxu0
      %v2532 = vadd.f32 0.0, %v2531
      %v2533 = vpop.f32.mrf.mxu0
      %v2534 = vadd.f32 0.0, %v2533
      %2535 = vmatmul.bf16.gmra.mxu0 %v2293
      %v2536 = vpop.f32.mrf.mxu0
      %v2537 = vadd.f32 0.0, %v2536
      %v2538 = vpop.f32.mrf.mxu0
      %v2539 = vadd.f32 0.0, %v2538
      %2540 = vmatmul.bf16.gmra.mxu0 %v2302
      %v2541 = vpop.f32.mrf.mxu0
      %v2542 = vadd.f32 0.0, %v2541
      %v2543 = vpop.f32.mrf.mxu0
      %v2544 = vadd.f32 0.0, %v2543
      %2545 = vmatmul.bf16.gmra.mxu0 %v2311
      %v2546 = vpop.f32.mrf.mxu0
      %v2547 = vadd.f32 0.0, %v2546
      %v2548 = vpop.f32.mrf.mxu0
      %v2549 = vadd.f32 0.0, %v2548
      %2550 = vmatmul.bf16.gmra.mxu0 %v2320
      %v2551 = vpop.f32.mrf.mxu0
      %v2552 = vadd.f32 0.0, %v2551
      %v2553 = vpop.f32.mrf.mxu0
      %v2554 = vadd.f32 0.0, %v2553
      %2555 = vmatmul.bf16.gmra.mxu0 %v2329
      %v2556 = vpop.f32.mrf.mxu0
      %v2557 = vadd.f32 0.0, %v2556
      %v2558 = vpop.f32.mrf.mxu0
      %v2559 = vadd.f32 0.0, %v2558
      %2560 = vmatmul.bf16.gmra.mxu0 %v2338
      %v2561 = vpop.f32.mrf.mxu0
      %v2562 = vadd.f32 0.0, %v2561
      %v2563 = vpop.f32.mrf.mxu0
      %v2564 = vadd.f32 0.0, %v2563
      %2565 = vmatmul.bf16.gmra.mxu0 %v2347
      %v2566 = vpop.f32.mrf.mxu0
      %v2567 = vadd.f32 0.0, %v2566
      %v2568 = vpop.f32.mrf.mxu0
      %v2569 = vadd.f32 0.0, %v2568
      %2570 = vmatmul.bf16.gmra.mxu0 %v2356
      %v2571 = vpop.f32.mrf.mxu0
      %v2572 = vadd.f32 0.0, %v2571
      %v2573 = vpop.f32.mrf.mxu0
      %v2574 = vadd.f32 0.0, %v2573
      %2575 = vmatmul.bf16.gmra.mxu0 %v2365
      %v2576 = vpop.f32.mrf.mxu0
      %v2577 = vadd.f32 0.0, %v2576
      %v2578 = vpop.f32.mrf.mxu0
      %v2579 = vadd.f32 0.0, %v2578
      %2580 = vmatmul.bf16.gmra.mxu0 %v2374
      %v2581 = vpop.f32.mrf.mxu0
      %v2582 = vadd.f32 0.0, %v2581
      %v2583 = vpop.f32.mrf.mxu0
      %v2584 = vadd.f32 0.0, %v2583
      %2585 = vmatmul.bf16.gmra.mxu0 %v2383
      %v2586 = vpop.f32.mrf.mxu0
      %v2587 = vadd.f32 0.0, %v2586
      %v2588 = vpop.f32.mrf.mxu0
      %v2589 = vadd.f32 0.0, %v2588
      %2590 = vmatmul.bf16.gmra.mxu0 %v2392
      %v2591 = vpop.f32.mrf.mxu0
      %v2592 = vadd.f32 0.0, %v2591
      %v2593 = vpop.f32.mrf.mxu0
      %v2594 = vadd.f32 0.0, %v2593
      %2595 = vmatmul.bf16.gmra.mxu0 %v2401
      %v2596 = vpop.f32.mrf.mxu0
      %v2597 = vadd.f32 0.0, %v2596
      %v2598 = vpop.f32.mrf.mxu0
      %v2599 = vadd.f32 0.0, %v2598
      %2600 = vmatmul.bf16.gmra.mxu0 %v2410
      %v2601 = vpop.f32.mrf.mxu0
      %v2602 = vadd.f32 0.0, %v2601
      %v2603 = vpop.f32.mrf.mxu0
      %v2604 = vadd.f32 0.0, %v2603
      %2605 = vmatmul.bf16.gmra.mxu0 %v2419
      %v2606 = vpop.f32.mrf.mxu0
      %v2607 = vadd.f32 0.0, %v2606
      %v2608 = vpop.f32.mrf.mxu0
      %v2609 = vadd.f32 0.0, %v2608
      %2610 = vmatmul.bf16.gmra.mxu0 %v2428
      %v2611 = vpop.f32.mrf.mxu0
      %v2612 = vadd.f32 0.0, %v2611
      %v2613 = vpop.f32.mrf.mxu0
      %v2614 = vadd.f32 0.0, %v2613
      %2615 = vmatmul.bf16.gmra.mxu0 %v2437
      %v2616 = vpop.f32.mrf.mxu0
      %v2617 = vadd.f32 0.0, %v2616
      %v2618 = vpop.f32.mrf.mxu0
      %v2619 = vadd.f32 0.0, %v2618
      %2620 = vdwg.mxu0
      %v2621 = vadd.f32 %v2030, %v2517
      %v2622 = vadd.f32 %v2031, %v2519
      %v2623 = vadd.f32 %v2032, %v2522
      %v2624 = vadd.f32 %v2033, %v2524
      %v2625 = vadd.f32 %v2034, %v2527
      %v2626 = vadd.f32 %v2035, %v2529
      %v2627 = vadd.f32 %v2036, %v2532
      %v2628 = vadd.f32 %v2037, %v2534
      %v2629 = vadd.f32 %v2038, %v2537
      %v2630 = vadd.f32 %v2039, %v2539
      %v2631 = vadd.f32 %v2040, %v2542
      %v2632 = vadd.f32 %v2041, %v2544
      %v2633 = vadd.f32 %v2042, %v2547
      %v2634 = vadd.f32 %v2043, %v2549
      %v2635 = vadd.f32 %v2044, %v2552
      %v2636 = vadd.f32 %v2045, %v2554
      %v2637 = vadd.f32 %v2046, %v2557
      %v2638 = vadd.f32 %v2047, %v2559
      %v2639 = vadd.f32 %v2048, %v2562
      %v2640 = vadd.f32 %v2049, %v2564
      %v2641 = vadd.f32 %v2050, %v2567
      %v2642 = vadd.f32 %v2051, %v2569
      %v2643 = vadd.f32 %v2052, %v2572
      %v2644 = vadd.f32 %v2053, %v2574
      %v2645 = vadd.f32 %v2054, %v2577
      %v2646 = vadd.f32 %v2055, %v2579
      %v2647 = vadd.f32 %v2056, %v2582
      %v2648 = vadd.f32 %v2057, %v2584
      %v2649 = vadd.f32 %v2058, %v2587
      %v2650 = vadd.f32 %v2059, %v2589
      %v2651 = vadd.f32 %v2060, %v2592
      %v2652 = vadd.f32 %v2061, %v2594
      %v2653 = vadd.f32 %v2062, %v2597
      %v2654 = vadd.f32 %v2063, %v2599
      %v2655 = vadd.f32 %v2064, %v2602
      %v2656 = vadd.f32 %v2065, %v2604
      %v2657 = vadd.f32 %v2066, %v2607
      %v2658 = vadd.f32 %v2067, %v2609
      %v2659 = vadd.f32 %v2068, %v2612
      %v2660 = vadd.f32 %v2069, %v2614
      %v2661 = vadd.f32 %v2070, %v2617
      %v2662 = vadd.f32 %v2071, %v2619
      %2663 = vst [vmem:[#allocation3] sm:$0xff] %v2621
      %2664 = vst [vmem:[#allocation3 + $0x8] sm:$0xff] %v2622
      %2665 = vst [vmem:[#allocation3 + $0x10] sm:$0xff] %v2623
      %2666 = vst [vmem:[#allocation3 + $0x18] sm:$0xff] %v2624
      %2667 = vst [vmem:[#allocation3 + $0x20] sm:$0xff] %v2625
      %2668 = vst [vmem:[#allocation3 + $0x28] sm:$0xff] %v2626
      %2669 = vst [vmem:[#allocation3 + $0x30] sm:$0xff] %v2627
      %2670 = vst [vmem:[#allocation3 + $0x38] sm:$0xff] %v2628
      %2671 = vst [vmem:[#allocation3 + $0x40] sm:$0xff] %v2629
      %2672 = vst [vmem:[#allocation3 + $0x48] sm:$0xff] %v2630
      %2673 = vst [vmem:[#allocation3 + $0x50] sm:$0xff] %v2631
      %2674 = vst [vmem:[#allocation3 + $0x58] sm:$0xff] %v2632
      %2675 = vst [vmem:[#allocation3 + $0x60] sm:$0xff] %v2633
      %2676 = vst [vmem:[#allocation3 + $0x68] sm:$0xff] %v2634
      %2677 = vst [vmem:[#allocation3 + $0x70] sm:$0xff] %v2635
      %2678 = vst [vmem:[#allocation3 + $0x78] sm:$0xff] %v2636
      %2679 = vst [vmem:[#allocation3 + $0x80] sm:$0xff] %v2637
      %2680 = vst [vmem:[#allocation3 + $0x88] sm:$0xff] %v2638
      %2681 = vst [vmem:[#allocation3 + $0x90] sm:$0xff] %v2639
      %2682 = vst [vmem:[#allocation3 + $0x98] sm:$0xff] %v2640
      %2683 = vst [vmem:[#allocation3 + $0xa0] sm:$0xff] %v2641
      %2684 = vst [vmem:[#allocation3 + $0xa8] sm:$0xff] %v2642
      %2685 = vst [vmem:[#allocation3 + $0xb0] sm:$0xff] %v2643
      %2686 = vst [vmem:[#allocation3 + $0xb8] sm:$0xff] %v2644
      %2687 = vst [vmem:[#allocation3 + $0xc0] sm:$0xff] %v2645
      %2688 = vst [vmem:[#allocation3 + $0xc8] sm:$0xff] %v2646
      %2689 = vst [vmem:[#allocation3 + $0xd0] sm:$0xff] %v2647
      %2690 = vst [vmem:[#allocation3 + $0xd8] sm:$0xff] %v2648
      %2691 = vst [vmem:[#allocation3 + $0xe0] sm:$0xff] %v2649
      %2692 = vst [vmem:[#allocation3 + $0xe8] sm:$0xff] %v2650
      %2693 = vst [vmem:[#allocation3 + $0xf0] sm:$0xff] %v2651
      %2694 = vst [vmem:[#allocation3 + $0xf8] sm:$0xff] %v2652
      %2695 = vst [vmem:[#allocation3 + $0x100] sm:$0xff] %v2653
      %2696 = vst [vmem:[#allocation3 + $0x108] sm:$0xff] %v2654
      %2697 = vst [vmem:[#allocation3 + $0x110] sm:$0xff] %v2655
      %2698 = vst [vmem:[#allocation3 + $0x118] sm:$0xff] %v2656
      %2699 = vst [vmem:[#allocation3 + $0x120] sm:$0xff] %v2657
      %2700 = vst [vmem:[#allocation3 + $0x128] sm:$0xff] %v2658
      %2701 = vst [vmem:[#allocation3 + $0x130] sm:$0xff] %v2659
      %2702 = vst [vmem:[#allocation3 + $0x138] sm:$0xff] %v2660
      %2703 = vst [vmem:[#allocation3 + $0x140] sm:$0xff] %v2661
      %2704 = vst [vmem:[#allocation3 + $0x148] sm:$0xff] %v2662
      %v2705 = vld [vmem:[#allocation3] sm:$0xff]
      %v2706 = vld [vmem:[#allocation3 + $0x8] sm:$0xff]
      %v2707 = vld [vmem:[#allocation3 + $0x10] sm:$0xff]
      %v2708 = vld [vmem:[#allocation3 + $0x18] sm:$0xff]
      %v2709 = vld [vmem:[#allocation3 + $0x20] sm:$0xff]
      %v2710 = vld [vmem:[#allocation3 + $0x28] sm:$0xff]
      %v2711 = vld [vmem:[#allocation3 + $0x30] sm:$0xff]
      %v2712 = vld [vmem:[#allocation3 + $0x38] sm:$0xff]
      %v2713 = vld [vmem:[#allocation3 + $0x40] sm:$0xff]
      %v2714 = vld [vmem:[#allocation3 + $0x48] sm:$0xff]
      %v2715 = vld [vmem:[#allocation3 + $0x50] sm:$0xff]
      %v2716 = vld [vmem:[#allocation3 + $0x58] sm:$0xff]
      %v2717 = vld [vmem:[#allocation3 + $0x60] sm:$0xff]
      %v2718 = vld [vmem:[#allocation3 + $0x68] sm:$0xff]
      %v2719 = vld [vmem:[#allocation3 + $0x70] sm:$0xff]
      %v2720 = vld [vmem:[#allocation3 + $0x78] sm:$0xff]
      %v2721 = vld [vmem:[#allocation3 + $0x80] sm:$0xff]
      %v2722 = vld [vmem:[#allocation3 + $0x88] sm:$0xff]
      %v2723 = vld [vmem:[#allocation3 + $0x90] sm:$0xff]
      %v2724 = vld [vmem:[#allocation3 + $0x98] sm:$0xff]
      %v2725 = vld [vmem:[#allocation3 + $0xa0] sm:$0xff]
      %v2726 = vld [vmem:[#allocation3 + $0xa8] sm:$0xff]
      %v2727 = vld [vmem:[#allocation3 + $0xb0] sm:$0xff]
      %v2728 = vld [vmem:[#allocation3 + $0xb8] sm:$0xff]
      %v2729 = vld [vmem:[#allocation3 + $0xc0] sm:$0xff]
      %v2730 = vld [vmem:[#allocation3 + $0xc8] sm:$0xff]
      %v2731 = vld [vmem:[#allocation3 + $0xd0] sm:$0xff]
      %v2732 = vld [vmem:[#allocation3 + $0xd8] sm:$0xff]
      %v2733 = vld [vmem:[#allocation3 + $0xe0] sm:$0xff]
      %v2734 = vld [vmem:[#allocation3 + $0xe8] sm:$0xff]
      %v2735 = vld [vmem:[#allocation3 + $0xf0] sm:$0xff]
      %v2736 = vld [vmem:[#allocation3 + $0xf8] sm:$0xff]
      %v2737 = vld [vmem:[#allocation3 + $0x100] sm:$0xff]
      %v2738 = vld [vmem:[#allocation3 + $0x108] sm:$0xff]
      %v2739 = vld [vmem:[#allocation3 + $0x110] sm:$0xff]
      %v2740 = vld [vmem:[#allocation3 + $0x118] sm:$0xff]
      %v2741 = vld [vmem:[#allocation3 + $0x120] sm:$0xff]
      %v2742 = vld [vmem:[#allocation3 + $0x128] sm:$0xff]
      %v2743 = vld [vmem:[#allocation3 + $0x130] sm:$0xff]
      %v2744 = vld [vmem:[#allocation3 + $0x138] sm:$0xff]
      %v2745 = vld [vmem:[#allocation3 + $0x140] sm:$0xff]
      %v2746 = vld [vmem:[#allocation3 + $0x148] sm:$0xff]
      %v2747 = vld [vmem:[#allocation2 + $0xc] sm:$0x8]
      %v2748 = vld [vmem:[#allocation2 + $0x10] sm:$0xf]
      %v2749 = vld [vmem:[#allocation2 + $0x14] sm:$0xf]
      %v2750 = vld [vmem:[#allocation2 + $0x18] sm:$0xf]
      %v2751 = vld [vmem:[#allocation2 + $0x1c] sm:$0xf]
      %v2752 = vld [vmem:[#allocation2 + $0x20] sm:$0xf]
      %v2753 = vld [vmem:[#allocation2 + $0x24] sm:$0xf]
      %v2754 = vld [vmem:[#allocation2 + $0x28] sm:$0xf]
      %v2755 = vld [vmem:[#allocation2 + $0x2c] sm:$0xf]
      %v2756 = vld [vmem:[#allocation2 + $0x30] sm:$0xf]
      %v2757 = vld [vmem:[#allocation2 + $0x34] sm:$0xf]
      %v2758 = vld [vmem:[#allocation2 + $0x38] sm:$0xf]
      %v2759 = vld [vmem:[#allocation2 + $0x3c] sm:$0xf]
      %v2760 = vld [vmem:[#allocation2 + $0x40] sm:$0xf]
      %v2761 = vld [vmem:[#allocation2 + $0x44] sm:$0xf]
      %v2762 = vld [vmem:[#allocation2 + $0x48] sm:$0xf]
      %v2763 = vld [vmem:[#allocation2 + $0x4c] sm:$0xf]
      %v2764 = vld [vmem:[#allocation2 + $0x50] sm:$0xf]
      %v2765 = vld [vmem:[#allocation2 + $0x54] sm:$0xf]
      %v2766 = vld [vmem:[#allocation2 + $0x58] sm:$0xf]
      %v2767 = vld [vmem:[#allocation2 + $0x5c] sm:$0xf]
      %v2768 = vld [vmem:[#allocation2 + $0x60] sm:$0xf]
      %v2769 = vld [vmem:[#allocation2 + $0x64] sm:$0xf]
      %v2770 = vld [vmem:[#allocation2 + $0x68] sm:$0xf]
      %v2771 = vld [vmem:[#allocation2 + $0x6c] sm:$0xf]
      %v2772 = vld [vmem:[#allocation2 + $0x70] sm:$0xf]
      %v2773 = vld [vmem:[#allocation2 + $0x74] sm:$0xf]
      %v2774 = vld [vmem:[#allocation2 + $0x78] sm:$0xf]
      %v2775 = vld [vmem:[#allocation2 + $0x7c] sm:$0xf]
      %v2776 = vld [vmem:[#allocation2 + $0x80] sm:$0xf]
      %v2777 = vld [vmem:[#allocation2 + $0x84] sm:$0xf]
      %v2778 = vld [vmem:[#allocation2 + $0x88] sm:$0xf]
      %v2779 = vld [vmem:[#allocation2 + $0x8c] sm:$0xf]
      %v2780 = vld [vmem:[#allocation2 + $0x90] sm:$0xf]
      %v2781 = vld [vmem:[#allocation2 + $0x94] sm:$0xf]
      %v2782 = vld [vmem:[#allocation2 + $0x98] sm:$0xf]
      %v2783 = vld [vmem:[#allocation2 + $0x9c] sm:$0xf]
      %v2784 = vld [vmem:[#allocation2 + $0xa0] sm:$0xf]
      %v2785 = vld [vmem:[#allocation2 + $0xa4] sm:$0xf]
      %v2786 = vld [vmem:[#allocation2 + $0xa8] sm:$0xf]
      %v2787 = vld [vmem:[#allocation2 + $0xac] sm:$0xf]
      %v2788 = vld [vmem:[#allocation2 + $0xb0] sm:$0xf]
      %v2789 = vld [vmem:[#allocation2 + $0xb4] sm:$0xf]
      %s2790 = scalar_lea.vmem %s3, 192
      %v2791 = vld [vmem:[%s2790] sm:$0xf]
      %v2792 = vld [vmem:[%s2790 + $0x4] sm:$0xf]
      %v2793 = vld [vmem:[%s2790 + $0x8] sm:$0xf]
      %v2794 = vld [vmem:[%s2790 + $0xc] sm:$0xf]
      %v2795 = vld [vmem:[%s2790 + $0x10] sm:$0xf]
      %v2796 = vld [vmem:[%s2790 + $0x14] sm:$0xf]
      %v2797 = vld [vmem:[%s2790 + $0x18] sm:$0xf]
      %v2798 = vld [vmem:[%s2790 + $0x1c] sm:$0xf]
      %v2799 = vld [vmem:[%s2790 + $0x20] sm:$0xf]
      %v2800 = vld [vmem:[%s2790 + $0x24] sm:$0xf]
      %v2801 = vld [vmem:[%s2790 + $0x28] sm:$0xf]
      %v2802 = vld [vmem:[%s2790 + $0x2c] sm:$0xf]
      %v2803 = vld [vmem:[%s2790 + $0x30] sm:$0xf]
      %v2804 = vld [vmem:[%s2790 + $0x34] sm:$0xf]
      %v2805 = vld [vmem:[%s2790 + $0x38] sm:$0xf]
      %v2806 = vld [vmem:[%s2790 + $0x3c] sm:$0xf]
      %v2850 = vunpack.c.l.b16 %v2747
      %v2851 = vunpack.c.l.b16 %v2748
      %v2852 = vunpack.c.l.b16 %v2749
      %v2853 = vunpack.c.l.b16 %v2750
      %v2854 = vunpack.c.l.b16 %v2751
      %v2855 = vunpack.c.l.b16 %v2752
      %v2856 = vunpack.c.l.b16 %v2753
      %v2857 = vunpack.c.l.b16 %v2754
      %v2858 = vunpack.c.l.b16 %v2755
      %v2859 = vunpack.c.l.b16 %v2756
      %v2860 = vunpack.c.l.b16 %v2757
      %v2861 = vunpack.c.l.b16 %v2758
      %v2862 = vunpack.c.l.b16 %v2759
      %v2863 = vunpack.c.l.b16 %v2760
      %v2864 = vunpack.c.l.b16 %v2761
      %v2865 = vunpack.c.l.b16 %v2762
      %v2866 = vunpack.c.l.b16 %v2763
      %v2867 = vunpack.c.l.b16 %v2764
      %v2868 = vunpack.c.l.b16 %v2765
      %v2869 = vunpack.c.l.b16 %v2766
      %v2870 = vunpack.c.l.b16 %v2767
      %v2871 = vunpack.c.l.b16 %v2768
      %v2872 = vunpack.c.l.b16 %v2769
      %v2873 = vunpack.c.l.b16 %v2770
      %v2874 = vunpack.c.l.b16 %v2771
      %v2875 = vunpack.c.l.b16 %v2772
      %v2876 = vunpack.c.l.b16 %v2773
      %v2877 = vunpack.c.l.b16 %v2774
      %v2878 = vunpack.c.l.b16 %v2775
      %v2879 = vunpack.c.l.b16 %v2776
      %v2880 = vunpack.c.l.b16 %v2777
      %v2881 = vunpack.c.l.b16 %v2778
      %v2882 = vunpack.c.l.b16 %v2779
      %v2883 = vunpack.c.l.b16 %v2780
      %v2884 = vunpack.c.l.b16 %v2781
      %v2885 = vunpack.c.l.b16 %v2782
      %v2886 = vunpack.c.l.b16 %v2783
      %v2887 = vunpack.c.l.b16 %v2784
      %v2888 = vunpack.c.l.b16 %v2785
      %v2889 = vunpack.c.l.b16 %v2786
      %v2890 = vunpack.c.l.b16 %v2787
      %v2891 = vunpack.c.l.b16 %v2788
      %v2892 = vunpack.c.l.b16 %v2789
      %v2893 = vpack.c.b16 %v2851, %v2850
      %v2894 = vpack.c.b16 %v2853, %v2852
      %v2895 = vpack.c.b16 %v2855, %v2854
      %v2896 = vpack.c.b16 %v2857, %v2856
      %v2897 = vpack.c.b16 %v2859, %v2858
      %v2898 = vpack.c.b16 %v2861, %v2860
      %v2899 = vpack.c.b16 %v2863, %v2862
      %v2900 = vpack.c.b16 %v2865, %v2864
      %v2901 = vpack.c.b16 %v2867, %v2866
      %v2902 = vpack.c.b16 %v2869, %v2868
      %v2903 = vpack.c.b16 %v2871, %v2870
      %v2904 = vpack.c.b16 %v2873, %v2872
      %v2905 = vpack.c.b16 %v2875, %v2874
      %v2906 = vpack.c.b16 %v2877, %v2876
      %v2907 = vpack.c.b16 %v2879, %v2878
      %v2908 = vpack.c.b16 %v2881, %v2880
      %v2909 = vpack.c.b16 %v2883, %v2882
      %v2910 = vpack.c.b16 %v2885, %v2884
      %v2911 = vpack.c.b16 %v2887, %v2886
      %v2912 = vpack.c.b16 %v2889, %v2888
      %v2913 = vpack.c.b16 %v2891, %v2890
      %v2914 = vpack.c.b16 %v2892, %v2892
      %v2916 = vshrl.u32 %v2893, 16
      %v2918 = vrot.slane %v2916, 3
      %v2919 = vshll.u32 %v2893, 16
      %v2921 = vrot.slane %v2919, 4
      %v2922 = vor.u32 %v2918, %v2921
      %v2924 = vshrl.u32 %v2894, 16
      %v2926 = vrot.slane %v2924, 3
      %v2927 = vshll.u32 %v2894, 16
      %v2929 = vrot.slane %v2927, 4
      %v2930 = vor.u32 %v2926, %v2929
      %v2931 = vsel %vm2240, %v2922, %v2930
      %v2933 = vshrl.u32 %v2895, 16
      %v2935 = vrot.slane %v2933, 3
      %v2936 = vshll.u32 %v2895, 16
      %v2938 = vrot.slane %v2936, 4
      %v2939 = vor.u32 %v2935, %v2938
      %v2940 = vsel %vm2240, %v2930, %v2939
      %v2942 = vshrl.u32 %v2896, 16
      %v2944 = vrot.slane %v2942, 3
      %v2945 = vshll.u32 %v2896, 16
      %v2947 = vrot.slane %v2945, 4
      %v2948 = vor.u32 %v2944, %v2947
      %v2949 = vsel %vm2240, %v2939, %v2948
      %v2951 = vshrl.u32 %v2897, 16
      %v2953 = vrot.slane %v2951, 3
      %v2954 = vshll.u32 %v2897, 16
      %v2956 = vrot.slane %v2954, 4
      %v2957 = vor.u32 %v2953, %v2956
      %v2958 = vsel %vm2240, %v2948, %v2957
      %v2960 = vshrl.u32 %v2898, 16
      %v2962 = vrot.slane %v2960, 3
      %v2963 = vshll.u32 %v2898, 16
      %v2965 = vrot.slane %v2963, 4
      %v2966 = vor.u32 %v2962, %v2965
      %v2967 = vsel %vm2240, %v2957, %v2966
      %v2969 = vshrl.u32 %v2899, 16
      %v2971 = vrot.slane %v2969, 3
      %v2972 = vshll.u32 %v2899, 16
      %v2974 = vrot.slane %v2972, 4
      %v2975 = vor.u32 %v2971, %v2974
      %v2976 = vsel %vm2240, %v2966, %v2975
      %v2978 = vshrl.u32 %v2900, 16
      %v2980 = vrot.slane %v2978, 3
      %v2981 = vshll.u32 %v2900, 16
      %v2983 = vrot.slane %v2981, 4
      %v2984 = vor.u32 %v2980, %v2983
      %v2985 = vsel %vm2240, %v2975, %v2984
      %v2987 = vshrl.u32 %v2901, 16
      %v2989 = vrot.slane %v2987, 3
      %v2990 = vshll.u32 %v2901, 16
      %v2992 = vrot.slane %v2990, 4
      %v2993 = vor.u32 %v2989, %v2992
      %v2994 = vsel %vm2240, %v2984, %v2993
      %v2996 = vshrl.u32 %v2902, 16
      %v2998 = vrot.slane %v2996, 3
      %v2999 = vshll.u32 %v2902, 16
      %v3001 = vrot.slane %v2999, 4
      %v3002 = vor.u32 %v2998, %v3001
      %v3003 = vsel %vm2240, %v2993, %v3002
      %v3005 = vshrl.u32 %v2903, 16
      %v3007 = vrot.slane %v3005, 3
      %v3008 = vshll.u32 %v2903, 16
      %v3010 = vrot.slane %v3008, 4
      %v3011 = vor.u32 %v3007, %v3010
      %v3012 = vsel %vm2240, %v3002, %v3011
      %v3014 = vshrl.u32 %v2904, 16
      %v3016 = vrot.slane %v3014, 3
      %v3017 = vshll.u32 %v2904, 16
      %v3019 = vrot.slane %v3017, 4
      %v3020 = vor.u32 %v3016, %v3019
      %v3021 = vsel %vm2240, %v3011, %v3020
      %v3023 = vshrl.u32 %v2905, 16
      %v3025 = vrot.slane %v3023, 3
      %v3026 = vshll.u32 %v2905, 16
      %v3028 = vrot.slane %v3026, 4
      %v3029 = vor.u32 %v3025, %v3028
      %v3030 = vsel %vm2240, %v3020, %v3029
      %v3032 = vshrl.u32 %v2906, 16
      %v3034 = vrot.slane %v3032, 3
      %v3035 = vshll.u32 %v2906, 16
      %v3037 = vrot.slane %v3035, 4
      %v3038 = vor.u32 %v3034, %v3037
      %v3039 = vsel %vm2240, %v3029, %v3038
      %v3041 = vshrl.u32 %v2907, 16
      %v3043 = vrot.slane %v3041, 3
      %v3044 = vshll.u32 %v2907, 16
      %v3046 = vrot.slane %v3044, 4
      %v3047 = vor.u32 %v3043, %v3046
      %v3048 = vsel %vm2240, %v3038, %v3047
      %v3050 = vshrl.u32 %v2908, 16
      %v3052 = vrot.slane %v3050, 3
      %v3053 = vshll.u32 %v2908, 16
      %v3055 = vrot.slane %v3053, 4
      %v3056 = vor.u32 %v3052, %v3055
      %v3057 = vsel %vm2240, %v3047, %v3056
      %v3059 = vshrl.u32 %v2909, 16
      %v3061 = vrot.slane %v3059, 3
      %v3062 = vshll.u32 %v2909, 16
      %v3064 = vrot.slane %v3062, 4
      %v3065 = vor.u32 %v3061, %v3064
      %v3066 = vsel %vm2240, %v3056, %v3065
      %v3068 = vshrl.u32 %v2910, 16
      %v3070 = vrot.slane %v3068, 3
      %v3071 = vshll.u32 %v2910, 16
      %v3073 = vrot.slane %v3071, 4
      %v3074 = vor.u32 %v3070, %v3073
      %v3075 = vsel %vm2240, %v3065, %v3074
      %v3077 = vshrl.u32 %v2911, 16
      %v3079 = vrot.slane %v3077, 3
      %v3080 = vshll.u32 %v2911, 16
      %v3082 = vrot.slane %v3080, 4
      %v3083 = vor.u32 %v3079, %v3082
      %v3084 = vsel %vm2240, %v3074, %v3083
      %v3086 = vshrl.u32 %v2912, 16
      %v3088 = vrot.slane %v3086, 3
      %v3089 = vshll.u32 %v2912, 16
      %v3091 = vrot.slane %v3089, 4
      %v3092 = vor.u32 %v3088, %v3091
      %v3093 = vsel %vm2240, %v3083, %v3092
      %v3095 = vshrl.u32 %v2913, 16
      %v3097 = vrot.slane %v3095, 3
      %v3098 = vshll.u32 %v2913, 16
      %v3100 = vrot.slane %v3098, 4
      %v3101 = vor.u32 %v3097, %v3100
      %v3102 = vsel %vm2240, %v3092, %v3101
      %v3104 = vshrl.u32 %v2914, 16
      %v3106 = vrot.slane %v3104, 3
      %v3107 = vshll.u32 %v2914, 16
      %v3109 = vrot.slane %v3107, 4
      %v3110 = vor.u32 %v3106, %v3109
      %v3111 = vsel %vm2240, %v3101, %v3110
      %v3149 = vunpack.c.l.b16 %v2791
      %v3150 = vunpack.c.l.b16 %v2792
      %v3151 = vunpack.c.l.b16 %v2793
      %v3152 = vunpack.c.l.b16 %v2794
      %v3153 = vunpack.c.l.b16 %v2795
      %v3154 = vunpack.c.l.b16 %v2796
      %v3155 = vunpack.c.l.b16 %v2797
      %v3156 = vunpack.c.l.b16 %v2798
      %v3157 = vunpack.c.l.b16 %v2799
      %v3158 = vunpack.c.l.b16 %v2800
      %v3159 = vunpack.c.l.b16 %v2801
      %v3160 = vunpack.c.l.b16 %v2802
      %v3161 = vunpack.c.l.b16 %v2803
      %v3162 = vunpack.c.l.b16 %v2804
      %v3163 = vunpack.c.l.b16 %v2805
      %v3164 = vunpack.c.l.b16 %v2806
      %v3165 = vpack.c.b16 %v3150, %v3149
      %v3166 = vpack.c.b16 %v3152, %v3151
      %v3167 = vpack.c.b16 %v3154, %v3153
      %v3168 = vpack.c.b16 %v3156, %v3155
      %v3169 = vpack.c.b16 %v3158, %v3157
      %v3170 = vpack.c.b16 %v3160, %v3159
      %v3171 = vpack.c.b16 %v3162, %v3161
      %v3172 = vpack.c.b16 %v3164, %v3163
      %3181 = vmatpush.bf16.msra.mxu0 %v3172
      %3182 = vmatpush.bf16.msra.mxu0 %v3171
      %3183 = vmatpush.bf16.msra.mxu0 %v3170
      %3184 = vmatpush.bf16.msra.mxu0 %v3169
      %3185 = vmatpush.bf16.msra.mxu0 %v3168
      %3186 = vmatpush.bf16.msra.mxu0 %v3167
      %3187 = vmatpush.bf16.msra.mxu0 %v3166
      %3188 = vmatpush.bf16.msra.mxu0 %v3165
      %3189 = vmatmul.bf16.gmra.mxu0 %v2931
      %v3190 = vpop.f32.mrf.mxu0
      %v3191 = vadd.f32 0.0, %v3190
      %v3192 = vpop.f32.mrf.mxu0
      %v3193 = vadd.f32 0.0, %v3192
      %3194 = vmatmul.bf16.gmra.mxu0 %v2940
      %v3195 = vpop.f32.mrf.mxu0
      %v3196 = vadd.f32 0.0, %v3195
      %v3197 = vpop.f32.mrf.mxu0
      %v3198 = vadd.f32 0.0, %v3197
      %3199 = vmatmul.bf16.gmra.mxu0 %v2949
      %v3200 = vpop.f32.mrf.mxu0
      %v3201 = vadd.f32 0.0, %v3200
      %v3202 = vpop.f32.mrf.mxu0
      %v3203 = vadd.f32 0.0, %v3202
      %3204 = vmatmul.bf16.gmra.mxu0 %v2958
      %v3205 = vpop.f32.mrf.mxu0
      %v3206 = vadd.f32 0.0, %v3205
      %v3207 = vpop.f32.mrf.mxu0
      %v3208 = vadd.f32 0.0, %v3207
      %3209 = vmatmul.bf16.gmra.mxu0 %v2967
      %v3210 = vpop.f32.mrf.mxu0
      %v3211 = vadd.f32 0.0, %v3210
      %v3212 = vpop.f32.mrf.mxu0
      %v3213 = vadd.f32 0.0, %v3212
      %3214 = vmatmul.bf16.gmra.mxu0 %v2976
      %v3215 = vpop.f32.mrf.mxu0
      %v3216 = vadd.f32 0.0, %v3215
      %v3217 = vpop.f32.mrf.mxu0
      %v3218 = vadd.f32 0.0, %v3217
      %3219 = vmatmul.bf16.gmra.mxu0 %v2985
      %v3220 = vpop.f32.mrf.mxu0
      %v3221 = vadd.f32 0.0, %v3220
      %v3222 = vpop.f32.mrf.mxu0
      %v3223 = vadd.f32 0.0, %v3222
      %3224 = vmatmul.bf16.gmra.mxu0 %v2994
      %v3225 = vpop.f32.mrf.mxu0
      %v3226 = vadd.f32 0.0, %v3225
      %v3227 = vpop.f32.mrf.mxu0
      %v3228 = vadd.f32 0.0, %v3227
      %3229 = vmatmul.bf16.gmra.mxu0 %v3003
      %v3230 = vpop.f32.mrf.mxu0
      %v3231 = vadd.f32 0.0, %v3230
      %v3232 = vpop.f32.mrf.mxu0
      %v3233 = vadd.f32 0.0, %v3232
      %3234 = vmatmul.bf16.gmra.mxu0 %v3012
      %v3235 = vpop.f32.mrf.mxu0
      %v3236 = vadd.f32 0.0, %v3235
      %v3237 = vpop.f32.mrf.mxu0
      %v3238 = vadd.f32 0.0, %v3237
      %3239 = vmatmul.bf16.gmra.mxu0 %v3021
      %v3240 = vpop.f32.mrf.mxu0
      %v3241 = vadd.f32 0.0, %v3240
      %v3242 = vpop.f32.mrf.mxu0
      %v3243 = vadd.f32 0.0, %v3242
      %3244 = vmatmul.bf16.gmra.mxu0 %v3030
      %v3245 = vpop.f32.mrf.mxu0
      %v3246 = vadd.f32 0.0, %v3245
      %v3247 = vpop.f32.mrf.mxu0
      %v3248 = vadd.f32 0.0, %v3247
      %3249 = vmatmul.bf16.gmra.mxu0 %v3039
      %v3250 = vpop.f32.mrf.mxu0
      %v3251 = vadd.f32 0.0, %v3250
      %v3252 = vpop.f32.mrf.mxu0
      %v3253 = vadd.f32 0.0, %v3252
      %3254 = vmatmul.bf16.gmra.mxu0 %v3048
      %v3255 = vpop.f32.mrf.mxu0
      %v3256 = vadd.f32 0.0, %v3255
      %v3257 = vpop.f32.mrf.mxu0
      %v3258 = vadd.f32 0.0, %v3257
      %3259 = vmatmul.bf16.gmra.mxu0 %v3057
      %v3260 = vpop.f32.mrf.mxu0
      %v3261 = vadd.f32 0.0, %v3260
      %v3262 = vpop.f32.mrf.mxu0
      %v3263 = vadd.f32 0.0, %v3262
      %3264 = vmatmul.bf16.gmra.mxu0 %v3066
      %v3265 = vpop.f32.mrf.mxu0
      %v3266 = vadd.f32 0.0, %v3265
      %v3267 = vpop.f32.mrf.mxu0
      %v3268 = vadd.f32 0.0, %v3267
      %3269 = vmatmul.bf16.gmra.mxu0 %v3075
      %v3270 = vpop.f32.mrf.mxu0
      %v3271 = vadd.f32 0.0, %v3270
      %v3272 = vpop.f32.mrf.mxu0
      %v3273 = vadd.f32 0.0, %v3272
      %3274 = vmatmul.bf16.gmra.mxu0 %v3084
      %v3275 = vpop.f32.mrf.mxu0
      %v3276 = vadd.f32 0.0, %v3275
      %v3277 = vpop.f32.mrf.mxu0
      %v3278 = vadd.f32 0.0, %v3277
      %3279 = vmatmul.bf16.gmra.mxu0 %v3093
      %v3280 = vpop.f32.mrf.mxu0
      %v3281 = vadd.f32 0.0, %v3280
      %v3282 = vpop.f32.mrf.mxu0
      %v3283 = vadd.f32 0.0, %v3282
      %3284 = vmatmul.bf16.gmra.mxu0 %v3102
      %v3285 = vpop.f32.mrf.mxu0
      %v3286 = vadd.f32 0.0, %v3285
      %v3287 = vpop.f32.mrf.mxu0
      %v3288 = vadd.f32 0.0, %v3287
      %3289 = vmatmul.bf16.gmra.mxu0 %v3111
      %v3290 = vpop.f32.mrf.mxu0
      %v3291 = vadd.f32 0.0, %v3290
      %v3292 = vpop.f32.mrf.mxu0
      %v3293 = vadd.f32 0.0, %v3292
      %3294 = vdwg.mxu0
      %v3295 = vadd.f32 %v2705, %v3191
      %v3296 = vadd.f32 %v2706, %v3193
      %v3297 = vadd.f32 %v2707, %v3196
      %v3298 = vadd.f32 %v2708, %v3198
      %v3299 = vadd.f32 %v2709, %v3201
      %v3300 = vadd.f32 %v2710, %v3203
      %v3301 = vadd.f32 %v2711, %v3206
      %v3302 = vadd.f32 %v2712, %v3208
      %v3303 = vadd.f32 %v2713, %v3211
      %v3304 = vadd.f32 %v2714, %v3213
      %v3305 = vadd.f32 %v2715, %v3216
      %v3306 = vadd.f32 %v2716, %v3218
      %v3307 = vadd.f32 %v2717, %v3221
      %v3308 = vadd.f32 %v2718, %v3223
      %v3309 = vadd.f32 %v2719, %v3226
      %v3310 = vadd.f32 %v2720, %v3228
      %v3311 = vadd.f32 %v2721, %v3231
      %v3312 = vadd.f32 %v2722, %v3233
      %v3313 = vadd.f32 %v2723, %v3236
      %v3314 = vadd.f32 %v2724, %v3238
      %v3315 = vadd.f32 %v2725, %v3241
      %v3316 = vadd.f32 %v2726, %v3243
      %v3317 = vadd.f32 %v2727, %v3246
      %v3318 = vadd.f32 %v2728, %v3248
      %v3319 = vadd.f32 %v2729, %v3251
      %v3320 = vadd.f32 %v2730, %v3253
      %v3321 = vadd.f32 %v2731, %v3256
      %v3322 = vadd.f32 %v2732, %v3258
      %v3323 = vadd.f32 %v2733, %v3261
      %v3324 = vadd.f32 %v2734, %v3263
      %v3325 = vadd.f32 %v2735, %v3266
      %v3326 = vadd.f32 %v2736, %v3268
      %v3327 = vadd.f32 %v2737, %v3271
      %v3328 = vadd.f32 %v2738, %v3273
      %v3329 = vadd.f32 %v2739, %v3276
      %v3330 = vadd.f32 %v2740, %v3278
      %v3331 = vadd.f32 %v2741, %v3281
      %v3332 = vadd.f32 %v2742, %v3283
      %v3333 = vadd.f32 %v2743, %v3286
      %v3334 = vadd.f32 %v2744, %v3288
      %v3335 = vadd.f32 %v2745, %v3291
      %v3336 = vadd.f32 %v2746, %v3293
      %3337 = vst [vmem:[#allocation3] sm:$0xff] %v3295
      %3338 = vst [vmem:[#allocation3 + $0x8] sm:$0xff] %v3296
      %3339 = vst [vmem:[#allocation3 + $0x10] sm:$0xff] %v3297
      %3340 = vst [vmem:[#allocation3 + $0x18] sm:$0xff] %v3298
      %3341 = vst [vmem:[#allocation3 + $0x20] sm:$0xff] %v3299
      %3342 = vst [vmem:[#allocation3 + $0x28] sm:$0xff] %v3300
      %3343 = vst [vmem:[#allocation3 + $0x30] sm:$0xff] %v3301
      %3344 = vst [vmem:[#allocation3 + $0x38] sm:$0xff] %v3302
      %3345 = vst [vmem:[#allocation3 + $0x40] sm:$0xff] %v3303
      %3346 = vst [vmem:[#allocation3 + $0x48] sm:$0xff] %v3304
      %3347 = vst [vmem:[#allocation3 + $0x50] sm:$0xff] %v3305
      %3348 = vst [vmem:[#allocation3 + $0x58] sm:$0xff] %v3306
      %3349 = vst [vmem:[#allocation3 + $0x60] sm:$0xff] %v3307
      %3350 = vst [vmem:[#allocation3 + $0x68] sm:$0xff] %v3308
      %3351 = vst [vmem:[#allocation3 + $0x70] sm:$0xff] %v3309
      %3352 = vst [vmem:[#allocation3 + $0x78] sm:$0xff] %v3310
      %3353 = vst [vmem:[#allocation3 + $0x80] sm:$0xff] %v3311
      %3354 = vst [vmem:[#allocation3 + $0x88] sm:$0xff] %v3312
      %3355 = vst [vmem:[#allocation3 + $0x90] sm:$0xff] %v3313
      %3356 = vst [vmem:[#allocation3 + $0x98] sm:$0xff] %v3314
      %3357 = vst [vmem:[#allocation3 + $0xa0] sm:$0xff] %v3315
      %3358 = vst [vmem:[#allocation3 + $0xa8] sm:$0xff] %v3316
      %3359 = vst [vmem:[#allocation3 + $0xb0] sm:$0xff] %v3317
      %3360 = vst [vmem:[#allocation3 + $0xb8] sm:$0xff] %v3318
      %3361 = vst [vmem:[#allocation3 + $0xc0] sm:$0xff] %v3319
      %3362 = vst [vmem:[#allocation3 + $0xc8] sm:$0xff] %v3320
      %3363 = vst [vmem:[#allocation3 + $0xd0] sm:$0xff] %v3321
      %3364 = vst [vmem:[#allocation3 + $0xd8] sm:$0xff] %v3322
      %3365 = vst [vmem:[#allocation3 + $0xe0] sm:$0xff] %v3323
      %3366 = vst [vmem:[#allocation3 + $0xe8] sm:$0xff] %v3324
      %3367 = vst [vmem:[#allocation3 + $0xf0] sm:$0xff] %v3325
      %3368 = vst [vmem:[#allocation3 + $0xf8] sm:$0xff] %v3326
      %3369 = vst [vmem:[#allocation3 + $0x100] sm:$0xff] %v3327
      %3370 = vst [vmem:[#allocation3 + $0x108] sm:$0xff] %v3328
      %3371 = vst [vmem:[#allocation3 + $0x110] sm:$0xff] %v3329
      %3372 = vst [vmem:[#allocation3 + $0x118] sm:$0xff] %v3330
      %3373 = vst [vmem:[#allocation3 + $0x120] sm:$0xff] %v3331
      %3374 = vst [vmem:[#allocation3 + $0x128] sm:$0xff] %v3332
      %3375 = vst [vmem:[#allocation3 + $0x130] sm:$0xff] %v3333
      %3376 = vst [vmem:[#allocation3 + $0x138] sm:$0xff] %v3334
      %3377 = vst [vmem:[#allocation3 + $0x140] sm:$0xff] %v3335
      %3378 = vst [vmem:[#allocation3 + $0x148] sm:$0xff] %v3336
      %v3379 = vld [vmem:[#allocation3] sm:$0xff]
      %v3380 = vld [vmem:[#allocation3 + $0x8] sm:$0xff]
      %v3381 = vld [vmem:[#allocation3 + $0x10] sm:$0xff]
      %v3382 = vld [vmem:[#allocation3 + $0x18] sm:$0xff]
      %v3383 = vld [vmem:[#allocation3 + $0x20] sm:$0xff]
      %v3384 = vld [vmem:[#allocation3 + $0x28] sm:$0xff]
      %v3385 = vld [vmem:[#allocation3 + $0x30] sm:$0xff]
      %v3386 = vld [vmem:[#allocation3 + $0x38] sm:$0xff]
      %v3387 = vld [vmem:[#allocation3 + $0x40] sm:$0xff]
      %v3388 = vld [vmem:[#allocation3 + $0x48] sm:$0xff]
      %v3389 = vld [vmem:[#allocation3 + $0x50] sm:$0xff]
      %v3390 = vld [vmem:[#allocation3 + $0x58] sm:$0xff]
      %v3391 = vld [vmem:[#allocation3 + $0x60] sm:$0xff]
      %v3392 = vld [vmem:[#allocation3 + $0x68] sm:$0xff]
      %v3393 = vld [vmem:[#allocation3 + $0x70] sm:$0xff]
      %v3394 = vld [vmem:[#allocation3 + $0x78] sm:$0xff]
      %v3395 = vld [vmem:[#allocation3 + $0x80] sm:$0xff]
      %v3396 = vld [vmem:[#allocation3 + $0x88] sm:$0xff]
      %v3397 = vld [vmem:[#allocation3 + $0x90] sm:$0xff]
      %v3398 = vld [vmem:[#allocation3 + $0x98] sm:$0xff]
      %v3399 = vld [vmem:[#allocation3 + $0xa0] sm:$0xff]
      %v3400 = vld [vmem:[#allocation3 + $0xa8] sm:$0xff]
      %v3401 = vld [vmem:[#allocation3 + $0xb0] sm:$0xff]
      %v3402 = vld [vmem:[#allocation3 + $0xb8] sm:$0xff]
      %v3403 = vld [vmem:[#allocation3 + $0xc0] sm:$0xff]
      %v3404 = vld [vmem:[#allocation3 + $0xc8] sm:$0xff]
      %v3405 = vld [vmem:[#allocation3 + $0xd0] sm:$0xff]
      %v3406 = vld [vmem:[#allocation3 + $0xd8] sm:$0xff]
      %v3407 = vld [vmem:[#allocation3 + $0xe0] sm:$0xff]
      %v3408 = vld [vmem:[#allocation3 + $0xe8] sm:$0xff]
      %v3409 = vld [vmem:[#allocation3 + $0xf0] sm:$0xff]
      %v3410 = vld [vmem:[#allocation3 + $0xf8] sm:$0xff]
      %v3411 = vld [vmem:[#allocation3 + $0x100] sm:$0xff]
      %v3412 = vld [vmem:[#allocation3 + $0x108] sm:$0xff]
      %v3413 = vld [vmem:[#allocation3 + $0x110] sm:$0xff]
      %v3414 = vld [vmem:[#allocation3 + $0x118] sm:$0xff]
      %v3415 = vld [vmem:[#allocation3 + $0x120] sm:$0xff]
      %v3416 = vld [vmem:[#allocation3 + $0x128] sm:$0xff]
      %v3417 = vld [vmem:[#allocation3 + $0x130] sm:$0xff]
      %v3418 = vld [vmem:[#allocation3 + $0x138] sm:$0xff]
      %v3419 = vld [vmem:[#allocation3 + $0x140] sm:$0xff]
      %v3420 = vld [vmem:[#allocation3 + $0x148] sm:$0xff]
      %v3421 = vld [vmem:[#allocation2 + $0x10] sm:$0xf]
      %v3422 = vld [vmem:[#allocation2 + $0x14] sm:$0xf]
      %v3423 = vld [vmem:[#allocation2 + $0x18] sm:$0xf]
      %v3424 = vld [vmem:[#allocation2 + $0x1c] sm:$0xf]
      %v3425 = vld [vmem:[#allocation2 + $0x20] sm:$0xf]
      %v3426 = vld [vmem:[#allocation2 + $0x24] sm:$0xf]
      %v3427 = vld [vmem:[#allocation2 + $0x28] sm:$0xf]
      %v3428 = vld [vmem:[#allocation2 + $0x2c] sm:$0xf]
      %v3429 = vld [vmem:[#allocation2 + $0x30] sm:$0xf]
      %v3430 = vld [vmem:[#allocation2 + $0x34] sm:$0xf]
      %v3431 = vld [vmem:[#allocation2 + $0x38] sm:$0xf]
      %v3432 = vld [vmem:[#allocation2 + $0x3c] sm:$0xf]
      %v3433 = vld [vmem:[#allocation2 + $0x40] sm:$0xf]
      %v3434 = vld [vmem:[#allocation2 + $0x44] sm:$0xf]
      %v3435 = vld [vmem:[#allocation2 + $0x48] sm:$0xf]
      %v3436 = vld [vmem:[#allocation2 + $0x4c] sm:$0xf]
      %v3437 = vld [vmem:[#allocation2 + $0x50] sm:$0xf]
      %v3438 = vld [vmem:[#allocation2 + $0x54] sm:$0xf]
      %v3439 = vld [vmem:[#allocation2 + $0x58] sm:$0xf]
      %v3440 = vld [vmem:[#allocation2 + $0x5c] sm:$0xf]
      %v3441 = vld [vmem:[#allocation2 + $0x60] sm:$0xf]
      %v3442 = vld [vmem:[#allocation2 + $0x64] sm:$0xf]
      %v3443 = vld [vmem:[#allocation2 + $0x68] sm:$0xf]
      %v3444 = vld [vmem:[#allocation2 + $0x6c] sm:$0xf]
      %v3445 = vld [vmem:[#allocation2 + $0x70] sm:$0xf]
      %v3446 = vld [vmem:[#allocation2 + $0x74] sm:$0xf]
      %v3447 = vld [vmem:[#allocation2 + $0x78] sm:$0xf]
      %v3448 = vld [vmem:[#allocation2 + $0x7c] sm:$0xf]
      %v3449 = vld [vmem:[#allocation2 + $0x80] sm:$0xf]
      %v3450 = vld [vmem:[#allocation2 + $0x84] sm:$0xf]
      %v3451 = vld [vmem:[#allocation2 + $0x88] sm:$0xf]
      %v3452 = vld [vmem:[#allocation2 + $0x8c] sm:$0xf]
      %v3453 = vld [vmem:[#allocation2 + $0x90] sm:$0xf]
      %v3454 = vld [vmem:[#allocation2 + $0x94] sm:$0xf]
      %v3455 = vld [vmem:[#allocation2 + $0x98] sm:$0xf]
      %v3456 = vld [vmem:[#allocation2 + $0x9c] sm:$0xf]
      %v3457 = vld [vmem:[#allocation2 + $0xa0] sm:$0xf]
      %v3458 = vld [vmem:[#allocation2 + $0xa4] sm:$0xf]
      %v3459 = vld [vmem:[#allocation2 + $0xa8] sm:$0xf]
      %v3460 = vld [vmem:[#allocation2 + $0xac] sm:$0xf]
      %v3461 = vld [vmem:[#allocation2 + $0xb0] sm:$0xf]
      %v3462 = vld [vmem:[#allocation2 + $0xb4] sm:$0xf]
      %s3463 = scalar_lea.vmem %s3, 256
      %v3464 = vld [vmem:[%s3463] sm:$0xf]
      %v3465 = vld [vmem:[%s3463 + $0x4] sm:$0xf]
      %v3466 = vld [vmem:[%s3463 + $0x8] sm:$0xf]
      %v3467 = vld [vmem:[%s3463 + $0xc] sm:$0xf]
      %v3468 = vld [vmem:[%s3463 + $0x10] sm:$0xf]
      %v3469 = vld [vmem:[%s3463 + $0x14] sm:$0xf]
      %v3470 = vld [vmem:[%s3463 + $0x18] sm:$0xf]
      %v3471 = vld [vmem:[%s3463 + $0x1c] sm:$0xf]
      %v3472 = vld [vmem:[%s3463 + $0x20] sm:$0xf]
      %v3473 = vld [vmem:[%s3463 + $0x24] sm:$0xf]
      %v3474 = vld [vmem:[%s3463 + $0x28] sm:$0xf]
      %v3475 = vld [vmem:[%s3463 + $0x2c] sm:$0xf]
      %v3476 = vld [vmem:[%s3463 + $0x30] sm:$0xf]
      %v3477 = vld [vmem:[%s3463 + $0x34] sm:$0xf]
      %v3478 = vld [vmem:[%s3463 + $0x38] sm:$0xf]
      %v3479 = vld [vmem:[%s3463 + $0x3c] sm:$0xf]
      %v3522 = vunpack.c.l.b16 %v3421
      %v3523 = vunpack.c.l.b16 %v3422
      %v3524 = vunpack.c.l.b16 %v3423
      %v3525 = vunpack.c.l.b16 %v3424
      %v3526 = vunpack.c.l.b16 %v3425
      %v3527 = vunpack.c.l.b16 %v3426
      %v3528 = vunpack.c.l.b16 %v3427
      %v3529 = vunpack.c.l.b16 %v3428
      %v3530 = vunpack.c.l.b16 %v3429
      %v3531 = vunpack.c.l.b16 %v3430
      %v3532 = vunpack.c.l.b16 %v3431
      %v3533 = vunpack.c.l.b16 %v3432
      %v3534 = vunpack.c.l.b16 %v3433
      %v3535 = vunpack.c.l.b16 %v3434
      %v3536 = vunpack.c.l.b16 %v3435
      %v3537 = vunpack.c.l.b16 %v3436
      %v3538 = vunpack.c.l.b16 %v3437
      %v3539 = vunpack.c.l.b16 %v3438
      %v3540 = vunpack.c.l.b16 %v3439
      %v3541 = vunpack.c.l.b16 %v3440
      %v3542 = vunpack.c.l.b16 %v3441
      %v3543 = vunpack.c.l.b16 %v3442
      %v3544 = vunpack.c.l.b16 %v3443
      %v3545 = vunpack.c.l.b16 %v3444
      %v3546 = vunpack.c.l.b16 %v3445
      %v3547 = vunpack.c.l.b16 %v3446
      %v3548 = vunpack.c.l.b16 %v3447
      %v3549 = vunpack.c.l.b16 %v3448
      %v3550 = vunpack.c.l.b16 %v3449
      %v3551 = vunpack.c.l.b16 %v3450
      %v3552 = vunpack.c.l.b16 %v3451
      %v3553 = vunpack.c.l.b16 %v3452
      %v3554 = vunpack.c.l.b16 %v3453
      %v3555 = vunpack.c.l.b16 %v3454
      %v3556 = vunpack.c.l.b16 %v3455
      %v3557 = vunpack.c.l.b16 %v3456
      %v3558 = vunpack.c.l.b16 %v3457
      %v3559 = vunpack.c.l.b16 %v3458
      %v3560 = vunpack.c.l.b16 %v3459
      %v3561 = vunpack.c.l.b16 %v3460
      %v3562 = vunpack.c.l.b16 %v3461
      %v3563 = vunpack.c.l.b16 %v3462
      %v3564 = vpack.c.b16 %v3523, %v3522
      %v3565 = vpack.c.b16 %v3525, %v3524
      %v3566 = vpack.c.b16 %v3527, %v3526
      %v3567 = vpack.c.b16 %v3529, %v3528
      %v3568 = vpack.c.b16 %v3531, %v3530
      %v3569 = vpack.c.b16 %v3533, %v3532
      %v3570 = vpack.c.b16 %v3535, %v3534
      %v3571 = vpack.c.b16 %v3537, %v3536
      %v3572 = vpack.c.b16 %v3539, %v3538
      %v3573 = vpack.c.b16 %v3541, %v3540
      %v3574 = vpack.c.b16 %v3543, %v3542
      %v3575 = vpack.c.b16 %v3545, %v3544
      %v3576 = vpack.c.b16 %v3547, %v3546
      %v3577 = vpack.c.b16 %v3549, %v3548
      %v3578 = vpack.c.b16 %v3551, %v3550
      %v3579 = vpack.c.b16 %v3553, %v3552
      %v3580 = vpack.c.b16 %v3555, %v3554
      %v3581 = vpack.c.b16 %v3557, %v3556
      %v3582 = vpack.c.b16 %v3559, %v3558
      %v3583 = vpack.c.b16 %v3561, %v3560
      %v3584 = vpack.c.b16 %v3563, %v3562
      %v3622 = vunpack.c.l.b16 %v3464
      %v3623 = vunpack.c.l.b16 %v3465
      %v3624 = vunpack.c.l.b16 %v3466
      %v3625 = vunpack.c.l.b16 %v3467
      %v3626 = vunpack.c.l.b16 %v3468
      %v3627 = vunpack.c.l.b16 %v3469
      %v3628 = vunpack.c.l.b16 %v3470
      %v3629 = vunpack.c.l.b16 %v3471
      %v3630 = vunpack.c.l.b16 %v3472
      %v3631 = vunpack.c.l.b16 %v3473
      %v3632 = vunpack.c.l.b16 %v3474
      %v3633 = vunpack.c.l.b16 %v3475
      %v3634 = vunpack.c.l.b16 %v3476
      %v3635 = vunpack.c.l.b16 %v3477
      %v3636 = vunpack.c.l.b16 %v3478
      %v3637 = vunpack.c.l.b16 %v3479
      %v3638 = vpack.c.b16 %v3623, %v3622
      %v3639 = vpack.c.b16 %v3625, %v3624
      %v3640 = vpack.c.b16 %v3627, %v3626
      %v3641 = vpack.c.b16 %v3629, %v3628
      %v3642 = vpack.c.b16 %v3631, %v3630
      %v3643 = vpack.c.b16 %v3633, %v3632
      %v3644 = vpack.c.b16 %v3635, %v3634
      %v3645 = vpack.c.b16 %v3637, %v3636
      %3654 = vmatpush.bf16.msra.mxu0 %v3645
      %3655 = vmatpush.bf16.msra.mxu0 %v3644
      %3656 = vmatpush.bf16.msra.mxu0 %v3643
      %3657 = vmatpush.bf16.msra.mxu0 %v3642
      %3658 = vmatpush.bf16.msra.mxu0 %v3641
      %3659 = vmatpush.bf16.msra.mxu0 %v3640
      %3660 = vmatpush.bf16.msra.mxu0 %v3639
      %3661 = vmatpush.bf16.msra.mxu0 %v3638
      %3662 = vmatmul.bf16.gmra.mxu0 %v3564
      %v3663 = vpop.f32.mrf.mxu0
      %v3664 = vadd.f32 0.0, %v3663
      %v3665 = vpop.f32.mrf.mxu0
      %v3666 = vadd.f32 0.0, %v3665
      %3667 = vmatmul.bf16.gmra.mxu0 %v3565
      %v3668 = vpop.f32.mrf.mxu0
      %v3669 = vadd.f32 0.0, %v3668
      %v3670 = vpop.f32.mrf.mxu0
      %v3671 = vadd.f32 0.0, %v3670
      %3672 = vmatmul.bf16.gmra.mxu0 %v3566
      %v3673 = vpop.f32.mrf.mxu0
      %v3674 = vadd.f32 0.0, %v3673
      %v3675 = vpop.f32.mrf.mxu0
      %v3676 = vadd.f32 0.0, %v3675
      %3677 = vmatmul.bf16.gmra.mxu0 %v3567
      %v3678 = vpop.f32.mrf.mxu0
      %v3679 = vadd.f32 0.0, %v3678
      %v3680 = vpop.f32.mrf.mxu0
      %v3681 = vadd.f32 0.0, %v3680
      %3682 = vmatmul.bf16.gmra.mxu0 %v3568
      %v3683 = vpop.f32.mrf.mxu0
      %v3684 = vadd.f32 0.0, %v3683
      %v3685 = vpop.f32.mrf.mxu0
      %v3686 = vadd.f32 0.0, %v3685
      %3687 = vmatmul.bf16.gmra.mxu0 %v3569
      %v3688 = vpop.f32.mrf.mxu0
      %v3689 = vadd.f32 0.0, %v3688
      %v3690 = vpop.f32.mrf.mxu0
      %v3691 = vadd.f32 0.0, %v3690
      %3692 = vmatmul.bf16.gmra.mxu0 %v3570
      %v3693 = vpop.f32.mrf.mxu0
      %v3694 = vadd.f32 0.0, %v3693
      %v3695 = vpop.f32.mrf.mxu0
      %v3696 = vadd.f32 0.0, %v3695
      %3697 = vmatmul.bf16.gmra.mxu0 %v3571
      %v3698 = vpop.f32.mrf.mxu0
      %v3699 = vadd.f32 0.0, %v3698
      %v3700 = vpop.f32.mrf.mxu0
      %v3701 = vadd.f32 0.0, %v3700
      %3702 = vmatmul.bf16.gmra.mxu0 %v3572
      %v3703 = vpop.f32.mrf.mxu0
      %v3704 = vadd.f32 0.0, %v3703
      %v3705 = vpop.f32.mrf.mxu0
      %v3706 = vadd.f32 0.0, %v3705
      %3707 = vmatmul.bf16.gmra.mxu0 %v3573
      %v3708 = vpop.f32.mrf.mxu0
      %v3709 = vadd.f32 0.0, %v3708
      %v3710 = vpop.f32.mrf.mxu0
      %v3711 = vadd.f32 0.0, %v3710
      %3712 = vmatmul.bf16.gmra.mxu0 %v3574
      %v3713 = vpop.f32.mrf.mxu0
      %v3714 = vadd.f32 0.0, %v3713
      %v3715 = vpop.f32.mrf.mxu0
      %v3716 = vadd.f32 0.0, %v3715
      %3717 = vmatmul.bf16.gmra.mxu0 %v3575
      %v3718 = vpop.f32.mrf.mxu0
      %v3719 = vadd.f32 0.0, %v3718
      %v3720 = vpop.f32.mrf.mxu0
      %v3721 = vadd.f32 0.0, %v3720
      %3722 = vmatmul.bf16.gmra.mxu0 %v3576
      %v3723 = vpop.f32.mrf.mxu0
      %v3724 = vadd.f32 0.0, %v3723
      %v3725 = vpop.f32.mrf.mxu0
      %v3726 = vadd.f32 0.0, %v3725
      %3727 = vmatmul.bf16.gmra.mxu0 %v3577
      %v3728 = vpop.f32.mrf.mxu0
      %v3729 = vadd.f32 0.0, %v3728
      %v3730 = vpop.f32.mrf.mxu0
      %v3731 = vadd.f32 0.0, %v3730
      %3732 = vmatmul.bf16.gmra.mxu0 %v3578
      %v3733 = vpop.f32.mrf.mxu0
      %v3734 = vadd.f32 0.0, %v3733
      %v3735 = vpop.f32.mrf.mxu0
      %v3736 = vadd.f32 0.0, %v3735
      %3737 = vmatmul.bf16.gmra.mxu0 %v3579
      %v3738 = vpop.f32.mrf.mxu0
      %v3739 = vadd.f32 0.0, %v3738
      %v3740 = vpop.f32.mrf.mxu0
      %v3741 = vadd.f32 0.0, %v3740
      %3742 = vmatmul.bf16.gmra.mxu0 %v3580
      %v3743 = vpop.f32.mrf.mxu0
      %v3744 = vadd.f32 0.0, %v3743
      %v3745 = vpop.f32.mrf.mxu0
      %v3746 = vadd.f32 0.0, %v3745
      %3747 = vmatmul.bf16.gmra.mxu0 %v3581
      %v3748 = vpop.f32.mrf.mxu0
      %v3749 = vadd.f32 0.0, %v3748
      %v3750 = vpop.f32.mrf.mxu0
      %v3751 = vadd.f32 0.0, %v3750
      %3752 = vmatmul.bf16.gmra.mxu0 %v3582
      %v3753 = vpop.f32.mrf.mxu0
      %v3754 = vadd.f32 0.0, %v3753
      %v3755 = vpop.f32.mrf.mxu0
      %v3756 = vadd.f32 0.0, %v3755
      %3757 = vmatmul.bf16.gmra.mxu0 %v3583
      %v3758 = vpop.f32.mrf.mxu0
      %v3759 = vadd.f32 0.0, %v3758
      %v3760 = vpop.f32.mrf.mxu0
      %v3761 = vadd.f32 0.0, %v3760
      %3762 = vmatmul.bf16.gmra.mxu0 %v3584
      %v3763 = vpop.f32.mrf.mxu0
      %v3764 = vadd.f32 0.0, %v3763
      %v3765 = vpop.f32.mrf.mxu0
      %v3766 = vadd.f32 0.0, %v3765
      %3767 = vdwg.mxu0
      %v3768 = vadd.f32 %v3379, %v3664
      %v3769 = vadd.f32 %v3380, %v3666
      %v3770 = vadd.f32 %v3381, %v3669
      %v3771 = vadd.f32 %v3382, %v3671
      %v3772 = vadd.f32 %v3383, %v3674
      %v3773 = vadd.f32 %v3384, %v3676
      %v3774 = vadd.f32 %v3385, %v3679
      %v3775 = vadd.f32 %v3386, %v3681
      %v3776 = vadd.f32 %v3387, %v3684
      %v3777 = vadd.f32 %v3388, %v3686
      %v3778 = vadd.f32 %v3389, %v3689
      %v3779 = vadd.f32 %v3390, %v3691
      %v3780 = vadd.f32 %v3391, %v3694
      %v3781 = vadd.f32 %v3392, %v3696
      %v3782 = vadd.f32 %v3393, %v3699
      %v3783 = vadd.f32 %v3394, %v3701
      %v3784 = vadd.f32 %v3395, %v3704
      %v3785 = vadd.f32 %v3396, %v3706
      %v3786 = vadd.f32 %v3397, %v3709
      %v3787 = vadd.f32 %v3398, %v3711
      %v3788 = vadd.f32 %v3399, %v3714
      %v3789 = vadd.f32 %v3400, %v3716
      %v3790 = vadd.f32 %v3401, %v3719
      %v3791 = vadd.f32 %v3402, %v3721
      %v3792 = vadd.f32 %v3403, %v3724
      %v3793 = vadd.f32 %v3404, %v3726
      %v3794 = vadd.f32 %v3405, %v3729
      %v3795 = vadd.f32 %v3406, %v3731
      %v3796 = vadd.f32 %v3407, %v3734
      %v3797 = vadd.f32 %v3408, %v3736
      %v3798 = vadd.f32 %v3409, %v3739
      %v3799 = vadd.f32 %v3410, %v3741
      %v3800 = vadd.f32 %v3411, %v3744
      %v3801 = vadd.f32 %v3412, %v3746
      %v3802 = vadd.f32 %v3413, %v3749
      %v3803 = vadd.f32 %v3414, %v3751
      %v3804 = vadd.f32 %v3415, %v3754
      %v3805 = vadd.f32 %v3416, %v3756
      %v3806 = vadd.f32 %v3417, %v3759
      %v3807 = vadd.f32 %v3418, %v3761
      %v3808 = vadd.f32 %v3419, %v3764
      %v3809 = vadd.f32 %v3420, %v3766
      %3810 = vst [vmem:[#allocation3] sm:$0xff] %v3768
      %3811 = vst [vmem:[#allocation3 + $0x8] sm:$0xff] %v3769
      %3812 = vst [vmem:[#allocation3 + $0x10] sm:$0xff] %v3770
      %3813 = vst [vmem:[#allocation3 + $0x18] sm:$0xff] %v3771
      %3814 = vst [vmem:[#allocation3 + $0x20] sm:$0xff] %v3772
      %3815 = vst [vmem:[#allocation3 + $0x28] sm:$0xff] %v3773
      %3816 = vst [vmem:[#allocation3 + $0x30] sm:$0xff] %v3774
      %3817 = vst [vmem:[#allocation3 + $0x38] sm:$0xff] %v3775
      %3818 = vst [vmem:[#allocation3 + $0x40] sm:$0xff] %v3776
      %3819 = vst [vmem:[#allocation3 + $0x48] sm:$0xff] %v3777
      %3820 = vst [vmem:[#allocation3 + $0x50] sm:$0xff] %v3778
      %3821 = vst [vmem:[#allocation3 + $0x58] sm:$0xff] %v3779
      %3822 = vst [vmem:[#allocation3 + $0x60] sm:$0xff] %v3780
      %3823 = vst [vmem:[#allocation3 + $0x68] sm:$0xff] %v3781
      %3824 = vst [vmem:[#allocation3 + $0x70] sm:$0xff] %v3782
      %3825 = vst [vmem:[#allocation3 + $0x78] sm:$0xff] %v3783
      %3826 = vst [vmem:[#allocation3 + $0x80] sm:$0xff] %v3784
      %3827 = vst [vmem:[#allocation3 + $0x88] sm:$0xff] %v3785
      %3828 = vst [vmem:[#allocation3 + $0x90] sm:$0xff] %v3786
      %3829 = vst [vmem:[#allocation3 + $0x98] sm:$0xff] %v3787
      %3830 = vst [vmem:[#allocation3 + $0xa0] sm:$0xff] %v3788
      %3831 = vst [vmem:[#allocation3 + $0xa8] sm:$0xff] %v3789
      %3832 = vst [vmem:[#allocation3 + $0xb0] sm:$0xff] %v3790
      %3833 = vst [vmem:[#allocation3 + $0xb8] sm:$0xff] %v3791
      %3834 = vst [vmem:[#allocation3 + $0xc0] sm:$0xff] %v3792
      %3835 = vst [vmem:[#allocation3 + $0xc8] sm:$0xff] %v3793
      %3836 = vst [vmem:[#allocation3 + $0xd0] sm:$0xff] %v3794
      %3837 = vst [vmem:[#allocation3 + $0xd8] sm:$0xff] %v3795
      %3838 = vst [vmem:[#allocation3 + $0xe0] sm:$0xff] %v3796
      %3839 = vst [vmem:[#allocation3 + $0xe8] sm:$0xff] %v3797
      %3840 = vst [vmem:[#allocation3 + $0xf0] sm:$0xff] %v3798
      %3841 = vst [vmem:[#allocation3 + $0xf8] sm:$0xff] %v3799
      %3842 = vst [vmem:[#allocation3 + $0x100] sm:$0xff] %v3800
      %3843 = vst [vmem:[#allocation3 + $0x108] sm:$0xff] %v3801
      %3844 = vst [vmem:[#allocation3 + $0x110] sm:$0xff] %v3802
      %3845 = vst [vmem:[#allocation3 + $0x118] sm:$0xff] %v3803
      %3846 = vst [vmem:[#allocation3 + $0x120] sm:$0xff] %v3804
      %3847 = vst [vmem:[#allocation3 + $0x128] sm:$0xff] %v3805
      %3848 = vst [vmem:[#allocation3 + $0x130] sm:$0xff] %v3806
      %3849 = vst [vmem:[#allocation3 + $0x138] sm:$0xff] %v3807
      %3850 = vst [vmem:[#allocation3 + $0x140] sm:$0xff] %v3808
      %3851 = vst [vmem:[#allocation3 + $0x148] sm:$0xff] %v3809
      %v3852 = vld [vmem:[#allocation3] sm:$0xff]
      %v3853 = vld [vmem:[#allocation3 + $0x8] sm:$0xff]
      %v3854 = vld [vmem:[#allocation3 + $0x10] sm:$0xff]
      %v3855 = vld [vmem:[#allocation3 + $0x18] sm:$0xff]
      %v3856 = vld [vmem:[#allocation3 + $0x20] sm:$0xff]
      %v3857 = vld [vmem:[#allocation3 + $0x28] sm:$0xff]
      %v3858 = vld [vmem:[#allocation3 + $0x30] sm:$0xff]
      %v3859 = vld [vmem:[#allocation3 + $0x38] sm:$0xff]
      %v3860 = vld [vmem:[#allocation3 + $0x40] sm:$0xff]
      %v3861 = vld [vmem:[#allocation3 + $0x48] sm:$0xff]
      %v3862 = vld [vmem:[#allocation3 + $0x50] sm:$0xff]
      %v3863 = vld [vmem:[#allocation3 + $0x58] sm:$0xff]
      %v3864 = vld [vmem:[#allocation3 + $0x60] sm:$0xff]
      %v3865 = vld [vmem:[#allocation3 + $0x68] sm:$0xff]
      %v3866 = vld [vmem:[#allocation3 + $0x70] sm:$0xff]
      %v3867 = vld [vmem:[#allocation3 + $0x78] sm:$0xff]
      %v3868 = vld [vmem:[#allocation3 + $0x80] sm:$0xff]
      %v3869 = vld [vmem:[#allocation3 + $0x88] sm:$0xff]
      %v3870 = vld [vmem:[#allocation3 + $0x90] sm:$0xff]
      %v3871 = vld [vmem:[#allocation3 + $0x98] sm:$0xff]
      %v3872 = vld [vmem:[#allocation3 + $0xa0] sm:$0xff]
      %v3873 = vld [vmem:[#allocation3 + $0xa8] sm:$0xff]
      %v3874 = vld [vmem:[#allocation3 + $0xb0] sm:$0xff]
      %v3875 = vld [vmem:[#allocation3 + $0xb8] sm:$0xff]
      %v3876 = vld [vmem:[#allocation3 + $0xc0] sm:$0xff]
      %v3877 = vld [vmem:[#allocation3 + $0xc8] sm:$0xff]
      %v3878 = vld [vmem:[#allocation3 + $0xd0] sm:$0xff]
      %v3879 = vld [vmem:[#allocation3 + $0xd8] sm:$0xff]
      %v3880 = vld [vmem:[#allocation3 + $0xe0] sm:$0xff]
      %v3881 = vld [vmem:[#allocation3 + $0xe8] sm:$0xff]
      %v3882 = vld [vmem:[#allocation3 + $0xf0] sm:$0xff]
      %v3883 = vld [vmem:[#allocation3 + $0xf8] sm:$0xff]
      %v3884 = vld [vmem:[#allocation3 + $0x100] sm:$0xff]
      %v3885 = vld [vmem:[#allocation3 + $0x108] sm:$0xff]
      %v3886 = vld [vmem:[#allocation3 + $0x110] sm:$0xff]
      %v3887 = vld [vmem:[#allocation3 + $0x118] sm:$0xff]
      %v3888 = vld [vmem:[#allocation3 + $0x120] sm:$0xff]
      %v3889 = vld [vmem:[#allocation3 + $0x128] sm:$0xff]
      %v3890 = vld [vmem:[#allocation3 + $0x130] sm:$0xff]
      %v3891 = vld [vmem:[#allocation3 + $0x138] sm:$0xff]
      %v3892 = vld [vmem:[#allocation3 + $0x140] sm:$0xff]
      %v3893 = vld [vmem:[#allocation3 + $0x148] sm:$0xff]
      %v3894 = vld [vmem:[#allocation2 + $0x10] sm:$0xf]
      %v3895 = vld [vmem:[#allocation2 + $0x14] sm:$0xf]
      %v3896 = vld [vmem:[#allocation2 + $0x18] sm:$0xf]
      %v3897 = vld [vmem:[#allocation2 + $0x1c] sm:$0xf]
      %v3898 = vld [vmem:[#allocation2 + $0x20] sm:$0xf]
      %v3899 = vld [vmem:[#allocation2 + $0x24] sm:$0xf]
      %v3900 = vld [vmem:[#allocation2 + $0x28] sm:$0xf]
      %v3901 = vld [vmem:[#allocation2 + $0x2c] sm:$0xf]
      %v3902 = vld [vmem:[#allocation2 + $0x30] sm:$0xf]
      %v3903 = vld [vmem:[#allocation2 + $0x34] sm:$0xf]
      %v3904 = vld [vmem:[#allocation2 + $0x38] sm:$0xf]
      %v3905 = vld [vmem:[#allocation2 + $0x3c] sm:$0xf]
      %v3906 = vld [vmem:[#allocation2 + $0x40] sm:$0xf]
      %v3907 = vld [vmem:[#allocation2 + $0x44] sm:$0xf]
      %v3908 = vld [vmem:[#allocation2 + $0x48] sm:$0xf]
      %v3909 = vld [vmem:[#allocation2 + $0x4c] sm:$0xf]
      %v3910 = vld [vmem:[#allocation2 + $0x50] sm:$0xf]
      %v3911 = vld [vmem:[#allocation2 + $0x54] sm:$0xf]
      %v3912 = vld [vmem:[#allocation2 + $0x58] sm:$0xf]
      %v3913 = vld [vmem:[#allocation2 + $0x5c] sm:$0xf]
      %v3914 = vld [vmem:[#allocation2 + $0x60] sm:$0xf]
      %v3915 = vld [vmem:[#allocation2 + $0x64] sm:$0xf]
      %v3916 = vld [vmem:[#allocation2 + $0x68] sm:$0xf]
      %v3917 = vld [vmem:[#allocation2 + $0x6c] sm:$0xf]
      %v3918 = vld [vmem:[#allocation2 + $0x70] sm:$0xf]
      %v3919 = vld [vmem:[#allocation2 + $0x74] sm:$0xf]
      %v3920 = vld [vmem:[#allocation2 + $0x78] sm:$0xf]
      %v3921 = vld [vmem:[#allocation2 + $0x7c] sm:$0xf]
      %v3922 = vld [vmem:[#allocation2 + $0x80] sm:$0xf]
      %v3923 = vld [vmem:[#allocation2 + $0x84] sm:$0xf]
      %v3924 = vld [vmem:[#allocation2 + $0x88] sm:$0xf]
      %v3925 = vld [vmem:[#allocation2 + $0x8c] sm:$0xf]
      %v3926 = vld [vmem:[#allocation2 + $0x90] sm:$0xf]
      %v3927 = vld [vmem:[#allocation2 + $0x94] sm:$0xf]
      %v3928 = vld [vmem:[#allocation2 + $0x98] sm:$0xf]
      %v3929 = vld [vmem:[#allocation2 + $0x9c] sm:$0xf]
      %v3930 = vld [vmem:[#allocation2 + $0xa0] sm:$0xf]
      %v3931 = vld [vmem:[#allocation2 + $0xa4] sm:$0xf]
      %v3932 = vld [vmem:[#allocation2 + $0xa8] sm:$0xf]
      %v3933 = vld [vmem:[#allocation2 + $0xac] sm:$0xf]
      %v3934 = vld [vmem:[#allocation2 + $0xb0] sm:$0xf]
      %v3935 = vld [vmem:[#allocation2 + $0xb4] sm:$0xf]
      %v3936 = vld [vmem:[#allocation2 + $0xb8] sm:$0x1]
      %s3937 = scalar_lea.vmem %s3, 320
      %v3938 = vld [vmem:[%s3937] sm:$0xf]
      %v3939 = vld [vmem:[%s3937 + $0x4] sm:$0xf]
      %v3940 = vld [vmem:[%s3937 + $0x8] sm:$0xf]
      %v3941 = vld [vmem:[%s3937 + $0xc] sm:$0xf]
      %v3942 = vld [vmem:[%s3937 + $0x10] sm:$0xf]
      %v3943 = vld [vmem:[%s3937 + $0x14] sm:$0xf]
      %v3944 = vld [vmem:[%s3937 + $0x18] sm:$0xf]
      %v3945 = vld [vmem:[%s3937 + $0x1c] sm:$0xf]
      %v3946 = vld [vmem:[%s3937 + $0x20] sm:$0xf]
      %v3947 = vld [vmem:[%s3937 + $0x24] sm:$0xf]
      %v3948 = vld [vmem:[%s3937 + $0x28] sm:$0xf]
      %v3949 = vld [vmem:[%s3937 + $0x2c] sm:$0xf]
      %v3950 = vld [vmem:[%s3937 + $0x30] sm:$0xf]
      %v3951 = vld [vmem:[%s3937 + $0x34] sm:$0xf]
      %v3952 = vld [vmem:[%s3937 + $0x38] sm:$0xf]
      %v3953 = vld [vmem:[%s3937 + $0x3c] sm:$0xf]
      %v3997 = vunpack.c.l.b16 %v3894
      %v3998 = vunpack.c.l.b16 %v3895
      %v3999 = vunpack.c.l.b16 %v3896
      %v4000 = vunpack.c.l.b16 %v3897
      %v4001 = vunpack.c.l.b16 %v3898
      %v4002 = vunpack.c.l.b16 %v3899
      %v4003 = vunpack.c.l.b16 %v3900
      %v4004 = vunpack.c.l.b16 %v3901
      %v4005 = vunpack.c.l.b16 %v3902
      %v4006 = vunpack.c.l.b16 %v3903
      %v4007 = vunpack.c.l.b16 %v3904
      %v4008 = vunpack.c.l.b16 %v3905
      %v4009 = vunpack.c.l.b16 %v3906
      %v4010 = vunpack.c.l.b16 %v3907
      %v4011 = vunpack.c.l.b16 %v3908
      %v4012 = vunpack.c.l.b16 %v3909
      %v4013 = vunpack.c.l.b16 %v3910
      %v4014 = vunpack.c.l.b16 %v3911
      %v4015 = vunpack.c.l.b16 %v3912
      %v4016 = vunpack.c.l.b16 %v3913
      %v4017 = vunpack.c.l.b16 %v3914
      %v4018 = vunpack.c.l.b16 %v3915
      %v4019 = vunpack.c.l.b16 %v3916
      %v4020 = vunpack.c.l.b16 %v3917
      %v4021 = vunpack.c.l.b16 %v3918
      %v4022 = vunpack.c.l.b16 %v3919
      %v4023 = vunpack.c.l.b16 %v3920
      %v4024 = vunpack.c.l.b16 %v3921
      %v4025 = vunpack.c.l.b16 %v3922
      %v4026 = vunpack.c.l.b16 %v3923
      %v4027 = vunpack.c.l.b16 %v3924
      %v4028 = vunpack.c.l.b16 %v3925
      %v4029 = vunpack.c.l.b16 %v3926
      %v4030 = vunpack.c.l.b16 %v3927
      %v4031 = vunpack.c.l.b16 %v3928
      %v4032 = vunpack.c.l.b16 %v3929
      %v4033 = vunpack.c.l.b16 %v3930
      %v4034 = vunpack.c.l.b16 %v3931
      %v4035 = vunpack.c.l.b16 %v3932
      %v4036 = vunpack.c.l.b16 %v3933
      %v4037 = vunpack.c.l.b16 %v3934
      %v4038 = vunpack.c.l.b16 %v3935
      %v4039 = vunpack.c.l.b16 %v3936
      %v4040 = vpack.c.b16 %v3998, %v3997
      %v4041 = vpack.c.b16 %v4000, %v3999
      %v4042 = vpack.c.b16 %v4002, %v4001
      %v4043 = vpack.c.b16 %v4004, %v4003
      %v4044 = vpack.c.b16 %v4006, %v4005
      %v4045 = vpack.c.b16 %v4008, %v4007
      %v4046 = vpack.c.b16 %v4010, %v4009
      %v4047 = vpack.c.b16 %v4012, %v4011
      %v4048 = vpack.c.b16 %v4014, %v4013
      %v4049 = vpack.c.b16 %v4016, %v4015
      %v4050 = vpack.c.b16 %v4018, %v4017
      %v4051 = vpack.c.b16 %v4020, %v4019
      %v4052 = vpack.c.b16 %v4022, %v4021
      %v4053 = vpack.c.b16 %v4024, %v4023
      %v4054 = vpack.c.b16 %v4026, %v4025
      %v4055 = vpack.c.b16 %v4028, %v4027
      %v4056 = vpack.c.b16 %v4030, %v4029
      %v4057 = vpack.c.b16 %v4032, %v4031
      %v4058 = vpack.c.b16 %v4034, %v4033
      %v4059 = vpack.c.b16 %v4036, %v4035
      %v4060 = vpack.c.b16 %v4038, %v4037
      %v4061 = vpack.c.b16 %v4039, %v4039
      %vm4062 = vsmask.f32 7424
      %v4064 = vshrl.u32 %v4040, 16
      %v4066 = vshll.u32 %v4040, 16
      %v4068 = vrot.slane %v4066, 1
      %v4069 = vor.u32 %v4064, %v4068
      %v4071 = vshll.u32 %v4041, 16
      %v4073 = vrot.slane %v4071, 1
      %v4074 = vsel %vm4062, %v4069, %v4073
      %v4075 = vshrl.u32 %v4041, 16
      %v4077 = vor.u32 %v4075, %v4073
      %v4079 = vshll.u32 %v4042, 16
      %v4081 = vrot.slane %v4079, 1
      %v4082 = vsel %vm4062, %v4077, %v4081
      %v4083 = vshrl.u32 %v4042, 16
      %v4085 = vor.u32 %v4083, %v4081
      %v4087 = vshll.u32 %v4043, 16
      %v4089 = vrot.slane %v4087, 1
      %v4090 = vsel %vm4062, %v4085, %v4089
      %v4091 = vshrl.u32 %v4043, 16
      %v4093 = vor.u32 %v4091, %v4089
      %v4095 = vshll.u32 %v4044, 16
      %v4097 = vrot.slane %v4095, 1
      %v4098 = vsel %vm4062, %v4093, %v4097
      %v4099 = vshrl.u32 %v4044, 16
      %v4101 = vor.u32 %v4099, %v4097
      %v4103 = vshll.u32 %v4045, 16
      %v4105 = vrot.slane %v4103, 1
      %v4106 = vsel %vm4062, %v4101, %v4105
      %v4107 = vshrl.u32 %v4045, 16
      %v4109 = vor.u32 %v4107, %v4105
      %v4111 = vshll.u32 %v4046, 16
      %v4113 = vrot.slane %v4111, 1
      %v4114 = vsel %vm4062, %v4109, %v4113
      %v4115 = vshrl.u32 %v4046, 16
      %v4117 = vor.u32 %v4115, %v4113
      %v4119 = vshll.u32 %v4047, 16
      %v4121 = vrot.slane %v4119, 1
      %v4122 = vsel %vm4062, %v4117, %v4121
      %v4123 = vshrl.u32 %v4047, 16
      %v4125 = vor.u32 %v4123, %v4121
      %v4127 = vshll.u32 %v4048, 16
      %v4129 = vrot.slane %v4127, 1
      %v4130 = vsel %vm4062, %v4125, %v4129
      %v4131 = vshrl.u32 %v4048, 16
      %v4133 = vor.u32 %v4131, %v4129
      %v4135 = vshll.u32 %v4049, 16
      %v4137 = vrot.slane %v4135, 1
      %v4138 = vsel %vm4062, %v4133, %v4137
      %v4139 = vshrl.u32 %v4049, 16
      %v4141 = vor.u32 %v4139, %v4137
      %v4143 = vshll.u32 %v4050, 16
      %v4145 = vrot.slane %v4143, 1
      %v4146 = vsel %vm4062, %v4141, %v4145
      %v4147 = vshrl.u32 %v4050, 16
      %v4149 = vor.u32 %v4147, %v4145
      %v4151 = vshll.u32 %v4051, 16
      %v4153 = vrot.slane %v4151, 1
      %v4154 = vsel %vm4062, %v4149, %v4153
      %v4155 = vshrl.u32 %v4051, 16
      %v4157 = vor.u32 %v4155, %v4153
      %v4159 = vshll.u32 %v4052, 16
      %v4161 = vrot.slane %v4159, 1
      %v4162 = vsel %vm4062, %v4157, %v4161
      %v4163 = vshrl.u32 %v4052, 16
      %v4165 = vor.u32 %v4163, %v4161
      %v4167 = vshll.u32 %v4053, 16
      %v4169 = vrot.slane %v4167, 1
      %v4170 = vsel %vm4062, %v4165, %v4169
      %v4171 = vshrl.u32 %v4053, 16
      %v4173 = vor.u32 %v4171, %v4169
      %v4175 = vshll.u32 %v4054, 16
      %v4177 = vrot.slane %v4175, 1
      %v4178 = vsel %vm4062, %v4173, %v4177
      %v4179 = vshrl.u32 %v4054, 16
      %v4181 = vor.u32 %v4179, %v4177
      %v4183 = vshll.u32 %v4055, 16
      %v4185 = vrot.slane %v4183, 1
      %v4186 = vsel %vm4062, %v4181, %v4185
      %v4187 = vshrl.u32 %v4055, 16
      %v4189 = vor.u32 %v4187, %v4185
      %v4191 = vshll.u32 %v4056, 16
      %v4193 = vrot.slane %v4191, 1
      %v4194 = vsel %vm4062, %v4189, %v4193
      %v4195 = vshrl.u32 %v4056, 16
      %v4197 = vor.u32 %v4195, %v4193
      %v4199 = vshll.u32 %v4057, 16
      %v4201 = vrot.slane %v4199, 1
      %v4202 = vsel %vm4062, %v4197, %v4201
      %v4203 = vshrl.u32 %v4057, 16
      %v4205 = vor.u32 %v4203, %v4201
      %v4207 = vshll.u32 %v4058, 16
      %v4209 = vrot.slane %v4207, 1
      %v4210 = vsel %vm4062, %v4205, %v4209
      %v4211 = vshrl.u32 %v4058, 16
      %v4213 = vor.u32 %v4211, %v4209
      %v4215 = vshll.u32 %v4059, 16
      %v4217 = vrot.slane %v4215, 1
      %v4218 = vsel %vm4062, %v4213, %v4217
      %v4219 = vshrl.u32 %v4059, 16
      %v4221 = vor.u32 %v4219, %v4217
      %v4223 = vshll.u32 %v4060, 16
      %v4225 = vrot.slane %v4223, 1
      %v4226 = vsel %vm4062, %v4221, %v4225
      %v4227 = vshrl.u32 %v4060, 16
      %v4229 = vor.u32 %v4227, %v4225
      %v4231 = vshll.u32 %v4061, 16
      %v4233 = vrot.slane %v4231, 1
      %v4234 = vsel %vm4062, %v4229, %v4233
      %v4272 = vunpack.c.l.b16 %v3938
      %v4273 = vunpack.c.l.b16 %v3939
      %v4274 = vunpack.c.l.b16 %v3940
      %v4275 = vunpack.c.l.b16 %v3941
      %v4276 = vunpack.c.l.b16 %v3942
      %v4277 = vunpack.c.l.b16 %v3943
      %v4278 = vunpack.c.l.b16 %v3944
      %v4279 = vunpack.c.l.b16 %v3945
      %v4280 = vunpack.c.l.b16 %v3946
      %v4281 = vunpack.c.l.b16 %v3947
      %v4282 = vunpack.c.l.b16 %v3948
      %v4283 = vunpack.c.l.b16 %v3949
      %v4284 = vunpack.c.l.b16 %v3950
      %v4285 = vunpack.c.l.b16 %v3951
      %v4286 = vunpack.c.l.b16 %v3952
      %v4287 = vunpack.c.l.b16 %v3953
      %v4288 = vpack.c.b16 %v4273, %v4272
      %v4289 = vpack.c.b16 %v4275, %v4274
      %v4290 = vpack.c.b16 %v4277, %v4276
      %v4291 = vpack.c.b16 %v4279, %v4278
      %v4292 = vpack.c.b16 %v4281, %v4280
      %v4293 = vpack.c.b16 %v4283, %v4282
      %v4294 = vpack.c.b16 %v4285, %v4284
      %v4295 = vpack.c.b16 %v4287, %v4286
      %4304 = vmatpush.bf16.msra.mxu0 %v4295
      %4305 = vmatpush.bf16.msra.mxu0 %v4294
      %4306 = vmatpush.bf16.msra.mxu0 %v4293
      %4307 = vmatpush.bf16.msra.mxu0 %v4292
      %4308 = vmatpush.bf16.msra.mxu0 %v4291
      %4309 = vmatpush.bf16.msra.mxu0 %v4290
      %4310 = vmatpush.bf16.msra.mxu0 %v4289
      %4311 = vmatpush.bf16.msra.mxu0 %v4288
      %4312 = vmatmul.bf16.gmra.mxu0 %v4074
      %v4313 = vpop.f32.mrf.mxu0
      %v4314 = vadd.f32 0.0, %v4313
      %v4315 = vpop.f32.mrf.mxu0
      %v4316 = vadd.f32 0.0, %v4315
      %4317 = vmatmul.bf16.gmra.mxu0 %v4082
      %v4318 = vpop.f32.mrf.mxu0
      %v4319 = vadd.f32 0.0, %v4318
      %v4320 = vpop.f32.mrf.mxu0
      %v4321 = vadd.f32 0.0, %v4320
      %4322 = vmatmul.bf16.gmra.mxu0 %v4090
      %v4323 = vpop.f32.mrf.mxu0
      %v4324 = vadd.f32 0.0, %v4323
      %v4325 = vpop.f32.mrf.mxu0
      %v4326 = vadd.f32 0.0, %v4325
      %4327 = vmatmul.bf16.gmra.mxu0 %v4098
      %v4328 = vpop.f32.mrf.mxu0
      %v4329 = vadd.f32 0.0, %v4328
      %v4330 = vpop.f32.mrf.mxu0
      %v4331 = vadd.f32 0.0, %v4330
      %4332 = vmatmul.bf16.gmra.mxu0 %v4106
      %v4333 = vpop.f32.mrf.mxu0
      %v4334 = vadd.f32 0.0, %v4333
      %v4335 = vpop.f32.mrf.mxu0
      %v4336 = vadd.f32 0.0, %v4335
      %4337 = vmatmul.bf16.gmra.mxu0 %v4114
      %v4338 = vpop.f32.mrf.mxu0
      %v4339 = vadd.f32 0.0, %v4338
      %v4340 = vpop.f32.mrf.mxu0
      %v4341 = vadd.f32 0.0, %v4340
      %4342 = vmatmul.bf16.gmra.mxu0 %v4122
      %v4343 = vpop.f32.mrf.mxu0
      %v4344 = vadd.f32 0.0, %v4343
      %v4345 = vpop.f32.mrf.mxu0
      %v4346 = vadd.f32 0.0, %v4345
      %4347 = vmatmul.bf16.gmra.mxu0 %v4130
      %v4348 = vpop.f32.mrf.mxu0
      %v4349 = vadd.f32 0.0, %v4348
      %v4350 = vpop.f32.mrf.mxu0
      %v4351 = vadd.f32 0.0, %v4350
      %4352 = vmatmul.bf16.gmra.mxu0 %v4138
      %v4353 = vpop.f32.mrf.mxu0
      %v4354 = vadd.f32 0.0, %v4353
      %v4355 = vpop.f32.mrf.mxu0
      %v4356 = vadd.f32 0.0, %v4355
      %4357 = vmatmul.bf16.gmra.mxu0 %v4146
      %v4358 = vpop.f32.mrf.mxu0
      %v4359 = vadd.f32 0.0, %v4358
      %v4360 = vpop.f32.mrf.mxu0
      %v4361 = vadd.f32 0.0, %v4360
      %4362 = vmatmul.bf16.gmra.mxu0 %v4154
      %v4363 = vpop.f32.mrf.mxu0
      %v4364 = vadd.f32 0.0, %v4363
      %v4365 = vpop.f32.mrf.mxu0
      %v4366 = vadd.f32 0.0, %v4365
      %4367 = vmatmul.bf16.gmra.mxu0 %v4162
      %v4368 = vpop.f32.mrf.mxu0
      %v4369 = vadd.f32 0.0, %v4368
      %v4370 = vpop.f32.mrf.mxu0
      %v4371 = vadd.f32 0.0, %v4370
      %4372 = vmatmul.bf16.gmra.mxu0 %v4170
      %v4373 = vpop.f32.mrf.mxu0
      %v4374 = vadd.f32 0.0, %v4373
      %v4375 = vpop.f32.mrf.mxu0
      %v4376 = vadd.f32 0.0, %v4375
      %4377 = vmatmul.bf16.gmra.mxu0 %v4178
      %v4378 = vpop.f32.mrf.mxu0
      %v4379 = vadd.f32 0.0, %v4378
      %v4380 = vpop.f32.mrf.mxu0
      %v4381 = vadd.f32 0.0, %v4380
      %4382 = vmatmul.bf16.gmra.mxu0 %v4186
      %v4383 = vpop.f32.mrf.mxu0
      %v4384 = vadd.f32 0.0, %v4383
      %v4385 = vpop.f32.mrf.mxu0
      %v4386 = vadd.f32 0.0, %v4385
      %4387 = vmatmul.bf16.gmra.mxu0 %v4194
      %v4388 = vpop.f32.mrf.mxu0
      %v4389 = vadd.f32 0.0, %v4388
      %v4390 = vpop.f32.mrf.mxu0
      %v4391 = vadd.f32 0.0, %v4390
      %4392 = vmatmul.bf16.gmra.mxu0 %v4202
      %v4393 = vpop.f32.mrf.mxu0
      %v4394 = vadd.f32 0.0, %v4393
      %v4395 = vpop.f32.mrf.mxu0
      %v4396 = vadd.f32 0.0, %v4395
      %4397 = vmatmul.bf16.gmra.mxu0 %v4210
      %v4398 = vpop.f32.mrf.mxu0
      %v4399 = vadd.f32 0.0, %v4398
      %v4400 = vpop.f32.mrf.mxu0
      %v4401 = vadd.f32 0.0, %v4400
      %4402 = vmatmul.bf16.gmra.mxu0 %v4218
      %v4403 = vpop.f32.mrf.mxu0
      %v4404 = vadd.f32 0.0, %v4403
      %v4405 = vpop.f32.mrf.mxu0
      %v4406 = vadd.f32 0.0, %v4405
      %4407 = vmatmul.bf16.gmra.mxu0 %v4226
      %v4408 = vpop.f32.mrf.mxu0
      %v4409 = vadd.f32 0.0, %v4408
      %v4410 = vpop.f32.mrf.mxu0
      %v4411 = vadd.f32 0.0, %v4410
      %4412 = vmatmul.bf16.gmra.mxu0 %v4234
      %v4413 = vpop.f32.mrf.mxu0
      %v4414 = vadd.f32 0.0, %v4413
      %v4415 = vpop.f32.mrf.mxu0
      %v4416 = vadd.f32 0.0, %v4415
      %4417 = vdwg.mxu0
      %v4418 = vadd.f32 %v3852, %v4314
      %v4419 = vadd.f32 %v3853, %v4316
      %v4420 = vadd.f32 %v3854, %v4319
      %v4421 = vadd.f32 %v3855, %v4321
      %v4422 = vadd.f32 %v3856, %v4324
      %v4423 = vadd.f32 %v3857, %v4326
      %v4424 = vadd.f32 %v3858, %v4329
      %v4425 = vadd.f32 %v3859, %v4331
      %v4426 = vadd.f32 %v3860, %v4334
      %v4427 = vadd.f32 %v3861, %v4336
      %v4428 = vadd.f32 %v3862, %v4339
      %v4429 = vadd.f32 %v3863, %v4341
      %v4430 = vadd.f32 %v3864, %v4344
      %v4431 = vadd.f32 %v3865, %v4346
      %v4432 = vadd.f32 %v3866, %v4349
      %v4433 = vadd.f32 %v3867, %v4351
      %v4434 = vadd.f32 %v3868, %v4354
      %v4435 = vadd.f32 %v3869, %v4356
      %v4436 = vadd.f32 %v3870, %v4359
      %v4437 = vadd.f32 %v3871, %v4361
      %v4438 = vadd.f32 %v3872, %v4364
      %v4439 = vadd.f32 %v3873, %v4366
      %v4440 = vadd.f32 %v3874, %v4369
      %v4441 = vadd.f32 %v3875, %v4371
      %v4442 = vadd.f32 %v3876, %v4374
      %v4443 = vadd.f32 %v3877, %v4376
      %v4444 = vadd.f32 %v3878, %v4379
      %v4445 = vadd.f32 %v3879, %v4381
      %v4446 = vadd.f32 %v3880, %v4384
      %v4447 = vadd.f32 %v3881, %v4386
      %v4448 = vadd.f32 %v3882, %v4389
      %v4449 = vadd.f32 %v3883, %v4391
      %v4450 = vadd.f32 %v3884, %v4394
      %v4451 = vadd.f32 %v3885, %v4396
      %v4452 = vadd.f32 %v3886, %v4399
      %v4453 = vadd.f32 %v3887, %v4401
      %v4454 = vadd.f32 %v3888, %v4404
      %v4455 = vadd.f32 %v3889, %v4406
      %v4456 = vadd.f32 %v3890, %v4409
      %v4457 = vadd.f32 %v3891, %v4411
      %v4458 = vadd.f32 %v3892, %v4414
      %v4459 = vadd.f32 %v3893, %v4416
      %4460 = vst [vmem:[#allocation3] sm:$0xff] %v4418
      %4461 = vst [vmem:[#allocation3 + $0x8] sm:$0xff] %v4419
      %4462 = vst [vmem:[#allocation3 + $0x10] sm:$0xff] %v4420
      %4463 = vst [vmem:[#allocation3 + $0x18] sm:$0xff] %v4421
      %4464 = vst [vmem:[#allocation3 + $0x20] sm:$0xff] %v4422
      %4465 = vst [vmem:[#allocation3 + $0x28] sm:$0xff] %v4423
      %4466 = vst [vmem:[#allocation3 + $0x30] sm:$0xff] %v4424
      %4467 = vst [vmem:[#allocation3 + $0x38] sm:$0xff] %v4425
      %4468 = vst [vmem:[#allocation3 + $0x40] sm:$0xff] %v4426
      %4469 = vst [vmem:[#allocation3 + $0x48] sm:$0xff] %v4427
      %4470 = vst [vmem:[#allocation3 + $0x50] sm:$0xff] %v4428
      %4471 = vst [vmem:[#allocation3 + $0x58] sm:$0xff] %v4429
      %4472 = vst [vmem:[#allocation3 + $0x60] sm:$0xff] %v4430
      %4473 = vst [vmem:[#allocation3 + $0x68] sm:$0xff] %v4431
      %4474 = vst [vmem:[#allocation3 + $0x70] sm:$0xff] %v4432
      %4475 = vst [vmem:[#allocation3 + $0x78] sm:$0xff] %v4433
      %4476 = vst [vmem:[#allocation3 + $0x80] sm:$0xff] %v4434
      %4477 = vst [vmem:[#allocation3 + $0x88] sm:$0xff] %v4435
      %4478 = vst [vmem:[#allocation3 + $0x90] sm:$0xff] %v4436
      %4479 = vst [vmem:[#allocation3 + $0x98] sm:$0xff] %v4437
      %4480 = vst [vmem:[#allocation3 + $0xa0] sm:$0xff] %v4438
      %4481 = vst [vmem:[#allocation3 + $0xa8] sm:$0xff] %v4439
      %4482 = vst [vmem:[#allocation3 + $0xb0] sm:$0xff] %v4440
      %4483 = vst [vmem:[#allocation3 + $0xb8] sm:$0xff] %v4441
      %4484 = vst [vmem:[#allocation3 + $0xc0] sm:$0xff] %v4442
      %4485 = vst [vmem:[#allocation3 + $0xc8] sm:$0xff] %v4443
      %4486 = vst [vmem:[#allocation3 + $0xd0] sm:$0xff] %v4444
      %4487 = vst [vmem:[#allocation3 + $0xd8] sm:$0xff] %v4445
      %4488 = vst [vmem:[#allocation3 + $0xe0] sm:$0xff] %v4446
      %4489 = vst [vmem:[#allocation3 + $0xe8] sm:$0xff] %v4447
      %4490 = vst [vmem:[#allocation3 + $0xf0] sm:$0xff] %v4448
      %4491 = vst [vmem:[#allocation3 + $0xf8] sm:$0xff] %v4449
      %4492 = vst [vmem:[#allocation3 + $0x100] sm:$0xff] %v4450
      %4493 = vst [vmem:[#allocation3 + $0x108] sm:$0xff] %v4451
      %4494 = vst [vmem:[#allocation3 + $0x110] sm:$0xff] %v4452
      %4495 = vst [vmem:[#allocation3 + $0x118] sm:$0xff] %v4453
      %4496 = vst [vmem:[#allocation3 + $0x120] sm:$0xff] %v4454
      %4497 = vst [vmem:[#allocation3 + $0x128] sm:$0xff] %v4455
      %4498 = vst [vmem:[#allocation3 + $0x130] sm:$0xff] %v4456
      %4499 = vst [vmem:[#allocation3 + $0x138] sm:$0xff] %v4457
      %4500 = vst [vmem:[#allocation3 + $0x140] sm:$0xff] %v4458
      %4501 = vst [vmem:[#allocation3 + $0x148] sm:$0xff] %v4459
      %v4502 = vld [vmem:[#allocation3] sm:$0xff]
      %v4503 = vld [vmem:[#allocation3 + $0x8] sm:$0xff]
      %v4504 = vld [vmem:[#allocation3 + $0x10] sm:$0xff]
      %v4505 = vld [vmem:[#allocation3 + $0x18] sm:$0xff]
      %v4506 = vld [vmem:[#allocation3 + $0x20] sm:$0xff]
      %v4507 = vld [vmem:[#allocation3 + $0x28] sm:$0xff]
      %v4508 = vld [vmem:[#allocation3 + $0x30] sm:$0xff]
      %v4509 = vld [vmem:[#allocation3 + $0x38] sm:$0xff]
      %v4510 = vld [vmem:[#allocation3 + $0x40] sm:$0xff]
      %v4511 = vld [vmem:[#allocation3 + $0x48] sm:$0xff]
      %v4512 = vld [vmem:[#allocation3 + $0x50] sm:$0xff]
      %v4513 = vld [vmem:[#allocation3 + $0x58] sm:$0xff]
      %v4514 = vld [vmem:[#allocation3 + $0x60] sm:$0xff]
      %v4515 = vld [vmem:[#allocation3 + $0x68] sm:$0xff]
      %v4516 = vld [vmem:[#allocation3 + $0x70] sm:$0xff]
      %v4517 = vld [vmem:[#allocation3 + $0x78] sm:$0xff]
      %v4518 = vld [vmem:[#allocation3 + $0x80] sm:$0xff]
      %v4519 = vld [vmem:[#allocation3 + $0x88] sm:$0xff]
      %v4520 = vld [vmem:[#allocation3 + $0x90] sm:$0xff]
      %v4521 = vld [vmem:[#allocation3 + $0x98] sm:$0xff]
      %v4522 = vld [vmem:[#allocation3 + $0xa0] sm:$0xff]
      %v4523 = vld [vmem:[#allocation3 + $0xa8] sm:$0xff]
      %v4524 = vld [vmem:[#allocation3 + $0xb0] sm:$0xff]
      %v4525 = vld [vmem:[#allocation3 + $0xb8] sm:$0xff]
      %v4526 = vld [vmem:[#allocation3 + $0xc0] sm:$0xff]
      %v4527 = vld [vmem:[#allocation3 + $0xc8] sm:$0xff]
      %v4528 = vld [vmem:[#allocation3 + $0xd0] sm:$0xff]
      %v4529 = vld [vmem:[#allocation3 + $0xd8] sm:$0xff]
      %v4530 = vld [vmem:[#allocation3 + $0xe0] sm:$0xff]
      %v4531 = vld [vmem:[#allocation3 + $0xe8] sm:$0xff]
      %v4532 = vld [vmem:[#allocation3 + $0xf0] sm:$0xff]
      %v4533 = vld [vmem:[#allocation3 + $0xf8] sm:$0xff]
      %v4534 = vld [vmem:[#allocation3 + $0x100] sm:$0xff]
      %v4535 = vld [vmem:[#allocation3 + $0x108] sm:$0xff]
      %v4536 = vld [vmem:[#allocation3 + $0x110] sm:$0xff]
      %v4537 = vld [vmem:[#allocation3 + $0x118] sm:$0xff]
      %v4538 = vld [vmem:[#allocation3 + $0x120] sm:$0xff]
      %v4539 = vld [vmem:[#allocation3 + $0x128] sm:$0xff]
      %v4540 = vld [vmem:[#allocation3 + $0x130] sm:$0xff]
      %v4541 = vld [vmem:[#allocation3 + $0x138] sm:$0xff]
      %v4542 = vld [vmem:[#allocation3 + $0x140] sm:$0xff]
      %v4543 = vld [vmem:[#allocation3 + $0x148] sm:$0xff]
      %v4544 = vld [vmem:[#allocation2 + $0x18] sm:$0xf]
      %v4545 = vld [vmem:[#allocation2 + $0x1c] sm:$0xf]
      %v4546 = vld [vmem:[#allocation2 + $0x20] sm:$0xf]
      %v4547 = vld [vmem:[#allocation2 + $0x24] sm:$0xf]
      %v4548 = vld [vmem:[#allocation2 + $0x28] sm:$0xf]
      %v4549 = vld [vmem:[#allocation2 + $0x2c] sm:$0xf]
      %v4550 = vld [vmem:[#allocation2 + $0x30] sm:$0xf]
      %v4551 = vld [vmem:[#allocation2 + $0x34] sm:$0xf]
      %v4552 = vld [vmem:[#allocation2 + $0x38] sm:$0xf]
      %v4553 = vld [vmem:[#allocation2 + $0x3c] sm:$0xf]
      %v4554 = vld [vmem:[#allocation2 + $0x40] sm:$0xf]
      %v4555 = vld [vmem:[#allocation2 + $0x44] sm:$0xf]
      %v4556 = vld [vmem:[#allocation2 + $0x48] sm:$0xf]
      %v4557 = vld [vmem:[#allocation2 + $0x4c] sm:$0xf]
      %v4558 = vld [vmem:[#allocation2 + $0x50] sm:$0xf]
      %v4559 = vld [vmem:[#allocation2 + $0x54] sm:$0xf]
      %v4560 = vld [vmem:[#allocation2 + $0x58] sm:$0xf]
      %v4561 = vld [vmem:[#allocation2 + $0x5c] sm:$0xf]
      %v4562 = vld [vmem:[#allocation2 + $0x60] sm:$0xf]
      %v4563 = vld [vmem:[#allocation2 + $0x64] sm:$0xf]
      %v4564 = vld [vmem:[#allocation2 + $0x68] sm:$0xf]
      %v4565 = vld [vmem:[#allocation2 + $0x6c] sm:$0xf]
      %v4566 = vld [vmem:[#allocation2 + $0x70] sm:$0xf]
      %v4567 = vld [vmem:[#allocation2 + $0x74] sm:$0xf]
      %v4568 = vld [vmem:[#allocation2 + $0x78] sm:$0xf]
      %v4569 = vld [vmem:[#allocation2 + $0x7c] sm:$0xf]
      %v4570 = vld [vmem:[#allocation2 + $0x80] sm:$0xf]
      %v4571 = vld [vmem:[#allocation2 + $0x84] sm:$0xf]
      %v4572 = vld [vmem:[#allocation2 + $0x88] sm:$0xf]
      %v4573 = vld [vmem:[#allocation2 + $0x8c] sm:$0xf]
      %v4574 = vld [vmem:[#allocation2 + $0x90] sm:$0xf]
      %v4575 = vld [vmem:[#allocation2 + $0x94] sm:$0xf]
      %v4576 = vld [vmem:[#allocation2 + $0x98] sm:$0xf]
      %v4577 = vld [vmem:[#allocation2 + $0x9c] sm:$0xf]
      %v4578 = vld [vmem:[#allocation2 + $0xa0] sm:$0xf]
      %v4579 = vld [vmem:[#allocation2 + $0xa4] sm:$0xf]
      %v4580 = vld [vmem:[#allocation2 + $0xa8] sm:$0xf]
      %v4581 = vld [vmem:[#allocation2 + $0xac] sm:$0xf]
      %v4582 = vld [vmem:[#allocation2 + $0xb0] sm:$0xf]
      %v4583 = vld [vmem:[#allocation2 + $0xb4] sm:$0xf]
      %v4584 = vld [vmem:[#allocation2 + $0xb8] sm:$0xf]
      %v4585 = vld [vmem:[#allocation2 + $0xbc] sm:$0xf]
      %v4586 = vld [vmem:[#allocation2 + $0xc0] sm:$0x1]
      %s4587 = scalar_lea.vmem %s3, 384
      %v4588 = vld [vmem:[%s4587] sm:$0xf]
      %v4589 = vld [vmem:[%s4587 + $0x4] sm:$0xf]
      %v4590 = vld [vmem:[%s4587 + $0x8] sm:$0xf]
      %v4591 = vld [vmem:[%s4587 + $0xc] sm:$0xf]
      %v4592 = vld [vmem:[%s4587 + $0x10] sm:$0xf]
      %v4593 = vld [vmem:[%s4587 + $0x14] sm:$0xf]
      %v4594 = vld [vmem:[%s4587 + $0x18] sm:$0xf]
      %v4595 = vld [vmem:[%s4587 + $0x1c] sm:$0xf]
      %v4596 = vld [vmem:[%s4587 + $0x20] sm:$0xf]
      %v4597 = vld [vmem:[%s4587 + $0x24] sm:$0xf]
      %v4598 = vld [vmem:[%s4587 + $0x28] sm:$0xf]
      %v4599 = vld [vmem:[%s4587 + $0x2c] sm:$0xf]
      %v4600 = vld [vmem:[%s4587 + $0x30] sm:$0xf]
      %v4601 = vld [vmem:[%s4587 + $0x34] sm:$0xf]
      %v4602 = vld [vmem:[%s4587 + $0x38] sm:$0xf]
      %v4603 = vld [vmem:[%s4587 + $0x3c] sm:$0xf]
      %v4647 = vunpack.c.l.b16 %v4544
      %v4648 = vunpack.c.l.b16 %v4545
      %v4649 = vunpack.c.l.b16 %v4546
      %v4650 = vunpack.c.l.b16 %v4547
      %v4651 = vunpack.c.l.b16 %v4548
      %v4652 = vunpack.c.l.b16 %v4549
      %v4653 = vunpack.c.l.b16 %v4550
      %v4654 = vunpack.c.l.b16 %v4551
      %v4655 = vunpack.c.l.b16 %v4552
      %v4656 = vunpack.c.l.b16 %v4553
      %v4657 = vunpack.c.l.b16 %v4554
      %v4658 = vunpack.c.l.b16 %v4555
      %v4659 = vunpack.c.l.b16 %v4556
      %v4660 = vunpack.c.l.b16 %v4557
      %v4661 = vunpack.c.l.b16 %v4558
      %v4662 = vunpack.c.l.b16 %v4559
      %v4663 = vunpack.c.l.b16 %v4560
      %v4664 = vunpack.c.l.b16 %v4561
      %v4665 = vunpack.c.l.b16 %v4562
      %v4666 = vunpack.c.l.b16 %v4563
      %v4667 = vunpack.c.l.b16 %v4564
      %v4668 = vunpack.c.l.b16 %v4565
      %v4669 = vunpack.c.l.b16 %v4566
      %v4670 = vunpack.c.l.b16 %v4567
      %v4671 = vunpack.c.l.b16 %v4568
      %v4672 = vunpack.c.l.b16 %v4569
      %v4673 = vunpack.c.l.b16 %v4570
      %v4674 = vunpack.c.l.b16 %v4571
      %v4675 = vunpack.c.l.b16 %v4572
      %v4676 = vunpack.c.l.b16 %v4573
      %v4677 = vunpack.c.l.b16 %v4574
      %v4678 = vunpack.c.l.b16 %v4575
      %v4679 = vunpack.c.l.b16 %v4576
      %v4680 = vunpack.c.l.b16 %v4577
      %v4681 = vunpack.c.l.b16 %v4578
      %v4682 = vunpack.c.l.b16 %v4579
      %v4683 = vunpack.c.l.b16 %v4580
      %v4684 = vunpack.c.l.b16 %v4581
      %v4685 = vunpack.c.l.b16 %v4582
      %v4686 = vunpack.c.l.b16 %v4583
      %v4687 = vunpack.c.l.b16 %v4584
      %v4688 = vunpack.c.l.b16 %v4585
      %v4689 = vunpack.c.l.b16 %v4586
      %v4690 = vpack.c.b16 %v4648, %v4647
      %v4691 = vpack.c.b16 %v4650, %v4649
      %v4692 = vpack.c.b16 %v4652, %v4651
      %v4693 = vpack.c.b16 %v4654, %v4653
      %v4694 = vpack.c.b16 %v4656, %v4655
      %v4695 = vpack.c.b16 %v4658, %v4657
      %v4696 = vpack.c.b16 %v4660, %v4659
      %v4697 = vpack.c.b16 %v4662, %v4661
      %v4698 = vpack.c.b16 %v4664, %v4663
      %v4699 = vpack.c.b16 %v4666, %v4665
      %v4700 = vpack.c.b16 %v4668, %v4667
      %v4701 = vpack.c.b16 %v4670, %v4669
      %v4702 = vpack.c.b16 %v4672, %v4671
      %v4703 = vpack.c.b16 %v4674, %v4673
      %v4704 = vpack.c.b16 %v4676, %v4675
      %v4705 = vpack.c.b16 %v4678, %v4677
      %v4706 = vpack.c.b16 %v4680, %v4679
      %v4707 = vpack.c.b16 %v4682, %v4681
      %v4708 = vpack.c.b16 %v4684, %v4683
      %v4709 = vpack.c.b16 %v4686, %v4685
      %v4710 = vpack.c.b16 %v4688, %v4687
      %v4711 = vpack.c.b16 %v4689, %v4689
      %v4713 = vshrl.u32 %v4690, 16
      %v4715 = vshll.u32 %v4690, 16
      %v4717 = vrot.slane %v4715, 1
      %v4718 = vor.u32 %v4713, %v4717
      %v4720 = vshll.u32 %v4691, 16
      %v4722 = vrot.slane %v4720, 1
      %v4723 = vsel %vm4062, %v4718, %v4722
      %v4724 = vshrl.u32 %v4691, 16
      %v4726 = vor.u32 %v4724, %v4722
      %v4728 = vshll.u32 %v4692, 16
      %v4730 = vrot.slane %v4728, 1
      %v4731 = vsel %vm4062, %v4726, %v4730
      %v4732 = vshrl.u32 %v4692, 16
      %v4734 = vor.u32 %v4732, %v4730
      %v4736 = vshll.u32 %v4693, 16
      %v4738 = vrot.slane %v4736, 1
      %v4739 = vsel %vm4062, %v4734, %v4738
      %v4740 = vshrl.u32 %v4693, 16
      %v4742 = vor.u32 %v4740, %v4738
      %v4744 = vshll.u32 %v4694, 16
      %v4746 = vrot.slane %v4744, 1
      %v4747 = vsel %vm4062, %v4742, %v4746
      %v4748 = vshrl.u32 %v4694, 16
      %v4750 = vor.u32 %v4748, %v4746
      %v4752 = vshll.u32 %v4695, 16
      %v4754 = vrot.slane %v4752, 1
      %v4755 = vsel %vm4062, %v4750, %v4754
      %v4756 = vshrl.u32 %v4695, 16
      %v4758 = vor.u32 %v4756, %v4754
      %v4760 = vshll.u32 %v4696, 16
      %v4762 = vrot.slane %v4760, 1
      %v4763 = vsel %vm4062, %v4758, %v4762
      %v4764 = vshrl.u32 %v4696, 16
      %v4766 = vor.u32 %v4764, %v4762
      %v4768 = vshll.u32 %v4697, 16
      %v4770 = vrot.slane %v4768, 1
      %v4771 = vsel %vm4062, %v4766, %v4770
      %v4772 = vshrl.u32 %v4697, 16
      %v4774 = vor.u32 %v4772, %v4770
      %v4776 = vshll.u32 %v4698, 16
      %v4778 = vrot.slane %v4776, 1
      %v4779 = vsel %vm4062, %v4774, %v4778
      %v4780 = vshrl.u32 %v4698, 16
      %v4782 = vor.u32 %v4780, %v4778
      %v4784 = vshll.u32 %v4699, 16
      %v4786 = vrot.slane %v4784, 1
      %v4787 = vsel %vm4062, %v4782, %v4786
      %v4788 = vshrl.u32 %v4699, 16
      %v4790 = vor.u32 %v4788, %v4786
      %v4792 = vshll.u32 %v4700, 16
      %v4794 = vrot.slane %v4792, 1
      %v4795 = vsel %vm4062, %v4790, %v4794
      %v4796 = vshrl.u32 %v4700, 16
      %v4798 = vor.u32 %v4796, %v4794
      %v4800 = vshll.u32 %v4701, 16
      %v4802 = vrot.slane %v4800, 1
      %v4803 = vsel %vm4062, %v4798, %v4802
      %v4804 = vshrl.u32 %v4701, 16
      %v4806 = vor.u32 %v4804, %v4802
      %v4808 = vshll.u32 %v4702, 16
      %v4810 = vrot.slane %v4808, 1
      %v4811 = vsel %vm4062, %v4806, %v4810
      %v4812 = vshrl.u32 %v4702, 16
      %v4814 = vor.u32 %v4812, %v4810
      %v4816 = vshll.u32 %v4703, 16
      %v4818 = vrot.slane %v4816, 1
      %v4819 = vsel %vm4062, %v4814, %v4818
      %v4820 = vshrl.u32 %v4703, 16
      %v4822 = vor.u32 %v4820, %v4818
      %v4824 = vshll.u32 %v4704, 16
      %v4826 = vrot.slane %v4824, 1
      %v4827 = vsel %vm4062, %v4822, %v4826
      %v4828 = vshrl.u32 %v4704, 16
      %v4830 = vor.u32 %v4828, %v4826
      %v4832 = vshll.u32 %v4705, 16
      %v4834 = vrot.slane %v4832, 1
      %v4835 = vsel %vm4062, %v4830, %v4834
      %v4836 = vshrl.u32 %v4705, 16
      %v4838 = vor.u32 %v4836, %v4834
      %v4840 = vshll.u32 %v4706, 16
      %v4842 = vrot.slane %v4840, 1
      %v4843 = vsel %vm4062, %v4838, %v4842
      %v4844 = vshrl.u32 %v4706, 16
      %v4846 = vor.u32 %v4844, %v4842
      %v4848 = vshll.u32 %v4707, 16
      %v4850 = vrot.slane %v4848, 1
      %v4851 = vsel %vm4062, %v4846, %v4850
      %v4852 = vshrl.u32 %v4707, 16
      %v4854 = vor.u32 %v4852, %v4850
      %v4856 = vshll.u32 %v4708, 16
      %v4858 = vrot.slane %v4856, 1
      %v4859 = vsel %vm4062, %v4854, %v4858
      %v4860 = vshrl.u32 %v4708, 16
      %v4862 = vor.u32 %v4860, %v4858
      %v4864 = vshll.u32 %v4709, 16
      %v4866 = vrot.slane %v4864, 1
      %v4867 = vsel %vm4062, %v4862, %v4866
      %v4868 = vshrl.u32 %v4709, 16
      %v4870 = vor.u32 %v4868, %v4866
      %v4872 = vshll.u32 %v4710, 16
      %v4874 = vrot.slane %v4872, 1
      %v4875 = vsel %vm4062, %v4870, %v4874
      %v4876 = vshrl.u32 %v4710, 16
      %v4878 = vor.u32 %v4876, %v4874
      %v4880 = vshll.u32 %v4711, 16
      %v4882 = vrot.slane %v4880, 1
      %v4883 = vsel %vm4062, %v4878, %v4882
      %v4921 = vunpack.c.l.b16 %v4588
      %v4922 = vunpack.c.l.b16 %v4589
      %v4923 = vunpack.c.l.b16 %v4590
      %v4924 = vunpack.c.l.b16 %v4591
      %v4925 = vunpack.c.l.b16 %v4592
      %v4926 = vunpack.c.l.b16 %v4593
      %v4927 = vunpack.c.l.b16 %v4594
      %v4928 = vunpack.c.l.b16 %v4595
      %v4929 = vunpack.c.l.b16 %v4596
      %v4930 = vunpack.c.l.b16 %v4597
      %v4931 = vunpack.c.l.b16 %v4598
      %v4932 = vunpack.c.l.b16 %v4599
      %v4933 = vunpack.c.l.b16 %v4600
      %v4934 = vunpack.c.l.b16 %v4601
      %v4935 = vunpack.c.l.b16 %v4602
      %v4936 = vunpack.c.l.b16 %v4603
      %v4937 = vpack.c.b16 %v4922, %v4921
      %v4938 = vpack.c.b16 %v4924, %v4923
      %v4939 = vpack.c.b16 %v4926, %v4925
      %v4940 = vpack.c.b16 %v4928, %v4927
      %v4941 = vpack.c.b16 %v4930, %v4929
      %v4942 = vpack.c.b16 %v4932, %v4931
      %v4943 = vpack.c.b16 %v4934, %v4933
      %v4944 = vpack.c.b16 %v4936, %v4935
      %4953 = vmatpush.bf16.msra.mxu0 %v4944
      %4954 = vmatpush.bf16.msra.mxu0 %v4943
      %4955 = vmatpush.bf16.msra.mxu0 %v4942
      %4956 = vmatpush.bf16.msra.mxu0 %v4941
      %4957 = vmatpush.bf16.msra.mxu0 %v4940
      %4958 = vmatpush.bf16.msra.mxu0 %v4939
      %4959 = vmatpush.bf16.msra.mxu0 %v4938
      %4960 = vmatpush.bf16.msra.mxu0 %v4937
      %4961 = vmatmul.bf16.gmra.mxu0 %v4723
      %v4962 = vpop.f32.mrf.mxu0
      %v4963 = vadd.f32 0.0, %v4962
      %v4964 = vpop.f32.mrf.mxu0
      %v4965 = vadd.f32 0.0, %v4964
      %4966 = vmatmul.bf16.gmra.mxu0 %v4731
      %v4967 = vpop.f32.mrf.mxu0
      %v4968 = vadd.f32 0.0, %v4967
      %v4969 = vpop.f32.mrf.mxu0
      %v4970 = vadd.f32 0.0, %v4969
      %4971 = vmatmul.bf16.gmra.mxu0 %v4739
      %v4972 = vpop.f32.mrf.mxu0
      %v4973 = vadd.f32 0.0, %v4972
      %v4974 = vpop.f32.mrf.mxu0
      %v4975 = vadd.f32 0.0, %v4974
      %4976 = vmatmul.bf16.gmra.mxu0 %v4747
      %v4977 = vpop.f32.mrf.mxu0
      %v4978 = vadd.f32 0.0, %v4977
      %v4979 = vpop.f32.mrf.mxu0
      %v4980 = vadd.f32 0.0, %v4979
      %4981 = vmatmul.bf16.gmra.mxu0 %v4755
      %v4982 = vpop.f32.mrf.mxu0
      %v4983 = vadd.f32 0.0, %v4982
      %v4984 = vpop.f32.mrf.mxu0
      %v4985 = vadd.f32 0.0, %v4984
      %4986 = vmatmul.bf16.gmra.mxu0 %v4763
      %v4987 = vpop.f32.mrf.mxu0
      %v4988 = vadd.f32 0.0, %v4987
      %v4989 = vpop.f32.mrf.mxu0
      %v4990 = vadd.f32 0.0, %v4989
      %4991 = vmatmul.bf16.gmra.mxu0 %v4771
      %v4992 = vpop.f32.mrf.mxu0
      %v4993 = vadd.f32 0.0, %v4992
      %v4994 = vpop.f32.mrf.mxu0
      %v4995 = vadd.f32 0.0, %v4994
      %4996 = vmatmul.bf16.gmra.mxu0 %v4779
      %v4997 = vpop.f32.mrf.mxu0
      %v4998 = vadd.f32 0.0, %v4997
      %v4999 = vpop.f32.mrf.mxu0
      %v5000 = vadd.f32 0.0, %v4999
      %5001 = vmatmul.bf16.gmra.mxu0 %v4787
      %v5002 = vpop.f32.mrf.mxu0
      %v5003 = vadd.f32 0.0, %v5002
      %v5004 = vpop.f32.mrf.mxu0
      %v5005 = vadd.f32 0.0, %v5004
      %5006 = vmatmul.bf16.gmra.mxu0 %v4795
      %v5007 = vpop.f32.mrf.mxu0
      %v5008 = vadd.f32 0.0, %v5007
      %v5009 = vpop.f32.mrf.mxu0
      %v5010 = vadd.f32 0.0, %v5009
      %5011 = vmatmul.bf16.gmra.mxu0 %v4803
      %v5012 = vpop.f32.mrf.mxu0
      %v5013 = vadd.f32 0.0, %v5012
      %v5014 = vpop.f32.mrf.mxu0
      %v5015 = vadd.f32 0.0, %v5014
      %5016 = vmatmul.bf16.gmra.mxu0 %v4811
      %v5017 = vpop.f32.mrf.mxu0
      %v5018 = vadd.f32 0.0, %v5017
      %v5019 = vpop.f32.mrf.mxu0
      %v5020 = vadd.f32 0.0, %v5019
      %5021 = vmatmul.bf16.gmra.mxu0 %v4819
      %v5022 = vpop.f32.mrf.mxu0
      %v5023 = vadd.f32 0.0, %v5022
      %v5024 = vpop.f32.mrf.mxu0
      %v5025 = vadd.f32 0.0, %v5024
      %5026 = vmatmul.bf16.gmra.mxu0 %v4827
      %v5027 = vpop.f32.mrf.mxu0
      %v5028 = vadd.f32 0.0, %v5027
      %v5029 = vpop.f32.mrf.mxu0
      %v5030 = vadd.f32 0.0, %v5029
      %5031 = vmatmul.bf16.gmra.mxu0 %v4835
      %v5032 = vpop.f32.mrf.mxu0
      %v5033 = vadd.f32 0.0, %v5032
      %v5034 = vpop.f32.mrf.mxu0
      %v5035 = vadd.f32 0.0, %v5034
      %5036 = vmatmul.bf16.gmra.mxu0 %v4843
      %v5037 = vpop.f32.mrf.mxu0
      %v5038 = vadd.f32 0.0, %v5037
      %v5039 = vpop.f32.mrf.mxu0
      %v5040 = vadd.f32 0.0, %v5039
      %5041 = vmatmul.bf16.gmra.mxu0 %v4851
      %v5042 = vpop.f32.mrf.mxu0
      %v5043 = vadd.f32 0.0, %v5042
      %v5044 = vpop.f32.mrf.mxu0
      %v5045 = vadd.f32 0.0, %v5044
      %5046 = vmatmul.bf16.gmra.mxu0 %v4859
      %v5047 = vpop.f32.mrf.mxu0
      %v5048 = vadd.f32 0.0, %v5047
      %v5049 = vpop.f32.mrf.mxu0
      %v5050 = vadd.f32 0.0, %v5049
      %5051 = vmatmul.bf16.gmra.mxu0 %v4867
      %v5052 = vpop.f32.mrf.mxu0
      %v5053 = vadd.f32 0.0, %v5052
      %v5054 = vpop.f32.mrf.mxu0
      %v5055 = vadd.f32 0.0, %v5054
      %5056 = vmatmul.bf16.gmra.mxu0 %v4875
      %v5057 = vpop.f32.mrf.mxu0
      %v5058 = vadd.f32 0.0, %v5057
      %v5059 = vpop.f32.mrf.mxu0
      %v5060 = vadd.f32 0.0, %v5059
      %5061 = vmatmul.bf16.gmra.mxu0 %v4883
      %v5062 = vpop.f32.mrf.mxu0
      %v5063 = vadd.f32 0.0, %v5062
      %v5064 = vpop.f32.mrf.mxu0
      %v5065 = vadd.f32 0.0, %v5064
      %5066 = vdwg.mxu0
      %v5067 = vadd.f32 %v4502, %v4963
      %v5068 = vadd.f32 %v4503, %v4965
      %v5069 = vadd.f32 %v4504, %v4968
      %v5070 = vadd.f32 %v4505, %v4970
      %v5071 = vadd.f32 %v4506, %v4973
      %v5072 = vadd.f32 %v4507, %v4975
      %v5073 = vadd.f32 %v4508, %v4978
      %v5074 = vadd.f32 %v4509, %v4980
      %v5075 = vadd.f32 %v4510, %v4983
      %v5076 = vadd.f32 %v4511, %v4985
      %v5077 = vadd.f32 %v4512, %v4988
      %v5078 = vadd.f32 %v4513, %v4990
      %v5079 = vadd.f32 %v4514, %v4993
      %v5080 = vadd.f32 %v4515, %v4995
      %v5081 = vadd.f32 %v4516, %v4998
      %v5082 = vadd.f32 %v4517, %v5000
      %v5083 = vadd.f32 %v4518, %v5003
      %v5084 = vadd.f32 %v4519, %v5005
      %v5085 = vadd.f32 %v4520, %v5008
      %v5086 = vadd.f32 %v4521, %v5010
      %v5087 = vadd.f32 %v4522, %v5013
      %v5088 = vadd.f32 %v4523, %v5015
      %v5089 = vadd.f32 %v4524, %v5018
      %v5090 = vadd.f32 %v4525, %v5020
      %v5091 = vadd.f32 %v4526, %v5023
      %v5092 = vadd.f32 %v4527, %v5025
      %v5093 = vadd.f32 %v4528, %v5028
      %v5094 = vadd.f32 %v4529, %v5030
      %v5095 = vadd.f32 %v4530, %v5033
      %v5096 = vadd.f32 %v4531, %v5035
      %v5097 = vadd.f32 %v4532, %v5038
      %v5098 = vadd.f32 %v4533, %v5040
      %v5099 = vadd.f32 %v4534, %v5043
      %v5100 = vadd.f32 %v4535, %v5045
      %v5101 = vadd.f32 %v4536, %v5048
      %v5102 = vadd.f32 %v4537, %v5050
      %v5103 = vadd.f32 %v4538, %v5053
      %v5104 = vadd.f32 %v4539, %v5055
      %v5105 = vadd.f32 %v4540, %v5058
      %v5106 = vadd.f32 %v4541, %v5060
      %v5107 = vadd.f32 %v4542, %v5063
      %v5108 = vadd.f32 %v4543, %v5065
      %5109 = vst [vmem:[#allocation3] sm:$0xff] %v5067
      %5110 = vst [vmem:[#allocation3 + $0x8] sm:$0xff] %v5068
      %5111 = vst [vmem:[#allocation3 + $0x10] sm:$0xff] %v5069
      %5112 = vst [vmem:[#allocation3 + $0x18] sm:$0xff] %v5070
      %5113 = vst [vmem:[#allocation3 + $0x20] sm:$0xff] %v5071
      %5114 = vst [vmem:[#allocation3 + $0x28] sm:$0xff] %v5072
      %5115 = vst [vmem:[#allocation3 + $0x30] sm:$0xff] %v5073
      %5116 = vst [vmem:[#allocation3 + $0x38] sm:$0xff] %v5074
      %5117 = vst [vmem:[#allocation3 + $0x40] sm:$0xff] %v5075
      %5118 = vst [vmem:[#allocation3 + $0x48] sm:$0xff] %v5076
      %5119 = vst [vmem:[#allocation3 + $0x50] sm:$0xff] %v5077
      %5120 = vst [vmem:[#allocation3 + $0x58] sm:$0xff] %v5078
      %5121 = vst [vmem:[#allocation3 + $0x60] sm:$0xff] %v5079
      %5122 = vst [vmem:[#allocation3 + $0x68] sm:$0xff] %v5080
      %5123 = vst [vmem:[#allocation3 + $0x70] sm:$0xff] %v5081
      %5124 = vst [vmem:[#allocation3 + $0x78] sm:$0xff] %v5082
      %5125 = vst [vmem:[#allocation3 + $0x80] sm:$0xff] %v5083
      %5126 = vst [vmem:[#allocation3 + $0x88] sm:$0xff] %v5084
      %5127 = vst [vmem:[#allocation3 + $0x90] sm:$0xff] %v5085
      %5128 = vst [vmem:[#allocation3 + $0x98] sm:$0xff] %v5086
      %5129 = vst [vmem:[#allocation3 + $0xa0] sm:$0xff] %v5087
      %5130 = vst [vmem:[#allocation3 + $0xa8] sm:$0xff] %v5088
      %5131 = vst [vmem:[#allocation3 + $0xb0] sm:$0xff] %v5089
      %5132 = vst [vmem:[#allocation3 + $0xb8] sm:$0xff] %v5090
      %5133 = vst [vmem:[#allocation3 + $0xc0] sm:$0xff] %v5091
      %5134 = vst [vmem:[#allocation3 + $0xc8] sm:$0xff] %v5092
      %5135 = vst [vmem:[#allocation3 + $0xd0] sm:$0xff] %v5093
      %5136 = vst [vmem:[#allocation3 + $0xd8] sm:$0xff] %v5094
      %5137 = vst [vmem:[#allocation3 + $0xe0] sm:$0xff] %v5095
      %5138 = vst [vmem:[#allocation3 + $0xe8] sm:$0xff] %v5096
      %5139 = vst [vmem:[#allocation3 + $0xf0] sm:$0xff] %v5097
      %5140 = vst [vmem:[#allocation3 + $0xf8] sm:$0xff] %v5098
      %5141 = vst [vmem:[#allocation3 + $0x100] sm:$0xff] %v5099
      %5142 = vst [vmem:[#allocation3 + $0x108] sm:$0xff] %v5100
      %5143 = vst [vmem:[#allocation3 + $0x110] sm:$0xff] %v5101
      %5144 = vst [vmem:[#allocation3 + $0x118] sm:$0xff] %v5102
      %5145 = vst [vmem:[#allocation3 + $0x120] sm:$0xff] %v5103
      %5146 = vst [vmem:[#allocation3 + $0x128] sm:$0xff] %v5104
      %5147 = vst [vmem:[#allocation3 + $0x130] sm:$0xff] %v5105
      %5148 = vst [vmem:[#allocation3 + $0x138] sm:$0xff] %v5106
      %5149 = vst [vmem:[#allocation3 + $0x140] sm:$0xff] %v5107
      %5150 = vst [vmem:[#allocation3 + $0x148] sm:$0xff] %v5108
      %v5151 = vld [vmem:[#allocation3] sm:$0xff]
      %v5152 = vld [vmem:[#allocation3 + $0x8] sm:$0xff]
      %v5153 = vld [vmem:[#allocation3 + $0x10] sm:$0xff]
      %v5154 = vld [vmem:[#allocation3 + $0x18] sm:$0xff]
      %v5155 = vld [vmem:[#allocation3 + $0x20] sm:$0xff]
      %v5156 = vld [vmem:[#allocation3 + $0x28] sm:$0xff]
      %v5157 = vld [vmem:[#allocation3 + $0x30] sm:$0xff]
      %v5158 = vld [vmem:[#allocation3 + $0x38] sm:$0xff]
      %v5159 = vld [vmem:[#allocation3 + $0x40] sm:$0xff]
      %v5160 = vld [vmem:[#allocation3 + $0x48] sm:$0xff]
      %v5161 = vld [vmem:[#allocation3 + $0x50] sm:$0xff]
      %v5162 = vld [vmem:[#allocation3 + $0x58] sm:$0xff]
      %v5163 = vld [vmem:[#allocation3 + $0x60] sm:$0xff]
      %v5164 = vld [vmem:[#allocation3 + $0x68] sm:$0xff]
      %v5165 = vld [vmem:[#allocation3 + $0x70] sm:$0xff]
      %v5166 = vld [vmem:[#allocation3 + $0x78] sm:$0xff]
      %v5167 = vld [vmem:[#allocation3 + $0x80] sm:$0xff]
      %v5168 = vld [vmem:[#allocation3 + $0x88] sm:$0xff]
      %v5169 = vld [vmem:[#allocation3 + $0x90] sm:$0xff]
      %v5170 = vld [vmem:[#allocation3 + $0x98] sm:$0xff]
      %v5171 = vld [vmem:[#allocation3 + $0xa0] sm:$0xff]
      %v5172 = vld [vmem:[#allocation3 + $0xa8] sm:$0xff]
      %v5173 = vld [vmem:[#allocation3 + $0xb0] sm:$0xff]
      %v5174 = vld [vmem:[#allocation3 + $0xb8] sm:$0xff]
      %v5175 = vld [vmem:[#allocation3 + $0xc0] sm:$0xff]
      %v5176 = vld [vmem:[#allocation3 + $0xc8] sm:$0xff]
      %v5177 = vld [vmem:[#allocation3 + $0xd0] sm:$0xff]
      %v5178 = vld [vmem:[#allocation3 + $0xd8] sm:$0xff]
      %v5179 = vld [vmem:[#allocation3 + $0xe0] sm:$0xff]
      %v5180 = vld [vmem:[#allocation3 + $0xe8] sm:$0xff]
      %v5181 = vld [vmem:[#allocation3 + $0xf0] sm:$0xff]
      %v5182 = vld [vmem:[#allocation3 + $0xf8] sm:$0xff]
      %v5183 = vld [vmem:[#allocation3 + $0x100] sm:$0xff]
      %v5184 = vld [vmem:[#allocation3 + $0x108] sm:$0xff]
      %v5185 = vld [vmem:[#allocation3 + $0x110] sm:$0xff]
      %v5186 = vld [vmem:[#allocation3 + $0x118] sm:$0xff]
      %v5187 = vld [vmem:[#allocation3 + $0x120] sm:$0xff]
      %v5188 = vld [vmem:[#allocation3 + $0x128] sm:$0xff]
      %v5189 = vld [vmem:[#allocation3 + $0x130] sm:$0xff]
      %v5190 = vld [vmem:[#allocation3 + $0x138] sm:$0xff]
      %v5191 = vld [vmem:[#allocation3 + $0x140] sm:$0xff]
      %v5192 = vld [vmem:[#allocation3 + $0x148] sm:$0xff]
      %v5193 = vld [vmem:[#allocation2 + $0x18] sm:$0xe]
      %v5194 = vld [vmem:[#allocation2 + $0x1c] sm:$0xf]
      %v5195 = vld [vmem:[#allocation2 + $0x20] sm:$0xf]
      %v5196 = vld [vmem:[#allocation2 + $0x24] sm:$0xf]
      %v5197 = vld [vmem:[#allocation2 + $0x28] sm:$0xf]
      %v5198 = vld [vmem:[#allocation2 + $0x2c] sm:$0xf]
      %v5199 = vld [vmem:[#allocation2 + $0x30] sm:$0xf]
      %v5200 = vld [vmem:[#allocation2 + $0x34] sm:$0xf]
      %v5201 = vld [vmem:[#allocation2 + $0x38] sm:$0xf]
      %v5202 = vld [vmem:[#allocation2 + $0x3c] sm:$0xf]
      %v5203 = vld [vmem:[#allocation2 + $0x40] sm:$0xf]
      %v5204 = vld [vmem:[#allocation2 + $0x44] sm:$0xf]
      %v5205 = vld [vmem:[#allocation2 + $0x48] sm:$0xf]
      %v5206 = vld [vmem:[#allocation2 + $0x4c] sm:$0xf]
      %v5207 = vld [vmem:[#allocation2 + $0x50] sm:$0xf]
      %v5208 = vld [vmem:[#allocation2 + $0x54] sm:$0xf]
      %v5209 = vld [vmem:[#allocation2 + $0x58] sm:$0xf]
      %v5210 = vld [vmem:[#allocation2 + $0x5c] sm:$0xf]
      %v5211 = vld [vmem:[#allocation2 + $0x60] sm:$0xf]
      %v5212 = vld [vmem:[#allocation2 + $0x64] sm:$0xf]
      %v5213 = vld [vmem:[#allocation2 + $0x68] sm:$0xf]
      %v5214 = vld [vmem:[#allocation2 + $0x6c] sm:$0xf]
      %v5215 = vld [vmem:[#allocation2 + $0x70] sm:$0xf]
      %v5216 = vld [vmem:[#allocation2 + $0x74] sm:$0xf]
      %v5217 = vld [vmem:[#allocation2 + $0x78] sm:$0xf]
      %v5218 = vld [vmem:[#allocation2 + $0x7c] sm:$0xf]
      %v5219 = vld [vmem:[#allocation2 + $0x80] sm:$0xf]
      %v5220 = vld [vmem:[#allocation2 + $0x84] sm:$0xf]
      %v5221 = vld [vmem:[#allocation2 + $0x88] sm:$0xf]
      %v5222 = vld [vmem:[#allocation2 + $0x8c] sm:$0xf]
      %v5223 = vld [vmem:[#allocation2 + $0x90] sm:$0xf]
      %v5224 = vld [vmem:[#allocation2 + $0x94] sm:$0xf]
      %v5225 = vld [vmem:[#allocation2 + $0x98] sm:$0xf]
      %v5226 = vld [vmem:[#allocation2 + $0x9c] sm:$0xf]
      %v5227 = vld [vmem:[#allocation2 + $0xa0] sm:$0xf]
      %v5228 = vld [vmem:[#allocation2 + $0xa4] sm:$0xf]
      %v5229 = vld [vmem:[#allocation2 + $0xa8] sm:$0xf]
      %v5230 = vld [vmem:[#allocation2 + $0xac] sm:$0xf]
      %v5231 = vld [vmem:[#allocation2 + $0xb0] sm:$0xf]
      %v5232 = vld [vmem:[#allocation2 + $0xb4] sm:$0xf]
      %v5233 = vld [vmem:[#allocation2 + $0xb8] sm:$0xf]
      %v5234 = vld [vmem:[#allocation2 + $0xbc] sm:$0xf]
      %v5235 = vld [vmem:[#allocation2 + $0xc0] sm:$0x1]
      %s5236 = scalar_lea.vmem %s3, 448
      %v5237 = vld [vmem:[%s5236] sm:$0xf]
      %v5238 = vld [vmem:[%s5236 + $0x4] sm:$0xf]
      %v5239 = vld [vmem:[%s5236 + $0x8] sm:$0xf]
      %v5240 = vld [vmem:[%s5236 + $0xc] sm:$0xf]
      %v5241 = vld [vmem:[%s5236 + $0x10] sm:$0xf]
      %v5242 = vld [vmem:[%s5236 + $0x14] sm:$0xf]
      %v5243 = vld [vmem:[%s5236 + $0x18] sm:$0xf]
      %v5244 = vld [vmem:[%s5236 + $0x1c] sm:$0xf]
      %v5245 = vld [vmem:[%s5236 + $0x20] sm:$0xf]
      %v5246 = vld [vmem:[%s5236 + $0x24] sm:$0xf]
      %v5247 = vld [vmem:[%s5236 + $0x28] sm:$0xf]
      %v5248 = vld [vmem:[%s5236 + $0x2c] sm:$0xf]
      %v5249 = vld [vmem:[%s5236 + $0x30] sm:$0xf]
      %v5250 = vld [vmem:[%s5236 + $0x34] sm:$0xf]
      %v5251 = vld [vmem:[%s5236 + $0x38] sm:$0xf]
      %v5252 = vld [vmem:[%s5236 + $0x3c] sm:$0xf]
      %v5296 = vunpack.c.l.b16 %v5193
      %v5297 = vunpack.c.l.b16 %v5194
      %v5298 = vunpack.c.l.b16 %v5195
      %v5299 = vunpack.c.l.b16 %v5196
      %v5300 = vunpack.c.l.b16 %v5197
      %v5301 = vunpack.c.l.b16 %v5198
      %v5302 = vunpack.c.l.b16 %v5199
      %v5303 = vunpack.c.l.b16 %v5200
      %v5304 = vunpack.c.l.b16 %v5201
      %v5305 = vunpack.c.l.b16 %v5202
      %v5306 = vunpack.c.l.b16 %v5203
      %v5307 = vunpack.c.l.b16 %v5204
      %v5308 = vunpack.c.l.b16 %v5205
      %v5309 = vunpack.c.l.b16 %v5206
      %v5310 = vunpack.c.l.b16 %v5207
      %v5311 = vunpack.c.l.b16 %v5208
      %v5312 = vunpack.c.l.b16 %v5209
      %v5313 = vunpack.c.l.b16 %v5210
      %v5314 = vunpack.c.l.b16 %v5211
      %v5315 = vunpack.c.l.b16 %v5212
      %v5316 = vunpack.c.l.b16 %v5213
      %v5317 = vunpack.c.l.b16 %v5214
      %v5318 = vunpack.c.l.b16 %v5215
      %v5319 = vunpack.c.l.b16 %v5216
      %v5320 = vunpack.c.l.b16 %v5217
      %v5321 = vunpack.c.l.b16 %v5218
      %v5322 = vunpack.c.l.b16 %v5219
      %v5323 = vunpack.c.l.b16 %v5220
      %v5324 = vunpack.c.l.b16 %v5221
      %v5325 = vunpack.c.l.b16 %v5222
      %v5326 = vunpack.c.l.b16 %v5223
      %v5327 = vunpack.c.l.b16 %v5224
      %v5328 = vunpack.c.l.b16 %v5225
      %v5329 = vunpack.c.l.b16 %v5226
      %v5330 = vunpack.c.l.b16 %v5227
      %v5331 = vunpack.c.l.b16 %v5228
      %v5332 = vunpack.c.l.b16 %v5229
      %v5333 = vunpack.c.l.b16 %v5230
      %v5334 = vunpack.c.l.b16 %v5231
      %v5335 = vunpack.c.l.b16 %v5232
      %v5336 = vunpack.c.l.b16 %v5233
      %v5337 = vunpack.c.l.b16 %v5234
      %v5338 = vunpack.c.l.b16 %v5235
      %v5339 = vpack.c.b16 %v5297, %v5296
      %v5340 = vpack.c.b16 %v5299, %v5298
      %v5341 = vpack.c.b16 %v5301, %v5300
      %v5342 = vpack.c.b16 %v5303, %v5302
      %v5343 = vpack.c.b16 %v5305, %v5304
      %v5344 = vpack.c.b16 %v5307, %v5306
      %v5345 = vpack.c.b16 %v5309, %v5308
      %v5346 = vpack.c.b16 %v5311, %v5310
      %v5347 = vpack.c.b16 %v5313, %v5312
      %v5348 = vpack.c.b16 %v5315, %v5314
      %v5349 = vpack.c.b16 %v5317, %v5316
      %v5350 = vpack.c.b16 %v5319, %v5318
      %v5351 = vpack.c.b16 %v5321, %v5320
      %v5352 = vpack.c.b16 %v5323, %v5322
      %v5353 = vpack.c.b16 %v5325, %v5324
      %v5354 = vpack.c.b16 %v5327, %v5326
      %v5355 = vpack.c.b16 %v5329, %v5328
      %v5356 = vpack.c.b16 %v5331, %v5330
      %v5357 = vpack.c.b16 %v5333, %v5332
      %v5358 = vpack.c.b16 %v5335, %v5334
      %v5359 = vpack.c.b16 %v5337, %v5336
      %v5360 = vpack.c.b16 %v5338, %v5338
      %vm5361 = vcmask 1046528
      %v5362 = vrot.slane %v5339, 1
      %v5363 = vrot.slane %v5340, 1
      %v5364 = vsel %vm5361, %v5362, %v5363
      %v5365 = vrot.slane %v5341, 1
      %v5366 = vsel %vm5361, %v5363, %v5365
      %v5367 = vrot.slane %v5342, 1
      %v5368 = vsel %vm5361, %v5365, %v5367
      %v5369 = vrot.slane %v5343, 1
      %v5370 = vsel %vm5361, %v5367, %v5369
      %v5371 = vrot.slane %v5344, 1
      %v5372 = vsel %vm5361, %v5369, %v5371
      %v5373 = vrot.slane %v5345, 1
      %v5374 = vsel %vm5361, %v5371, %v5373
      %v5375 = vrot.slane %v5346, 1
      %v5376 = vsel %vm5361, %v5373, %v5375
      %v5377 = vrot.slane %v5347, 1
      %v5378 = vsel %vm5361, %v5375, %v5377
      %v5379 = vrot.slane %v5348, 1
      %v5380 = vsel %vm5361, %v5377, %v5379
      %v5381 = vrot.slane %v5349, 1
      %v5382 = vsel %vm5361, %v5379, %v5381
      %v5383 = vrot.slane %v5350, 1
      %v5384 = vsel %vm5361, %v5381, %v5383
      %v5385 = vrot.slane %v5351, 1
      %v5386 = vsel %vm5361, %v5383, %v5385
      %v5387 = vrot.slane %v5352, 1
      %v5388 = vsel %vm5361, %v5385, %v5387
      %v5389 = vrot.slane %v5353, 1
      %v5390 = vsel %vm5361, %v5387, %v5389
      %v5391 = vrot.slane %v5354, 1
      %v5392 = vsel %vm5361, %v5389, %v5391
      %v5393 = vrot.slane %v5355, 1
      %v5394 = vsel %vm5361, %v5391, %v5393
      %v5395 = vrot.slane %v5356, 1
      %v5396 = vsel %vm5361, %v5393, %v5395
      %v5397 = vrot.slane %v5357, 1
      %v5398 = vsel %vm5361, %v5395, %v5397
      %v5399 = vrot.slane %v5358, 1
      %v5400 = vsel %vm5361, %v5397, %v5399
      %v5401 = vrot.slane %v5359, 1
      %v5402 = vsel %vm5361, %v5399, %v5401
      %v5403 = vrot.slane %v5360, 1
      %v5404 = vsel %vm5361, %v5401, %v5403
      %v5442 = vunpack.c.l.b16 %v5237
      %v5443 = vunpack.c.l.b16 %v5238
      %v5444 = vunpack.c.l.b16 %v5239
      %v5445 = vunpack.c.l.b16 %v5240
      %v5446 = vunpack.c.l.b16 %v5241
      %v5447 = vunpack.c.l.b16 %v5242
      %v5448 = vunpack.c.l.b16 %v5243
      %v5449 = vunpack.c.l.b16 %v5244
      %v5450 = vunpack.c.l.b16 %v5245
      %v5451 = vunpack.c.l.b16 %v5246
      %v5452 = vunpack.c.l.b16 %v5247
      %v5453 = vunpack.c.l.b16 %v5248
      %v5454 = vunpack.c.l.b16 %v5249
      %v5455 = vunpack.c.l.b16 %v5250
      %v5456 = vunpack.c.l.b16 %v5251
      %v5457 = vunpack.c.l.b16 %v5252
      %v5458 = vpack.c.b16 %v5443, %v5442
      %v5459 = vpack.c.b16 %v5445, %v5444
      %v5460 = vpack.c.b16 %v5447, %v5446
      %v5461 = vpack.c.b16 %v5449, %v5448
      %v5462 = vpack.c.b16 %v5451, %v5450
      %v5463 = vpack.c.b16 %v5453, %v5452
      %v5464 = vpack.c.b16 %v5455, %v5454
      %v5465 = vpack.c.b16 %v5457, %v5456
      %5474 = vmatpush.bf16.msra.mxu0 %v5465
      %5475 = vmatpush.bf16.msra.mxu0 %v5464
      %5476 = vmatpush.bf16.msra.mxu0 %v5463
      %5477 = vmatpush.bf16.msra.mxu0 %v5462
      %5478 = vmatpush.bf16.msra.mxu0 %v5461
      %5479 = vmatpush.bf16.msra.mxu0 %v5460
      %5480 = vmatpush.bf16.msra.mxu0 %v5459
      %5481 = vmatpush.bf16.msra.mxu0 %v5458
      %5482 = vmatmul.bf16.gmra.mxu0 %v5364
      %v5483 = vpop.f32.mrf.mxu0
      %v5484 = vadd.f32 0.0, %v5483
      %v5485 = vpop.f32.mrf.mxu0
      %v5486 = vadd.f32 0.0, %v5485
      %5487 = vmatmul.bf16.gmra.mxu0 %v5366
      %v5488 = vpop.f32.mrf.mxu0
      %v5489 = vadd.f32 0.0, %v5488
      %v5490 = vpop.f32.mrf.mxu0
      %v5491 = vadd.f32 0.0, %v5490
      %5492 = vmatmul.bf16.gmra.mxu0 %v5368
      %v5493 = vpop.f32.mrf.mxu0
      %v5494 = vadd.f32 0.0, %v5493
      %v5495 = vpop.f32.mrf.mxu0
      %v5496 = vadd.f32 0.0, %v5495
      %5497 = vmatmul.bf16.gmra.mxu0 %v5370
      %v5498 = vpop.f32.mrf.mxu0
      %v5499 = vadd.f32 0.0, %v5498
      %v5500 = vpop.f32.mrf.mxu0
      %v5501 = vadd.f32 0.0, %v5500
      %5502 = vmatmul.bf16.gmra.mxu0 %v5372
      %v5503 = vpop.f32.mrf.mxu0
      %v5504 = vadd.f32 0.0, %v5503
      %v5505 = vpop.f32.mrf.mxu0
      %v5506 = vadd.f32 0.0, %v5505
      %5507 = vmatmul.bf16.gmra.mxu0 %v5374
      %v5508 = vpop.f32.mrf.mxu0
      %v5509 = vadd.f32 0.0, %v5508
      %v5510 = vpop.f32.mrf.mxu0
      %v5511 = vadd.f32 0.0, %v5510
      %5512 = vmatmul.bf16.gmra.mxu0 %v5376
      %v5513 = vpop.f32.mrf.mxu0
      %v5514 = vadd.f32 0.0, %v5513
      %v5515 = vpop.f32.mrf.mxu0
      %v5516 = vadd.f32 0.0, %v5515
      %5517 = vmatmul.bf16.gmra.mxu0 %v5378
      %v5518 = vpop.f32.mrf.mxu0
      %v5519 = vadd.f32 0.0, %v5518
      %v5520 = vpop.f32.mrf.mxu0
      %v5521 = vadd.f32 0.0, %v5520
      %5522 = vmatmul.bf16.gmra.mxu0 %v5380
      %v5523 = vpop.f32.mrf.mxu0
      %v5524 = vadd.f32 0.0, %v5523
      %v5525 = vpop.f32.mrf.mxu0
      %v5526 = vadd.f32 0.0, %v5525
      %5527 = vmatmul.bf16.gmra.mxu0 %v5382
      %v5528 = vpop.f32.mrf.mxu0
      %v5529 = vadd.f32 0.0, %v5528
      %v5530 = vpop.f32.mrf.mxu0
      %v5531 = vadd.f32 0.0, %v5530
      %5532 = vmatmul.bf16.gmra.mxu0 %v5384
      %v5533 = vpop.f32.mrf.mxu0
      %v5534 = vadd.f32 0.0, %v5533
      %v5535 = vpop.f32.mrf.mxu0
      %v5536 = vadd.f32 0.0, %v5535
      %5537 = vmatmul.bf16.gmra.mxu0 %v5386
      %v5538 = vpop.f32.mrf.mxu0
      %v5539 = vadd.f32 0.0, %v5538
      %v5540 = vpop.f32.mrf.mxu0
      %v5541 = vadd.f32 0.0, %v5540
      %5542 = vmatmul.bf16.gmra.mxu0 %v5388
      %v5543 = vpop.f32.mrf.mxu0
      %v5544 = vadd.f32 0.0, %v5543
      %v5545 = vpop.f32.mrf.mxu0
      %v5546 = vadd.f32 0.0, %v5545
      %5547 = vmatmul.bf16.gmra.mxu0 %v5390
      %v5548 = vpop.f32.mrf.mxu0
      %v5549 = vadd.f32 0.0, %v5548
      %v5550 = vpop.f32.mrf.mxu0
      %v5551 = vadd.f32 0.0, %v5550
      %5552 = vmatmul.bf16.gmra.mxu0 %v5392
      %v5553 = vpop.f32.mrf.mxu0
      %v5554 = vadd.f32 0.0, %v5553
      %v5555 = vpop.f32.mrf.mxu0
      %v5556 = vadd.f32 0.0, %v5555
      %5557 = vmatmul.bf16.gmra.mxu0 %v5394
      %v5558 = vpop.f32.mrf.mxu0
      %v5559 = vadd.f32 0.0, %v5558
      %v5560 = vpop.f32.mrf.mxu0
      %v5561 = vadd.f32 0.0, %v5560
      %5562 = vmatmul.bf16.gmra.mxu0 %v5396
      %v5563 = vpop.f32.mrf.mxu0
      %v5564 = vadd.f32 0.0, %v5563
      %v5565 = vpop.f32.mrf.mxu0
      %v5566 = vadd.f32 0.0, %v5565
      %5567 = vmatmul.bf16.gmra.mxu0 %v5398
      %v5568 = vpop.f32.mrf.mxu0
      %v5569 = vadd.f32 0.0, %v5568
      %v5570 = vpop.f32.mrf.mxu0
      %v5571 = vadd.f32 0.0, %v5570
      %5572 = vmatmul.bf16.gmra.mxu0 %v5400
      %v5573 = vpop.f32.mrf.mxu0
      %v5574 = vadd.f32 0.0, %v5573
      %v5575 = vpop.f32.mrf.mxu0
      %v5576 = vadd.f32 0.0, %v5575
      %5577 = vmatmul.bf16.gmra.mxu0 %v5402
      %v5578 = vpop.f32.mrf.mxu0
      %v5579 = vadd.f32 0.0, %v5578
      %v5580 = vpop.f32.mrf.mxu0
      %v5581 = vadd.f32 0.0, %v5580
      %5582 = vmatmul.bf16.gmra.mxu0 %v5404
      %v5583 = vpop.f32.mrf.mxu0
      %v5584 = vadd.f32 0.0, %v5583
      %v5585 = vpop.f32.mrf.mxu0
      %v5586 = vadd.f32 0.0, %v5585
      %5587 = vdwg.mxu0
      %v5588 = vadd.f32 %v5151, %v5484
      %v5589 = vadd.f32 %v5152, %v5486
      %v5590 = vadd.f32 %v5153, %v5489
      %v5591 = vadd.f32 %v5154, %v5491
      %v5592 = vadd.f32 %v5155, %v5494
      %v5593 = vadd.f32 %v5156, %v5496
      %v5594 = vadd.f32 %v5157, %v5499
      %v5595 = vadd.f32 %v5158, %v5501
      %v5596 = vadd.f32 %v5159, %v5504
      %v5597 = vadd.f32 %v5160, %v5506
      %v5598 = vadd.f32 %v5161, %v5509
      %v5599 = vadd.f32 %v5162, %v5511
      %v5600 = vadd.f32 %v5163, %v5514
      %v5601 = vadd.f32 %v5164, %v5516
      %v5602 = vadd.f32 %v5165, %v5519
      %v5603 = vadd.f32 %v5166, %v5521
      %v5604 = vadd.f32 %v5167, %v5524
      %v5605 = vadd.f32 %v5168, %v5526
      %v5606 = vadd.f32 %v5169, %v5529
      %v5607 = vadd.f32 %v5170, %v5531
      %v5608 = vadd.f32 %v5171, %v5534
      %v5609 = vadd.f32 %v5172, %v5536
      %v5610 = vadd.f32 %v5173, %v5539
      %v5611 = vadd.f32 %v5174, %v5541
      %v5612 = vadd.f32 %v5175, %v5544
      %v5613 = vadd.f32 %v5176, %v5546
      %v5614 = vadd.f32 %v5177, %v5549
      %v5615 = vadd.f32 %v5178, %v5551
      %v5616 = vadd.f32 %v5179, %v5554
      %v5617 = vadd.f32 %v5180, %v5556
      %v5618 = vadd.f32 %v5181, %v5559
      %v5619 = vadd.f32 %v5182, %v5561
      %v5620 = vadd.f32 %v5183, %v5564
      %v5621 = vadd.f32 %v5184, %v5566
      %v5622 = vadd.f32 %v5185, %v5569
      %v5623 = vadd.f32 %v5186, %v5571
      %v5624 = vadd.f32 %v5187, %v5574
      %v5625 = vadd.f32 %v5188, %v5576
      %v5626 = vadd.f32 %v5189, %v5579
      %v5627 = vadd.f32 %v5190, %v5581
      %v5628 = vadd.f32 %v5191, %v5584
      %v5629 = vadd.f32 %v5192, %v5586
      %5630 = vst [vmem:[#allocation3] sm:$0xff] %v5588
      %5631 = vst [vmem:[#allocation3 + $0x8] sm:$0xff] %v5589
      %5632 = vst [vmem:[#allocation3 + $0x10] sm:$0xff] %v5590
      %5633 = vst [vmem:[#allocation3 + $0x18] sm:$0xff] %v5591
      %5634 = vst [vmem:[#allocation3 + $0x20] sm:$0xff] %v5592
      %5635 = vst [vmem:[#allocation3 + $0x28] sm:$0xff] %v5593
      %5636 = vst [vmem:[#allocation3 + $0x30] sm:$0xff] %v5594
      %5637 = vst [vmem:[#allocation3 + $0x38] sm:$0xff] %v5595
      %5638 = vst [vmem:[#allocation3 + $0x40] sm:$0xff] %v5596
      %5639 = vst [vmem:[#allocation3 + $0x48] sm:$0xff] %v5597
      %5640 = vst [vmem:[#allocation3 + $0x50] sm:$0xff] %v5598
      %5641 = vst [vmem:[#allocation3 + $0x58] sm:$0xff] %v5599
      %5642 = vst [vmem:[#allocation3 + $0x60] sm:$0xff] %v5600
      %5643 = vst [vmem:[#allocation3 + $0x68] sm:$0xff] %v5601
      %5644 = vst [vmem:[#allocation3 + $0x70] sm:$0xff] %v5602
      %5645 = vst [vmem:[#allocation3 + $0x78] sm:$0xff] %v5603
      %5646 = vst [vmem:[#allocation3 + $0x80] sm:$0xff] %v5604
      %5647 = vst [vmem:[#allocation3 + $0x88] sm:$0xff] %v5605
      %5648 = vst [vmem:[#allocation3 + $0x90] sm:$0xff] %v5606
      %5649 = vst [vmem:[#allocation3 + $0x98] sm:$0xff] %v5607
      %5650 = vst [vmem:[#allocation3 + $0xa0] sm:$0xff] %v5608
      %5651 = vst [vmem:[#allocation3 + $0xa8] sm:$0xff] %v5609
      %5652 = vst [vmem:[#allocation3 + $0xb0] sm:$0xff] %v5610
      %5653 = vst [vmem:[#allocation3 + $0xb8] sm:$0xff] %v5611
      %5654 = vst [vmem:[#allocation3 + $0xc0] sm:$0xff] %v5612
      %5655 = vst [vmem:[#allocation3 + $0xc8] sm:$0xff] %v5613
      %5656 = vst [vmem:[#allocation3 + $0xd0] sm:$0xff] %v5614
      %5657 = vst [vmem:[#allocation3 + $0xd8] sm:$0xff] %v5615
      %5658 = vst [vmem:[#allocation3 + $0xe0] sm:$0xff] %v5616
      %5659 = vst [vmem:[#allocation3 + $0xe8] sm:$0xff] %v5617
      %5660 = vst [vmem:[#allocation3 + $0xf0] sm:$0xff] %v5618
      %5661 = vst [vmem:[#allocation3 + $0xf8] sm:$0xff] %v5619
      %5662 = vst [vmem:[#allocation3 + $0x100] sm:$0xff] %v5620
      %5663 = vst [vmem:[#allocation3 + $0x108] sm:$0xff] %v5621
      %5664 = vst [vmem:[#allocation3 + $0x110] sm:$0xff] %v5622
      %5665 = vst [vmem:[#allocation3 + $0x118] sm:$0xff] %v5623
      %5666 = vst [vmem:[#allocation3 + $0x120] sm:$0xff] %v5624
      %5667 = vst [vmem:[#allocation3 + $0x128] sm:$0xff] %v5625
      %5668 = vst [vmem:[#allocation3 + $0x130] sm:$0xff] %v5626
      %5669 = vst [vmem:[#allocation3 + $0x138] sm:$0xff] %v5627
      %5670 = vst [vmem:[#allocation3 + $0x140] sm:$0xff] %v5628
      %5671 = vst [vmem:[#allocation3 + $0x148] sm:$0xff] %v5629
      %v5672 = vld [vmem:[#allocation3] sm:$0xff]
      %v5673 = vld [vmem:[#allocation3 + $0x8] sm:$0xff]
      %v5674 = vld [vmem:[#allocation3 + $0x10] sm:$0xff]
      %v5675 = vld [vmem:[#allocation3 + $0x18] sm:$0xff]
      %v5676 = vld [vmem:[#allocation3 + $0x20] sm:$0xff]
      %v5677 = vld [vmem:[#allocation3 + $0x28] sm:$0xff]
      %v5678 = vld [vmem:[#allocation3 + $0x30] sm:$0xff]
      %v5679 = vld [vmem:[#allocation3 + $0x38] sm:$0xff]
      %v5680 = vld [vmem:[#allocation3 + $0x40] sm:$0xff]
      %v5681 = vld [vmem:[#allocation3 + $0x48] sm:$0xff]
      %v5682 = vld [vmem:[#allocation3 + $0x50] sm:$0xff]
      %v5683 = vld [vmem:[#allocation3 + $0x58] sm:$0xff]
      %v5684 = vld [vmem:[#allocation3 + $0x60] sm:$0xff]
      %v5685 = vld [vmem:[#allocation3 + $0x68] sm:$0xff]
      %v5686 = vld [vmem:[#allocation3 + $0x70] sm:$0xff]
      %v5687 = vld [vmem:[#allocation3 + $0x78] sm:$0xff]
      %v5688 = vld [vmem:[#allocation3 + $0x80] sm:$0xff]
      %v5689 = vld [vmem:[#allocation3 + $0x88] sm:$0xff]
      %v5690 = vld [vmem:[#allocation3 + $0x90] sm:$0xff]
      %v5691 = vld [vmem:[#allocation3 + $0x98] sm:$0xff]
      %v5692 = vld [vmem:[#allocation3 + $0xa0] sm:$0xff]
      %v5693 = vld [vmem:[#allocation3 + $0xa8] sm:$0xff]
      %v5694 = vld [vmem:[#allocation3 + $0xb0] sm:$0xff]
      %v5695 = vld [vmem:[#allocation3 + $0xb8] sm:$0xff]
      %v5696 = vld [vmem:[#allocation3 + $0xc0] sm:$0xff]
      %v5697 = vld [vmem:[#allocation3 + $0xc8] sm:$0xff]
      %v5698 = vld [vmem:[#allocation3 + $0xd0] sm:$0xff]
      %v5699 = vld [vmem:[#allocation3 + $0xd8] sm:$0xff]
      %v5700 = vld [vmem:[#allocation3 + $0xe0] sm:$0xff]
      %v5701 = vld [vmem:[#allocation3 + $0xe8] sm:$0xff]
      %v5702 = vld [vmem:[#allocation3 + $0xf0] sm:$0xff]
      %v5703 = vld [vmem:[#allocation3 + $0xf8] sm:$0xff]
      %v5704 = vld [vmem:[#allocation3 + $0x100] sm:$0xff]
      %v5705 = vld [vmem:[#allocation3 + $0x108] sm:$0xff]
      %v5706 = vld [vmem:[#allocation3 + $0x110] sm:$0xff]
      %v5707 = vld [vmem:[#allocation3 + $0x118] sm:$0xff]
      %v5708 = vld [vmem:[#allocation3 + $0x120] sm:$0xff]
      %v5709 = vld [vmem:[#allocation3 + $0x128] sm:$0xff]
      %v5710 = vld [vmem:[#allocation3 + $0x130] sm:$0xff]
      %v5711 = vld [vmem:[#allocation3 + $0x138] sm:$0xff]
      %v5712 = vld [vmem:[#allocation3 + $0x140] sm:$0xff]
      %v5713 = vld [vmem:[#allocation3 + $0x148] sm:$0xff]
      %v5714 = vld [vmem:[#allocation2 + $0x18] sm:$0xe]
      %v5715 = vld [vmem:[#allocation2 + $0x1c] sm:$0xf]
      %v5716 = vld [vmem:[#allocation2 + $0x20] sm:$0xf]
      %v5717 = vld [vmem:[#allocation2 + $0x24] sm:$0xf]
      %v5718 = vld [vmem:[#allocation2 + $0x28] sm:$0xf]
      %v5719 = vld [vmem:[#allocation2 + $0x2c] sm:$0xf]
      %v5720 = vld [vmem:[#allocation2 + $0x30] sm:$0xf]
      %v5721 = vld [vmem:[#allocation2 + $0x34] sm:$0xf]
      %v5722 = vld [vmem:[#allocation2 + $0x38] sm:$0xf]
      %v5723 = vld [vmem:[#allocation2 + $0x3c] sm:$0xf]
      %v5724 = vld [vmem:[#allocation2 + $0x40] sm:$0xf]
      %v5725 = vld [vmem:[#allocation2 + $0x44] sm:$0xf]
      %v5726 = vld [vmem:[#allocation2 + $0x48] sm:$0xf]
      %v5727 = vld [vmem:[#allocation2 + $0x4c] sm:$0xf]
      %v5728 = vld [vmem:[#allocation2 + $0x50] sm:$0xf]
      %v5729 = vld [vmem:[#allocation2 + $0x54] sm:$0xf]
      %v5730 = vld [vmem:[#allocation2 + $0x58] sm:$0xf]
      %v5731 = vld [vmem:[#allocation2 + $0x5c] sm:$0xf]
      %v5732 = vld [vmem:[#allocation2 + $0x60] sm:$0xf]
      %v5733 = vld [vmem:[#allocation2 + $0x64] sm:$0xf]
      %v5734 = vld [vmem:[#allocation2 + $0x68] sm:$0xf]
      %v5735 = vld [vmem:[#allocation2 + $0x6c] sm:$0xf]
      %v5736 = vld [vmem:[#allocation2 + $0x70] sm:$0xf]
      %v5737 = vld [vmem:[#allocation2 + $0x74] sm:$0xf]
      %v5738 = vld [vmem:[#allocation2 + $0x78] sm:$0xf]
      %v5739 = vld [vmem:[#allocation2 + $0x7c] sm:$0xf]
      %v5740 = vld [vmem:[#allocation2 + $0x80] sm:$0xf]
      %v5741 = vld [vmem:[#allocation2 + $0x84] sm:$0xf]
      %v5742 = vld [vmem:[#allocation2 + $0x88] sm:$0xf]
      %v5743 = vld [vmem:[#allocation2 + $0x8c] sm:$0xf]
      %v5744 = vld [vmem:[#allocation2 + $0x90] sm:$0xf]
      %v5745 = vld [vmem:[#allocation2 + $0x94] sm:$0xf]
      %v5746 = vld [vmem:[#allocation2 + $0x98] sm:$0xf]
      %v5747 = vld [vmem:[#allocation2 + $0x9c] sm:$0xf]
      %v5748 = vld [vmem:[#allocation2 + $0xa0] sm:$0xf]
      %v5749 = vld [vmem:[#allocation2 + $0xa4] sm:$0xf]
      %v5750 = vld [vmem:[#allocation2 + $0xa8] sm:$0xf]
      %v5751 = vld [vmem:[#allocation2 + $0xac] sm:$0xf]
      %v5752 = vld [vmem:[#allocation2 + $0xb0] sm:$0xf]
      %v5753 = vld [vmem:[#allocation2 + $0xb4] sm:$0xf]
      %v5754 = vld [vmem:[#allocation2 + $0xb8] sm:$0xf]
      %v5755 = vld [vmem:[#allocation2 + $0xbc] sm:$0xf]
      %v5756 = vld [vmem:[#allocation2 + $0xc0] sm:$0x3]
      %s5757 = scalar_lea.vmem %s3, 512
      %v5758 = vld [vmem:[%s5757] sm:$0xf]
      %v5759 = vld [vmem:[%s5757 + $0x4] sm:$0xf]
      %v5760 = vld [vmem:[%s5757 + $0x8] sm:$0xf]
      %v5761 = vld [vmem:[%s5757 + $0xc] sm:$0xf]
      %v5762 = vld [vmem:[%s5757 + $0x10] sm:$0xf]
      %v5763 = vld [vmem:[%s5757 + $0x14] sm:$0xf]
      %v5764 = vld [vmem:[%s5757 + $0x18] sm:$0xf]
      %v5765 = vld [vmem:[%s5757 + $0x1c] sm:$0xf]
      %v5766 = vld [vmem:[%s5757 + $0x20] sm:$0xf]
      %v5767 = vld [vmem:[%s5757 + $0x24] sm:$0xf]
      %v5768 = vld [vmem:[%s5757 + $0x28] sm:$0xf]
      %v5769 = vld [vmem:[%s5757 + $0x2c] sm:$0xf]
      %v5770 = vld [vmem:[%s5757 + $0x30] sm:$0xf]
      %v5771 = vld [vmem:[%s5757 + $0x34] sm:$0xf]
      %v5772 = vld [vmem:[%s5757 + $0x38] sm:$0xf]
      %v5773 = vld [vmem:[%s5757 + $0x3c] sm:$0xf]
      %v5817 = vunpack.c.l.b16 %v5714
      %v5818 = vunpack.c.l.b16 %v5715
      %v5819 = vunpack.c.l.b16 %v5716
      %v5820 = vunpack.c.l.b16 %v5717
      %v5821 = vunpack.c.l.b16 %v5718
      %v5822 = vunpack.c.l.b16 %v5719
      %v5823 = vunpack.c.l.b16 %v5720
      %v5824 = vunpack.c.l.b16 %v5721
      %v5825 = vunpack.c.l.b16 %v5722
      %v5826 = vunpack.c.l.b16 %v5723
      %v5827 = vunpack.c.l.b16 %v5724
      %v5828 = vunpack.c.l.b16 %v5725
      %v5829 = vunpack.c.l.b16 %v5726
      %v5830 = vunpack.c.l.b16 %v5727
      %v5831 = vunpack.c.l.b16 %v5728
      %v5832 = vunpack.c.l.b16 %v5729
      %v5833 = vunpack.c.l.b16 %v5730
      %v5834 = vunpack.c.l.b16 %v5731
      %v5835 = vunpack.c.l.b16 %v5732
      %v5836 = vunpack.c.l.b16 %v5733
      %v5837 = vunpack.c.l.b16 %v5734
      %v5838 = vunpack.c.l.b16 %v5735
      %v5839 = vunpack.c.l.b16 %v5736
      %v5840 = vunpack.c.l.b16 %v5737
      %v5841 = vunpack.c.l.b16 %v5738
      %v5842 = vunpack.c.l.b16 %v5739
      %v5843 = vunpack.c.l.b16 %v5740
      %v5844 = vunpack.c.l.b16 %v5741
      %v5845 = vunpack.c.l.b16 %v5742
      %v5846 = vunpack.c.l.b16 %v5743
      %v5847 = vunpack.c.l.b16 %v5744
      %v5848 = vunpack.c.l.b16 %v5745
      %v5849 = vunpack.c.l.b16 %v5746
      %v5850 = vunpack.c.l.b16 %v5747
      %v5851 = vunpack.c.l.b16 %v5748
      %v5852 = vunpack.c.l.b16 %v5749
      %v5853 = vunpack.c.l.b16 %v5750
      %v5854 = vunpack.c.l.b16 %v5751
      %v5855 = vunpack.c.l.b16 %v5752
      %v5856 = vunpack.c.l.b16 %v5753
      %v5857 = vunpack.c.l.b16 %v5754
      %v5858 = vunpack.c.l.b16 %v5755
      %v5859 = vunpack.c.l.b16 %v5756
      %v5860 = vpack.c.b16 %v5818, %v5817
      %v5861 = vpack.c.b16 %v5820, %v5819
      %v5862 = vpack.c.b16 %v5822, %v5821
      %v5863 = vpack.c.b16 %v5824, %v5823
      %v5864 = vpack.c.b16 %v5826, %v5825
      %v5865 = vpack.c.b16 %v5828, %v5827
      %v5866 = vpack.c.b16 %v5830, %v5829
      %v5867 = vpack.c.b16 %v5832, %v5831
      %v5868 = vpack.c.b16 %v5834, %v5833
      %v5869 = vpack.c.b16 %v5836, %v5835
      %v5870 = vpack.c.b16 %v5838, %v5837
      %v5871 = vpack.c.b16 %v5840, %v5839
      %v5872 = vpack.c.b16 %v5842, %v5841
      %v5873 = vpack.c.b16 %v5844, %v5843
      %v5874 = vpack.c.b16 %v5846, %v5845
      %v5875 = vpack.c.b16 %v5848, %v5847
      %v5876 = vpack.c.b16 %v5850, %v5849
      %v5877 = vpack.c.b16 %v5852, %v5851
      %v5878 = vpack.c.b16 %v5854, %v5853
      %v5879 = vpack.c.b16 %v5856, %v5855
      %v5880 = vpack.c.b16 %v5858, %v5857
      %v5881 = vpack.c.b16 %v5859, %v5859
      %vm5882 = vsmask.f32 6400
      %v5884 = vshrl.u32 %v5860, 16
      %v5886 = vrot.slane %v5884, 1
      %v5887 = vshll.u32 %v5860, 16
      %v5889 = vrot.slane %v5887, 2
      %v5890 = vor.u32 %v5886, %v5889
      %v5892 = vshrl.u32 %v5861, 16
      %v5894 = vrot.slane %v5892, 1
      %v5895 = vshll.u32 %v5861, 16
      %v5897 = vrot.slane %v5895, 2
      %v5898 = vor.u32 %v5894, %v5897
      %v5899 = vsel %vm5882, %v5890, %v5898
      %v5901 = vshrl.u32 %v5862, 16
      %v5903 = vrot.slane %v5901, 1
      %v5904 = vshll.u32 %v5862, 16
      %v5906 = vrot.slane %v5904, 2
      %v5907 = vor.u32 %v5903, %v5906
      %v5908 = vsel %vm5882, %v5898, %v5907
      %v5910 = vshrl.u32 %v5863, 16
      %v5912 = vrot.slane %v5910, 1
      %v5913 = vshll.u32 %v5863, 16
      %v5915 = vrot.slane %v5913, 2
      %v5916 = vor.u32 %v5912, %v5915
      %v5917 = vsel %vm5882, %v5907, %v5916
      %v5919 = vshrl.u32 %v5864, 16
      %v5921 = vrot.slane %v5919, 1
      %v5922 = vshll.u32 %v5864, 16
      %v5924 = vrot.slane %v5922, 2
      %v5925 = vor.u32 %v5921, %v5924
      %v5926 = vsel %vm5882, %v5916, %v5925
      %v5928 = vshrl.u32 %v5865, 16
      %v5930 = vrot.slane %v5928, 1
      %v5931 = vshll.u32 %v5865, 16
      %v5933 = vrot.slane %v5931, 2
      %v5934 = vor.u32 %v5930, %v5933
      %v5935 = vsel %vm5882, %v5925, %v5934
      %v5937 = vshrl.u32 %v5866, 16
      %v5939 = vrot.slane %v5937, 1
      %v5940 = vshll.u32 %v5866, 16
      %v5942 = vrot.slane %v5940, 2
      %v5943 = vor.u32 %v5939, %v5942
      %v5944 = vsel %vm5882, %v5934, %v5943
      %v5946 = vshrl.u32 %v5867, 16
      %v5948 = vrot.slane %v5946, 1
      %v5949 = vshll.u32 %v5867, 16
      %v5951 = vrot.slane %v5949, 2
      %v5952 = vor.u32 %v5948, %v5951
      %v5953 = vsel %vm5882, %v5943, %v5952
      %v5955 = vshrl.u32 %v5868, 16
      %v5957 = vrot.slane %v5955, 1
      %v5958 = vshll.u32 %v5868, 16
      %v5960 = vrot.slane %v5958, 2
      %v5961 = vor.u32 %v5957, %v5960
      %v5962 = vsel %vm5882, %v5952, %v5961
      %v5964 = vshrl.u32 %v5869, 16
      %v5966 = vrot.slane %v5964, 1
      %v5967 = vshll.u32 %v5869, 16
      %v5969 = vrot.slane %v5967, 2
      %v5970 = vor.u32 %v5966, %v5969
      %v5971 = vsel %vm5882, %v5961, %v5970
      %v5973 = vshrl.u32 %v5870, 16
      %v5975 = vrot.slane %v5973, 1
      %v5976 = vshll.u32 %v5870, 16
      %v5978 = vrot.slane %v5976, 2
      %v5979 = vor.u32 %v5975, %v5978
      %v5980 = vsel %vm5882, %v5970, %v5979
      %v5982 = vshrl.u32 %v5871, 16
      %v5984 = vrot.slane %v5982, 1
      %v5985 = vshll.u32 %v5871, 16
      %v5987 = vrot.slane %v5985, 2
      %v5988 = vor.u32 %v5984, %v5987
      %v5989 = vsel %vm5882, %v5979, %v5988
      %v5991 = vshrl.u32 %v5872, 16
      %v5993 = vrot.slane %v5991, 1
      %v5994 = vshll.u32 %v5872, 16
      %v5996 = vrot.slane %v5994, 2
      %v5997 = vor.u32 %v5993, %v5996
      %v5998 = vsel %vm5882, %v5988, %v5997
      %v6000 = vshrl.u32 %v5873, 16
      %v6002 = vrot.slane %v6000, 1
      %v6003 = vshll.u32 %v5873, 16
      %v6005 = vrot.slane %v6003, 2
      %v6006 = vor.u32 %v6002, %v6005
      %v6007 = vsel %vm5882, %v5997, %v6006
      %v6009 = vshrl.u32 %v5874, 16
      %v6011 = vrot.slane %v6009, 1
      %v6012 = vshll.u32 %v5874, 16
      %v6014 = vrot.slane %v6012, 2
      %v6015 = vor.u32 %v6011, %v6014
      %v6016 = vsel %vm5882, %v6006, %v6015
      %v6018 = vshrl.u32 %v5875, 16
      %v6020 = vrot.slane %v6018, 1
      %v6021 = vshll.u32 %v5875, 16
      %v6023 = vrot.slane %v6021, 2
      %v6024 = vor.u32 %v6020, %v6023
      %v6025 = vsel %vm5882, %v6015, %v6024
      %v6027 = vshrl.u32 %v5876, 16
      %v6029 = vrot.slane %v6027, 1
      %v6030 = vshll.u32 %v5876, 16
      %v6032 = vrot.slane %v6030, 2
      %v6033 = vor.u32 %v6029, %v6032
      %v6034 = vsel %vm5882, %v6024, %v6033
      %v6036 = vshrl.u32 %v5877, 16
      %v6038 = vrot.slane %v6036, 1
      %v6039 = vshll.u32 %v5877, 16
      %v6041 = vrot.slane %v6039, 2
      %v6042 = vor.u32 %v6038, %v6041
      %v6043 = vsel %vm5882, %v6033, %v6042
      %v6045 = vshrl.u32 %v5878, 16
      %v6047 = vrot.slane %v6045, 1
      %v6048 = vshll.u32 %v5878, 16
      %v6050 = vrot.slane %v6048, 2
      %v6051 = vor.u32 %v6047, %v6050
      %v6052 = vsel %vm5882, %v6042, %v6051
      %v6054 = vshrl.u32 %v5879, 16
      %v6056 = vrot.slane %v6054, 1
      %v6057 = vshll.u32 %v5879, 16
      %v6059 = vrot.slane %v6057, 2
      %v6060 = vor.u32 %v6056, %v6059
      %v6061 = vsel %vm5882, %v6051, %v6060
      %v6063 = vshrl.u32 %v5880, 16
      %v6065 = vrot.slane %v6063, 1
      %v6066 = vshll.u32 %v5880, 16
      %v6068 = vrot.slane %v6066, 2
      %v6069 = vor.u32 %v6065, %v6068
      %v6070 = vsel %vm5882, %v6060, %v6069
      %v6072 = vshrl.u32 %v5881, 16
      %v6074 = vrot.slane %v6072, 1
      %v6075 = vshll.u32 %v5881, 16
      %v6077 = vrot.slane %v6075, 2
      %v6078 = vor.u32 %v6074, %v6077
      %v6079 = vsel %vm5882, %v6069, %v6078
      %v6117 = vunpack.c.l.b16 %v5758
      %v6118 = vunpack.c.l.b16 %v5759
      %v6119 = vunpack.c.l.b16 %v5760
      %v6120 = vunpack.c.l.b16 %v5761
      %v6121 = vunpack.c.l.b16 %v5762
      %v6122 = vunpack.c.l.b16 %v5763
      %v6123 = vunpack.c.l.b16 %v5764
      %v6124 = vunpack.c.l.b16 %v5765
      %v6125 = vunpack.c.l.b16 %v5766
      %v6126 = vunpack.c.l.b16 %v5767
      %v6127 = vunpack.c.l.b16 %v5768
      %v6128 = vunpack.c.l.b16 %v5769
      %v6129 = vunpack.c.l.b16 %v5770
      %v6130 = vunpack.c.l.b16 %v5771
      %v6131 = vunpack.c.l.b16 %v5772
      %v6132 = vunpack.c.l.b16 %v5773
      %v6133 = vpack.c.b16 %v6118, %v6117
      %v6134 = vpack.c.b16 %v6120, %v6119
      %v6135 = vpack.c.b16 %v6122, %v6121
      %v6136 = vpack.c.b16 %v6124, %v6123
      %v6137 = vpack.c.b16 %v6126, %v6125
      %v6138 = vpack.c.b16 %v6128, %v6127
      %v6139 = vpack.c.b16 %v6130, %v6129
      %v6140 = vpack.c.b16 %v6132, %v6131
      %6149 = vmatpush.bf16.msra.mxu0 %v6140
      %6150 = vmatpush.bf16.msra.mxu0 %v6139
      %6151 = vmatpush.bf16.msra.mxu0 %v6138
      %6152 = vmatpush.bf16.msra.mxu0 %v6137
      %6153 = vmatpush.bf16.msra.mxu0 %v6136
      %6154 = vmatpush.bf16.msra.mxu0 %v6135
      %6155 = vmatpush.bf16.msra.mxu0 %v6134
      %6156 = vmatpush.bf16.msra.mxu0 %v6133
      %6157 = vmatmul.bf16.gmra.mxu0 %v5899
      %v6158 = vpop.f32.mrf.mxu0
      %v6159 = vadd.f32 0.0, %v6158
      %v6160 = vpop.f32.mrf.mxu0
      %v6161 = vadd.f32 0.0, %v6160
      %6162 = vmatmul.bf16.gmra.mxu0 %v5908
      %v6163 = vpop.f32.mrf.mxu0
      %v6164 = vadd.f32 0.0, %v6163
      %v6165 = vpop.f32.mrf.mxu0
      %v6166 = vadd.f32 0.0, %v6165
      %6167 = vmatmul.bf16.gmra.mxu0 %v5917
      %v6168 = vpop.f32.mrf.mxu0
      %v6169 = vadd.f32 0.0, %v6168
      %v6170 = vpop.f32.mrf.mxu0
      %v6171 = vadd.f32 0.0, %v6170
      %6172 = vmatmul.bf16.gmra.mxu0 %v5926
      %v6173 = vpop.f32.mrf.mxu0
      %v6174 = vadd.f32 0.0, %v6173
      %v6175 = vpop.f32.mrf.mxu0
      %v6176 = vadd.f32 0.0, %v6175
      %6177 = vmatmul.bf16.gmra.mxu0 %v5935
      %v6178 = vpop.f32.mrf.mxu0
      %v6179 = vadd.f32 0.0, %v6178
      %v6180 = vpop.f32.mrf.mxu0
      %v6181 = vadd.f32 0.0, %v6180
      %6182 = vmatmul.bf16.gmra.mxu0 %v5944
      %v6183 = vpop.f32.mrf.mxu0
      %v6184 = vadd.f32 0.0, %v6183
      %v6185 = vpop.f32.mrf.mxu0
      %v6186 = vadd.f32 0.0, %v6185
      %6187 = vmatmul.bf16.gmra.mxu0 %v5953
      %v6188 = vpop.f32.mrf.mxu0
      %v6189 = vadd.f32 0.0, %v6188
      %v6190 = vpop.f32.mrf.mxu0
      %v6191 = vadd.f32 0.0, %v6190
      %6192 = vmatmul.bf16.gmra.mxu0 %v5962
      %v6193 = vpop.f32.mrf.mxu0
      %v6194 = vadd.f32 0.0, %v6193
      %v6195 = vpop.f32.mrf.mxu0
      %v6196 = vadd.f32 0.0, %v6195
      %6197 = vmatmul.bf16.gmra.mxu0 %v5971
      %v6198 = vpop.f32.mrf.mxu0
      %v6199 = vadd.f32 0.0, %v6198
      %v6200 = vpop.f32.mrf.mxu0
      %v6201 = vadd.f32 0.0, %v6200
      %6202 = vmatmul.bf16.gmra.mxu0 %v5980
      %v6203 = vpop.f32.mrf.mxu0
      %v6204 = vadd.f32 0.0, %v6203
      %v6205 = vpop.f32.mrf.mxu0
      %v6206 = vadd.f32 0.0, %v6205
      %6207 = vmatmul.bf16.gmra.mxu0 %v5989
      %v6208 = vpop.f32.mrf.mxu0
      %v6209 = vadd.f32 0.0, %v6208
      %v6210 = vpop.f32.mrf.mxu0
      %v6211 = vadd.f32 0.0, %v6210
      %6212 = vmatmul.bf16.gmra.mxu0 %v5998
      %v6213 = vpop.f32.mrf.mxu0
      %v6214 = vadd.f32 0.0, %v6213
      %v6215 = vpop.f32.mrf.mxu0
      %v6216 = vadd.f32 0.0, %v6215
      %6217 = vmatmul.bf16.gmra.mxu0 %v6007
      %v6218 = vpop.f32.mrf.mxu0
      %v6219 = vadd.f32 0.0, %v6218
      %v6220 = vpop.f32.mrf.mxu0
      %v6221 = vadd.f32 0.0, %v6220
      %6222 = vmatmul.bf16.gmra.mxu0 %v6016
      %v6223 = vpop.f32.mrf.mxu0
      %v6224 = vadd.f32 0.0, %v6223
      %v6225 = vpop.f32.mrf.mxu0
      %v6226 = vadd.f32 0.0, %v6225
      %6227 = vmatmul.bf16.gmra.mxu0 %v6025
      %v6228 = vpop.f32.mrf.mxu0
      %v6229 = vadd.f32 0.0, %v6228
      %v6230 = vpop.f32.mrf.mxu0
      %v6231 = vadd.f32 0.0, %v6230
      %6232 = vmatmul.bf16.gmra.mxu0 %v6034
      %v6233 = vpop.f32.mrf.mxu0
      %v6234 = vadd.f32 0.0, %v6233
      %v6235 = vpop.f32.mrf.mxu0
      %v6236 = vadd.f32 0.0, %v6235
      %6237 = vmatmul.bf16.gmra.mxu0 %v6043
      %v6238 = vpop.f32.mrf.mxu0
      %v6239 = vadd.f32 0.0, %v6238
      %v6240 = vpop.f32.mrf.mxu0
      %v6241 = vadd.f32 0.0, %v6240
      %6242 = vmatmul.bf16.gmra.mxu0 %v6052
      %v6243 = vpop.f32.mrf.mxu0
      %v6244 = vadd.f32 0.0, %v6243
      %v6245 = vpop.f32.mrf.mxu0
      %v6246 = vadd.f32 0.0, %v6245
      %6247 = vmatmul.bf16.gmra.mxu0 %v6061
      %v6248 = vpop.f32.mrf.mxu0
      %v6249 = vadd.f32 0.0, %v6248
      %v6250 = vpop.f32.mrf.mxu0
      %v6251 = vadd.f32 0.0, %v6250
      %6252 = vmatmul.bf16.gmra.mxu0 %v6070
      %v6253 = vpop.f32.mrf.mxu0
      %v6254 = vadd.f32 0.0, %v6253
      %v6255 = vpop.f32.mrf.mxu0
      %v6256 = vadd.f32 0.0, %v6255
      %6257 = vmatmul.bf16.gmra.mxu0 %v6079
      %v6258 = vpop.f32.mrf.mxu0
      %v6259 = vadd.f32 0.0, %v6258
      %v6260 = vpop.f32.mrf.mxu0
      %v6261 = vadd.f32 0.0, %v6260
      %6262 = vdwg.mxu0
      %v6263 = vadd.f32 %v5672, %v6159
      %v6264 = vadd.f32 %v5673, %v6161
      %v6265 = vadd.f32 %v5674, %v6164
      %v6266 = vadd.f32 %v5675, %v6166
      %v6267 = vadd.f32 %v5676, %v6169
      %v6268 = vadd.f32 %v5677, %v6171
      %v6269 = vadd.f32 %v5678, %v6174
      %v6270 = vadd.f32 %v5679, %v6176
      %v6271 = vadd.f32 %v5680, %v6179
      %v6272 = vadd.f32 %v5681, %v6181
      %v6273 = vadd.f32 %v5682, %v6184
      %v6274 = vadd.f32 %v5683, %v6186
      %v6275 = vadd.f32 %v5684, %v6189
      %v6276 = vadd.f32 %v5685, %v6191
      %v6277 = vadd.f32 %v5686, %v6194
      %v6278 = vadd.f32 %v5687, %v6196
      %v6279 = vadd.f32 %v5688, %v6199
      %v6280 = vadd.f32 %v5689, %v6201
      %v6281 = vadd.f32 %v5690, %v6204
      %v6282 = vadd.f32 %v5691, %v6206
      %v6283 = vadd.f32 %v5692, %v6209
      %v6284 = vadd.f32 %v5693, %v6211
      %v6285 = vadd.f32 %v5694, %v6214
      %v6286 = vadd.f32 %v5695, %v6216
      %v6287 = vadd.f32 %v5696, %v6219
      %v6288 = vadd.f32 %v5697, %v6221
      %v6289 = vadd.f32 %v5698, %v6224
      %v6290 = vadd.f32 %v5699, %v6226
      %v6291 = vadd.f32 %v5700, %v6229
      %v6292 = vadd.f32 %v5701, %v6231
      %v6293 = vadd.f32 %v5702, %v6234
      %v6294 = vadd.f32 %v5703, %v6236
      %v6295 = vadd.f32 %v5704, %v6239
      %v6296 = vadd.f32 %v5705, %v6241
      %v6297 = vadd.f32 %v5706, %v6244
      %v6298 = vadd.f32 %v5707, %v6246
      %v6299 = vadd.f32 %v5708, %v6249
      %v6300 = vadd.f32 %v5709, %v6251
      %v6301 = vadd.f32 %v5710, %v6254
      %v6302 = vadd.f32 %v5711, %v6256
      %v6303 = vadd.f32 %v5712, %v6259
      %v6304 = vadd.f32 %v5713, %v6261
      %6305 = vst [vmem:[#allocation3] sm:$0xff] %v6263
      %6306 = vst [vmem:[#allocation3 + $0x8] sm:$0xff] %v6264
      %6307 = vst [vmem:[#allocation3 + $0x10] sm:$0xff] %v6265
      %6308 = vst [vmem:[#allocation3 + $0x18] sm:$0xff] %v6266
      %6309 = vst [vmem:[#allocation3 + $0x20] sm:$0xff] %v6267
      %6310 = vst [vmem:[#allocation3 + $0x28] sm:$0xff] %v6268
      %6311 = vst [vmem:[#allocation3 + $0x30] sm:$0xff] %v6269
      %6312 = vst [vmem:[#allocation3 + $0x38] sm:$0xff] %v6270
      %6313 = vst [vmem:[#allocation3 + $0x40] sm:$0xff] %v6271
      %6314 = vst [vmem:[#allocation3 + $0x48] sm:$0xff] %v6272
      %6315 = vst [vmem:[#allocation3 + $0x50] sm:$0xff] %v6273
      %6316 = vst [vmem:[#allocation3 + $0x58] sm:$0xff] %v6274
      %6317 = vst [vmem:[#allocation3 + $0x60] sm:$0xff] %v6275
      %6318 = vst [vmem:[#allocation3 + $0x68] sm:$0xff] %v6276
      %6319 = vst [vmem:[#allocation3 + $0x70] sm:$0xff] %v6277
      %6320 = vst [vmem:[#allocation3 + $0x78] sm:$0xff] %v6278
      %6321 = vst [vmem:[#allocation3 + $0x80] sm:$0xff] %v6279
      %6322 = vst [vmem:[#allocation3 + $0x88] sm:$0xff] %v6280
      %6323 = vst [vmem:[#allocation3 + $0x90] sm:$0xff] %v6281
      %6324 = vst [vmem:[#allocation3 + $0x98] sm:$0xff] %v6282
      %6325 = vst [vmem:[#allocation3 + $0xa0] sm:$0xff] %v6283
      %6326 = vst [vmem:[#allocation3 + $0xa8] sm:$0xff] %v6284
      %6327 = vst [vmem:[#allocation3 + $0xb0] sm:$0xff] %v6285
      %6328 = vst [vmem:[#allocation3 + $0xb8] sm:$0xff] %v6286
      %6329 = vst [vmem:[#allocation3 + $0xc0] sm:$0xff] %v6287
      %6330 = vst [vmem:[#allocation3 + $0xc8] sm:$0xff] %v6288
      %6331 = vst [vmem:[#allocation3 + $0xd0] sm:$0xff] %v6289
      %6332 = vst [vmem:[#allocation3 + $0xd8] sm:$0xff] %v6290
      %6333 = vst [vmem:[#allocation3 + $0xe0] sm:$0xff] %v6291
      %6334 = vst [vmem:[#allocation3 + $0xe8] sm:$0xff] %v6292
      %6335 = vst [vmem:[#allocation3 + $0xf0] sm:$0xff] %v6293
      %6336 = vst [vmem:[#allocation3 + $0xf8] sm:$0xff] %v6294
      %6337 = vst [vmem:[#allocation3 + $0x100] sm:$0xff] %v6295
      %6338 = vst [vmem:[#allocation3 + $0x108] sm:$0xff] %v6296
      %6339 = vst [vmem:[#allocation3 + $0x110] sm:$0xff] %v6297
      %6340 = vst [vmem:[#allocation3 + $0x118] sm:$0xff] %v6298
      %6341 = vst [vmem:[#allocation3 + $0x120] sm:$0xff] %v6299
      %6342 = vst [vmem:[#allocation3 + $0x128] sm:$0xff] %v6300
      %6343 = vst [vmem:[#allocation3 + $0x130] sm:$0xff] %v6301
      %6344 = vst [vmem:[#allocation3 + $0x138] sm:$0xff] %v6302
      %6345 = vst [vmem:[#allocation3 + $0x140] sm:$0xff] %v6303
      %6346 = vst [vmem:[#allocation3 + $0x148] sm:$0xff] %v6304
      %v6347 = vld [vmem:[%s6] sm:$0xff]
      %v6348 = vld [vmem:[%s6 + $0x8] sm:$0xff]
      %v6349 = vld [vmem:[%s6 + $0x10] sm:$0xff]
      %v6350 = vld [vmem:[%s6 + $0x18] sm:$0xff]
      %v6351 = vld [vmem:[%s6 + $0x20] sm:$0xff]
      %v6352 = vld [vmem:[%s6 + $0x28] sm:$0xff]
      %v6353 = vld [vmem:[%s6 + $0x30] sm:$0xff]
      %v6354 = vld [vmem:[%s6 + $0x38] sm:$0xff]
      %v6355 = vld [vmem:[%s6 + $0x40] sm:$0xff]
      %v6356 = vld [vmem:[%s6 + $0x48] sm:$0xff]
      %v6357 = vld [vmem:[%s6 + $0x50] sm:$0xff]
      %v6358 = vld [vmem:[%s6 + $0x58] sm:$0xff]
      %v6359 = vld [vmem:[%s6 + $0x60] sm:$0xff]
      %v6360 = vld [vmem:[%s6 + $0x68] sm:$0xff]
      %v6361 = vld [vmem:[%s6 + $0x70] sm:$0xff]
      %v6362 = vld [vmem:[%s6 + $0x78] sm:$0xff]
      %v6363 = vld [vmem:[%s6 + $0x80] sm:$0xff]
      %v6364 = vld [vmem:[%s6 + $0x88] sm:$0xff]
      %v6365 = vld [vmem:[%s6 + $0x90] sm:$0xff]
      %v6366 = vld [vmem:[%s6 + $0x98] sm:$0xff]
      %v6367 = vld [vmem:[%s6 + $0xa0] sm:$0xff]
      %v6368 = vld [vmem:[%s6 + $0xa8] sm:$0xff]
      %v6369 = vld [vmem:[%s6 + $0xb0] sm:$0xff]
      %v6370 = vld [vmem:[%s6 + $0xb8] sm:$0xff]
      %v6371 = vld [vmem:[%s6 + $0xc0] sm:$0xff]
      %v6372 = vld [vmem:[%s6 + $0xc8] sm:$0xff]
      %v6373 = vld [vmem:[%s6 + $0xd0] sm:$0xff]
      %v6374 = vld [vmem:[%s6 + $0xd8] sm:$0xff]
      %v6375 = vld [vmem:[%s6 + $0xe0] sm:$0xff]
      %v6376 = vld [vmem:[%s6 + $0xe8] sm:$0xff]
      %v6377 = vld [vmem:[%s6 + $0xf0] sm:$0xff]
      %v6378 = vld [vmem:[%s6 + $0xf8] sm:$0xff]
      %v6379 = vld [vmem:[%s6 + $0x100] sm:$0xff]
      %v6380 = vld [vmem:[%s6 + $0x108] sm:$0xff]
      %v6381 = vld [vmem:[%s6 + $0x110] sm:$0xff]
      %v6382 = vld [vmem:[%s6 + $0x118] sm:$0xff]
      %v6383 = vld [vmem:[%s6 + $0x120] sm:$0xff]
      %v6384 = vld [vmem:[%s6 + $0x128] sm:$0xff]
      %v6385 = vld [vmem:[%s6 + $0x130] sm:$0xff]
      %v6386 = vld [vmem:[%s6 + $0x138] sm:$0xff]
      %v6387 = vld [vmem:[%s6 + $0x140] sm:$0xff]
      %v6388 = vld [vmem:[%s6 + $0x148] sm:$0xff]
      %v6389 = vld [vmem:[#allocation3] sm:$0xff]
      %v6390 = vld [vmem:[#allocation3 + $0x8] sm:$0xff]
      %v6391 = vld [vmem:[#allocation3 + $0x10] sm:$0xff]
      %v6392 = vld [vmem:[#allocation3 + $0x18] sm:$0xff]
      %v6393 = vld [vmem:[#allocation3 + $0x20] sm:$0xff]
      %v6394 = vld [vmem:[#allocation3 + $0x28] sm:$0xff]
      %v6395 = vld [vmem:[#allocation3 + $0x30] sm:$0xff]
      %v6396 = vld [vmem:[#allocation3 + $0x38] sm:$0xff]
      %v6397 = vld [vmem:[#allocation3 + $0x40] sm:$0xff]
      %v6398 = vld [vmem:[#allocation3 + $0x48] sm:$0xff]
      %v6399 = vld [vmem:[#allocation3 + $0x50] sm:$0xff]
      %v6400 = vld [vmem:[#allocation3 + $0x58] sm:$0xff]
      %v6401 = vld [vmem:[#allocation3 + $0x60] sm:$0xff]
      %v6402 = vld [vmem:[#allocation3 + $0x68] sm:$0xff]
      %v6403 = vld [vmem:[#allocation3 + $0x70] sm:$0xff]
      %v6404 = vld [vmem:[#allocation3 + $0x78] sm:$0xff]
      %v6405 = vld [vmem:[#allocation3 + $0x80] sm:$0xff]
      %v6406 = vld [vmem:[#allocation3 + $0x88] sm:$0xff]
      %v6407 = vld [vmem:[#allocation3 + $0x90] sm:$0xff]
      %v6408 = vld [vmem:[#allocation3 + $0x98] sm:$0xff]
      %v6409 = vld [vmem:[#allocation3 + $0xa0] sm:$0xff]
      %v6410 = vld [vmem:[#allocation3 + $0xa8] sm:$0xff]
      %v6411 = vld [vmem:[#allocation3 + $0xb0] sm:$0xff]
      %v6412 = vld [vmem:[#allocation3 + $0xb8] sm:$0xff]
      %v6413 = vld [vmem:[#allocation3 + $0xc0] sm:$0xff]
      %v6414 = vld [vmem:[#allocation3 + $0xc8] sm:$0xff]
      %v6415 = vld [vmem:[#allocation3 + $0xd0] sm:$0xff]
      %v6416 = vld [vmem:[#allocation3 + $0xd8] sm:$0xff]
      %v6417 = vld [vmem:[#allocation3 + $0xe0] sm:$0xff]
      %v6418 = vld [vmem:[#allocation3 + $0xe8] sm:$0xff]
      %v6419 = vld [vmem:[#allocation3 + $0xf0] sm:$0xff]
      %v6420 = vld [vmem:[#allocation3 + $0xf8] sm:$0xff]
      %v6421 = vld [vmem:[#allocation3 + $0x100] sm:$0xff]
      %v6422 = vld [vmem:[#allocation3 + $0x108] sm:$0xff]
      %v6423 = vld [vmem:[#allocation3 + $0x110] sm:$0xff]
      %v6424 = vld [vmem:[#allocation3 + $0x118] sm:$0xff]
      %v6425 = vld [vmem:[#allocation3 + $0x120] sm:$0xff]
      %v6426 = vld [vmem:[#allocation3 + $0x128] sm:$0xff]
      %v6427 = vld [vmem:[#allocation3 + $0x130] sm:$0xff]
      %v6428 = vld [vmem:[#allocation3 + $0x138] sm:$0xff]
      %v6429 = vld [vmem:[#allocation3 + $0x140] sm:$0xff]
      %v6430 = vld [vmem:[#allocation3 + $0x148] sm:$0xff]
      %6432 = vset.pattern.permute.xlu0 0
      %6433 = vperm.xlu0 %6432, %v6347
      %v6434 = vpop.permute.xlu0 %6433
      %6437 = vset.pattern.permute.xlu0 0
      %6438 = vperm.xlu0 %6437, %v6348
      %v6439 = vpop.permute.xlu0 %6438
      %6442 = vset.pattern.permute.xlu0 0
      %6443 = vperm.xlu0 %6442, %v6349
      %v6444 = vpop.permute.xlu0 %6443
      %6447 = vset.pattern.permute.xlu0 0
      %6448 = vperm.xlu0 %6447, %v6350
      %v6449 = vpop.permute.xlu0 %6448
      %6452 = vset.pattern.permute.xlu0 0
      %6453 = vperm.xlu0 %6452, %v6351
      %v6454 = vpop.permute.xlu0 %6453
      %6457 = vset.pattern.permute.xlu0 0
      %6458 = vperm.xlu0 %6457, %v6352
      %v6459 = vpop.permute.xlu0 %6458
      %6462 = vset.pattern.permute.xlu0 0
      %6463 = vperm.xlu0 %6462, %v6353
      %v6464 = vpop.permute.xlu0 %6463
      %6467 = vset.pattern.permute.xlu0 0
      %6468 = vperm.xlu0 %6467, %v6354
      %v6469 = vpop.permute.xlu0 %6468
      %6472 = vset.pattern.permute.xlu0 0
      %6473 = vperm.xlu0 %6472, %v6355
      %v6474 = vpop.permute.xlu0 %6473
      %6477 = vset.pattern.permute.xlu0 0
      %6478 = vperm.xlu0 %6477, %v6356
      %v6479 = vpop.permute.xlu0 %6478
      %6482 = vset.pattern.permute.xlu0 0
      %6483 = vperm.xlu0 %6482, %v6357
      %v6484 = vpop.permute.xlu0 %6483
      %6487 = vset.pattern.permute.xlu0 0
      %6488 = vperm.xlu0 %6487, %v6358
      %v6489 = vpop.permute.xlu0 %6488
      %6492 = vset.pattern.permute.xlu0 0
      %6493 = vperm.xlu0 %6492, %v6359
      %v6494 = vpop.permute.xlu0 %6493
      %6497 = vset.pattern.permute.xlu0 0
      %6498 = vperm.xlu0 %6497, %v6360
      %v6499 = vpop.permute.xlu0 %6498
      %6502 = vset.pattern.permute.xlu0 0
      %6503 = vperm.xlu0 %6502, %v6361
      %v6504 = vpop.permute.xlu0 %6503
      %6507 = vset.pattern.permute.xlu0 0
      %6508 = vperm.xlu0 %6507, %v6362
      %v6509 = vpop.permute.xlu0 %6508
      %6512 = vset.pattern.permute.xlu0 0
      %6513 = vperm.xlu0 %6512, %v6363
      %v6514 = vpop.permute.xlu0 %6513
      %6517 = vset.pattern.permute.xlu0 0
      %6518 = vperm.xlu0 %6517, %v6364
      %v6519 = vpop.permute.xlu0 %6518
      %6522 = vset.pattern.permute.xlu0 0
      %6523 = vperm.xlu0 %6522, %v6365
      %v6524 = vpop.permute.xlu0 %6523
      %6527 = vset.pattern.permute.xlu0 0
      %6528 = vperm.xlu0 %6527, %v6366
      %v6529 = vpop.permute.xlu0 %6528
      %6532 = vset.pattern.permute.xlu0 0
      %6533 = vperm.xlu0 %6532, %v6367
      %v6534 = vpop.permute.xlu0 %6533
      %6537 = vset.pattern.permute.xlu0 0
      %6538 = vperm.xlu0 %6537, %v6368
      %v6539 = vpop.permute.xlu0 %6538
      %6542 = vset.pattern.permute.xlu0 0
      %6543 = vperm.xlu0 %6542, %v6369
      %v6544 = vpop.permute.xlu0 %6543
      %6547 = vset.pattern.permute.xlu0 0
      %6548 = vperm.xlu0 %6547, %v6370
      %v6549 = vpop.permute.xlu0 %6548
      %6552 = vset.pattern.permute.xlu0 0
      %6553 = vperm.xlu0 %6552, %v6371
      %v6554 = vpop.permute.xlu0 %6553
      %6557 = vset.pattern.permute.xlu0 0
      %6558 = vperm.xlu0 %6557, %v6372
      %v6559 = vpop.permute.xlu0 %6558
      %6562 = vset.pattern.permute.xlu0 0
      %6563 = vperm.xlu0 %6562, %v6373
      %v6564 = vpop.permute.xlu0 %6563
      %6567 = vset.pattern.permute.xlu0 0
      %6568 = vperm.xlu0 %6567, %v6374
      %v6569 = vpop.permute.xlu0 %6568
      %6572 = vset.pattern.permute.xlu0 0
      %6573 = vperm.xlu0 %6572, %v6375
      %v6574 = vpop.permute.xlu0 %6573
      %6577 = vset.pattern.permute.xlu0 0
      %6578 = vperm.xlu0 %6577, %v6376
      %v6579 = vpop.permute.xlu0 %6578
      %6582 = vset.pattern.permute.xlu0 0
      %6583 = vperm.xlu0 %6582, %v6377
      %v6584 = vpop.permute.xlu0 %6583
      %6587 = vset.pattern.permute.xlu0 0
      %6588 = vperm.xlu0 %6587, %v6378
      %v6589 = vpop.permute.xlu0 %6588
      %6592 = vset.pattern.permute.xlu0 0
      %6593 = vperm.xlu0 %6592, %v6379
      %v6594 = vpop.permute.xlu0 %6593
      %6597 = vset.pattern.permute.xlu0 0
      %6598 = vperm.xlu0 %6597, %v6380
      %v6599 = vpop.permute.xlu0 %6598
      %6602 = vset.pattern.permute.xlu0 0
      %6603 = vperm.xlu0 %6602, %v6381
      %v6604 = vpop.permute.xlu0 %6603
      %6607 = vset.pattern.permute.xlu0 0
      %6608 = vperm.xlu0 %6607, %v6382
      %v6609 = vpop.permute.xlu0 %6608
      %6612 = vset.pattern.permute.xlu0 0
      %6613 = vperm.xlu0 %6612, %v6383
      %v6614 = vpop.permute.xlu0 %6613
      %6617 = vset.pattern.permute.xlu0 0
      %6618 = vperm.xlu0 %6617, %v6384
      %v6619 = vpop.permute.xlu0 %6618
      %6622 = vset.pattern.permute.xlu0 0
      %6623 = vperm.xlu0 %6622, %v6385
      %v6624 = vpop.permute.xlu0 %6623
      %6627 = vset.pattern.permute.xlu0 0
      %6628 = vperm.xlu0 %6627, %v6386
      %v6629 = vpop.permute.xlu0 %6628
      %6632 = vset.pattern.permute.xlu0 0
      %6633 = vperm.xlu0 %6632, %v6387
      %v6634 = vpop.permute.xlu0 %6633
      %6637 = vset.pattern.permute.xlu0 0
      %6638 = vperm.xlu0 %6637, %v6388
      %v6639 = vpop.permute.xlu0 %6638
      %v6641 = vmul.f32 %v6389, %v6434
      %v6642 = vmul.f32 %v6390, %v6439
      %v6643 = vmul.f32 %v6391, %v6444
      %v6644 = vmul.f32 %v6392, %v6449
      %v6645 = vmul.f32 %v6393, %v6454
      %v6646 = vmul.f32 %v6394, %v6459
      %v6647 = vmul.f32 %v6395, %v6464
      %v6648 = vmul.f32 %v6396, %v6469
      %v6649 = vmul.f32 %v6397, %v6474
      %v6650 = vmul.f32 %v6398, %v6479
      %v6651 = vmul.f32 %v6399, %v6484
      %v6652 = vmul.f32 %v6400, %v6489
      %v6653 = vmul.f32 %v6401, %v6494
      %v6654 = vmul.f32 %v6402, %v6499
      %v6655 = vmul.f32 %v6403, %v6504
      %v6656 = vmul.f32 %v6404, %v6509
      %v6657 = vmul.f32 %v6405, %v6514
      %v6658 = vmul.f32 %v6406, %v6519
      %v6659 = vmul.f32 %v6407, %v6524
      %v6660 = vmul.f32 %v6408, %v6529
      %v6661 = vmul.f32 %v6409, %v6534
      %v6662 = vmul.f32 %v6410, %v6539
      %v6663 = vmul.f32 %v6411, %v6544
      %v6664 = vmul.f32 %v6412, %v6549
      %v6665 = vmul.f32 %v6413, %v6554
      %v6666 = vmul.f32 %v6414, %v6559
      %v6667 = vmul.f32 %v6415, %v6564
      %v6668 = vmul.f32 %v6416, %v6569
      %v6669 = vmul.f32 %v6417, %v6574
      %v6670 = vmul.f32 %v6418, %v6579
      %v6671 = vmul.f32 %v6419, %v6584
      %v6672 = vmul.f32 %v6420, %v6589
      %v6673 = vmul.f32 %v6421, %v6594
      %v6674 = vmul.f32 %v6422, %v6599
      %v6675 = vmul.f32 %v6423, %v6604
      %v6676 = vmul.f32 %v6424, %v6609
      %v6677 = vmul.f32 %v6425, %v6614
      %v6678 = vmul.f32 %v6426, %v6619
      %v6679 = vmul.f32 %v6427, %v6624
      %v6680 = vmul.f32 %v6428, %v6629
      %v6681 = vmul.f32 %v6429, %v6634
      %v6682 = vmul.f32 %v6430, %v6639
      %v6683 = vpack.c.bf16 %v6641, %v6641
      %v6684 = vpack.c.bf16 %v6642, %v6642
      %v6685 = vpack.c.bf16 %v6643, %v6643
      %v6686 = vpack.c.bf16 %v6644, %v6644
      %v6687 = vpack.c.bf16 %v6645, %v6645
      %v6688 = vpack.c.bf16 %v6646, %v6646
      %v6689 = vpack.c.bf16 %v6647, %v6647
      %v6690 = vpack.c.bf16 %v6648, %v6648
      %v6691 = vpack.c.bf16 %v6649, %v6649
      %v6692 = vpack.c.bf16 %v6650, %v6650
      %v6693 = vpack.c.bf16 %v6651, %v6651
      %v6694 = vpack.c.bf16 %v6652, %v6652
      %v6695 = vpack.c.bf16 %v6653, %v6653
      %v6696 = vpack.c.bf16 %v6654, %v6654
      %v6697 = vpack.c.bf16 %v6655, %v6655
      %v6698 = vpack.c.bf16 %v6656, %v6656
      %v6699 = vpack.c.bf16 %v6657, %v6657
      %v6700 = vpack.c.bf16 %v6658, %v6658
      %v6701 = vpack.c.bf16 %v6659, %v6659
      %v6702 = vpack.c.bf16 %v6660, %v6660
      %v6703 = vpack.c.bf16 %v6661, %v6661
      %v6704 = vpack.c.bf16 %v6662, %v6662
      %v6705 = vpack.c.bf16 %v6663, %v6663
      %v6706 = vpack.c.bf16 %v6664, %v6664
      %v6707 = vpack.c.bf16 %v6665, %v6665
      %v6708 = vpack.c.bf16 %v6666, %v6666
      %v6709 = vpack.c.bf16 %v6667, %v6667
      %v6710 = vpack.c.bf16 %v6668, %v6668
      %v6711 = vpack.c.bf16 %v6669, %v6669
      %v6712 = vpack.c.bf16 %v6670, %v6670
      %v6713 = vpack.c.bf16 %v6671, %v6671
      %v6714 = vpack.c.bf16 %v6672, %v6672
      %v6715 = vpack.c.bf16 %v6673, %v6673
      %v6716 = vpack.c.bf16 %v6674, %v6674
      %v6717 = vpack.c.bf16 %v6675, %v6675
      %v6718 = vpack.c.bf16 %v6676, %v6676
      %v6719 = vpack.c.bf16 %v6677, %v6677
      %v6720 = vpack.c.bf16 %v6678, %v6678
      %v6721 = vpack.c.bf16 %v6679, %v6679
      %v6722 = vpack.c.bf16 %v6680, %v6680
      %v6723 = vpack.c.bf16 %v6681, %v6681
      %v6724 = vpack.c.bf16 %v6682, %v6682
      %6725 = vst [vmem:[%s346] sm:$0xf] %v6683
      %6726 = vst [vmem:[%s346 + $0x4] sm:$0xf] %v6684
      %6727 = vst [vmem:[%s346 + $0x8] sm:$0xf] %v6685
      %6728 = vst [vmem:[%s346 + $0xc] sm:$0xf] %v6686
      %6729 = vst [vmem:[%s346 + $0x10] sm:$0xf] %v6687
      %6730 = vst [vmem:[%s346 + $0x14] sm:$0xf] %v6688
      %6731 = vst [vmem:[%s346 + $0x18] sm:$0xf] %v6689
      %6732 = vst [vmem:[%s346 + $0x1c] sm:$0xf] %v6690
      %6733 = vst [vmem:[%s346 + $0x20] sm:$0xf] %v6691
      %6734 = vst [vmem:[%s346 + $0x24] sm:$0xf] %v6692
      %6735 = vst [vmem:[%s346 + $0x28] sm:$0xf] %v6693
      %6736 = vst [vmem:[%s346 + $0x2c] sm:$0xf] %v6694
      %6737 = vst [vmem:[%s346 + $0x30] sm:$0xf] %v6695
      %6738 = vst [vmem:[%s346 + $0x34] sm:$0xf] %v6696
      %6739 = vst [vmem:[%s346 + $0x38] sm:$0xf] %v6697
      %6740 = vst [vmem:[%s346 + $0x3c] sm:$0xf] %v6698
      %6741 = vst [vmem:[%s346 + $0x40] sm:$0xf] %v6699
      %6742 = vst [vmem:[%s346 + $0x44] sm:$0xf] %v6700
      %6743 = vst [vmem:[%s346 + $0x48] sm:$0xf] %v6701
      %6744 = vst [vmem:[%s346 + $0x4c] sm:$0xf] %v6702
      %6745 = vst [vmem:[%s346 + $0x50] sm:$0xf] %v6703
      %6746 = vst [vmem:[%s346 + $0x54] sm:$0xf] %v6704
      %6747 = vst [vmem:[%s346 + $0x58] sm:$0xf] %v6705
      %6748 = vst [vmem:[%s346 + $0x5c] sm:$0xf] %v6706
      %6749 = vst [vmem:[%s346 + $0x60] sm:$0xf] %v6707
      %6750 = vst [vmem:[%s346 + $0x64] sm:$0xf] %v6708
      %6751 = vst [vmem:[%s346 + $0x68] sm:$0xf] %v6709
      %6752 = vst [vmem:[%s346 + $0x6c] sm:$0xf] %v6710
      %6753 = vst [vmem:[%s346 + $0x70] sm:$0xf] %v6711
      %6754 = vst [vmem:[%s346 + $0x74] sm:$0xf] %v6712
      %6755 = vst [vmem:[%s346 + $0x78] sm:$0xf] %v6713
      %6756 = vst [vmem:[%s346 + $0x7c] sm:$0xf] %v6714
      %6757 = vst [vmem:[%s346 + $0x80] sm:$0xf] %v6715
      %6758 = vst [vmem:[%s346 + $0x84] sm:$0xf] %v6716
      %6759 = vst [vmem:[%s346 + $0x88] sm:$0xf] %v6717
      %6760 = vst [vmem:[%s346 + $0x8c] sm:$0xf] %v6718
      %6761 = vst [vmem:[%s346 + $0x90] sm:$0xf] %v6719
      %6762 = vst [vmem:[%s346 + $0x94] sm:$0xf] %v6720
      %6763 = vst [vmem:[%s346 + $0x98] sm:$0xf] %v6721
      %6764 = vst [vmem:[%s346 + $0x9c] sm:$0xf] %v6722
      %6765 = vst [vmem:[%s346 + $0xa0] sm:$0xf] %v6723
      %6766 = vst [vmem:[%s346 + $0xa4] sm:$0xf] %v6724
      %v6767 = vadd.f32 %v6641, %v6642
      %v6768 = vadd.f32 %v6767, %v6643
      %v6769 = vadd.f32 %v6768, %v6644
      %v6770 = vadd.f32 %v6769, %v6645
      %v6771 = vadd.f32 %v6770, %v6646
      %v6772 = vadd.f32 %v6771, %v6647
      %v6773 = vadd.f32 %v6772, %v6648
      %v6774 = vadd.f32 %v6773, %v6649
      %v6775 = vadd.f32 %v6774, %v6650
      %v6776 = vadd.f32 %v6775, %v6651
      %v6777 = vadd.f32 %v6776, %v6652
      %v6778 = vadd.f32 %v6777, %v6653
      %v6779 = vadd.f32 %v6778, %v6654
      %v6780 = vadd.f32 %v6779, %v6655
      %v6781 = vadd.f32 %v6780, %v6656
      %v6782 = vadd.f32 %v6781, %v6657
      %v6783 = vadd.f32 %v6782, %v6658
      %v6784 = vadd.f32 %v6783, %v6659
      %v6785 = vadd.f32 %v6784, %v6660
      %v6786 = vadd.f32 %v6785, %v6661
      %v6787 = vadd.f32 %v6786, %v6662
      %v6788 = vadd.f32 %v6787, %v6663
      %v6789 = vadd.f32 %v6788, %v6664
      %v6790 = vadd.f32 %v6789, %v6665
      %v6791 = vadd.f32 %v6790, %v6666
      %v6792 = vadd.f32 %v6791, %v6667
      %v6793 = vadd.f32 %v6792, %v6668
      %v6794 = vadd.f32 %v6793, %v6669
      %v6795 = vadd.f32 %v6794, %v6670
      %v6796 = vadd.f32 %v6795, %v6671
      %v6797 = vadd.f32 %v6796, %v6672
      %v6798 = vadd.f32 %v6797, %v6673
      %v6799 = vadd.f32 %v6798, %v6674
      %v6800 = vadd.f32 %v6799, %v6675
      %v6801 = vadd.f32 %v6800, %v6676
      %v6802 = vadd.f32 %v6801, %v6677
      %v6803 = vadd.f32 %v6802, %v6678
      %v6804 = vadd.f32 %v6803, %v6679
      %v6805 = vadd.f32 %v6804, %v6680
      %v6806 = vadd.f32 %v6805, %v6681
      %v6807 = vadd.f32 %v6806, %v6682
      %v6808 = vrot.slane %v6807, 4
      %v6809 = vadd.f32 %v6807, %v6808
      %v6810 = vrot.slane %v6809, 2
      %v6811 = vadd.f32 %v6809, %v6810
      %v6812 = vrot.slane %v6811, 1
      %v6813 = vadd.f32 %v6811, %v6812
      %6814 = vst [vmem:[%s350] sm:$0x1] %v6813
      %v6815 = vmul.f32 %v6641, %v6641
      %v6816 = vmul.f32 %v6642, %v6642
      %v6817 = vmul.f32 %v6643, %v6643
      %v6818 = vmul.f32 %v6644, %v6644
      %v6819 = vmul.f32 %v6645, %v6645
      %v6820 = vmul.f32 %v6646, %v6646
      %v6821 = vmul.f32 %v6647, %v6647
      %v6822 = vmul.f32 %v6648, %v6648
      %v6823 = vmul.f32 %v6649, %v6649
      %v6824 = vmul.f32 %v6650, %v6650
      %v6825 = vmul.f32 %v6651, %v6651
      %v6826 = vmul.f32 %v6652, %v6652
      %v6827 = vmul.f32 %v6653, %v6653
      %v6828 = vmul.f32 %v6654, %v6654
      %v6829 = vmul.f32 %v6655, %v6655
      %v6830 = vmul.f32 %v6656, %v6656
      %v6831 = vmul.f32 %v6657, %v6657
      %v6832 = vmul.f32 %v6658, %v6658
      %v6833 = vmul.f32 %v6659, %v6659
      %v6834 = vmul.f32 %v6660, %v6660
      %v6835 = vmul.f32 %v6661, %v6661
      %v6836 = vmul.f32 %v6662, %v6662
      %v6837 = vmul.f32 %v6663, %v6663
      %v6838 = vmul.f32 %v6664, %v6664
      %v6839 = vmul.f32 %v6665, %v6665
      %v6840 = vmul.f32 %v6666, %v6666
      %v6841 = vmul.f32 %v6667, %v6667
      %v6842 = vmul.f32 %v6668, %v6668
      %v6843 = vmul.f32 %v6669, %v6669
      %v6844 = vmul.f32 %v6670, %v6670
      %v6845 = vmul.f32 %v6671, %v6671
      %v6846 = vmul.f32 %v6672, %v6672
      %v6847 = vmul.f32 %v6673, %v6673
      %v6848 = vmul.f32 %v6674, %v6674
      %v6849 = vmul.f32 %v6675, %v6675
      %v6850 = vmul.f32 %v6676, %v6676
      %v6851 = vmul.f32 %v6677, %v6677
      %v6852 = vmul.f32 %v6678, %v6678
      %v6853 = vmul.f32 %v6679, %v6679
      %v6854 = vmul.f32 %v6680, %v6680
      %v6855 = vmul.f32 %v6681, %v6681
      %v6856 = vmul.f32 %v6682, %v6682
      %v6857 = vadd.f32 %v6815, %v6816
      %v6858 = vadd.f32 %v6857, %v6817
      %v6859 = vadd.f32 %v6858, %v6818
      %v6860 = vadd.f32 %v6859, %v6819
      %v6861 = vadd.f32 %v6860, %v6820
      %v6862 = vadd.f32 %v6861, %v6821
      %v6863 = vadd.f32 %v6862, %v6822
      %v6864 = vadd.f32 %v6863, %v6823
      %v6865 = vadd.f32 %v6864, %v6824
      %v6866 = vadd.f32 %v6865, %v6825
      %v6867 = vadd.f32 %v6866, %v6826
      %v6868 = vadd.f32 %v6867, %v6827
      %v6869 = vadd.f32 %v6868, %v6828
      %v6870 = vadd.f32 %v6869, %v6829
      %v6871 = vadd.f32 %v6870, %v6830
      %v6872 = vadd.f32 %v6871, %v6831
      %v6873 = vadd.f32 %v6872, %v6832
      %v6874 = vadd.f32 %v6873, %v6833
      %v6875 = vadd.f32 %v6874, %v6834
      %v6876 = vadd.f32 %v6875, %v6835
      %v6877 = vadd.f32 %v6876, %v6836
      %v6878 = vadd.f32 %v6877, %v6837
      %v6879 = vadd.f32 %v6878, %v6838
      %v6880 = vadd.f32 %v6879, %v6839
      %v6881 = vadd.f32 %v6880, %v6840
      %v6882 = vadd.f32 %v6881, %v6841
      %v6883 = vadd.f32 %v6882, %v6842
      %v6884 = vadd.f32 %v6883, %v6843
      %v6885 = vadd.f32 %v6884, %v6844
      %v6886 = vadd.f32 %v6885, %v6845
      %v6887 = vadd.f32 %v6886, %v6846
      %v6888 = vadd.f32 %v6887, %v6847
      %v6889 = vadd.f32 %v6888, %v6848
      %v6890 = vadd.f32 %v6889, %v6849
      %v6891 = vadd.f32 %v6890, %v6850
      %v6892 = vadd.f32 %v6891, %v6851
      %v6893 = vadd.f32 %v6892, %v6852
      %v6894 = vadd.f32 %v6893, %v6853
      %v6895 = vadd.f32 %v6894, %v6854
      %v6896 = vadd.f32 %v6895, %v6855
      %v6897 = vadd.f32 %v6896, %v6856
      %v6898 = vrot.slane %v6897, 4
      %v6899 = vadd.f32 %v6897, %v6898
      %v6900 = vrot.slane %v6899, 2
      %v6901 = vadd.f32 %v6899, %v6900
      %v6902 = vrot.slane %v6901, 1
      %v6903 = vadd.f32 %v6901, %v6902
      %6904 = vst [vmem:[%s350 + $0x1] sm:$0x1] %v6903
      %v6905 = vld [vmem:[#allocation2 + $0x10] sm:$0xf]
      %v6906 = vld [vmem:[#allocation2 + $0x14] sm:$0xf]
      %v6907 = vld [vmem:[#allocation2 + $0x18] sm:$0xf]
      %v6908 = vld [vmem:[#allocation2 + $0x1c] sm:$0xf]
      %v6909 = vld [vmem:[#allocation2 + $0x20] sm:$0xf]
      %v6910 = vld [vmem:[#allocation2 + $0x24] sm:$0xf]
      %v6911 = vld [vmem:[#allocation2 + $0x28] sm:$0xf]
      %v6912 = vld [vmem:[#allocation2 + $0x2c] sm:$0xf]
      %v6913 = vld [vmem:[#allocation2 + $0x30] sm:$0xf]
      %v6914 = vld [vmem:[#allocation2 + $0x34] sm:$0xf]
      %v6915 = vld [vmem:[#allocation2 + $0x38] sm:$0xf]
      %v6916 = vld [vmem:[#allocation2 + $0x3c] sm:$0xf]
      %v6917 = vld [vmem:[#allocation2 + $0x40] sm:$0xf]
      %v6918 = vld [vmem:[#allocation2 + $0x44] sm:$0xf]
      %v6919 = vld [vmem:[#allocation2 + $0x48] sm:$0xf]
      %v6920 = vld [vmem:[#allocation2 + $0x4c] sm:$0xf]
      %v6921 = vld [vmem:[#allocation2 + $0x50] sm:$0xf]
      %v6922 = vld [vmem:[#allocation2 + $0x54] sm:$0xf]
      %v6923 = vld [vmem:[#allocation2 + $0x58] sm:$0xf]
      %v6924 = vld [vmem:[#allocation2 + $0x5c] sm:$0xf]
      %v6925 = vld [vmem:[#allocation2 + $0x60] sm:$0xf]
      %v6926 = vld [vmem:[#allocation2 + $0x64] sm:$0xf]
      %v6927 = vld [vmem:[#allocation2 + $0x68] sm:$0xf]
      %v6928 = vld [vmem:[#allocation2 + $0x6c] sm:$0xf]
      %v6929 = vld [vmem:[#allocation2 + $0x70] sm:$0xf]
      %v6930 = vld [vmem:[#allocation2 + $0x74] sm:$0xf]
      %v6931 = vld [vmem:[#allocation2 + $0x78] sm:$0xf]
      %v6932 = vld [vmem:[#allocation2 + $0x7c] sm:$0xf]
      %v6933 = vld [vmem:[#allocation2 + $0x80] sm:$0xf]
      %v6934 = vld [vmem:[#allocation2 + $0x84] sm:$0xf]
      %v6935 = vld [vmem:[#allocation2 + $0x88] sm:$0xf]
      %v6936 = vld [vmem:[#allocation2 + $0x8c] sm:$0xf]
      %v6937 = vld [vmem:[#allocation2 + $0x90] sm:$0xf]
      %v6938 = vld [vmem:[#allocation2 + $0x94] sm:$0xf]
      %v6939 = vld [vmem:[#allocation2 + $0x98] sm:$0xf]
      %v6940 = vld [vmem:[#allocation2 + $0x9c] sm:$0xf]
      %v6941 = vld [vmem:[#allocation2 + $0xa0] sm:$0xf]
      %v6942 = vld [vmem:[#allocation2 + $0xa4] sm:$0xf]
      %v6943 = vld [vmem:[#allocation2 + $0xa8] sm:$0xf]
      %v6944 = vld [vmem:[#allocation2 + $0xac] sm:$0xf]
      %v6945 = vld [vmem:[#allocation2 + $0xb0] sm:$0xf]
      %v6946 = vld [vmem:[#allocation2 + $0xb4] sm:$0xf]
      %v6947 = vld [vmem:[%s4] sm:$0xf]
      %v6948 = vld [vmem:[%s4 + $0x4] sm:$0xf]
      %v6949 = vld [vmem:[%s4 + $0x8] sm:$0xf]
      %v6950 = vld [vmem:[%s4 + $0xc] sm:$0xf]
      %v6951 = vld [vmem:[%s4 + $0x10] sm:$0xf]
      %v6952 = vld [vmem:[%s4 + $0x14] sm:$0xf]
      %v6953 = vld [vmem:[%s4 + $0x18] sm:$0xf]
      %v6954 = vld [vmem:[%s4 + $0x1c] sm:$0xf]
      %v6955 = vld [vmem:[%s4 + $0x20] sm:$0xf]
      %v6956 = vld [vmem:[%s4 + $0x24] sm:$0xf]
      %v6957 = vld [vmem:[%s4 + $0x28] sm:$0xf]
      %v6958 = vld [vmem:[%s4 + $0x2c] sm:$0xf]
      %v6959 = vld [vmem:[%s4 + $0x30] sm:$0xf]
      %v6960 = vld [vmem:[%s4 + $0x34] sm:$0xf]
      %v6961 = vld [vmem:[%s4 + $0x38] sm:$0xf]
      %v6962 = vld [vmem:[%s4 + $0x3c] sm:$0xf]
      %v7005 = vunpack.c.l.b16 %v6905
      %v7006 = vunpack.c.l.b16 %v6906
      %v7007 = vunpack.c.l.b16 %v6907
      %v7008 = vunpack.c.l.b16 %v6908
      %v7009 = vunpack.c.l.b16 %v6909
      %v7010 = vunpack.c.l.b16 %v6910
      %v7011 = vunpack.c.l.b16 %v6911
      %v7012 = vunpack.c.l.b16 %v6912
      %v7013 = vunpack.c.l.b16 %v6913
      %v7014 = vunpack.c.l.b16 %v6914
      %v7015 = vunpack.c.l.b16 %v6915
      %v7016 = vunpack.c.l.b16 %v6916
      %v7017 = vunpack.c.l.b16 %v6917
      %v7018 = vunpack.c.l.b16 %v6918
      %v7019 = vunpack.c.l.b16 %v6919
      %v7020 = vunpack.c.l.b16 %v6920
      %v7021 = vunpack.c.l.b16 %v6921
      %v7022 = vunpack.c.l.b16 %v6922
      %v7023 = vunpack.c.l.b16 %v6923
      %v7024 = vunpack.c.l.b16 %v6924
      %v7025 = vunpack.c.l.b16 %v6925
      %v7026 = vunpack.c.l.b16 %v6926
      %v7027 = vunpack.c.l.b16 %v6927
      %v7028 = vunpack.c.l.b16 %v6928
      %v7029 = vunpack.c.l.b16 %v6929
      %v7030 = vunpack.c.l.b16 %v6930
      %v7031 = vunpack.c.l.b16 %v6931
      %v7032 = vunpack.c.l.b16 %v6932
      %v7033 = vunpack.c.l.b16 %v6933
      %v7034 = vunpack.c.l.b16 %v6934
      %v7035 = vunpack.c.l.b16 %v6935
      %v7036 = vunpack.c.l.b16 %v6936
      %v7037 = vunpack.c.l.b16 %v6937
      %v7038 = vunpack.c.l.b16 %v6938
      %v7039 = vunpack.c.l.b16 %v6939
      %v7040 = vunpack.c.l.b16 %v6940
      %v7041 = vunpack.c.l.b16 %v6941
      %v7042 = vunpack.c.l.b16 %v6942
      %v7043 = vunpack.c.l.b16 %v6943
      %v7044 = vunpack.c.l.b16 %v6944
      %v7045 = vunpack.c.l.b16 %v6945
      %v7046 = vunpack.c.l.b16 %v6946
      %v7047 = vpack.c.b16 %v7006, %v7005
      %v7048 = vpack.c.b16 %v7008, %v7007
      %v7049 = vpack.c.b16 %v7010, %v7009
      %v7050 = vpack.c.b16 %v7012, %v7011
      %v7051 = vpack.c.b16 %v7014, %v7013
      %v7052 = vpack.c.b16 %v7016, %v7015
      %v7053 = vpack.c.b16 %v7018, %v7017
      %v7054 = vpack.c.b16 %v7020, %v7019
      %v7055 = vpack.c.b16 %v7022, %v7021
      %v7056 = vpack.c.b16 %v7024, %v7023
      %v7057 = vpack.c.b16 %v7026, %v7025
      %v7058 = vpack.c.b16 %v7028, %v7027
      %v7059 = vpack.c.b16 %v7030, %v7029
      %v7060 = vpack.c.b16 %v7032, %v7031
      %v7061 = vpack.c.b16 %v7034, %v7033
      %v7062 = vpack.c.b16 %v7036, %v7035
      %v7063 = vpack.c.b16 %v7038, %v7037
      %v7064 = vpack.c.b16 %v7040, %v7039
      %v7065 = vpack.c.b16 %v7042, %v7041
      %v7066 = vpack.c.b16 %v7044, %v7043
      %v7067 = vpack.c.b16 %v7046, %v7045
      %v7105 = vunpack.c.l.b16 %v6947
      %v7106 = vunpack.c.l.b16 %v6948
      %v7107 = vunpack.c.l.b16 %v6949
      %v7108 = vunpack.c.l.b16 %v6950
      %v7109 = vunpack.c.l.b16 %v6951
      %v7110 = vunpack.c.l.b16 %v6952
      %v7111 = vunpack.c.l.b16 %v6953
      %v7112 = vunpack.c.l.b16 %v6954
      %v7113 = vunpack.c.l.b16 %v6955
      %v7114 = vunpack.c.l.b16 %v6956
      %v7115 = vunpack.c.l.b16 %v6957
      %v7116 = vunpack.c.l.b16 %v6958
      %v7117 = vunpack.c.l.b16 %v6959
      %v7118 = vunpack.c.l.b16 %v6960
      %v7119 = vunpack.c.l.b16 %v6961
      %v7120 = vunpack.c.l.b16 %v6962
      %v7121 = vpack.c.b16 %v7106, %v7105
      %v7122 = vpack.c.b16 %v7108, %v7107
      %v7123 = vpack.c.b16 %v7110, %v7109
      %v7124 = vpack.c.b16 %v7112, %v7111
      %v7125 = vpack.c.b16 %v7114, %v7113
      %v7126 = vpack.c.b16 %v7116, %v7115
      %v7127 = vpack.c.b16 %v7118, %v7117
      %v7128 = vpack.c.b16 %v7120, %v7119
      %7137 = vmatpush.bf16.msra.mxu0 %v7128
      %7138 = vmatpush.bf16.msra.mxu0 %v7127
      %7139 = vmatpush.bf16.msra.mxu0 %v7126
      %7140 = vmatpush.bf16.msra.mxu0 %v7125
      %7141 = vmatpush.bf16.msra.mxu0 %v7124
      %7142 = vmatpush.bf16.msra.mxu0 %v7123
      %7143 = vmatpush.bf16.msra.mxu0 %v7122
      %7144 = vmatpush.bf16.msra.mxu0 %v7121
      %7145 = vmatmul.bf16.gmra.mxu0 %v7047
      %v7146 = vpop.f32.mrf.mxu0
      %v7147 = vadd.f32 0.0, %v7146
      %v7148 = vpop.f32.mrf.mxu0
      %v7149 = vadd.f32 0.0, %v7148
      %7150 = vmatmul.bf16.gmra.mxu0 %v7048
      %v7151 = vpop.f32.mrf.mxu0
      %v7152 = vadd.f32 0.0, %v7151
      %v7153 = vpop.f32.mrf.mxu0
      %v7154 = vadd.f32 0.0, %v7153
      %7155 = vmatmul.bf16.gmra.mxu0 %v7049
      %v7156 = vpop.f32.mrf.mxu0
      %v7157 = vadd.f32 0.0, %v7156
      %v7158 = vpop.f32.mrf.mxu0
      %v7159 = vadd.f32 0.0, %v7158
      %7160 = vmatmul.bf16.gmra.mxu0 %v7050
      %v7161 = vpop.f32.mrf.mxu0
      %v7162 = vadd.f32 0.0, %v7161
      %v7163 = vpop.f32.mrf.mxu0
      %v7164 = vadd.f32 0.0, %v7163
      %7165 = vmatmul.bf16.gmra.mxu0 %v7051
      %v7166 = vpop.f32.mrf.mxu0
      %v7167 = vadd.f32 0.0, %v7166
      %v7168 = vpop.f32.mrf.mxu0
      %v7169 = vadd.f32 0.0, %v7168
      %7170 = vmatmul.bf16.gmra.mxu0 %v7052
      %v7171 = vpop.f32.mrf.mxu0
      %v7172 = vadd.f32 0.0, %v7171
      %v7173 = vpop.f32.mrf.mxu0
      %v7174 = vadd.f32 0.0, %v7173
      %7175 = vmatmul.bf16.gmra.mxu0 %v7053
      %v7176 = vpop.f32.mrf.mxu0
      %v7177 = vadd.f32 0.0, %v7176
      %v7178 = vpop.f32.mrf.mxu0
      %v7179 = vadd.f32 0.0, %v7178
      %7180 = vmatmul.bf16.gmra.mxu0 %v7054
      %v7181 = vpop.f32.mrf.mxu0
      %v7182 = vadd.f32 0.0, %v7181
      %v7183 = vpop.f32.mrf.mxu0
      %v7184 = vadd.f32 0.0, %v7183
      %7185 = vmatmul.bf16.gmra.mxu0 %v7055
      %v7186 = vpop.f32.mrf.mxu0
      %v7187 = vadd.f32 0.0, %v7186
      %v7188 = vpop.f32.mrf.mxu0
      %v7189 = vadd.f32 0.0, %v7188
      %7190 = vmatmul.bf16.gmra.mxu0 %v7056
      %v7191 = vpop.f32.mrf.mxu0
      %v7192 = vadd.f32 0.0, %v7191
      %v7193 = vpop.f32.mrf.mxu0
      %v7194 = vadd.f32 0.0, %v7193
      %7195 = vmatmul.bf16.gmra.mxu0 %v7057
      %v7196 = vpop.f32.mrf.mxu0
      %v7197 = vadd.f32 0.0, %v7196
      %v7198 = vpop.f32.mrf.mxu0
      %v7199 = vadd.f32 0.0, %v7198
      %7200 = vmatmul.bf16.gmra.mxu0 %v7058
      %v7201 = vpop.f32.mrf.mxu0
      %v7202 = vadd.f32 0.0, %v7201
      %v7203 = vpop.f32.mrf.mxu0
      %v7204 = vadd.f32 0.0, %v7203
      %7205 = vmatmul.bf16.gmra.mxu0 %v7059
      %v7206 = vpop.f32.mrf.mxu0
      %v7207 = vadd.f32 0.0, %v7206
      %v7208 = vpop.f32.mrf.mxu0
      %v7209 = vadd.f32 0.0, %v7208
      %7210 = vmatmul.bf16.gmra.mxu0 %v7060
      %v7211 = vpop.f32.mrf.mxu0
      %v7212 = vadd.f32 0.0, %v7211
      %v7213 = vpop.f32.mrf.mxu0
      %v7214 = vadd.f32 0.0, %v7213
      %7215 = vmatmul.bf16.gmra.mxu0 %v7061
      %v7216 = vpop.f32.mrf.mxu0
      %v7217 = vadd.f32 0.0, %v7216
      %v7218 = vpop.f32.mrf.mxu0
      %v7219 = vadd.f32 0.0, %v7218
      %7220 = vmatmul.bf16.gmra.mxu0 %v7062
      %v7221 = vpop.f32.mrf.mxu0
      %v7222 = vadd.f32 0.0, %v7221
      %v7223 = vpop.f32.mrf.mxu0
      %v7224 = vadd.f32 0.0, %v7223
      %7225 = vmatmul.bf16.gmra.mxu0 %v7063
      %v7226 = vpop.f32.mrf.mxu0
      %v7227 = vadd.f32 0.0, %v7226
      %v7228 = vpop.f32.mrf.mxu0
      %v7229 = vadd.f32 0.0, %v7228
      %7230 = vmatmul.bf16.gmra.mxu0 %v7064
      %v7231 = vpop.f32.mrf.mxu0
      %v7232 = vadd.f32 0.0, %v7231
      %v7233 = vpop.f32.mrf.mxu0
      %v7234 = vadd.f32 0.0, %v7233
      %7235 = vmatmul.bf16.gmra.mxu0 %v7065
      %v7236 = vpop.f32.mrf.mxu0
      %v7237 = vadd.f32 0.0, %v7236
      %v7238 = vpop.f32.mrf.mxu0
      %v7239 = vadd.f32 0.0, %v7238
      %7240 = vmatmul.bf16.gmra.mxu0 %v7066
      %v7241 = vpop.f32.mrf.mxu0
      %v7242 = vadd.f32 0.0, %v7241
      %v7243 = vpop.f32.mrf.mxu0
      %v7244 = vadd.f32 0.0, %v7243
      %7245 = vmatmul.bf16.gmra.mxu0 %v7067
      %v7246 = vpop.f32.mrf.mxu0
      %v7247 = vadd.f32 0.0, %v7246
      %v7248 = vpop.f32.mrf.mxu0
      %v7249 = vadd.f32 0.0, %v7248
      %7250 = vdwg.mxu0
      %v7251 = vmul.f32 %v7147, %v6434
      %v7252 = vmul.f32 %v7149, %v6439
      %v7253 = vmul.f32 %v7152, %v6444
      %v7254 = vmul.f32 %v7154, %v6449
      %v7255 = vmul.f32 %v7157, %v6454
      %v7256 = vmul.f32 %v7159, %v6459
      %v7257 = vmul.f32 %v7162, %v6464
      %v7258 = vmul.f32 %v7164, %v6469
      %v7259 = vmul.f32 %v7167, %v6474
      %v7260 = vmul.f32 %v7169, %v6479
      %v7261 = vmul.f32 %v7172, %v6484
      %v7262 = vmul.f32 %v7174, %v6489
      %v7263 = vmul.f32 %v7177, %v6494
      %v7264 = vmul.f32 %v7179, %v6499
      %v7265 = vmul.f32 %v7182, %v6504
      %v7266 = vmul.f32 %v7184, %v6509
      %v7267 = vmul.f32 %v7187, %v6514
      %v7268 = vmul.f32 %v7189, %v6519
      %v7269 = vmul.f32 %v7192, %v6524
      %v7270 = vmul.f32 %v7194, %v6529
      %v7271 = vmul.f32 %v7197, %v6534
      %v7272 = vmul.f32 %v7199, %v6539
      %v7273 = vmul.f32 %v7202, %v6544
      %v7274 = vmul.f32 %v7204, %v6549
      %v7275 = vmul.f32 %v7207, %v6554
      %v7276 = vmul.f32 %v7209, %v6559
      %v7277 = vmul.f32 %v7212, %v6564
      %v7278 = vmul.f32 %v7214, %v6569
      %v7279 = vmul.f32 %v7217, %v6574
      %v7280 = vmul.f32 %v7219, %v6579
      %v7281 = vmul.f32 %v7222, %v6584
      %v7282 = vmul.f32 %v7224, %v6589
      %v7283 = vmul.f32 %v7227, %v6594
      %v7284 = vmul.f32 %v7229, %v6599
      %v7285 = vmul.f32 %v7232, %v6604
      %v7286 = vmul.f32 %v7234, %v6609
      %v7287 = vmul.f32 %v7237, %v6614
      %v7288 = vmul.f32 %v7239, %v6619
      %v7289 = vmul.f32 %v7242, %v6624
      %v7290 = vmul.f32 %v7244, %v6629
      %v7291 = vmul.f32 %v7247, %v6634
      %v7292 = vmul.f32 %v7249, %v6639
      %7293 = vst [vmem:[%s355] sm:$0xff] %v7251
      %7294 = vst [vmem:[%s355 + $0x8] sm:$0xff] %v7252
      %7295 = vst [vmem:[%s355 + $0x10] sm:$0xff] %v7253
      %7296 = vst [vmem:[%s355 + $0x18] sm:$0xff] %v7254
      %7297 = vst [vmem:[%s355 + $0x20] sm:$0xff] %v7255
      %7298 = vst [vmem:[%s355 + $0x28] sm:$0xff] %v7256
      %7299 = vst [vmem:[%s355 + $0x30] sm:$0xff] %v7257
      %7300 = vst [vmem:[%s355 + $0x38] sm:$0xff] %v7258
      %7301 = vst [vmem:[%s355 + $0x40] sm:$0xff] %v7259
      %7302 = vst [vmem:[%s355 + $0x48] sm:$0xff] %v7260
      %7303 = vst [vmem:[%s355 + $0x50] sm:$0xff] %v7261
      %7304 = vst [vmem:[%s355 + $0x58] sm:$0xff] %v7262
      %7305 = vst [vmem:[%s355 + $0x60] sm:$0xff] %v7263
      %7306 = vst [vmem:[%s355 + $0x68] sm:$0xff] %v7264
      %7307 = vst [vmem:[%s355 + $0x70] sm:$0xff] %v7265
      %7308 = vst [vmem:[%s355 + $0x78] sm:$0xff] %v7266
      %7309 = vst [vmem:[%s355 + $0x80] sm:$0xff] %v7267
      %7310 = vst [vmem:[%s355 + $0x88] sm:$0xff] %v7268
      %7311 = vst [vmem:[%s355 + $0x90] sm:$0xff] %v7269
      %7312 = vst [vmem:[%s355 + $0x98] sm:$0xff] %v7270
      %7313 = vst [vmem:[%s355 + $0xa0] sm:$0xff] %v7271
      %7314 = vst [vmem:[%s355 + $0xa8] sm:$0xff] %v7272
      %7315 = vst [vmem:[%s355 + $0xb0] sm:$0xff] %v7273
      %7316 = vst [vmem:[%s355 + $0xb8] sm:$0xff] %v7274
      %7317 = vst [vmem:[%s355 + $0xc0] sm:$0xff] %v7275
      %7318 = vst [vmem:[%s355 + $0xc8] sm:$0xff] %v7276
      %7319 = vst [vmem:[%s355 + $0xd0] sm:$0xff] %v7277
      %7320 = vst [vmem:[%s355 + $0xd8] sm:$0xff] %v7278
      %7321 = vst [vmem:[%s355 + $0xe0] sm:$0xff] %v7279
      %7322 = vst [vmem:[%s355 + $0xe8] sm:$0xff] %v7280
      %7323 = vst [vmem:[%s355 + $0xf0] sm:$0xff] %v7281
      %7324 = vst [vmem:[%s355 + $0xf8] sm:$0xff] %v7282
      %7325 = vst [vmem:[%s355 + $0x100] sm:$0xff] %v7283
      %7326 = vst [vmem:[%s355 + $0x108] sm:$0xff] %v7284
      %7327 = vst [vmem:[%s355 + $0x110] sm:$0xff] %v7285
      %7328 = vst [vmem:[%s355 + $0x118] sm:$0xff] %v7286
      %7329 = vst [vmem:[%s355 + $0x120] sm:$0xff] %v7287
      %7330 = vst [vmem:[%s355 + $0x128] sm:$0xff] %v7288
      %7331 = vst [vmem:[%s355 + $0x130] sm:$0xff] %v7289
      %7332 = vst [vmem:[%s355 + $0x138] sm:$0xff] %v7290
      %7333 = vst [vmem:[%s355 + $0x140] sm:$0xff] %v7291
      %7334 = vst [vmem:[%s355 + $0x148] sm:$0xff] %v7292
      %p7335 = scmp.lt.s32.totalorder %s21, 1
      %s7336 = scalar_select %p7335, %s21, 1
      %s7337 = smul.addr %s7336, 42
      %s7338 = smul.addr %s7337, 4
      %s7339 = scalar_lea.vmem %s7, %s7338
      %p7340 = scmp.lt.s32.totalorder %s21, 1
      %s7341 = scalar_select %p7340, %s21, 1
      %s7342 = smul.addr %s7341, 2
      %s7343 = scalar_lea.vmem %s8, %s7342
      %p7344 = scmp.lt.s32.totalorder %s21, 1
      %s7345 = scalar_select %p7344, %s21, 1
      %s7346 = smul.addr %s7345, 42
      %s7347 = smul.addr %s7346, 8
      %s7348 = scalar_lea.vmem %s9, %s7347
      // Predicated region
      $region49: #{_lambda_.2} parent=47 // pred_check
        %p7349 = pneg %p191
      $region50: #{_lambda_.2} parent=47 // pred_check_branch
        %7351 = sbr.rel (%p7349) target = $region52
      $region51: #{_lambda_.2} parent=47 // pred_region
        _
      $region52: #{_lambda_.2} parent=47 // pred_fallthru
        _
      // Predicated region
      $region53: #{_lambda_.2} parent=47 // pred_check
        %p7352 = pneg %p217
      $region54: #{_lambda_.2} parent=47 // pred_check_branch
        %7354 = sbr.rel (%p7352) target = $region56
      $region55: #{_lambda_.2} parent=47 // pred_region
        _
      $region56: #{_lambda_.2} parent=47 // pred_fallthru
        _
      // Predicated region
      $region57: #{_lambda_.2} parent=47 // pred_check
        %p7355 = pneg %p243
      $region58: #{_lambda_.2} parent=47 // pred_check_branch
        %7357 = sbr.rel (%p7355) target = $region60
      $region59: #{_lambda_.2} parent=47 // pred_region
        _
      $region60: #{_lambda_.2} parent=47 // pred_fallthru
        _
    $region48: #{_lambda_.2} parent=5 // pred_fallthru
      _
    %p7358 = scmp.le.s32.totalorder 2, %s16
    // Predicated region
    $region61: #{_lambda_.2} parent=5 // pred_check
      %p7359 = pneg %p7358
    $region62: #{_lambda_.2} parent=5 // pred_check_branch
      %7361 = sbr.rel (%p7359) target = $region64
    $region63: #{_lambda_.2} parent=5 // pred_region
      %s7362 = ssub.s32 %s16, 2
      // Predicated region
      $region65: #{_lambda_.2} parent=63 // pred_check
        %p7363 = pneg %p197
      $region66: #{_lambda_.2} parent=63 // pred_check_branch
        %7365 = sbr.rel (%p7363) target = $region68
      $region67: #{_lambda_.2} parent=63 // pred_region
        %p7366 = scmp.lt.s32.totalorder %s22, 1
        %s7367 = scalar_select %p7366, %s22, 1
        %s7368 = smul.addr %s7367, 42
        %s7369 = smul.addr %s7368, 4
        %s7370 = scalar_lea.vmem %s7, %s7369
      $region68: #{_lambda_.2} parent=63 // pred_fallthru
        _
      // Predicated region
      $region69: #{_lambda_.2} parent=63 // pred_check
        %p7371 = pneg %p223
      $region70: #{_lambda_.2} parent=63 // pred_check_branch
        %7373 = sbr.rel (%p7371) target = $region72
      $region71: #{_lambda_.2} parent=63 // pred_region
        %p7374 = scmp.lt.s32.totalorder %s22, 1
        %s7375 = scalar_select %p7374, %s22, 1
        %s7376 = smul.addr %s7375, 2
        %s7377 = scalar_lea.vmem %s8, %s7376
      $region72: #{_lambda_.2} parent=63 // pred_fallthru
        _
      // Predicated region
      $region73: #{_lambda_.2} parent=63 // pred_check
        %p7378 = pneg %p249
      $region74: #{_lambda_.2} parent=63 // pred_check_branch
        %7380 = sbr.rel (%p7378) target = $region76
      $region75: #{_lambda_.2} parent=63 // pred_region
        %p7381 = scmp.lt.s32.totalorder %s22, 1
        %s7382 = scalar_select %p7381, %s22, 1
        %s7383 = smul.addr %s7382, 42
        %s7384 = smul.addr %s7383, 8
        %s7385 = scalar_lea.vmem %s9, %s7384
      $region76: #{_lambda_.2} parent=63 // pred_fallthru
        _
    $region64: #{_lambda_.2} parent=5 // pred_fallthru
      _
  $region6: #{_lambda_.2} parent=0 // loop_footer
    %s20 = sadd.s32 1, %s16
  $region7: #{_lambda_.2} parent=0 // loop_footer_branch
    %15 = sbr.rel target = $region3
  $region8: #{_lambda_.2} parent=0 // loop_exit
    _

</llo_original>
